<compile_context>
chip_gen: v6e
topology: v6e:2x2x1
jax: 0.10.0
libtpu: 0.0.40
codegen_flags: <defaults>
</compile_context>

<pallas_src>
import jax
import jax.numpy as jnp
from jax import lax
from jax.experimental import pallas as pl
from jax.experimental.pallas import tpu as pltpu

N_STATE = 4
N_CTRL = 1                      # scalar control (matches the cartpole example)
N_SC = N_STATE + N_CTRL
LANE = 128                      # batch elements packed along the lane axis per grid step


def _unrolled_time_loop(T, body, carry):
    """Fully unroll short horizons (straight-line code); fori_loop otherwise."""
    if T <= 32:
        for step in range(T):
            carry = body(step, carry)
        return carry
    return lax.fori_loop(0, T, body, carry)


def _lqr_kernel(Q_ref, p_ref, F_ref, c_ref, x0_ref,
                x_ref, u_ref, cost_ref, gains_ref):
    """LQR backward Riccati recursion + forward rollout + quadratic cost for one
    block of LANE batch elements (batch packed along the lane axis).

    Q_ref : (T, n_sc, n_sc, NB)  column-major: Q_ref[t, j] = column j of Qbar_t
    p_ref : (T, n_sc, NB)
    F_ref : (n_state, n_sc, NB)  = [A | B], broadcast over lanes
    c_ref : (n_state, NB)        affine dynamics offset, broadcast over lanes
    x0_ref: (n_state, NB)
    """
    T = Q_ref.shape[0]
    nsc = Q_ref.shape[1]
    nb = Q_ref.shape[3]
    nx = x0_ref.shape[0]
    f32 = jnp.float32

    # ---- hoisted, loop-invariant views of the shared system matrices ----
    F_all = F_ref[...]                                   # (nx, nsc, nb), F_all[k, j, :] = F[k, j]
    c_all = c_ref[...]                                   # (nx, nb),      c_all[i, :]    = c1[i]
    Frow = [F_all[k] for k in range(nx)]                 # (nsc, nb): Frow[k][i, :] = F[k, i]
    Fkj = [[F_all[k, j:j + 1, :] for j in range(nsc)]    # (1, nb) lane-broadcast scalar F[k, j]
           for k in range(nx)]
    Fcol = [jnp.concatenate([Fkj[k][j] for k in range(nx)], axis=0)   # (nx, nb): F[:, j]
            for j in range(nsc)]
    c_m = [c_all[m:m + 1, :] for m in range(nx)]         # (1, nb) scalar c1[m]

    def Ft_mul(w):
        """F^T @ w for lane-batched w: (nx, nb) -> (nsc, nb)."""
        acc = Frow[0] * w[0:1, :]
        for k in range(1, nx):
            acc = acc + Frow[k] * w[k:k + 1, :]
        return acc

    # -------- backward Riccati recursion, t = T-1 .. 0 --------
    def bwd(i, carry):
        Vcols, v = carry                                 # tuple of nx (nx, nb); (nx, nb)
        t = T - 1 - i

        # VF columns: VFc[j][i, :] = sum_k V[i, k] * F[k, j]
        VFc = []
        for j in range(nsc):
            acc = Vcols[0] * Fkj[0][j]
            for k in range(1, nx):
                acc = acc + Vcols[k] * Fkj[k][j]
            VFc.append(acc)

        # Qt columns: Qt[:, j] = Qbar[:, j] + F^T (V F)[:, j]
        Qtc = [Q_ref[t, j] + Ft_mul(VFc[j]) for j in range(nsc)]

        # qt = pbar + F^T (v + V c)
        Vc = Vcols[0] * c_m[0]
        for m in range(1, nx):
            Vc = Vc + Vcols[m] * c_m[m]
        qt = p_ref[t] + Ft_mul(v + Vc)

        Qxu = Qtc[nx][:nx, :]                            # (nx, nb)
        Quu = Qtc[nx][nx:nx + 1, :]                      # (1, nb)
        Qux = jnp.concatenate([Qtc[j][nx:nx + 1, :] for j in range(nx)],
                              axis=0)                    # (nx, nb), row j = Qt[nx, j]
        qx = qt[:nx, :]
        qu = qt[nx:nx + 1, :]

        inv_quu = pl.reciprocal(Quu, approx=False)       # one reciprocal, then muls
        Kvec = -(Qux * inv_quu)                          # (nx, nb): Kvec[j, :] = K_t[0, j]
        kk = -(qu * inv_quu)                             # (1, nb)
        KQuu = Kvec * Quu

        # V_t = Qxx + Qxu K + K^T Qux + K^T Quu K    (one column at a time)
        Vn = tuple(
            Qtc[j][:nx, :]
            + Qxu * Kvec[j:j + 1, :]
            + Kvec * Qux[j:j + 1, :]
            + KQuu * Kvec[j:j + 1, :]
            for j in range(nx))
        # v_t = qx + Qxu k + K^T qu + K^T Quu k
        vn = qx + Qxu * kk + Kvec * qu + KQuu * kk

        gains_ref[t] = jnp.concatenate([Kvec, kk], axis=0)   # merged [K_t | k_t]
        return Vn, vn

    V0 = tuple(jnp.zeros((nx, nb), f32) for _ in range(nx))
    v0 = jnp.zeros((nx, nb), f32)
    _unrolled_time_loop(T, bwd, (V0, v0))

    # -------- forward rollout + quadratic cost --------
    x_ref[0] = x0_ref[...]

    def fwd(t, carry):
        x, cost = carry                                  # (nx, nb), (1, nb)
        g = gains_ref[t]                                 # (nsc, nb)
        Kv = g[:nx, :]
        kk = g[nx:nx + 1, :]
        u = jnp.sum(Kv * x, axis=0, keepdims=True) + kk  # (1, nb): K_t x + k_t

        tau = jnp.concatenate([x, u], axis=0)            # (nsc, nb)

        # Qbar_t @ tau via column broadcasts
        Qtau = Q_ref[t, 0] * tau[0:1, :]
        for j in range(1, nsc):
            Qtau = Qtau + Q_ref[t, j] * tau[j:j + 1, :]
        quad = jnp.sum(tau * Qtau, axis=0, keepdims=True)
        lin = jnp.sum(p_ref[t] * tau, axis=0, keepdims=True)
        cost = cost + 0.5 * quad + lin

        # x_{t+1} = F tau + c1
        xn = c_all + Fcol[0] * tau[0:1, :]
        for j in range(1, nsc):
            xn = xn + Fcol[j] * tau[j:j + 1, :]

        u_ref[t] = u
        x_ref[t + 1] = xn
        return xn, cost

    cost0 = jnp.zeros((1, nb), f32)
    _, cost = _unrolled_time_loop(T, fwd, (x0_ref[...], cost0))
    cost_ref[...] = cost


@jax.jit
def _run_lqr(Q, p, F, c1, x_init):
    """Batched LTI LQR solve (lane-packed batch).

    Q (nb, T, n_sc, n_sc), p (nb, T, n_sc), F (n_state, n_sc), c1 (n_state,),
    x_init (nb, n_state)  ->  x (nb, T+1, n_state), u (nb, T, n_ctrl), cost (nb,)
    """
    f32 = jnp.float32
    nb, T, nsc = Q.shape[0], Q.shape[1], Q.shape[2]
    nx = x_init.shape[1]
    n_ctrl = nsc - nx

    nb_pad = max(LANE, ((nb + LANE - 1) // LANE) * LANE)
    pad = nb_pad - nb
    if pad:
        # Pad batch lanes with a well-conditioned dummy problem (Q=I, p=0, x0=0)
        # so padded lanes stay finite (Quu >= 1).
        Q = jnp.concatenate(
            [Q, jnp.broadcast_to(jnp.eye(nsc, dtype=f32), (pad, T, nsc, nsc))], axis=0)
        p = jnp.concatenate([p, jnp.zeros((pad, T, nsc), f32)], axis=0)
        x_init = jnp.concatenate([x_init, jnp.zeros((pad, nx), f32)], axis=0)

    # Lane-packed (batch-last) layouts; Q column-major so Q_t[t, j] is a dense
    # (n_sc, LANE) tile holding column j of Qbar_t.
    Q_t = jnp.transpose(Q, (1, 3, 2, 0))                 # (T, j, i, nb_pad)
    p_t = jnp.transpose(p, (1, 2, 0))                    # (T, nsc, nb_pad)
    x0_t = jnp.transpose(x_init, (1, 0))                 # (nx, nb_pad)
    F_b = jnp.broadcast_to(F[:, :, None], (nx, nsc, LANE)).astype(f32)
    c_b = jnp.broadcast_to(c1[:, None], (nx, LANE)).astype(f32)

    grid = (nb_pad // LANE,)
    out_shape = (
        jax.ShapeDtypeStruct((T + 1, nx, nb_pad), f32),
        jax.ShapeDtypeStruct((T, n_ctrl, nb_pad), f32),
        jax.ShapeDtypeStruct((1, nb_pad), f32),
    )
    in_specs = [
        pl.BlockSpec((T, nsc, nsc, LANE), lambda b: (0, 0, 0, b)),
        pl.BlockSpec((T, nsc, LANE), lambda b: (0, 0, b)),
        pl.BlockSpec((nx, nsc, LANE), lambda b: (0, 0, 0)),
        pl.BlockSpec((nx, LANE), lambda b: (0, 0)),
        pl.BlockSpec((nx, LANE), lambda b: (0, b)),
    ]
    out_specs = (
        pl.BlockSpec((T + 1, nx, LANE), lambda b: (0, 0, b)),
        pl.BlockSpec((T, n_ctrl, LANE), lambda b: (0, 0, b)),
        pl.BlockSpec((1, LANE), lambda b: (0, b)),
    )
    x, u, cost = pl.pallas_call(
        _lqr_kernel,
        out_shape=out_shape,
        grid_spec=pltpu.PrefetchScalarGridSpec(
            num_scalar_prefetch=0,
            grid=grid,
            in_specs=in_specs,
            out_specs=out_specs,
            # merged [K_t | k_t] gain scratch, lane-dense
            scratch_shapes=[pltpu.VMEM((T, nsc, LANE), f32)],
        ),
        compiler_params=pltpu.CompilerParams(
            dimension_semantics=("parallel",),            # batch blocks split across TCs
            vmem_limit_bytes=32 * 1024 * 1024),           # explicit budget (raise for very long T)
    )(Q_t, p_t, F_b, c_b, x0_t)

    # back to batch-major, drop padded lanes
    x = jnp.transpose(x, (2, 0, 1))[:nb]                  # (nb, T+1, nx)
    u = jnp.transpose(u, (2, 0, 1))[:nb]                  # (nb, T, n_ctrl)
    cost = cost[0, :nb]                                   # (nb,)
    return x, u, cost


def mpc_forward(A, B, c1, Q, p, x_init, max_steps=10):
    """MPC.forward for an LTI system with quadratic cost.

    For an LTI system every receding-horizon LQR solve is identical
    (single-iteration convergence, as in the pypose docstring), so the stepper
    loop + best-cost tracking + final re-solve of the reference module reduce to
    exactly one LQR solve -- the redundant host loop (and its device->host syncs)
    is removed.
    """
    del max_steps  # stepper iterations are redundant on the LTI path
    # TODO(synk): u_lower/u_upper/du box constraints and nonlinear-system
    # re-linearization (iLQR) are not implemented (LTI quadratic-cost path only).
    f32 = jnp.float32
    F = jnp.concatenate([A, B], axis=1).astype(f32)       # (n_state, n_sc) = [A | B]
    return _run_lqr(Q.astype(f32), p.astype(f32), F, c1.astype(f32),
                    x_init.astype(f32))


# ----------------------- pure-JAX reference (for validation) -----------------------
def _lqr_ref(A, B, c1, Q, p, x_init):
    nb, T, nsc = p.shape
    nx = A.shape[0]
    F = jnp.concatenate([A, B], axis=1)
    V = jnp.zeros((nb, nx, nx), jnp.float32)
    v = jnp.zeros((nb, nx), jnp.float32)
    Ks, ks = [None] * T, [None] * T
    for t in range(T - 1, -1, -1):
        FtV = jnp.einsum('ij,bjk->bik', F.T, V)
        Qt = Q[:, t] + jnp.einsum('bik,kj->bij', FtV, F)
        qt = (p[:, t] + jnp.einsum('ij,bj->bi', F.T, v)
              + jnp.einsum('bij,j->bi', FtV, c1))
        Qxx, Qxu = Qt[:, :nx, :nx], Qt[:, :nx, nx:]
        Qux, Quu = Qt[:, nx:, :nx], Qt[:, nx:, nx:]
        qx, qu = qt[:, :nx], qt[:, nx:]
        K = -(Qux / Quu)
        kk = -(qu / Quu[..., 0])
        KT = jnp.swapaxes(K, -1, -2)
        V = Qxx + Qxu @ K + KT @ Qux + KT @ Quu @ K
        v = (qx + (Qxu @ kk[..., None])[..., 0]
             + (KT @ qu[..., None])[..., 0]
             + (KT @ Quu @ kk[..., None])[..., 0])
        Ks[t], ks[t] = K, kk
    x = x_init
    xs, us = [x], []
    cost = jnp.zeros((nb,), jnp.float32)
    for t in range(T):
        u = (Ks[t] @ x[..., None])[..., 0] + ks[t]
        tau = jnp.concatenate([x, u], axis=-1)
        cost = (cost + 0.5 * jnp.einsum('bi,bij,bj->b', tau, Q[:, t], tau)
                + jnp.einsum('bi,bi->b', p[:, t], tau))
        x = jnp.einsum('ij,bj->bi', F, tau) + c1
        xs.append(x)
        us.append(u)
    return jnp.stack(xs, axis=1), jnp.stack(us, axis=1), cost


if __name__ == "__main__":
    key = jax.random.PRNGKey(0)
    k1, k2, k3, k4, k5 = jax.random.split(key, 5)

    n_batch, T = 2, 8
    # Deterministic synthetic LTI system (x_{t+1} = A x + B u + c1) and cost.
    A = jnp.eye(N_STATE, dtype=jnp.float32) + 0.01 * jax.random.normal(
        k1, (N_STATE, N_STATE), jnp.float32)
    B = 0.1 * jax.random.normal(k2, (N_STATE, N_CTRL), jnp.float32)
    c1 = 0.01 * jax.random.normal(k3, (N_STATE,), jnp.float32)
    Q = jnp.tile(jnp.eye(N_SC, dtype=jnp.float32), (n_batch, T, 1, 1))
    p = jax.random.normal(k4, (n_batch, T, N_SC), jnp.float32)
    x_init = jax.random.normal(k5, (n_batch, N_STATE), jnp.float32)

    x, u, cost = mpc_forward(A, B, c1, Q, p, x_init)
    jax.block_until_ready((x, u, cost))

    xr, ur, cr = _lqr_ref(A, B, c1, Q, p, x_init)
    assert x.shape == (n_batch, T + 1, N_STATE)
    assert u.shape == (n_batch, T, N_CTRL)
    assert cost.shape == (n_batch,)
    assert jnp.allclose(x, xr, rtol=1e-3, atol=1e-3)
    assert jnp.allclose(u, ur, rtol=1e-3, atol=1e-3)
    assert jnp.allclose(cost, cr, rtol=1e-3, atol=1e-3)

    print("KERNEL_OK")
</pallas_src>

<mosaic_0001>
module attributes {stable_mosaic.version = 11 : i64} {
  func.func @_lqr_kernel(%arg0: i32, %arg1: memref<8x5x5x128xf32, #tpu.memory_space<vmem>>, %arg2: memref<8x5x128xf32, #tpu.memory_space<vmem>>, %arg3: memref<4x5x128xf32, #tpu.memory_space<vmem>>, %arg4: memref<4x128xf32, #tpu.memory_space<vmem>>, %arg5: memref<4x128xf32, #tpu.memory_space<vmem>>, %arg6: memref<9x4x128xf32, #tpu.memory_space<vmem>>, %arg7: memref<8x1x128xf32, #tpu.memory_space<vmem>>, %arg8: memref<1x128xf32, #tpu.memory_space<vmem>>, %arg9: memref<8x5x128xf32, #tpu.memory_space<vmem>>) attributes {dimension_semantics = [#tpu.dimension_semantics<parallel>], iteration_bounds = array<i64: 1>, scalar_prefetch = 0 : i64, scratch_operands = 1 : i64, tpu.core_type = #tpu.core_type<tc>, window_params = [{transform_indices = @transform_0, window_bounds = array<i64: 8, 5, 5, 128>}, {transform_indices = @transform_1, window_bounds = array<i64: 8, 5, 128>}, {pipeline_mode = #tpu.pipeline_mode<synchronous>, transform_indices = @transform_2, window_bounds = array<i64: 4, 5, 128>}, {pipeline_mode = #tpu.pipeline_mode<synchronous>, transform_indices = @transform_3, window_bounds = array<i64: 4, 128>}, {transform_indices = @transform_4, window_bounds = array<i64: 4, 128>}, {transform_indices = @transform_5, window_bounds = array<i64: 9, 4, 128>}, {transform_indices = @transform_6, window_bounds = array<i64: 8, 1, 128>}, {transform_indices = @transform_7, window_bounds = array<i64: 1, 128>}]} {
    %c0 = arith.constant 0 : index
    %c0_0 = arith.constant 0 : index
    %c0_1 = arith.constant 0 : index
    %0 = vector.load %arg3[%c0, %c0_0, %c0_1] : memref<4x5x128xf32, #tpu.memory_space<vmem>>, vector<4x5x128xf32>
    %c0_2 = arith.constant 0 : index
    %c0_3 = arith.constant 0 : index
    %1 = vector.load %arg4[%c0_2, %c0_3] : memref<4x128xf32, #tpu.memory_space<vmem>>, vector<4x128xf32>
    %2 = vector.extract_strided_slice %0 {offsets = [0, 0, 0], sizes = [1, 5, 128], strides = [1, 1, 1]} : vector<4x5x128xf32> to vector<1x5x128xf32>
    %3 = vector.shape_cast %2 : vector<1x5x128xf32> to vector<5x128xf32>
    %4 = vector.extract_strided_slice %0 {offsets = [1, 0, 0], sizes = [1, 5, 128], strides = [1, 1, 1]} : vector<4x5x128xf32> to vector<1x5x128xf32>
    %5 = vector.shape_cast %4 : vector<1x5x128xf32> to vector<5x128xf32>
    %6 = vector.extract_strided_slice %0 {offsets = [2, 0, 0], sizes = [1, 5, 128], strides = [1, 1, 1]} : vector<4x5x128xf32> to vector<1x5x128xf32>
    %7 = vector.shape_cast %6 : vector<1x5x128xf32> to vector<5x128xf32>
    %8 = vector.extract_strided_slice %0 {offsets = [3, 0, 0], sizes = [1, 5, 128], strides = [1, 1, 1]} : vector<4x5x128xf32> to vector<1x5x128xf32>
    %9 = vector.shape_cast %8 : vector<1x5x128xf32> to vector<5x128xf32>
    %10 = vector.extract_strided_slice %0 {offsets = [0, 0, 0], sizes = [1, 1, 128], strides = [1, 1, 1]} : vector<4x5x128xf32> to vector<1x1x128xf32>
    %11 = vector.shape_cast %10 : vector<1x1x128xf32> to vector<1x128xf32>
    %12 = vector.extract_strided_slice %0 {offsets = [0, 1, 0], sizes = [1, 1, 128], strides = [1, 1, 1]} : vector<4x5x128xf32> to vector<1x1x128xf32>
    %13 = vector.shape_cast %12 : vector<1x1x128xf32> to vector<1x128xf32>
    %14 = vector.extract_strided_slice %0 {offsets = [0, 2, 0], sizes = [1, 1, 128], strides = [1, 1, 1]} : vector<4x5x128xf32> to vector<1x1x128xf32>
    %15 = vector.shape_cast %14 : vector<1x1x128xf32> to vector<1x128xf32>
    %16 = vector.extract_strided_slice %0 {offsets = [0, 3, 0], sizes = [1, 1, 128], strides = [1, 1, 1]} : vector<4x5x128xf32> to vector<1x1x128xf32>
    %17 = vector.shape_cast %16 : vector<1x1x128xf32> to vector<1x128xf32>
    %18 = vector.extract_strided_slice %0 {offsets = [0, 4, 0], sizes = [1, 1, 128], strides = [1, 1, 1]} : vector<4x5x128xf32> to vector<1x1x128xf32>
    %19 = vector.shape_cast %18 : vector<1x1x128xf32> to vector<1x128xf32>
    %20 = vector.extract_strided_slice %0 {offsets = [1, 0, 0], sizes = [1, 1, 128], strides = [1, 1, 1]} : vector<4x5x128xf32> to vector<1x1x128xf32>
    %21 = vector.shape_cast %20 : vector<1x1x128xf32> to vector<1x128xf32>
    %22 = vector.extract_strided_slice %0 {offsets = [1, 1, 0], sizes = [1, 1, 128], strides = [1, 1, 1]} : vector<4x5x128xf32> to vector<1x1x128xf32>
    %23 = vector.shape_cast %22 : vector<1x1x128xf32> to vector<1x128xf32>
    %24 = vector.extract_strided_slice %0 {offsets = [1, 2, 0], sizes = [1, 1, 128], strides = [1, 1, 1]} : vector<4x5x128xf32> to vector<1x1x128xf32>
    %25 = vector.shape_cast %24 : vector<1x1x128xf32> to vector<1x128xf32>
    %26 = vector.extract_strided_slice %0 {offsets = [1, 3, 0], sizes = [1, 1, 128], strides = [1, 1, 1]} : vector<4x5x128xf32> to vector<1x1x128xf32>
    %27 = vector.shape_cast %26 : vector<1x1x128xf32> to vector<1x128xf32>
    %28 = vector.extract_strided_slice %0 {offsets = [1, 4, 0], sizes = [1, 1, 128], strides = [1, 1, 1]} : vector<4x5x128xf32> to vector<1x1x128xf32>
    %29 = vector.shape_cast %28 : vector<1x1x128xf32> to vector<1x128xf32>
    %30 = vector.extract_strided_slice %0 {offsets = [2, 0, 0], sizes = [1, 1, 128], strides = [1, 1, 1]} : vector<4x5x128xf32> to vector<1x1x128xf32>
    %31 = vector.shape_cast %30 : vector<1x1x128xf32> to vector<1x128xf32>
    %32 = vector.extract_strided_slice %0 {offsets = [2, 1, 0], sizes = [1, 1, 128], strides = [1, 1, 1]} : vector<4x5x128xf32> to vector<1x1x128xf32>
    %33 = vector.shape_cast %32 : vector<1x1x128xf32> to vector<1x128xf32>
    %34 = vector.extract_strided_slice %0 {offsets = [2, 2, 0], sizes = [1, 1, 128], strides = [1, 1, 1]} : vector<4x5x128xf32> to vector<1x1x128xf32>
    %35 = vector.shape_cast %34 : vector<1x1x128xf32> to vector<1x128xf32>
    %36 = vector.extract_strided_slice %0 {offsets = [2, 3, 0], sizes = [1, 1, 128], strides = [1, 1, 1]} : vector<4x5x128xf32> to vector<1x1x128xf32>
    %37 = vector.shape_cast %36 : vector<1x1x128xf32> to vector<1x128xf32>
    %38 = vector.extract_strided_slice %0 {offsets = [2, 4, 0], sizes = [1, 1, 128], strides = [1, 1, 1]} : vector<4x5x128xf32> to vector<1x1x128xf32>
    %39 = vector.shape_cast %38 : vector<1x1x128xf32> to vector<1x128xf32>
    %40 = vector.extract_strided_slice %0 {offsets = [3, 0, 0], sizes = [1, 1, 128], strides = [1, 1, 1]} : vector<4x5x128xf32> to vector<1x1x128xf32>
    %41 = vector.shape_cast %40 : vector<1x1x128xf32> to vector<1x128xf32>
    %42 = vector.extract_strided_slice %0 {offsets = [3, 1, 0], sizes = [1, 1, 128], strides = [1, 1, 1]} : vector<4x5x128xf32> to vector<1x1x128xf32>
    %43 = vector.shape_cast %42 : vector<1x1x128xf32> to vector<1x128xf32>
    %44 = vector.extract_strided_slice %0 {offsets = [3, 2, 0], sizes = [1, 1, 128], strides = [1, 1, 1]} : vector<4x5x128xf32> to vector<1x1x128xf32>
    %45 = vector.shape_cast %44 : vector<1x1x128xf32> to vector<1x128xf32>
    %46 = vector.extract_strided_slice %0 {offsets = [3, 3, 0], sizes = [1, 1, 128], strides = [1, 1, 1]} : vector<4x5x128xf32> to vector<1x1x128xf32>
    %47 = vector.shape_cast %46 : vector<1x1x128xf32> to vector<1x128xf32>
    %48 = vector.extract_strided_slice %0 {offsets = [3, 4, 0], sizes = [1, 1, 128], strides = [1, 1, 1]} : vector<4x5x128xf32> to vector<1x1x128xf32>
    %49 = vector.shape_cast %48 : vector<1x1x128xf32> to vector<1x128xf32>
    %50 = tpu.concatenate %11, %21, %31, %41 in 0 : vector<1x128xf32>, vector<1x128xf32>, vector<1x128xf32>, vector<1x128xf32> -> vector<4x128xf32>
    %51 = tpu.concatenate %13, %23, %33, %43 in 0 : vector<1x128xf32>, vector<1x128xf32>, vector<1x128xf32>, vector<1x128xf32> -> vector<4x128xf32>
    %52 = tpu.concatenate %15, %25, %35, %45 in 0 : vector<1x128xf32>, vector<1x128xf32>, vector<1x128xf32>, vector<1x128xf32> -> vector<4x128xf32>
    %53 = tpu.concatenate %17, %27, %37, %47 in 0 : vector<1x128xf32>, vector<1x128xf32>, vector<1x128xf32>, vector<1x128xf32> -> vector<4x128xf32>
    %54 = tpu.concatenate %19, %29, %39, %49 in 0 : vector<1x128xf32>, vector<1x128xf32>, vector<1x128xf32>, vector<1x128xf32> -> vector<4x128xf32>
    %55 = vector.extract_strided_slice %1 {offsets = [0, 0], sizes = [1, 128], strides = [1, 1]} : vector<4x128xf32> to vector<1x128xf32>
    %56 = vector.extract_strided_slice %1 {offsets = [1, 0], sizes = [1, 128], strides = [1, 1]} : vector<4x128xf32> to vector<1x128xf32>
    %57 = vector.extract_strided_slice %1 {offsets = [2, 0], sizes = [1, 128], strides = [1, 1]} : vector<4x128xf32> to vector<1x128xf32>
    %58 = vector.extract_strided_slice %1 {offsets = [3, 0], sizes = [1, 128], strides = [1, 1]} : vector<4x128xf32> to vector<1x128xf32>
    %cst = arith.constant 0.000000e+00 : f32
    %59 = vector.broadcast %cst : f32 to vector<4x128xf32>
    %cst_4 = arith.constant 0.000000e+00 : f32
    %60 = vector.broadcast %cst_4 : f32 to vector<4x128xf32>
    %cst_5 = arith.constant 0.000000e+00 : f32
    %61 = vector.broadcast %cst_5 : f32 to vector<4x128xf32>
    %cst_6 = arith.constant 0.000000e+00 : f32
    %62 = vector.broadcast %cst_6 : f32 to vector<4x128xf32>
    %cst_7 = arith.constant 0.000000e+00 : f32
    %63 = vector.broadcast %cst_7 : f32 to vector<4x128xf32>
    %64 = vector.broadcast %11 : vector<1x128xf32> to vector<4x128xf32>
    %65 = arith.mulf %59, %64 : vector<4x128xf32>
    %66 = vector.broadcast %21 : vector<1x128xf32> to vector<4x128xf32>
    %67 = arith.mulf %60, %66 : vector<4x128xf32>
    %68 = arith.addf %65, %67 : vector<4x128xf32>
    %69 = vector.broadcast %31 : vector<1x128xf32> to vector<4x128xf32>
    %70 = arith.mulf %61, %69 : vector<4x128xf32>
    %71 = arith.addf %68, %70 : vector<4x128xf32>
    %72 = vector.broadcast %41 : vector<1x128xf32> to vector<4x128xf32>
    %73 = arith.mulf %62, %72 : vector<4x128xf32>
    %74 = arith.addf %71, %73 : vector<4x128xf32>
    %75 = vector.broadcast %13 : vector<1x128xf32> to vector<4x128xf32>
    %76 = arith.mulf %59, %75 : vector<4x128xf32>
    %77 = vector.broadcast %23 : vector<1x128xf32> to vector<4x128xf32>
    %78 = arith.mulf %60, %77 : vector<4x128xf32>
    %79 = arith.addf %76, %78 : vector<4x128xf32>
    %80 = vector.broadcast %33 : vector<1x128xf32> to vector<4x128xf32>
    %81 = arith.mulf %61, %80 : vector<4x128xf32>
    %82 = arith.addf %79, %81 : vector<4x128xf32>
    %83 = vector.broadcast %43 : vector<1x128xf32> to vector<4x128xf32>
    %84 = arith.mulf %62, %83 : vector<4x128xf32>
    %85 = arith.addf %82, %84 : vector<4x128xf32>
    %86 = vector.broadcast %15 : vector<1x128xf32> to vector<4x128xf32>
    %87 = arith.mulf %59, %86 : vector<4x128xf32>
    %88 = vector.broadcast %25 : vector<1x128xf32> to vector<4x128xf32>
    %89 = arith.mulf %60, %88 : vector<4x128xf32>
    %90 = arith.addf %87, %89 : vector<4x128xf32>
    %91 = vector.broadcast %35 : vector<1x128xf32> to vector<4x128xf32>
    %92 = arith.mulf %61, %91 : vector<4x128xf32>
    %93 = arith.addf %90, %92 : vector<4x128xf32>
    %94 = vector.broadcast %45 : vector<1x128xf32> to vector<4x128xf32>
    %95 = arith.mulf %62, %94 : vector<4x128xf32>
    %96 = arith.addf %93, %95 : vector<4x128xf32>
    %97 = vector.broadcast %17 : vector<1x128xf32> to vector<4x128xf32>
    %98 = arith.mulf %59, %97 : vector<4x128xf32>
    %99 = vector.broadcast %27 : vector<1x128xf32> to vector<4x128xf32>
    %100 = arith.mulf %60, %99 : vector<4x128xf32>
    %101 = arith.addf %98, %100 : vector<4x128xf32>
    %102 = vector.broadcast %37 : vector<1x128xf32> to vector<4x128xf32>
    %103 = arith.mulf %61, %102 : vector<4x128xf32>
    %104 = arith.addf %101, %103 : vector<4x128xf32>
    %105 = vector.broadcast %47 : vector<1x128xf32> to vector<4x128xf32>
    %106 = arith.mulf %62, %105 : vector<4x128xf32>
    %107 = arith.addf %104, %106 : vector<4x128xf32>
    %108 = vector.broadcast %19 : vector<1x128xf32> to vector<4x128xf32>
    %109 = arith.mulf %59, %108 : vector<4x128xf32>
    %110 = vector.broadcast %29 : vector<1x128xf32> to vector<4x128xf32>
    %111 = arith.mulf %60, %110 : vector<4x128xf32>
    %112 = arith.addf %109, %111 : vector<4x128xf32>
    %113 = vector.broadcast %39 : vector<1x128xf32> to vector<4x128xf32>
    %114 = arith.mulf %61, %113 : vector<4x128xf32>
    %115 = arith.addf %112, %114 : vector<4x128xf32>
    %116 = vector.broadcast %49 : vector<1x128xf32> to vector<4x128xf32>
    %117 = arith.mulf %62, %116 : vector<4x128xf32>
    %118 = arith.addf %115, %117 : vector<4x128xf32>
    %c7 = arith.constant 7 : index
    %c0_8 = arith.constant 0 : index
    %c0_9 = arith.constant 0 : index
    %c0_10 = arith.constant 0 : index
    %119 = vector.load %arg1[%c7, %c0_8, %c0_9, %c0_10] : memref<8x5x5x128xf32, #tpu.memory_space<vmem>>, vector<1x1x5x128xf32>
    %120 = vector.shape_cast %119 : vector<1x1x5x128xf32> to vector<5x128xf32>
    %121 = vector.extract_strided_slice %74 {offsets = [0, 0], sizes = [1, 128], strides = [1, 1]} : vector<4x128xf32> to vector<1x128xf32>
    %122 = vector.broadcast %121 : vector<1x128xf32> to vector<5x128xf32>
    %123 = arith.mulf %3, %122 : vector<5x128xf32>
    %124 = vector.extract_strided_slice %74 {offsets = [1, 0], sizes = [1, 128], strides = [1, 1]} : vector<4x128xf32> to vector<1x128xf32>
    %125 = vector.broadcast %124 : vector<1x128xf32> to vector<5x128xf32>
    %126 = arith.mulf %5, %125 : vector<5x128xf32>
    %127 = arith.addf %123, %126 : vector<5x128xf32>
    %128 = vector.extract_strided_slice %74 {offsets = [2, 0], sizes = [1, 128], strides = [1, 1]} : vector<4x128xf32> to vector<1x128xf32>
    %129 = vector.broadcast %128 : vector<1x128xf32> to vector<5x128xf32>
    %130 = arith.mulf %7, %129 : vector<5x128xf32>
    %131 = arith.addf %127, %130 : vector<5x128xf32>
    %132 = vector.extract_strided_slice %74 {offsets = [3, 0], sizes = [1, 128], strides = [1, 1]} : vector<4x128xf32> to vector<1x128xf32>
    %133 = vector.broadcast %132 : vector<1x128xf32> to vector<5x128xf32>
    %134 = arith.mulf %9, %133 : vector<5x128xf32>
    %135 = arith.addf %131, %134 : vector<5x128xf32>
    %136 = arith.addf %120, %135 : vector<5x128xf32>
    %c7_11 = arith.constant 7 : index
    %c1 = arith.constant 1 : index
    %c0_12 = arith.constant 0 : index
    %c0_13 = arith.constant 0 : index
    %137 = vector.load %arg1[%c7_11, %c1, %c0_12, %c0_13] : memref<8x5x5x128xf32, #tpu.memory_space<vmem>>, vector<1x1x5x128xf32>
    %138 = vector.shape_cast %137 : vector<1x1x5x128xf32> to vector<5x128xf32>
    %139 = vector.extract_strided_slice %85 {offsets = [0, 0], sizes = [1, 128], strides = [1, 1]} : vector<4x128xf32> to vector<1x128xf32>
    %140 = vector.broadcast %139 : vector<1x128xf32> to vector<5x128xf32>
    %141 = arith.mulf %3, %140 : vector<5x128xf32>
    %142 = vector.extract_strided_slice %85 {offsets = [1, 0], sizes = [1, 128], strides = [1, 1]} : vector<4x128xf32> to vector<1x128xf32>
    %143 = vector.broadcast %142 : vector<1x128xf32> to vector<5x128xf32>
    %144 = arith.mulf %5, %143 : vector<5x128xf32>
    %145 = arith.addf %141, %144 : vector<5x128xf32>
    %146 = vector.extract_strided_slice %85 {offsets = [2, 0], sizes = [1, 128], strides = [1, 1]} : vector<4x128xf32> to vector<1x128xf32>
    %147 = vector.broadcast %146 : vector<1x128xf32> to vector<5x128xf32>
    %148 = arith.mulf %7, %147 : vector<5x128xf32>
    %149 = arith.addf %145, %148 : vector<5x128xf32>
    %150 = vector.extract_strided_slice %85 {offsets = [3, 0], sizes = [1, 128], strides = [1, 1]} : vector<4x128xf32> to vector<1x128xf32>
    %151 = vector.broadcast %150 : vector<1x128xf32> to vector<5x128xf32>
    %152 = arith.mulf %9, %151 : vector<5x128xf32>
    %153 = arith.addf %149, %152 : vector<5x128xf32>
    %154 = arith.addf %138, %153 : vector<5x128xf32>
    %c7_14 = arith.constant 7 : index
    %c2 = arith.constant 2 : index
    %c0_15 = arith.constant 0 : index
    %c0_16 = arith.constant 0 : index
    %155 = vector.load %arg1[%c7_14, %c2, %c0_15, %c0_16] : memref<8x5x5x128xf32, #tpu.memory_space<vmem>>, vector<1x1x5x128xf32>
    %156 = vector.shape_cast %155 : vector<1x1x5x128xf32> to vector<5x128xf32>
    %157 = vector.extract_strided_slice %96 {offsets = [0, 0], sizes = [1, 128], strides = [1, 1]} : vector<4x128xf32> to vector<1x128xf32>
    %158 = vector.broadcast %157 : vector<1x128xf32> to vector<5x128xf32>
    %159 = arith.mulf %3, %158 : vector<5x128xf32>
    %160 = vector.extract_strided_slice %96 {offsets = [1, 0], sizes = [1, 128], strides = [1, 1]} : vector<4x128xf32> to vector<1x128xf32>
    %161 = vector.broadcast %160 : vector<1x128xf32> to vector<5x128xf32>
    %162 = arith.mulf %5, %161 : vector<5x128xf32>
    %163 = arith.addf %159, %162 : vector<5x128xf32>
    %164 = vector.extract_strided_slice %96 {offsets = [2, 0], sizes = [1, 128], strides = [1, 1]} : vector<4x128xf32> to vector<1x128xf32>
    %165 = vector.broadcast %164 : vector<1x128xf32> to vector<5x128xf32>
    %166 = arith.mulf %7, %165 : vector<5x128xf32>
    %167 = arith.addf %163, %166 : vector<5x128xf32>
    %168 = vector.extract_strided_slice %96 {offsets = [3, 0], sizes = [1, 128], strides = [1, 1]} : vector<4x128xf32> to vector<1x128xf32>
    %169 = vector.broadcast %168 : vector<1x128xf32> to vector<5x128xf32>
    %170 = arith.mulf %9, %169 : vector<5x128xf32>
    %171 = arith.addf %167, %170 : vector<5x128xf32>
    %172 = arith.addf %156, %171 : vector<5x128xf32>
    %c7_17 = arith.constant 7 : index
    %c3 = arith.constant 3 : index
    %c0_18 = arith.constant 0 : index
    %c0_19 = arith.constant 0 : index
    %173 = vector.load %arg1[%c7_17, %c3, %c0_18, %c0_19] : memref<8x5x5x128xf32, #tpu.memory_space<vmem>>, vector<1x1x5x128xf32>
    %174 = vector.shape_cast %173 : vector<1x1x5x128xf32> to vector<5x128xf32>
    %175 = vector.extract_strided_slice %107 {offsets = [0, 0], sizes = [1, 128], strides = [1, 1]} : vector<4x128xf32> to vector<1x128xf32>
    %176 = vector.broadcast %175 : vector<1x128xf32> to vector<5x128xf32>
    %177 = arith.mulf %3, %176 : vector<5x128xf32>
    %178 = vector.extract_strided_slice %107 {offsets = [1, 0], sizes = [1, 128], strides = [1, 1]} : vector<4x128xf32> to vector<1x128xf32>
    %179 = vector.broadcast %178 : vector<1x128xf32> to vector<5x128xf32>
    %180 = arith.mulf %5, %179 : vector<5x128xf32>
    %181 = arith.addf %177, %180 : vector<5x128xf32>
    %182 = vector.extract_strided_slice %107 {offsets = [2, 0], sizes = [1, 128], strides = [1, 1]} : vector<4x128xf32> to vector<1x128xf32>
    %183 = vector.broadcast %182 : vector<1x128xf32> to vector<5x128xf32>
    %184 = arith.mulf %7, %183 : vector<5x128xf32>
    %185 = arith.addf %181, %184 : vector<5x128xf32>
    %186 = vector.extract_strided_slice %107 {offsets = [3, 0], sizes = [1, 128], strides = [1, 1]} : vector<4x128xf32> to vector<1x128xf32>
    %187 = vector.broadcast %186 : vector<1x128xf32> to vector<5x128xf32>
    %188 = arith.mulf %9, %187 : vector<5x128xf32>
    %189 = arith.addf %185, %188 : vector<5x128xf32>
    %190 = arith.addf %174, %189 : vector<5x128xf32>
    %c7_20 = arith.constant 7 : index
    %c4 = arith.constant 4 : index
    %c0_21 = arith.constant 0 : index
    %c0_22 = arith.constant 0 : index
    %191 = vector.load %arg1[%c7_20, %c4, %c0_21, %c0_22] : memref<8x5x5x128xf32, #tpu.memory_space<vmem>>, vector<1x1x5x128xf32>
    %192 = vector.shape_cast %191 : vector<1x1x5x128xf32> to vector<5x128xf32>
    %193 = vector.extract_strided_slice %118 {offsets = [0, 0], sizes = [1, 128], strides = [1, 1]} : vector<4x128xf32> to vector<1x128xf32>
    %194 = vector.broadcast %193 : vector<1x128xf32> to vector<5x128xf32>
    %195 = arith.mulf %3, %194 : vector<5x128xf32>
    %196 = vector.extract_strided_slice %118 {offsets = [1, 0], sizes = [1, 128], strides = [1, 1]} : vector<4x128xf32> to vector<1x128xf32>
    %197 = vector.broadcast %196 : vector<1x128xf32> to vector<5x128xf32>
    %198 = arith.mulf %5, %197 : vector<5x128xf32>
    %199 = arith.addf %195, %198 : vector<5x128xf32>
    %200 = vector.extract_strided_slice %118 {offsets = [2, 0], sizes = [1, 128], strides = [1, 1]} : vector<4x128xf32> to vector<1x128xf32>
    %201 = vector.broadcast %200 : vector<1x128xf32> to vector<5x128xf32>
    %202 = arith.mulf %7, %201 : vector<5x128xf32>
    %203 = arith.addf %199, %202 : vector<5x128xf32>
    %204 = vector.extract_strided_slice %118 {offsets = [3, 0], sizes = [1, 128], strides = [1, 1]} : vector<4x128xf32> to vector<1x128xf32>
    %205 = vector.broadcast %204 : vector<1x128xf32> to vector<5x128xf32>
    %206 = arith.mulf %9, %205 : vector<5x128xf32>
    %207 = arith.addf %203, %206 : vector<5x128xf32>
    %208 = arith.addf %192, %207 : vector<5x128xf32>
    %209 = vector.broadcast %55 : vector<1x128xf32> to vector<4x128xf32>
    %210 = arith.mulf %59, %209 : vector<4x128xf32>
    %211 = vector.broadcast %56 : vector<1x128xf32> to vector<4x128xf32>
    %212 = arith.mulf %60, %211 : vector<4x128xf32>
    %213 = arith.addf %210, %212 : vector<4x128xf32>
    %214 = vector.broadcast %57 : vector<1x128xf32> to vector<4x128xf32>
    %215 = arith.mulf %61, %214 : vector<4x128xf32>
    %216 = arith.addf %213, %215 : vector<4x128xf32>
    %217 = vector.broadcast %58 : vector<1x128xf32> to vector<4x128xf32>
    %218 = arith.mulf %62, %217 : vector<4x128xf32>
    %219 = arith.addf %216, %218 : vector<4x128xf32>
    %c7_23 = arith.constant 7 : index
    %c0_24 = arith.constant 0 : index
    %c0_25 = arith.constant 0 : index
    %220 = vector.load %arg2[%c7_23, %c0_24, %c0_25] : memref<8x5x128xf32, #tpu.memory_space<vmem>>, vector<1x5x128xf32>
    %221 = vector.shape_cast %220 : vector<1x5x128xf32> to vector<5x128xf32>
    %222 = arith.addf %63, %219 : vector<4x128xf32>
    %223 = vector.extract_strided_slice %222 {offsets = [0, 0], sizes = [1, 128], strides = [1, 1]} : vector<4x128xf32> to vector<1x128xf32>
    %224 = vector.broadcast %223 : vector<1x128xf32> to vector<5x128xf32>
    %225 = arith.mulf %3, %224 : vector<5x128xf32>
    %226 = vector.extract_strided_slice %222 {offsets = [1, 0], sizes = [1, 128], strides = [1, 1]} : vector<4x128xf32> to vector<1x128xf32>
    %227 = vector.broadcast %226 : vector<1x128xf32> to vector<5x128xf32>
    %228 = arith.mulf %5, %227 : vector<5x128xf32>
    %229 = arith.addf %225, %228 : vector<5x128xf32>
    %230 = vector.extract_strided_slice %222 {offsets = [2, 0], sizes = [1, 128], strides = [1, 1]} : vector<4x128xf32> to vector<1x128xf32>
    %231 = vector.broadcast %230 : vector<1x128xf32> to vector<5x128xf32>
    %232 = arith.mulf %7, %231 : vector<5x128xf32>
    %233 = arith.addf %229, %232 : vector<5x128xf32>
    %234 = vector.extract_strided_slice %222 {offsets = [3, 0], sizes = [1, 128], strides = [1, 1]} : vector<4x128xf32> to vector<1x128xf32>
    %235 = vector.broadcast %234 : vector<1x128xf32> to vector<5x128xf32>
    %236 = arith.mulf %9, %235 : vector<5x128xf32>
    %237 = arith.addf %233, %236 : vector<5x128xf32>
    %238 = arith.addf %221, %237 : vector<5x128xf32>
    %239 = vector.extract_strided_slice %208 {offsets = [0, 0], sizes = [4, 128], strides = [1, 1]} : vector<5x128xf32> to vector<4x128xf32>
    %240 = vector.extract_strided_slice %208 {offsets = [4, 0], sizes = [1, 128], strides = [1, 1]} : vector<5x128xf32> to vector<1x128xf32>
    %241 = vector.extract_strided_slice %136 {offsets = [4, 0], sizes = [1, 128], strides = [1, 1]} : vector<5x128xf32> to vector<1x128xf32>
    %242 = vector.extract_strided_slice %154 {offsets = [4, 0], sizes = [1, 128], strides = [1, 1]} : vector<5x128xf32> to vector<1x128xf32>
    %243 = vector.extract_strided_slice %172 {offsets = [4, 0], sizes = [1, 128], strides = [1, 1]} : vector<5x128xf32> to vector<1x128xf32>
    %244 = vector.extract_strided_slice %190 {offsets = [4, 0], sizes = [1, 128], strides = [1, 1]} : vector<5x128xf32> to vector<1x128xf32>
    %245 = tpu.concatenate %241, %242, %243, %244 in 0 : vector<1x128xf32>, vector<1x128xf32>, vector<1x128xf32>, vector<1x128xf32> -> vector<4x128xf32>
    %246 = vector.extract_strided_slice %238 {offsets = [0, 0], sizes = [4, 128], strides = [1, 1]} : vector<5x128xf32> to vector<4x128xf32>
    %247 = vector.extract_strided_slice %238 {offsets = [4, 0], sizes = [1, 128], strides = [1, 1]} : vector<5x128xf32> to vector<1x128xf32>
    %248 = tpu.reciprocal %240 : vector<1x128xf32> -> vector<1x128xf32>
    %249 = vector.broadcast %248 : vector<1x128xf32> to vector<4x128xf32>
    %250 = arith.mulf %245, %249 : vector<4x128xf32>
    %cst_26 = arith.constant 0.000000e+00 : f32
    %251 = vector.broadcast %cst_26 : f32 to vector<4x128xf32>
    %252 = arith.subf %251, %250 : vector<4x128xf32>
    %253 = arith.mulf %247, %248 : vector<1x128xf32>
    %cst_27 = arith.constant 0.000000e+00 : f32
    %254 = vector.broadcast %cst_27 : f32 to vector<1x128xf32>
    %255 = arith.subf %254, %253 : vector<1x128xf32>
    %256 = vector.broadcast %240 : vector<1x128xf32> to vector<4x128xf32>
    %257 = arith.mulf %252, %256 : vector<4x128xf32>
    %258 = vector.extract_strided_slice %136 {offsets = [0, 0], sizes = [4, 128], strides = [1, 1]} : vector<5x128xf32> to vector<4x128xf32>
    %259 = vector.extract_strided_slice %252 {offsets = [0, 0], sizes = [1, 128], strides = [1, 1]} : vector<4x128xf32> to vector<1x128xf32>
    %260 = vector.broadcast %259 : vector<1x128xf32> to vector<4x128xf32>
    %261 = arith.mulf %239, %260 : vector<4x128xf32>
    %262 = arith.addf %258, %261 : vector<4x128xf32>
    %263 = vector.extract_strided_slice %245 {offsets = [0, 0], sizes = [1, 128], strides = [1, 1]} : vector<4x128xf32> to vector<1x128xf32>
    %264 = vector.broadcast %263 : vector<1x128xf32> to vector<4x128xf32>
    %265 = arith.mulf %252, %264 : vector<4x128xf32>
    %266 = arith.addf %262, %265 : vector<4x128xf32>
    %267 = vector.extract_strided_slice %252 {offsets = [0, 0], sizes = [1, 128], strides = [1, 1]} : vector<4x128xf32> to vector<1x128xf32>
    %268 = vector.broadcast %267 : vector<1x128xf32> to vector<4x128xf32>
    %269 = arith.mulf %257, %268 : vector<4x128xf32>
    %270 = arith.addf %266, %269 : vector<4x128xf32>
    %271 = vector.extract_strided_slice %154 {offsets = [0, 0], sizes = [4, 128], strides = [1, 1]} : vector<5x128xf32> to vector<4x128xf32>
    %272 = vector.extract_strided_slice %252 {offsets = [1, 0], sizes = [1, 128], strides = [1, 1]} : vector<4x128xf32> to vector<1x128xf32>
    %273 = vector.broadcast %272 : vector<1x128xf32> to vector<4x128xf32>
    %274 = arith.mulf %239, %273 : vector<4x128xf32>
    %275 = arith.addf %271, %274 : vector<4x128xf32>
    %276 = vector.extract_strided_slice %245 {offsets = [1, 0], sizes = [1, 128], strides = [1, 1]} : vector<4x128xf32> to vector<1x128xf32>
    %277 = vector.broadcast %276 : vector<1x128xf32> to vector<4x128xf32>
    %278 = arith.mulf %252, %277 : vector<4x128xf32>
    %279 = arith.addf %275, %278 : vector<4x128xf32>
    %280 = vector.extract_strided_slice %252 {offsets = [1, 0], sizes = [1, 128], strides = [1, 1]} : vector<4x128xf32> to vector<1x128xf32>
    %281 = vector.broadcast %280 : vector<1x128xf32> to vector<4x128xf32>
    %282 = arith.mulf %257, %281 : vector<4x128xf32>
    %283 = arith.addf %279, %282 : vector<4x128xf32>
    %284 = vector.extract_strided_slice %172 {offsets = [0, 0], sizes = [4, 128], strides = [1, 1]} : vector<5x128xf32> to vector<4x128xf32>
    %285 = vector.extract_strided_slice %252 {offsets = [2, 0], sizes = [1, 128], strides = [1, 1]} : vector<4x128xf32> to vector<1x128xf32>
    %286 = vector.broadcast %285 : vector<1x128xf32> to vector<4x128xf32>
    %287 = arith.mulf %239, %286 : vector<4x128xf32>
    %288 = arith.addf %284, %287 : vector<4x128xf32>
    %289 = vector.extract_strided_slice %245 {offsets = [2, 0], sizes = [1, 128], strides = [1, 1]} : vector<4x128xf32> to vector<1x128xf32>
    %290 = vector.broadcast %289 : vector<1x128xf32> to vector<4x128xf32>
    %291 = arith.mulf %252, %290 : vector<4x128xf32>
    %292 = arith.addf %288, %291 : vector<4x128xf32>
    %293 = vector.extract_strided_slice %252 {offsets = [2, 0], sizes = [1, 128], strides = [1, 1]} : vector<4x128xf32> to vector<1x128xf32>
    %294 = vector.broadcast %293 : vector<1x128xf32> to vector<4x128xf32>
    %295 = arith.mulf %257, %294 : vector<4x128xf32>
    %296 = arith.addf %292, %295 : vector<4x128xf32>
    %297 = vector.extract_strided_slice %190 {offsets = [0, 0], sizes = [4, 128], strides = [1, 1]} : vector<5x128xf32> to vector<4x128xf32>
    %298 = vector.extract_strided_slice %252 {offsets = [3, 0], sizes = [1, 128], strides = [1, 1]} : vector<4x128xf32> to vector<1x128xf32>
    %299 = vector.broadcast %298 : vector<1x128xf32> to vector<4x128xf32>
    %300 = arith.mulf %239, %299 : vector<4x128xf32>
    %301 = arith.addf %297, %300 : vector<4x128xf32>
    %302 = vector.extract_strided_slice %245 {offsets = [3, 0], sizes = [1, 128], strides = [1, 1]} : vector<4x128xf32> to vector<1x128xf32>
    %303 = vector.broadcast %302 : vector<1x128xf32> to vector<4x128xf32>
    %304 = arith.mulf %252, %303 : vector<4x128xf32>
    %305 = arith.addf %301, %304 : vector<4x128xf32>
    %306 = vector.extract_strided_slice %252 {offsets = [3, 0], sizes = [1, 128], strides = [1, 1]} : vector<4x128xf32> to vector<1x128xf32>
    %307 = vector.broadcast %306 : vector<1x128xf32> to vector<4x128xf32>
    %308 = arith.mulf %257, %307 : vector<4x128xf32>
    %309 = arith.addf %305, %308 : vector<4x128xf32>
    %310 = vector.broadcast %255 : vector<1x128xf32> to vector<4x128xf32>
    %311 = arith.mulf %239, %310 : vector<4x128xf32>
    %312 = arith.addf %246, %311 : vector<4x128xf32>
    %313 = vector.broadcast %247 : vector<1x128xf32> to vector<4x128xf32>
    %314 = arith.mulf %252, %313 : vector<4x128xf32>
    %315 = arith.addf %312, %314 : vector<4x128xf32>
    %316 = vector.broadcast %255 : vector<1x128xf32> to vector<4x128xf32>
    %317 = arith.mulf %257, %316 : vector<4x128xf32>
    %318 = arith.addf %315, %317 : vector<4x128xf32>
    %319 = tpu.concatenate %252, %255 in 0 : vector<4x128xf32>, vector<1x128xf32> -> vector<5x128xf32>
    %c7_28 = arith.constant 7 : index
    %c0_29 = arith.constant 0 : index
    %c0_30 = arith.constant 0 : index
    %320 = vector.load %arg9[%c7_28, %c0_29, %c0_30] : memref<8x5x128xf32, #tpu.memory_space<vmem>>, vector<1x5x128xf32>
    %321 = vector.shape_cast %320 : vector<1x5x128xf32> to vector<5x128xf32>
    %322 = vector.shape_cast %319 : vector<5x128xf32> to vector<1x5x128xf32>
    tpu.vector_store %arg9[%c7_28, %c0_29, %c0_30], %322 {strides = array<i32>} : memref<8x5x128xf32, #tpu.memory_space<vmem>>, vector<1x5x128xf32>,
    %323 = vector.broadcast %11 : vector<1x128xf32> to vector<4x128xf32>
    %324 = arith.mulf %270, %323 : vector<4x128xf32>
    %325 = vector.broadcast %21 : vector<1x128xf32> to vector<4x128xf32>
    %326 = arith.mulf %283, %325 : vector<4x128xf32>
    %327 = arith.addf %324, %326 : vector<4x128xf32>
    %328 = vector.broadcast %31 : vector<1x128xf32> to vector<4x128xf32>
    %329 = arith.mulf %296, %328 : vector<4x128xf32>
    %330 = arith.addf %327, %329 : vector<4x128xf32>
    %331 = vector.broadcast %41 : vector<1x128xf32> to vector<4x128xf32>
    %332 = arith.mulf %309, %331 : vector<4x128xf32>
    %333 = arith.addf %330, %332 : vector<4x128xf32>
    %334 = vector.broadcast %13 : vector<1x128xf32> to vector<4x128xf32>
    %335 = arith.mulf %270, %334 : vector<4x128xf32>
    %336 = vector.broadcast %23 : vector<1x128xf32> to vector<4x128xf32>
    %337 = arith.mulf %283, %336 : vector<4x128xf32>
    %338 = arith.addf %335, %337 : vector<4x128xf32>
    %339 = vector.broadcast %33 : vector<1x128xf32> to vector<4x128xf32>
    %340 = arith.mulf %296, %339 : vector<4x128xf32>
    %341 = arith.addf %338, %340 : vector<4x128xf32>
    %342 = vector.broadcast %43 : vector<1x128xf32> to vector<4x128xf32>
    %343 = arith.mulf %309, %342 : vector<4x128xf32>
    %344 = arith.addf %341, %343 : vector<4x128xf32>
    %345 = vector.broadcast %15 : vector<1x128xf32> to vector<4x128xf32>
    %346 = arith.mulf %270, %345 : vector<4x128xf32>
    %347 = vector.broadcast %25 : vector<1x128xf32> to vector<4x128xf32>
    %348 = arith.mulf %283, %347 : vector<4x128xf32>
    %349 = arith.addf %346, %348 : vector<4x128xf32>
    %350 = vector.broadcast %35 : vector<1x128xf32> to vector<4x128xf32>
    %351 = arith.mulf %296, %350 : vector<4x128xf32>
    %352 = arith.addf %349, %351 : vector<4x128xf32>
    %353 = vector.broadcast %45 : vector<1x128xf32> to vector<4x128xf32>
    %354 = arith.mulf %309, %353 : vector<4x128xf32>
    %355 = arith.addf %352, %354 : vector<4x128xf32>
    %356 = vector.broadcast %17 : vector<1x128xf32> to vector<4x128xf32>
    %357 = arith.mulf %270, %356 : vector<4x128xf32>
    %358 = vector.broadcast %27 : vector<1x128xf32> to vector<4x128xf32>
    %359 = arith.mulf %283, %358 : vector<4x128xf32>
    %360 = arith.addf %357, %359 : vector<4x128xf32>
    %361 = vector.broadcast %37 : vector<1x128xf32> to vector<4x128xf32>
    %362 = arith.mulf %296, %361 : vector<4x128xf32>
    %363 = arith.addf %360, %362 : vector<4x128xf32>
    %364 = vector.broadcast %47 : vector<1x128xf32> to vector<4x128xf32>
    %365 = arith.mulf %309, %364 : vector<4x128xf32>
    %366 = arith.addf %363, %365 : vector<4x128xf32>
    %367 = vector.broadcast %19 : vector<1x128xf32> to vector<4x128xf32>
    %368 = arith.mulf %270, %367 : vector<4x128xf32>
    %369 = vector.broadcast %29 : vector<1x128xf32> to vector<4x128xf32>
    %370 = arith.mulf %283, %369 : vector<4x128xf32>
    %371 = arith.addf %368, %370 : vector<4x128xf32>
    %372 = vector.broadcast %39 : vector<1x128xf32> to vector<4x128xf32>
    %373 = arith.mulf %296, %372 : vector<4x128xf32>
    %374 = arith.addf %371, %373 : vector<4x128xf32>
    %375 = vector.broadcast %49 : vector<1x128xf32> to vector<4x128xf32>
    %376 = arith.mulf %309, %375 : vector<4x128xf32>
    %377 = arith.addf %374, %376 : vector<4x128xf32>
    %c6 = arith.constant 6 : index
    %c0_31 = arith.constant 0 : index
    %c0_32 = arith.constant 0 : index
    %c0_33 = arith.constant 0 : index
    %378 = vector.load %arg1[%c6, %c0_31, %c0_32, %c0_33] : memref<8x5x5x128xf32, #tpu.memory_space<vmem>>, vector<1x1x5x128xf32>
    %379 = vector.shape_cast %378 : vector<1x1x5x128xf32> to vector<5x128xf32>
    %380 = vector.extract_strided_slice %333 {offsets = [0, 0], sizes = [1, 128], strides = [1, 1]} : vector<4x128xf32> to vector<1x128xf32>
    %381 = vector.broadcast %380 : vector<1x128xf32> to vector<5x128xf32>
    %382 = arith.mulf %3, %381 : vector<5x128xf32>
    %383 = vector.extract_strided_slice %333 {offsets = [1, 0], sizes = [1, 128], strides = [1, 1]} : vector<4x128xf32> to vector<1x128xf32>
    %384 = vector.broadcast %383 : vector<1x128xf32> to vector<5x128xf32>
    %385 = arith.mulf %5, %384 : vector<5x128xf32>
    %386 = arith.addf %382, %385 : vector<5x128xf32>
    %387 = vector.extract_strided_slice %333 {offsets = [2, 0], sizes = [1, 128], strides = [1, 1]} : vector<4x128xf32> to vector<1x128xf32>
    %388 = vector.broadcast %387 : vector<1x128xf32> to vector<5x128xf32>
    %389 = arith.mulf %7, %388 : vector<5x128xf32>
    %390 = arith.addf %386, %389 : vector<5x128xf32>
    %391 = vector.extract_strided_slice %333 {offsets = [3, 0], sizes = [1, 128], strides = [1, 1]} : vector<4x128xf32> to vector<1x128xf32>
    %392 = vector.broadcast %391 : vector<1x128xf32> to vector<5x128xf32>
    %393 = arith.mulf %9, %392 : vector<5x128xf32>
    %394 = arith.addf %390, %393 : vector<5x128xf32>
    %395 = arith.addf %379, %394 : vector<5x128xf32>
    %c6_34 = arith.constant 6 : index
    %c1_35 = arith.constant 1 : index
    %c0_36 = arith.constant 0 : index
    %c0_37 = arith.constant 0 : index
    %396 = vector.load %arg1[%c6_34, %c1_35, %c0_36, %c0_37] : memref<8x5x5x128xf32, #tpu.memory_space<vmem>>, vector<1x1x5x128xf32>
    %397 = vector.shape_cast %396 : vector<1x1x5x128xf32> to vector<5x128xf32>
    %398 = vector.extract_strided_slice %344 {offsets = [0, 0], sizes = [1, 128], strides = [1, 1]} : vector<4x128xf32> to vector<1x128xf32>
    %399 = vector.broadcast %398 : vector<1x128xf32> to vector<5x128xf32>
    %400 = arith.mulf %3, %399 : vector<5x128xf32>
    %401 = vector.extract_strided_slice %344 {offsets = [1, 0], sizes = [1, 128], strides = [1, 1]} : vector<4x128xf32> to vector<1x128xf32>
    %402 = vector.broadcast %401 : vector<1x128xf32> to vector<5x128xf32>
    %403 = arith.mulf %5, %402 : vector<5x128xf32>
    %404 = arith.addf %400, %403 : vector<5x128xf32>
    %405 = vector.extract_strided_slice %344 {offsets = [2, 0], sizes = [1, 128], strides = [1, 1]} : vector<4x128xf32> to vector<1x128xf32>
    %406 = vector.broadcast %405 : vector<1x128xf32> to vector<5x128xf32>
    %407 = arith.mulf %7, %406 : vector<5x128xf32>
    %408 = arith.addf %404, %407 : vector<5x128xf32>
    %409 = vector.extract_strided_slice %344 {offsets = [3, 0], sizes = [1, 128], strides = [1, 1]} : vector<4x128xf32> to vector<1x128xf32>
    %410 = vector.broadcast %409 : vector<1x128xf32> to vector<5x128xf32>
    %411 = arith.mulf %9, %410 : vector<5x128xf32>
    %412 = arith.addf %408, %411 : vector<5x128xf32>
    %413 = arith.addf %397, %412 : vector<5x128xf32>
    %c6_38 = arith.constant 6 : index
    %c2_39 = arith.constant 2 : index
    %c0_40 = arith.constant 0 : index
    %c0_41 = arith.constant 0 : index
    %414 = vector.load %arg1[%c6_38, %c2_39, %c0_40, %c0_41] : memref<8x5x5x128xf32, #tpu.memory_space<vmem>>, vector<1x1x5x128xf32>
    %415 = vector.shape_cast %414 : vector<1x1x5x128xf32> to vector<5x128xf32>
    %416 = vector.extract_strided_slice %355 {offsets = [0, 0], sizes = [1, 128], strides = [1, 1]} : vector<4x128xf32> to vector<1x128xf32>
    %417 = vector.broadcast %416 : vector<1x128xf32> to vector<5x128xf32>
    %418 = arith.mulf %3, %417 : vector<5x128xf32>
    %419 = vector.extract_strided_slice %355 {offsets = [1, 0], sizes = [1, 128], strides = [1, 1]} : vector<4x128xf32> to vector<1x128xf32>
    %420 = vector.broadcast %419 : vector<1x128xf32> to vector<5x128xf32>
    %421 = arith.mulf %5, %420 : vector<5x128xf32>
    %422 = arith.addf %418, %421 : vector<5x128xf32>
    %423 = vector.extract_strided_slice %355 {offsets = [2, 0], sizes = [1, 128], strides = [1, 1]} : vector<4x128xf32> to vector<1x128xf32>
    %424 = vector.broadcast %423 : vector<1x128xf32> to vector<5x128xf32>
    %425 = arith.mulf %7, %424 : vector<5x128xf32>
    %426 = arith.addf %422, %425 : vector<5x128xf32>
    %427 = vector.extract_strided_slice %355 {offsets = [3, 0], sizes = [1, 128], strides = [1, 1]} : vector<4x128xf32> to vector<1x128xf32>
    %428 = vector.broadcast %427 : vector<1x128xf32> to vector<5x128xf32>
    %429 = arith.mulf %9, %428 : vector<5x128xf32>
    %430 = arith.addf %426, %429 : vector<5x128xf32>
    %431 = arith.addf %415, %430 : vector<5x128xf32>
    %c6_42 = arith.constant 6 : index
    %c3_43 = arith.constant 3 : index
    %c0_44 = arith.constant 0 : index
    %c0_45 = arith.constant 0 : index
    %432 = vector.load %arg1[%c6_42, %c3_43, %c0_44, %c0_45] : memref<8x5x5x128xf32, #tpu.memory_space<vmem>>, vector<1x1x5x128xf32>
    %433 = vector.shape_cast %432 : vector<1x1x5x128xf32> to vector<5x128xf32>
    %434 = vector.extract_strided_slice %366 {offsets = [0, 0], sizes = [1, 128], strides = [1, 1]} : vector<4x128xf32> to vector<1x128xf32>
    %435 = vector.broadcast %434 : vector<1x128xf32> to vector<5x128xf32>
    %436 = arith.mulf %3, %435 : vector<5x128xf32>
    %437 = vector.extract_strided_slice %366 {offsets = [1, 0], sizes = [1, 128], strides = [1, 1]} : vector<4x128xf32> to vector<1x128xf32>
    %438 = vector.broadcast %437 : vector<1x128xf32> to vector<5x128xf32>
    %439 = arith.mulf %5, %438 : vector<5x128xf32>
    %440 = arith.addf %436, %439 : vector<5x128xf32>
    %441 = vector.extract_strided_slice %366 {offsets = [2, 0], sizes = [1, 128], strides = [1, 1]} : vector<4x128xf32> to vector<1x128xf32>
    %442 = vector.broadcast %441 : vector<1x128xf32> to vector<5x128xf32>
    %443 = arith.mulf %7, %442 : vector<5x128xf32>
    %444 = arith.addf %440, %443 : vector<5x128xf32>
    %445 = vector.extract_strided_slice %366 {offsets = [3, 0], sizes = [1, 128], strides = [1, 1]} : vector<4x128xf32> to vector<1x128xf32>
    %446 = vector.broadcast %445 : vector<1x128xf32> to vector<5x128xf32>
    %447 = arith.mulf %9, %446 : vector<5x128xf32>
    %448 = arith.addf %444, %447 : vector<5x128xf32>
    %449 = arith.addf %433, %448 : vector<5x128xf32>
    %c6_46 = arith.constant 6 : index
    %c4_47 = arith.constant 4 : index
    %c0_48 = arith.constant 0 : index
    %c0_49 = arith.constant 0 : index
    %450 = vector.load %arg1[%c6_46, %c4_47, %c0_48, %c0_49] : memref<8x5x5x128xf32, #tpu.memory_space<vmem>>, vector<1x1x5x128xf32>
    %451 = vector.shape_cast %450 : vector<1x1x5x128xf32> to vector<5x128xf32>
    %452 = vector.extract_strided_slice %377 {offsets = [0, 0], sizes = [1, 128], strides = [1, 1]} : vector<4x128xf32> to vector<1x128xf32>
    %453 = vector.broadcast %452 : vector<1x128xf32> to vector<5x128xf32>
    %454 = arith.mulf %3, %453 : vector<5x128xf32>
    %455 = vector.extract_strided_slice %377 {offsets = [1, 0], sizes = [1, 128], strides = [1, 1]} : vector<4x128xf32> to vector<1x128xf32>
    %456 = vector.broadcast %455 : vector<1x128xf32> to vector<5x128xf32>
    %457 = arith.mulf %5, %456 : vector<5x128xf32>
    %458 = arith.addf %454, %457 : vector<5x128xf32>
    %459 = vector.extract_strided_slice %377 {offsets = [2, 0], sizes = [1, 128], strides = [1, 1]} : vector<4x128xf32> to vector<1x128xf32>
    %460 = vector.broadcast %459 : vector<1x128xf32> to vector<5x128xf32>
    %461 = arith.mulf %7, %460 : vector<5x128xf32>
    %462 = arith.addf %458, %461 : vector<5x128xf32>
    %463 = vector.extract_strided_slice %377 {offsets = [3, 0], sizes = [1, 128], strides = [1, 1]} : vector<4x128xf32> to vector<1x128xf32>
    %464 = vector.broadcast %463 : vector<1x128xf32> to vector<5x128xf32>
    %465 = arith.mulf %9, %464 : vector<5x128xf32>
    %466 = arith.addf %462, %465 : vector<5x128xf32>
    %467 = arith.addf %451, %466 : vector<5x128xf32>
    %468 = vector.broadcast %55 : vector<1x128xf32> to vector<4x128xf32>
    %469 = arith.mulf %270, %468 : vector<4x128xf32>
    %470 = vector.broadcast %56 : vector<1x128xf32> to vector<4x128xf32>
    %471 = arith.mulf %283, %470 : vector<4x128xf32>
    %472 = arith.addf %469, %471 : vector<4x128xf32>
    %473 = vector.broadcast %57 : vector<1x128xf32> to vector<4x128xf32>
    %474 = arith.mulf %296, %473 : vector<4x128xf32>
    %475 = arith.addf %472, %474 : vector<4x128xf32>
    %476 = vector.broadcast %58 : vector<1x128xf32> to vector<4x128xf32>
    %477 = arith.mulf %309, %476 : vector<4x128xf32>
    %478 = arith.addf %475, %477 : vector<4x128xf32>
    %c6_50 = arith.constant 6 : index
    %c0_51 = arith.constant 0 : index
    %c0_52 = arith.constant 0 : index
    %479 = vector.load %arg2[%c6_50, %c0_51, %c0_52] : memref<8x5x128xf32, #tpu.memory_space<vmem>>, vector<1x5x128xf32>
    %480 = vector.shape_cast %479 : vector<1x5x128xf32> to vector<5x128xf32>
    %481 = arith.addf %318, %478 : vector<4x128xf32>
    %482 = vector.extract_strided_slice %481 {offsets = [0, 0], sizes = [1, 128], strides = [1, 1]} : vector<4x128xf32> to vector<1x128xf32>
    %483 = vector.broadcast %482 : vector<1x128xf32> to vector<5x128xf32>
    %484 = arith.mulf %3, %483 : vector<5x128xf32>
    %485 = vector.extract_strided_slice %481 {offsets = [1, 0], sizes = [1, 128], strides = [1, 1]} : vector<4x128xf32> to vector<1x128xf32>
    %486 = vector.broadcast %485 : vector<1x128xf32> to vector<5x128xf32>
    %487 = arith.mulf %5, %486 : vector<5x128xf32>
    %488 = arith.addf %484, %487 : vector<5x128xf32>
    %489 = vector.extract_strided_slice %481 {offsets = [2, 0], sizes = [1, 128], strides = [1, 1]} : vector<4x128xf32> to vector<1x128xf32>
    %490 = vector.broadcast %489 : vector<1x128xf32> to vector<5x128xf32>
    %491 = arith.mulf %7, %490 : vector<5x128xf32>
    %492 = arith.addf %488, %491 : vector<5x128xf32>
    %493 = vector.extract_strided_slice %481 {offsets = [3, 0], sizes = [1, 128], strides = [1, 1]} : vector<4x128xf32> to vector<1x128xf32>
    %494 = vector.broadcast %493 : vector<1x128xf32> to vector<5x128xf32>
    %495 = arith.mulf %9, %494 : vector<5x128xf32>
    %496 = arith.addf %492, %495 : vector<5x128xf32>
    %497 = arith.addf %480, %496 : vector<5x128xf32>
    %498 = vector.extract_strided_slice %467 {offsets = [0, 0], sizes = [4, 128], strides = [1, 1]} : vector<5x128xf32> to vector<4x128xf32>
    %499 = vector.extract_strided_slice %467 {offsets = [4, 0], sizes = [1, 128], strides = [1, 1]} : vector<5x128xf32> to vector<1x128xf32>
    %500 = vector.extract_strided_slice %395 {offsets = [4, 0], sizes = [1, 128], strides = [1, 1]} : vector<5x128xf32> to vector<1x128xf32>
    %501 = vector.extract_strided_slice %413 {offsets = [4, 0], sizes = [1, 128], strides = [1, 1]} : vector<5x128xf32> to vector<1x128xf32>
    %502 = vector.extract_strided_slice %431 {offsets = [4, 0], sizes = [1, 128], strides = [1, 1]} : vector<5x128xf32> to vector<1x128xf32>
    %503 = vector.extract_strided_slice %449 {offsets = [4, 0], sizes = [1, 128], strides = [1, 1]} : vector<5x128xf32> to vector<1x128xf32>
    %504 = tpu.concatenate %500, %501, %502, %503 in 0 : vector<1x128xf32>, vector<1x128xf32>, vector<1x128xf32>, vector<1x128xf32> -> vector<4x128xf32>
    %505 = vector.extract_strided_slice %497 {offsets = [0, 0], sizes = [4, 128], strides = [1, 1]} : vector<5x128xf32> to vector<4x128xf32>
    %506 = vector.extract_strided_slice %497 {offsets = [4, 0], sizes = [1, 128], strides = [1, 1]} : vector<5x128xf32> to vector<1x128xf32>
    %507 = tpu.reciprocal %499 : vector<1x128xf32> -> vector<1x128xf32>
    %508 = vector.broadcast %507 : vector<1x128xf32> to vector<4x128xf32>
    %509 = arith.mulf %504, %508 : vector<4x128xf32>
    %cst_53 = arith.constant 0.000000e+00 : f32
    %510 = vector.broadcast %cst_53 : f32 to vector<4x128xf32>
    %511 = arith.subf %510, %509 : vector<4x128xf32>
    %512 = arith.mulf %506, %507 : vector<1x128xf32>
    %cst_54 = arith.constant 0.000000e+00 : f32
    %513 = vector.broadcast %cst_54 : f32 to vector<1x128xf32>
    %514 = arith.subf %513, %512 : vector<1x128xf32>
    %515 = vector.broadcast %499 : vector<1x128xf32> to vector<4x128xf32>
    %516 = arith.mulf %511, %515 : vector<4x128xf32>
    %517 = vector.extract_strided_slice %395 {offsets = [0, 0], sizes = [4, 128], strides = [1, 1]} : vector<5x128xf32> to vector<4x128xf32>
    %518 = vector.extract_strided_slice %511 {offsets = [0, 0], sizes = [1, 128], strides = [1, 1]} : vector<4x128xf32> to vector<1x128xf32>
    %519 = vector.broadcast %518 : vector<1x128xf32> to vector<4x128xf32>
    %520 = arith.mulf %498, %519 : vector<4x128xf32>
    %521 = arith.addf %517, %520 : vector<4x128xf32>
    %522 = vector.extract_strided_slice %504 {offsets = [0, 0], sizes = [1, 128], strides = [1, 1]} : vector<4x128xf32> to vector<1x128xf32>
    %523 = vector.broadcast %522 : vector<1x128xf32> to vector<4x128xf32>
    %524 = arith.mulf %511, %523 : vector<4x128xf32>
    %525 = arith.addf %521, %524 : vector<4x128xf32>
    %526 = vector.extract_strided_slice %511 {offsets = [0, 0], sizes = [1, 128], strides = [1, 1]} : vector<4x128xf32> to vector<1x128xf32>
    %527 = vector.broadcast %526 : vector<1x128xf32> to vector<4x128xf32>
    %528 = arith.mulf %516, %527 : vector<4x128xf32>
    %529 = arith.addf %525, %528 : vector<4x128xf32>
    %530 = vector.extract_strided_slice %413 {offsets = [0, 0], sizes = [4, 128], strides = [1, 1]} : vector<5x128xf32> to vector<4x128xf32>
    %531 = vector.extract_strided_slice %511 {offsets = [1, 0], sizes = [1, 128], strides = [1, 1]} : vector<4x128xf32> to vector<1x128xf32>
    %532 = vector.broadcast %531 : vector<1x128xf32> to vector<4x128xf32>
    %533 = arith.mulf %498, %532 : vector<4x128xf32>
    %534 = arith.addf %530, %533 : vector<4x128xf32>
    %535 = vector.extract_strided_slice %504 {offsets = [1, 0], sizes = [1, 128], strides = [1, 1]} : vector<4x128xf32> to vector<1x128xf32>
    %536 = vector.broadcast %535 : vector<1x128xf32> to vector<4x128xf32>
    %537 = arith.mulf %511, %536 : vector<4x128xf32>
    %538 = arith.addf %534, %537 : vector<4x128xf32>
    %539 = vector.extract_strided_slice %511 {offsets = [1, 0], sizes = [1, 128], strides = [1, 1]} : vector<4x128xf32> to vector<1x128xf32>
    %540 = vector.broadcast %539 : vector<1x128xf32> to vector<4x128xf32>
    %541 = arith.mulf %516, %540 : vector<4x128xf32>
    %542 = arith.addf %538, %541 : vector<4x128xf32>
    %543 = vector.extract_strided_slice %431 {offsets = [0, 0], sizes = [4, 128], strides = [1, 1]} : vector<5x128xf32> to vector<4x128xf32>
    %544 = vector.extract_strided_slice %511 {offsets = [2, 0], sizes = [1, 128], strides = [1, 1]} : vector<4x128xf32> to vector<1x128xf32>
    %545 = vector.broadcast %544 : vector<1x128xf32> to vector<4x128xf32>
    %546 = arith.mulf %498, %545 : vector<4x128xf32>
    %547 = arith.addf %543, %546 : vector<4x128xf32>
    %548 = vector.extract_strided_slice %504 {offsets = [2, 0], sizes = [1, 128], strides = [1, 1]} : vector<4x128xf32> to vector<1x128xf32>
    %549 = vector.broadcast %548 : vector<1x128xf32> to vector<4x128xf32>
    %550 = arith.mulf %511, %549 : vector<4x128xf32>
    %551 = arith.addf %547, %550 : vector<4x128xf32>
    %552 = vector.extract_strided_slice %511 {offsets = [2, 0], sizes = [1, 128], strides = [1, 1]} : vector<4x128xf32> to vector<1x128xf32>
    %553 = vector.broadcast %552 : vector<1x128xf32> to vector<4x128xf32>
    %554 = arith.mulf %516, %553 : vector<4x128xf32>
    %555 = arith.addf %551, %554 : vector<4x128xf32>
    %556 = vector.extract_strided_slice %449 {offsets = [0, 0], sizes = [4, 128], strides = [1, 1]} : vector<5x128xf32> to vector<4x128xf32>
    %557 = vector.extract_strided_slice %511 {offsets = [3, 0], sizes = [1, 128], strides = [1, 1]} : vector<4x128xf32> to vector<1x128xf32>
    %558 = vector.broadcast %557 : vector<1x128xf32> to vector<4x128xf32>
    %559 = arith.mulf %498, %558 : vector<4x128xf32>
    %560 = arith.addf %556, %559 : vector<4x128xf32>
    %561 = vector.extract_strided_slice %504 {offsets = [3, 0], sizes = [1, 128], strides = [1, 1]} : vector<4x128xf32> to vector<1x128xf32>
    %562 = vector.broadcast %561 : vector<1x128xf32> to vector<4x128xf32>
    %563 = arith.mulf %511, %562 : vector<4x128xf32>
    %564 = arith.addf %560, %563 : vector<4x128xf32>
    %565 = vector.extract_strided_slice %511 {offsets = [3, 0], sizes = [1, 128], strides = [1, 1]} : vector<4x128xf32> to vector<1x128xf32>
    %566 = vector.broadcast %565 : vector<1x128xf32> to vector<4x128xf32>
    %567 = arith.mulf %516, %566 : vector<4x128xf32>
    %568 = arith.addf %564, %567 : vector<4x128xf32>
    %569 = vector.broadcast %514 : vector<1x128xf32> to vector<4x128xf32>
    %570 = arith.mulf %498, %569 : vector<4x128xf32>
    %571 = arith.addf %505, %570 : vector<4x128xf32>
    %572 = vector.broadcast %506 : vector<1x128xf32> to vector<4x128xf32>
    %573 = arith.mulf %511, %572 : vector<4x128xf32>
    %574 = arith.addf %571, %573 : vector<4x128xf32>
    %575 = vector.broadcast %514 : vector<1x128xf32> to vector<4x128xf32>
    %576 = arith.mulf %516, %575 : vector<4x128xf32>
    %577 = arith.addf %574, %576 : vector<4x128xf32>
    %578 = tpu.concatenate %511, %514 in 0 : vector<4x128xf32>, vector<1x128xf32> -> vector<5x128xf32>
    %c6_55 = arith.constant 6 : index
    %c0_56 = arith.constant 0 : index
    %c0_57 = arith.constant 0 : index
    %579 = vector.load %arg9[%c6_55, %c0_56, %c0_57] : memref<8x5x128xf32, #tpu.memory_space<vmem>>, vector<1x5x128xf32>
    %580 = vector.shape_cast %579 : vector<1x5x128xf32> to vector<5x128xf32>
    %581 = vector.shape_cast %578 : vector<5x128xf32> to vector<1x5x128xf32>
    tpu.vector_store %arg9[%c6_55, %c0_56, %c0_57], %581 {strides = array<i32>} : memref<8x5x128xf32, #tpu.memory_space<vmem>>, vector<1x5x128xf32>,
    %582 = vector.broadcast %11 : vector<1x128xf32> to vector<4x128xf32>
    %583 = arith.mulf %529, %582 : vector<4x128xf32>
    %584 = vector.broadcast %21 : vector<1x128xf32> to vector<4x128xf32>
    %585 = arith.mulf %542, %584 : vector<4x128xf32>
    %586 = arith.addf %583, %585 : vector<4x128xf32>
    %587 = vector.broadcast %31 : vector<1x128xf32> to vector<4x128xf32>
    %588 = arith.mulf %555, %587 : vector<4x128xf32>
    %589 = arith.addf %586, %588 : vector<4x128xf32>
    %590 = vector.broadcast %41 : vector<1x128xf32> to vector<4x128xf32>
    %591 = arith.mulf %568, %590 : vector<4x128xf32>
    %592 = arith.addf %589, %591 : vector<4x128xf32>
    %593 = vector.broadcast %13 : vector<1x128xf32> to vector<4x128xf32>
    %594 = arith.mulf %529, %593 : vector<4x128xf32>
    %595 = vector.broadcast %23 : vector<1x128xf32> to vector<4x128xf32>
    %596 = arith.mulf %542, %595 : vector<4x128xf32>
    %597 = arith.addf %594, %596 : vector<4x128xf32>
    %598 = vector.broadcast %33 : vector<1x128xf32> to vector<4x128xf32>
    %599 = arith.mulf %555, %598 : vector<4x128xf32>
    %600 = arith.addf %597, %599 : vector<4x128xf32>
    %601 = vector.broadcast %43 : vector<1x128xf32> to vector<4x128xf32>
    %602 = arith.mulf %568, %601 : vector<4x128xf32>
    %603 = arith.addf %600, %602 : vector<4x128xf32>
    %604 = vector.broadcast %15 : vector<1x128xf32> to vector<4x128xf32>
    %605 = arith.mulf %529, %604 : vector<4x128xf32>
    %606 = vector.broadcast %25 : vector<1x128xf32> to vector<4x128xf32>
    %607 = arith.mulf %542, %606 : vector<4x128xf32>
    %608 = arith.addf %605, %607 : vector<4x128xf32>
    %609 = vector.broadcast %35 : vector<1x128xf32> to vector<4x128xf32>
    %610 = arith.mulf %555, %609 : vector<4x128xf32>
    %611 = arith.addf %608, %610 : vector<4x128xf32>
    %612 = vector.broadcast %45 : vector<1x128xf32> to vector<4x128xf32>
    %613 = arith.mulf %568, %612 : vector<4x128xf32>
    %614 = arith.addf %611, %613 : vector<4x128xf32>
    %615 = vector.broadcast %17 : vector<1x128xf32> to vector<4x128xf32>
    %616 = arith.mulf %529, %615 : vector<4x128xf32>
    %617 = vector.broadcast %27 : vector<1x128xf32> to vector<4x128xf32>
    %618 = arith.mulf %542, %617 : vector<4x128xf32>
    %619 = arith.addf %616, %618 : vector<4x128xf32>
    %620 = vector.broadcast %37 : vector<1x128xf32> to vector<4x128xf32>
    %621 = arith.mulf %555, %620 : vector<4x128xf32>
    %622 = arith.addf %619, %621 : vector<4x128xf32>
    %623 = vector.broadcast %47 : vector<1x128xf32> to vector<4x128xf32>
    %624 = arith.mulf %568, %623 : vector<4x128xf32>
    %625 = arith.addf %622, %624 : vector<4x128xf32>
    %626 = vector.broadcast %19 : vector<1x128xf32> to vector<4x128xf32>
    %627 = arith.mulf %529, %626 : vector<4x128xf32>
    %628 = vector.broadcast %29 : vector<1x128xf32> to vector<4x128xf32>
    %629 = arith.mulf %542, %628 : vector<4x128xf32>
    %630 = arith.addf %627, %629 : vector<4x128xf32>
    %631 = vector.broadcast %39 : vector<1x128xf32> to vector<4x128xf32>
    %632 = arith.mulf %555, %631 : vector<4x128xf32>
    %633 = arith.addf %630, %632 : vector<4x128xf32>
    %634 = vector.broadcast %49 : vector<1x128xf32> to vector<4x128xf32>
    %635 = arith.mulf %568, %634 : vector<4x128xf32>
    %636 = arith.addf %633, %635 : vector<4x128xf32>
    %c5 = arith.constant 5 : index
    %c0_58 = arith.constant 0 : index
    %c0_59 = arith.constant 0 : index
    %c0_60 = arith.constant 0 : index
    %637 = vector.load %arg1[%c5, %c0_58, %c0_59, %c0_60] : memref<8x5x5x128xf32, #tpu.memory_space<vmem>>, vector<1x1x5x128xf32>
    %638 = vector.shape_cast %637 : vector<1x1x5x128xf32> to vector<5x128xf32>
    %639 = vector.extract_strided_slice %592 {offsets = [0, 0], sizes = [1, 128], strides = [1, 1]} : vector<4x128xf32> to vector<1x128xf32>
    %640 = vector.broadcast %639 : vector<1x128xf32> to vector<5x128xf32>
    %641 = arith.mulf %3, %640 : vector<5x128xf32>
    %642 = vector.extract_strided_slice %592 {offsets = [1, 0], sizes = [1, 128], strides = [1, 1]} : vector<4x128xf32> to vector<1x128xf32>
    %643 = vector.broadcast %642 : vector<1x128xf32> to vector<5x128xf32>
    %644 = arith.mulf %5, %643 : vector<5x128xf32>
    %645 = arith.addf %641, %644 : vector<5x128xf32>
    %646 = vector.extract_strided_slice %592 {offsets = [2, 0], sizes = [1, 128], strides = [1, 1]} : vector<4x128xf32> to vector<1x128xf32>
    %647 = vector.broadcast %646 : vector<1x128xf32> to vector<5x128xf32>
    %648 = arith.mulf %7, %647 : vector<5x128xf32>
    %649 = arith.addf %645, %648 : vector<5x128xf32>
    %650 = vector.extract_strided_slice %592 {offsets = [3, 0], sizes = [1, 128], strides = [1, 1]} : vector<4x128xf32> to vector<1x128xf32>
    %651 = vector.broadcast %650 : vector<1x128xf32> to vector<5x128xf32>
    %652 = arith.mulf %9, %651 : vector<5x128xf32>
    %653 = arith.addf %649, %652 : vector<5x128xf32>
    %654 = arith.addf %638, %653 : vector<5x128xf32>
    %c5_61 = arith.constant 5 : index
    %c1_62 = arith.constant 1 : index
    %c0_63 = arith.constant 0 : index
    %c0_64 = arith.constant 0 : index
    %655 = vector.load %arg1[%c5_61, %c1_62, %c0_63, %c0_64] : memref<8x5x5x128xf32, #tpu.memory_space<vmem>>, vector<1x1x5x128xf32>
    %656 = vector.shape_cast %655 : vector<1x1x5x128xf32> to vector<5x128xf32>
    %657 = vector.extract_strided_slice %603 {offsets = [0, 0], sizes = [1, 128], strides = [1, 1]} : vector<4x128xf32> to vector<1x128xf32>
    %658 = vector.broadcast %657 : vector<1x128xf32> to vector<5x128xf32>
    %659 = arith.mulf %3, %658 : vector<5x128xf32>
    %660 = vector.extract_strided_slice %603 {offsets = [1, 0], sizes = [1, 128], strides = [1, 1]} : vector<4x128xf32> to vector<1x128xf32>
    %661 = vector.broadcast %660 : vector<1x128xf32> to vector<5x128xf32>
    %662 = arith.mulf %5, %661 : vector<5x128xf32>
    %663 = arith.addf %659, %662 : vector<5x128xf32>
    %664 = vector.extract_strided_slice %603 {offsets = [2, 0], sizes = [1, 128], strides = [1, 1]} : vector<4x128xf32> to vector<1x128xf32>
    %665 = vector.broadcast %664 : vector<1x128xf32> to vector<5x128xf32>
    %666 = arith.mulf %7, %665 : vector<5x128xf32>
    %667 = arith.addf %663, %666 : vector<5x128xf32>
    %668 = vector.extract_strided_slice %603 {offsets = [3, 0], sizes = [1, 128], strides = [1, 1]} : vector<4x128xf32> to vector<1x128xf32>
    %669 = vector.broadcast %668 : vector<1x128xf32> to vector<5x128xf32>
    %670 = arith.mulf %9, %669 : vector<5x128xf32>
    %671 = arith.addf %667, %670 : vector<5x128xf32>
    %672 = arith.addf %656, %671 : vector<5x128xf32>
    %c5_65 = arith.constant 5 : index
    %c2_66 = arith.constant 2 : index
    %c0_67 = arith.constant 0 : index
    %c0_68 = arith.constant 0 : index
    %673 = vector.load %arg1[%c5_65, %c2_66, %c0_67, %c0_68] : memref<8x5x5x128xf32, #tpu.memory_space<vmem>>, vector<1x1x5x128xf32>
    %674 = vector.shape_cast %673 : vector<1x1x5x128xf32> to vector<5x128xf32>
    %675 = vector.extract_strided_slice %614 {offsets = [0, 0], sizes = [1, 128], strides = [1, 1]} : vector<4x128xf32> to vector<1x128xf32>
    %676 = vector.broadcast %675 : vector<1x128xf32> to vector<5x128xf32>
    %677 = arith.mulf %3, %676 : vector<5x128xf32>
    %678 = vector.extract_strided_slice %614 {offsets = [1, 0], sizes = [1, 128], strides = [1, 1]} : vector<4x128xf32> to vector<1x128xf32>
    %679 = vector.broadcast %678 : vector<1x128xf32> to vector<5x128xf32>
    %680 = arith.mulf %5, %679 : vector<5x128xf32>
    %681 = arith.addf %677, %680 : vector<5x128xf32>
    %682 = vector.extract_strided_slice %614 {offsets = [2, 0], sizes = [1, 128], strides = [1, 1]} : vector<4x128xf32> to vector<1x128xf32>
    %683 = vector.broadcast %682 : vector<1x128xf32> to vector<5x128xf32>
    %684 = arith.mulf %7, %683 : vector<5x128xf32>
    %685 = arith.addf %681, %684 : vector<5x128xf32>
    %686 = vector.extract_strided_slice %614 {offsets = [3, 0], sizes = [1, 128], strides = [1, 1]} : vector<4x128xf32> to vector<1x128xf32>
    %687 = vector.broadcast %686 : vector<1x128xf32> to vector<5x128xf32>
    %688 = arith.mulf %9, %687 : vector<5x128xf32>
    %689 = arith.addf %685, %688 : vector<5x128xf32>
    %690 = arith.addf %674, %689 : vector<5x128xf32>
    %c5_69 = arith.constant 5 : index
    %c3_70 = arith.constant 3 : index
    %c0_71 = arith.constant 0 : index
    %c0_72 = arith.constant 0 : index
    %691 = vector.load %arg1[%c5_69, %c3_70, %c0_71, %c0_72] : memref<8x5x5x128xf32, #tpu.memory_space<vmem>>, vector<1x1x5x128xf32>
    %692 = vector.shape_cast %691 : vector<1x1x5x128xf32> to vector<5x128xf32>
    %693 = vector.extract_strided_slice %625 {offsets = [0, 0], sizes = [1, 128], strides = [1, 1]} : vector<4x128xf32> to vector<1x128xf32>
    %694 = vector.broadcast %693 : vector<1x128xf32> to vector<5x128xf32>
    %695 = arith.mulf %3, %694 : vector<5x128xf32>
    %696 = vector.extract_strided_slice %625 {offsets = [1, 0], sizes = [1, 128], strides = [1, 1]} : vector<4x128xf32> to vector<1x128xf32>
    %697 = vector.broadcast %696 : vector<1x128xf32> to vector<5x128xf32>
    %698 = arith.mulf %5, %697 : vector<5x128xf32>
    %699 = arith.addf %695, %698 : vector<5x128xf32>
    %700 = vector.extract_strided_slice %625 {offsets = [2, 0], sizes = [1, 128], strides = [1, 1]} : vector<4x128xf32> to vector<1x128xf32>
    %701 = vector.broadcast %700 : vector<1x128xf32> to vector<5x128xf32>
    %702 = arith.mulf %7, %701 : vector<5x128xf32>
    %703 = arith.addf %699, %702 : vector<5x128xf32>
    %704 = vector.extract_strided_slice %625 {offsets = [3, 0], sizes = [1, 128], strides = [1, 1]} : vector<4x128xf32> to vector<1x128xf32>
    %705 = vector.broadcast %704 : vector<1x128xf32> to vector<5x128xf32>
    %706 = arith.mulf %9, %705 : vector<5x128xf32>
    %707 = arith.addf %703, %706 : vector<5x128xf32>
    %708 = arith.addf %692, %707 : vector<5x128xf32>
    %c5_73 = arith.constant 5 : index
    %c4_74 = arith.constant 4 : index
    %c0_75 = arith.constant 0 : index
    %c0_76 = arith.constant 0 : index
    %709 = vector.load %arg1[%c5_73, %c4_74, %c0_75, %c0_76] : memref<8x5x5x128xf32, #tpu.memory_space<vmem>>, vector<1x1x5x128xf32>
    %710 = vector.shape_cast %709 : vector<1x1x5x128xf32> to vector<5x128xf32>
    %711 = vector.extract_strided_slice %636 {offsets = [0, 0], sizes = [1, 128], strides = [1, 1]} : vector<4x128xf32> to vector<1x128xf32>
    %712 = vector.broadcast %711 : vector<1x128xf32> to vector<5x128xf32>
    %713 = arith.mulf %3, %712 : vector<5x128xf32>
    %714 = vector.extract_strided_slice %636 {offsets = [1, 0], sizes = [1, 128], strides = [1, 1]} : vector<4x128xf32> to vector<1x128xf32>
    %715 = vector.broadcast %714 : vector<1x128xf32> to vector<5x128xf32>
    %716 = arith.mulf %5, %715 : vector<5x128xf32>
    %717 = arith.addf %713, %716 : vector<5x128xf32>
    %718 = vector.extract_strided_slice %636 {offsets = [2, 0], sizes = [1, 128], strides = [1, 1]} : vector<4x128xf32> to vector<1x128xf32>
    %719 = vector.broadcast %718 : vector<1x128xf32> to vector<5x128xf32>
    %720 = arith.mulf %7, %719 : vector<5x128xf32>
    %721 = arith.addf %717, %720 : vector<5x128xf32>
    %722 = vector.extract_strided_slice %636 {offsets = [3, 0], sizes = [1, 128], strides = [1, 1]} : vector<4x128xf32> to vector<1x128xf32>
    %723 = vector.broadcast %722 : vector<1x128xf32> to vector<5x128xf32>
    %724 = arith.mulf %9, %723 : vector<5x128xf32>
    %725 = arith.addf %721, %724 : vector<5x128xf32>
    %726 = arith.addf %710, %725 : vector<5x128xf32>
    %727 = vector.broadcast %55 : vector<1x128xf32> to vector<4x128xf32>
    %728 = arith.mulf %529, %727 : vector<4x128xf32>
    %729 = vector.broadcast %56 : vector<1x128xf32> to vector<4x128xf32>
    %730 = arith.mulf %542, %729 : vector<4x128xf32>
    %731 = arith.addf %728, %730 : vector<4x128xf32>
    %732 = vector.broadcast %57 : vector<1x128xf32> to vector<4x128xf32>
    %733 = arith.mulf %555, %732 : vector<4x128xf32>
    %734 = arith.addf %731, %733 : vector<4x128xf32>
    %735 = vector.broadcast %58 : vector<1x128xf32> to vector<4x128xf32>
    %736 = arith.mulf %568, %735 : vector<4x128xf32>
    %737 = arith.addf %734, %736 : vector<4x128xf32>
    %c5_77 = arith.constant 5 : index
    %c0_78 = arith.constant 0 : index
    %c0_79 = arith.constant 0 : index
    %738 = vector.load %arg2[%c5_77, %c0_78, %c0_79] : memref<8x5x128xf32, #tpu.memory_space<vmem>>, vector<1x5x128xf32>
    %739 = vector.shape_cast %738 : vector<1x5x128xf32> to vector<5x128xf32>
    %740 = arith.addf %577, %737 : vector<4x128xf32>
    %741 = vector.extract_strided_slice %740 {offsets = [0, 0], sizes = [1, 128], strides = [1, 1]} : vector<4x128xf32> to vector<1x128xf32>
    %742 = vector.broadcast %741 : vector<1x128xf32> to vector<5x128xf32>
    %743 = arith.mulf %3, %742 : vector<5x128xf32>
    %744 = vector.extract_strided_slice %740 {offsets = [1, 0], sizes = [1, 128], strides = [1, 1]} : vector<4x128xf32> to vector<1x128xf32>
    %745 = vector.broadcast %744 : vector<1x128xf32> to vector<5x128xf32>
    %746 = arith.mulf %5, %745 : vector<5x128xf32>
    %747 = arith.addf %743, %746 : vector<5x128xf32>
    %748 = vector.extract_strided_slice %740 {offsets = [2, 0], sizes = [1, 128], strides = [1, 1]} : vector<4x128xf32> to vector<1x128xf32>
    %749 = vector.broadcast %748 : vector<1x128xf32> to vector<5x128xf32>
    %750 = arith.mulf %7, %749 : vector<5x128xf32>
    %751 = arith.addf %747, %750 : vector<5x128xf32>
    %752 = vector.extract_strided_slice %740 {offsets = [3, 0], sizes = [1, 128], strides = [1, 1]} : vector<4x128xf32> to vector<1x128xf32>
    %753 = vector.broadcast %752 : vector<1x128xf32> to vector<5x128xf32>
    %754 = arith.mulf %9, %753 : vector<5x128xf32>
    %755 = arith.addf %751, %754 : vector<5x128xf32>
    %756 = arith.addf %739, %755 : vector<5x128xf32>
    %757 = vector.extract_strided_slice %726 {offsets = [0, 0], sizes = [4, 128], strides = [1, 1]} : vector<5x128xf32> to vector<4x128xf32>
    %758 = vector.extract_strided_slice %726 {offsets = [4, 0], sizes = [1, 128], strides = [1, 1]} : vector<5x128xf32> to vector<1x128xf32>
    %759 = vector.extract_strided_slice %654 {offsets = [4, 0], sizes = [1, 128], strides = [1, 1]} : vector<5x128xf32> to vector<1x128xf32>
    %760 = vector.extract_strided_slice %672 {offsets = [4, 0], sizes = [1, 128], strides = [1, 1]} : vector<5x128xf32> to vector<1x128xf32>
    %761 = vector.extract_strided_slice %690 {offsets = [4, 0], sizes = [1, 128], strides = [1, 1]} : vector<5x128xf32> to vector<1x128xf32>
    %762 = vector.extract_strided_slice %708 {offsets = [4, 0], sizes = [1, 128], strides = [1, 1]} : vector<5x128xf32> to vector<1x128xf32>
    %763 = tpu.concatenate %759, %760, %761, %762 in 0 : vector<1x128xf32>, vector<1x128xf32>, vector<1x128xf32>, vector<1x128xf32> -> vector<4x128xf32>
    %764 = vector.extract_strided_slice %756 {offsets = [0, 0], sizes = [4, 128], strides = [1, 1]} : vector<5x128xf32> to vector<4x128xf32>
    %765 = vector.extract_strided_slice %756 {offsets = [4, 0], sizes = [1, 128], strides = [1, 1]} : vector<5x128xf32> to vector<1x128xf32>
    %766 = tpu.reciprocal %758 : vector<1x128xf32> -> vector<1x128xf32>
    %767 = vector.broadcast %766 : vector<1x128xf32> to vector<4x128xf32>
    %768 = arith.mulf %763, %767 : vector<4x128xf32>
    %cst_80 = arith.constant 0.000000e+00 : f32
    %769 = vector.broadcast %cst_80 : f32 to vector<4x128xf32>
    %770 = arith.subf %769, %768 : vector<4x128xf32>
    %771 = arith.mulf %765, %766 : vector<1x128xf32>
    %cst_81 = arith.constant 0.000000e+00 : f32
    %772 = vector.broadcast %cst_81 : f32 to vector<1x128xf32>
    %773 = arith.subf %772, %771 : vector<1x128xf32>
    %774 = vector.broadcast %758 : vector<1x128xf32> to vector<4x128xf32>
    %775 = arith.mulf %770, %774 : vector<4x128xf32>
    %776 = vector.extract_strided_slice %654 {offsets = [0, 0], sizes = [4, 128], strides = [1, 1]} : vector<5x128xf32> to vector<4x128xf32>
    %777 = vector.extract_strided_slice %770 {offsets = [0, 0], sizes = [1, 128], strides = [1, 1]} : vector<4x128xf32> to vector<1x128xf32>
    %778 = vector.broadcast %777 : vector<1x128xf32> to vector<4x128xf32>
    %779 = arith.mulf %757, %778 : vector<4x128xf32>
    %780 = arith.addf %776, %779 : vector<4x128xf32>
    %781 = vector.extract_strided_slice %763 {offsets = [0, 0], sizes = [1, 128], strides = [1, 1]} : vector<4x128xf32> to vector<1x128xf32>
    %782 = vector.broadcast %781 : vector<1x128xf32> to vector<4x128xf32>
    %783 = arith.mulf %770, %782 : vector<4x128xf32>
    %784 = arith.addf %780, %783 : vector<4x128xf32>
    %785 = vector.extract_strided_slice %770 {offsets = [0, 0], sizes = [1, 128], strides = [1, 1]} : vector<4x128xf32> to vector<1x128xf32>
    %786 = vector.broadcast %785 : vector<1x128xf32> to vector<4x128xf32>
    %787 = arith.mulf %775, %786 : vector<4x128xf32>
    %788 = arith.addf %784, %787 : vector<4x128xf32>
    %789 = vector.extract_strided_slice %672 {offsets = [0, 0], sizes = [4, 128], strides = [1, 1]} : vector<5x128xf32> to vector<4x128xf32>
    %790 = vector.extract_strided_slice %770 {offsets = [1, 0], sizes = [1, 128], strides = [1, 1]} : vector<4x128xf32> to vector<1x128xf32>
    %791 = vector.broadcast %790 : vector<1x128xf32> to vector<4x128xf32>
    %792 = arith.mulf %757, %791 : vector<4x128xf32>
    %793 = arith.addf %789, %792 : vector<4x128xf32>
    %794 = vector.extract_strided_slice %763 {offsets = [1, 0], sizes = [1, 128], strides = [1, 1]} : vector<4x128xf32> to vector<1x128xf32>
    %795 = vector.broadcast %794 : vector<1x128xf32> to vector<4x128xf32>
    %796 = arith.mulf %770, %795 : vector<4x128xf32>
    %797 = arith.addf %793, %796 : vector<4x128xf32>
    %798 = vector.extract_strided_slice %770 {offsets = [1, 0], sizes = [1, 128], strides = [1, 1]} : vector<4x128xf32> to vector<1x128xf32>
    %799 = vector.broadcast %798 : vector<1x128xf32> to vector<4x128xf32>
    %800 = arith.mulf %775, %799 : vector<4x128xf32>
    %801 = arith.addf %797, %800 : vector<4x128xf32>
    %802 = vector.extract_strided_slice %690 {offsets = [0, 0], sizes = [4, 128], strides = [1, 1]} : vector<5x128xf32> to vector<4x128xf32>
    %803 = vector.extract_strided_slice %770 {offsets = [2, 0], sizes = [1, 128], strides = [1, 1]} : vector<4x128xf32> to vector<1x128xf32>
    %804 = vector.broadcast %803 : vector<1x128xf32> to vector<4x128xf32>
    %805 = arith.mulf %757, %804 : vector<4x128xf32>
    %806 = arith.addf %802, %805 : vector<4x128xf32>
    %807 = vector.extract_strided_slice %763 {offsets = [2, 0], sizes = [1, 128], strides = [1, 1]} : vector<4x128xf32> to vector<1x128xf32>
    %808 = vector.broadcast %807 : vector<1x128xf32> to vector<4x128xf32>
    %809 = arith.mulf %770, %808 : vector<4x128xf32>
    %810 = arith.addf %806, %809 : vector<4x128xf32>
    %811 = vector.extract_strided_slice %770 {offsets = [2, 0], sizes = [1, 128], strides = [1, 1]} : vector<4x128xf32> to vector<1x128xf32>
    %812 = vector.broadcast %811 : vector<1x128xf32> to vector<4x128xf32>
    %813 = arith.mulf %775, %812 : vector<4x128xf32>
    %814 = arith.addf %810, %813 : vector<4x128xf32>
    %815 = vector.extract_strided_slice %708 {offsets = [0, 0], sizes = [4, 128], strides = [1, 1]} : vector<5x128xf32> to vector<4x128xf32>
    %816 = vector.extract_strided_slice %770 {offsets = [3, 0], sizes = [1, 128], strides = [1, 1]} : vector<4x128xf32> to vector<1x128xf32>
    %817 = vector.broadcast %816 : vector<1x128xf32> to vector<4x128xf32>
    %818 = arith.mulf %757, %817 : vector<4x128xf32>
    %819 = arith.addf %815, %818 : vector<4x128xf32>
    %820 = vector.extract_strided_slice %763 {offsets = [3, 0], sizes = [1, 128], strides = [1, 1]} : vector<4x128xf32> to vector<1x128xf32>
    %821 = vector.broadcast %820 : vector<1x128xf32> to vector<4x128xf32>
    %822 = arith.mulf %770, %821 : vector<4x128xf32>
    %823 = arith.addf %819, %822 : vector<4x128xf32>
    %824 = vector.extract_strided_slice %770 {offsets = [3, 0], sizes = [1, 128], strides = [1, 1]} : vector<4x128xf32> to vector<1x128xf32>
    %825 = vector.broadcast %824 : vector<1x128xf32> to vector<4x128xf32>
    %826 = arith.mulf %775, %825 : vector<4x128xf32>
    %827 = arith.addf %823, %826 : vector<4x128xf32>
    %828 = vector.broadcast %773 : vector<1x128xf32> to vector<4x128xf32>
    %829 = arith.mulf %757, %828 : vector<4x128xf32>
    %830 = arith.addf %764, %829 : vector<4x128xf32>
    %831 = vector.broadcast %765 : vector<1x128xf32> to vector<4x128xf32>
    %832 = arith.mulf %770, %831 : vector<4x128xf32>
    %833 = arith.addf %830, %832 : vector<4x128xf32>
    %834 = vector.broadcast %773 : vector<1x128xf32> to vector<4x128xf32>
    %835 = arith.mulf %775, %834 : vector<4x128xf32>
    %836 = arith.addf %833, %835 : vector<4x128xf32>
    %837 = tpu.concatenate %770, %773 in 0 : vector<4x128xf32>, vector<1x128xf32> -> vector<5x128xf32>
    %c5_82 = arith.constant 5 : index
    %c0_83 = arith.constant 0 : index
    %c0_84 = arith.constant 0 : index
    %838 = vector.load %arg9[%c5_82, %c0_83, %c0_84] : memref<8x5x128xf32, #tpu.memory_space<vmem>>, vector<1x5x128xf32>
    %839 = vector.shape_cast %838 : vector<1x5x128xf32> to vector<5x128xf32>
    %840 = vector.shape_cast %837 : vector<5x128xf32> to vector<1x5x128xf32>
    tpu.vector_store %arg9[%c5_82, %c0_83, %c0_84], %840 {strides = array<i32>} : memref<8x5x128xf32, #tpu.memory_space<vmem>>, vector<1x5x128xf32>,
    %841 = vector.broadcast %11 : vector<1x128xf32> to vector<4x128xf32>
    %842 = arith.mulf %788, %841 : vector<4x128xf32>
    %843 = vector.broadcast %21 : vector<1x128xf32> to vector<4x128xf32>
    %844 = arith.mulf %801, %843 : vector<4x128xf32>
    %845 = arith.addf %842, %844 : vector<4x128xf32>
    %846 = vector.broadcast %31 : vector<1x128xf32> to vector<4x128xf32>
    %847 = arith.mulf %814, %846 : vector<4x128xf32>
    %848 = arith.addf %845, %847 : vector<4x128xf32>
    %849 = vector.broadcast %41 : vector<1x128xf32> to vector<4x128xf32>
    %850 = arith.mulf %827, %849 : vector<4x128xf32>
    %851 = arith.addf %848, %850 : vector<4x128xf32>
    %852 = vector.broadcast %13 : vector<1x128xf32> to vector<4x128xf32>
    %853 = arith.mulf %788, %852 : vector<4x128xf32>
    %854 = vector.broadcast %23 : vector<1x128xf32> to vector<4x128xf32>
    %855 = arith.mulf %801, %854 : vector<4x128xf32>
    %856 = arith.addf %853, %855 : vector<4x128xf32>
    %857 = vector.broadcast %33 : vector<1x128xf32> to vector<4x128xf32>
    %858 = arith.mulf %814, %857 : vector<4x128xf32>
    %859 = arith.addf %856, %858 : vector<4x128xf32>
    %860 = vector.broadcast %43 : vector<1x128xf32> to vector<4x128xf32>
    %861 = arith.mulf %827, %860 : vector<4x128xf32>
    %862 = arith.addf %859, %861 : vector<4x128xf32>
    %863 = vector.broadcast %15 : vector<1x128xf32> to vector<4x128xf32>
    %864 = arith.mulf %788, %863 : vector<4x128xf32>
    %865 = vector.broadcast %25 : vector<1x128xf32> to vector<4x128xf32>
    %866 = arith.mulf %801, %865 : vector<4x128xf32>
    %867 = arith.addf %864, %866 : vector<4x128xf32>
    %868 = vector.broadcast %35 : vector<1x128xf32> to vector<4x128xf32>
    %869 = arith.mulf %814, %868 : vector<4x128xf32>
    %870 = arith.addf %867, %869 : vector<4x128xf32>
    %871 = vector.broadcast %45 : vector<1x128xf32> to vector<4x128xf32>
    %872 = arith.mulf %827, %871 : vector<4x128xf32>
    %873 = arith.addf %870, %872 : vector<4x128xf32>
    %874 = vector.broadcast %17 : vector<1x128xf32> to vector<4x128xf32>
    %875 = arith.mulf %788, %874 : vector<4x128xf32>
    %876 = vector.broadcast %27 : vector<1x128xf32> to vector<4x128xf32>
    %877 = arith.mulf %801, %876 : vector<4x128xf32>
    %878 = arith.addf %875, %877 : vector<4x128xf32>
    %879 = vector.broadcast %37 : vector<1x128xf32> to vector<4x128xf32>
    %880 = arith.mulf %814, %879 : vector<4x128xf32>
    %881 = arith.addf %878, %880 : vector<4x128xf32>
    %882 = vector.broadcast %47 : vector<1x128xf32> to vector<4x128xf32>
    %883 = arith.mulf %827, %882 : vector<4x128xf32>
    %884 = arith.addf %881, %883 : vector<4x128xf32>
    %885 = vector.broadcast %19 : vector<1x128xf32> to vector<4x128xf32>
    %886 = arith.mulf %788, %885 : vector<4x128xf32>
    %887 = vector.broadcast %29 : vector<1x128xf32> to vector<4x128xf32>
    %888 = arith.mulf %801, %887 : vector<4x128xf32>
    %889 = arith.addf %886, %888 : vector<4x128xf32>
    %890 = vector.broadcast %39 : vector<1x128xf32> to vector<4x128xf32>
    %891 = arith.mulf %814, %890 : vector<4x128xf32>
    %892 = arith.addf %889, %891 : vector<4x128xf32>
    %893 = vector.broadcast %49 : vector<1x128xf32> to vector<4x128xf32>
    %894 = arith.mulf %827, %893 : vector<4x128xf32>
    %895 = arith.addf %892, %894 : vector<4x128xf32>
    %c4_85 = arith.constant 4 : index
    %c0_86 = arith.constant 0 : index
    %c0_87 = arith.constant 0 : index
    %c0_88 = arith.constant 0 : index
    %896 = vector.load %arg1[%c4_85, %c0_86, %c0_87, %c0_88] : memref<8x5x5x128xf32, #tpu.memory_space<vmem>>, vector<1x1x5x128xf32>
    %897 = vector.shape_cast %896 : vector<1x1x5x128xf32> to vector<5x128xf32>
    %898 = vector.extract_strided_slice %851 {offsets = [0, 0], sizes = [1, 128], strides = [1, 1]} : vector<4x128xf32> to vector<1x128xf32>
    %899 = vector.broadcast %898 : vector<1x128xf32> to vector<5x128xf32>
    %900 = arith.mulf %3, %899 : vector<5x128xf32>
    %901 = vector.extract_strided_slice %851 {offsets = [1, 0], sizes = [1, 128], strides = [1, 1]} : vector<4x128xf32> to vector<1x128xf32>
    %902 = vector.broadcast %901 : vector<1x128xf32> to vector<5x128xf32>
    %903 = arith.mulf %5, %902 : vector<5x128xf32>
    %904 = arith.addf %900, %903 : vector<5x128xf32>
    %905 = vector.extract_strided_slice %851 {offsets = [2, 0], sizes = [1, 128], strides = [1, 1]} : vector<4x128xf32> to vector<1x128xf32>
    %906 = vector.broadcast %905 : vector<1x128xf32> to vector<5x128xf32>
    %907 = arith.mulf %7, %906 : vector<5x128xf32>
    %908 = arith.addf %904, %907 : vector<5x128xf32>
    %909 = vector.extract_strided_slice %851 {offsets = [3, 0], sizes = [1, 128], strides = [1, 1]} : vector<4x128xf32> to vector<1x128xf32>
    %910 = vector.broadcast %909 : vector<1x128xf32> to vector<5x128xf32>
    %911 = arith.mulf %9, %910 : vector<5x128xf32>
    %912 = arith.addf %908, %911 : vector<5x128xf32>
    %913 = arith.addf %897, %912 : vector<5x128xf32>
    %c4_89 = arith.constant 4 : index
    %c1_90 = arith.constant 1 : index
    %c0_91 = arith.constant 0 : index
    %c0_92 = arith.constant 0 : index
    %914 = vector.load %arg1[%c4_89, %c1_90, %c0_91, %c0_92] : memref<8x5x5x128xf32, #tpu.memory_space<vmem>>, vector<1x1x5x128xf32>
    %915 = vector.shape_cast %914 : vector<1x1x5x128xf32> to vector<5x128xf32>
    %916 = vector.extract_strided_slice %862 {offsets = [0, 0], sizes = [1, 128], strides = [1, 1]} : vector<4x128xf32> to vector<1x128xf32>
    %917 = vector.broadcast %916 : vector<1x128xf32> to vector<5x128xf32>
    %918 = arith.mulf %3, %917 : vector<5x128xf32>
    %919 = vector.extract_strided_slice %862 {offsets = [1, 0], sizes = [1, 128], strides = [1, 1]} : vector<4x128xf32> to vector<1x128xf32>
    %920 = vector.broadcast %919 : vector<1x128xf32> to vector<5x128xf32>
    %921 = arith.mulf %5, %920 : vector<5x128xf32>
    %922 = arith.addf %918, %921 : vector<5x128xf32>
    %923 = vector.extract_strided_slice %862 {offsets = [2, 0], sizes = [1, 128], strides = [1, 1]} : vector<4x128xf32> to vector<1x128xf32>
    %924 = vector.broadcast %923 : vector<1x128xf32> to vector<5x128xf32>
    %925 = arith.mulf %7, %924 : vector<5x128xf32>
    %926 = arith.addf %922, %925 : vector<5x128xf32>
    %927 = vector.extract_strided_slice %862 {offsets = [3, 0], sizes = [1, 128], strides = [1, 1]} : vector<4x128xf32> to vector<1x128xf32>
    %928 = vector.broadcast %927 : vector<1x128xf32> to vector<5x128xf32>
    %929 = arith.mulf %9, %928 : vector<5x128xf32>
    %930 = arith.addf %926, %929 : vector<5x128xf32>
    %931 = arith.addf %915, %930 : vector<5x128xf32>
    %c4_93 = arith.constant 4 : index
    %c2_94 = arith.constant 2 : index
    %c0_95 = arith.constant 0 : index
    %c0_96 = arith.constant 0 : index
    %932 = vector.load %arg1[%c4_93, %c2_94, %c0_95, %c0_96] : memref<8x5x5x128xf32, #tpu.memory_space<vmem>>, vector<1x1x5x128xf32>
    %933 = vector.shape_cast %932 : vector<1x1x5x128xf32> to vector<5x128xf32>
    %934 = vector.extract_strided_slice %873 {offsets = [0, 0], sizes = [1, 128], strides = [1, 1]} : vector<4x128xf32> to vector<1x128xf32>
    %935 = vector.broadcast %934 : vector<1x128xf32> to vector<5x128xf32>
    %936 = arith.mulf %3, %935 : vector<5x128xf32>
    %937 = vector.extract_strided_slice %873 {offsets = [1, 0], sizes = [1, 128], strides = [1, 1]} : vector<4x128xf32> to vector<1x128xf32>
    %938 = vector.broadcast %937 : vector<1x128xf32> to vector<5x128xf32>
    %939 = arith.mulf %5, %938 : vector<5x128xf32>
    %940 = arith.addf %936, %939 : vector<5x128xf32>
    %941 = vector.extract_strided_slice %873 {offsets = [2, 0], sizes = [1, 128], strides = [1, 1]} : vector<4x128xf32> to vector<1x128xf32>
    %942 = vector.broadcast %941 : vector<1x128xf32> to vector<5x128xf32>
    %943 = arith.mulf %7, %942 : vector<5x128xf32>
    %944 = arith.addf %940, %943 : vector<5x128xf32>
    %945 = vector.extract_strided_slice %873 {offsets = [3, 0], sizes = [1, 128], strides = [1, 1]} : vector<4x128xf32> to vector<1x128xf32>
    %946 = vector.broadcast %945 : vector<1x128xf32> to vector<5x128xf32>
    %947 = arith.mulf %9, %946 : vector<5x128xf32>
    %948 = arith.addf %944, %947 : vector<5x128xf32>
    %949 = arith.addf %933, %948 : vector<5x128xf32>
    %c4_97 = arith.constant 4 : index
    %c3_98 = arith.constant 3 : index
    %c0_99 = arith.constant 0 : index
    %c0_100 = arith.constant 0 : index
    %950 = vector.load %arg1[%c4_97, %c3_98, %c0_99, %c0_100] : memref<8x5x5x128xf32, #tpu.memory_space<vmem>>, vector<1x1x5x128xf32>
    %951 = vector.shape_cast %950 : vector<1x1x5x128xf32> to vector<5x128xf32>
    %952 = vector.extract_strided_slice %884 {offsets = [0, 0], sizes = [1, 128], strides = [1, 1]} : vector<4x128xf32> to vector<1x128xf32>
    %953 = vector.broadcast %952 : vector<1x128xf32> to vector<5x128xf32>
    %954 = arith.mulf %3, %953 : vector<5x128xf32>
    %955 = vector.extract_strided_slice %884 {offsets = [1, 0], sizes = [1, 128], strides = [1, 1]} : vector<4x128xf32> to vector<1x128xf32>
    %956 = vector.broadcast %955 : vector<1x128xf32> to vector<5x128xf32>
    %957 = arith.mulf %5, %956 : vector<5x128xf32>
    %958 = arith.addf %954, %957 : vector<5x128xf32>
    %959 = vector.extract_strided_slice %884 {offsets = [2, 0], sizes = [1, 128], strides = [1, 1]} : vector<4x128xf32> to vector<1x128xf32>
    %960 = vector.broadcast %959 : vector<1x128xf32> to vector<5x128xf32>
    %961 = arith.mulf %7, %960 : vector<5x128xf32>
    %962 = arith.addf %958, %961 : vector<5x128xf32>
    %963 = vector.extract_strided_slice %884 {offsets = [3, 0], sizes = [1, 128], strides = [1, 1]} : vector<4x128xf32> to vector<1x128xf32>
    %964 = vector.broadcast %963 : vector<1x128xf32> to vector<5x128xf32>
    %965 = arith.mulf %9, %964 : vector<5x128xf32>
    %966 = arith.addf %962, %965 : vector<5x128xf32>
    %967 = arith.addf %951, %966 : vector<5x128xf32>
    %c4_101 = arith.constant 4 : index
    %c4_102 = arith.constant 4 : index
    %c0_103 = arith.constant 0 : index
    %c0_104 = arith.constant 0 : index
    %968 = vector.load %arg1[%c4_101, %c4_102, %c0_103, %c0_104] : memref<8x5x5x128xf32, #tpu.memory_space<vmem>>, vector<1x1x5x128xf32>
    %969 = vector.shape_cast %968 : vector<1x1x5x128xf32> to vector<5x128xf32>
    %970 = vector.extract_strided_slice %895 {offsets = [0, 0], sizes = [1, 128], strides = [1, 1]} : vector<4x128xf32> to vector<1x128xf32>
    %971 = vector.broadcast %970 : vector<1x128xf32> to vector<5x128xf32>
    %972 = arith.mulf %3, %971 : vector<5x128xf32>
    %973 = vector.extract_strided_slice %895 {offsets = [1, 0], sizes = [1, 128], strides = [1, 1]} : vector<4x128xf32> to vector<1x128xf32>
    %974 = vector.broadcast %973 : vector<1x128xf32> to vector<5x128xf32>
    %975 = arith.mulf %5, %974 : vector<5x128xf32>
    %976 = arith.addf %972, %975 : vector<5x128xf32>
    %977 = vector.extract_strided_slice %895 {offsets = [2, 0], sizes = [1, 128], strides = [1, 1]} : vector<4x128xf32> to vector<1x128xf32>
    %978 = vector.broadcast %977 : vector<1x128xf32> to vector<5x128xf32>
    %979 = arith.mulf %7, %978 : vector<5x128xf32>
    %980 = arith.addf %976, %979 : vector<5x128xf32>
    %981 = vector.extract_strided_slice %895 {offsets = [3, 0], sizes = [1, 128], strides = [1, 1]} : vector<4x128xf32> to vector<1x128xf32>
    %982 = vector.broadcast %981 : vector<1x128xf32> to vector<5x128xf32>
    %983 = arith.mulf %9, %982 : vector<5x128xf32>
    %984 = arith.addf %980, %983 : vector<5x128xf32>
    %985 = arith.addf %969, %984 : vector<5x128xf32>
    %986 = vector.broadcast %55 : vector<1x128xf32> to vector<4x128xf32>
    %987 = arith.mulf %788, %986 : vector<4x128xf32>
    %988 = vector.broadcast %56 : vector<1x128xf32> to vector<4x128xf32>
    %989 = arith.mulf %801, %988 : vector<4x128xf32>
    %990 = arith.addf %987, %989 : vector<4x128xf32>
    %991 = vector.broadcast %57 : vector<1x128xf32> to vector<4x128xf32>
    %992 = arith.mulf %814, %991 : vector<4x128xf32>
    %993 = arith.addf %990, %992 : vector<4x128xf32>
    %994 = vector.broadcast %58 : vector<1x128xf32> to vector<4x128xf32>
    %995 = arith.mulf %827, %994 : vector<4x128xf32>
    %996 = arith.addf %993, %995 : vector<4x128xf32>
    %c4_105 = arith.constant 4 : index
    %c0_106 = arith.constant 0 : index
    %c0_107 = arith.constant 0 : index
    %997 = vector.load %arg2[%c4_105, %c0_106, %c0_107] : memref<8x5x128xf32, #tpu.memory_space<vmem>>, vector<1x5x128xf32>
    %998 = vector.shape_cast %997 : vector<1x5x128xf32> to vector<5x128xf32>
    %999 = arith.addf %836, %996 : vector<4x128xf32>
    %1000 = vector.extract_strided_slice %999 {offsets = [0, 0], sizes = [1, 128], strides = [1, 1]} : vector<4x128xf32> to vector<1x128xf32>
    %1001 = vector.broadcast %1000 : vector<1x128xf32> to vector<5x128xf32>
    %1002 = arith.mulf %3, %1001 : vector<5x128xf32>
    %1003 = vector.extract_strided_slice %999 {offsets = [1, 0], sizes = [1, 128], strides = [1, 1]} : vector<4x128xf32> to vector<1x128xf32>
    %1004 = vector.broadcast %1003 : vector<1x128xf32> to vector<5x128xf32>
    %1005 = arith.mulf %5, %1004 : vector<5x128xf32>
    %1006 = arith.addf %1002, %1005 : vector<5x128xf32>
    %1007 = vector.extract_strided_slice %999 {offsets = [2, 0], sizes = [1, 128], strides = [1, 1]} : vector<4x128xf32> to vector<1x128xf32>
    %1008 = vector.broadcast %1007 : vector<1x128xf32> to vector<5x128xf32>
    %1009 = arith.mulf %7, %1008 : vector<5x128xf32>
    %1010 = arith.addf %1006, %1009 : vector<5x128xf32>
    %1011 = vector.extract_strided_slice %999 {offsets = [3, 0], sizes = [1, 128], strides = [1, 1]} : vector<4x128xf32> to vector<1x128xf32>
    %1012 = vector.broadcast %1011 : vector<1x128xf32> to vector<5x128xf32>
    %1013 = arith.mulf %9, %1012 : vector<5x128xf32>
    %1014 = arith.addf %1010, %1013 : vector<5x128xf32>
    %1015 = arith.addf %998, %1014 : vector<5x128xf32>
    %1016 = vector.extract_strided_slice %985 {offsets = [0, 0], sizes = [4, 128], strides = [1, 1]} : vector<5x128xf32> to vector<4x128xf32>
    %1017 = vector.extract_strided_slice %985 {offsets = [4, 0], sizes = [1, 128], strides = [1, 1]} : vector<5x128xf32> to vector<1x128xf32>
    %1018 = vector.extract_strided_slice %913 {offsets = [4, 0], sizes = [1, 128], strides = [1, 1]} : vector<5x128xf32> to vector<1x128xf32>
    %1019 = vector.extract_strided_slice %931 {offsets = [4, 0], sizes = [1, 128], strides = [1, 1]} : vector<5x128xf32> to vector<1x128xf32>
    %1020 = vector.extract_strided_slice %949 {offsets = [4, 0], sizes = [1, 128], strides = [1, 1]} : vector<5x128xf32> to vector<1x128xf32>
    %1021 = vector.extract_strided_slice %967 {offsets = [4, 0], sizes = [1, 128], strides = [1, 1]} : vector<5x128xf32> to vector<1x128xf32>
    %1022 = tpu.concatenate %1018, %1019, %1020, %1021 in 0 : vector<1x128xf32>, vector<1x128xf32>, vector<1x128xf32>, vector<1x128xf32> -> vector<4x128xf32>
    %1023 = vector.extract_strided_slice %1015 {offsets = [0, 0], sizes = [4, 128], strides = [1, 1]} : vector<5x128xf32> to vector<4x128xf32>
    %1024 = vector.extract_strided_slice %1015 {offsets = [4, 0], sizes = [1, 128], strides = [1, 1]} : vector<5x128xf32> to vector<1x128xf32>
    %1025 = tpu.reciprocal %1017 : vector<1x128xf32> -> vector<1x128xf32>
    %1026 = vector.broadcast %1025 : vector<1x128xf32> to vector<4x128xf32>
    %1027 = arith.mulf %1022, %1026 : vector<4x128xf32>
    %cst_108 = arith.constant 0.000000e+00 : f32
    %1028 = vector.broadcast %cst_108 : f32 to vector<4x128xf32>
    %1029 = arith.subf %1028, %1027 : vector<4x128xf32>
    %1030 = arith.mulf %1024, %1025 : vector<1x128xf32>
    %cst_109 = arith.constant 0.000000e+00 : f32
    %1031 = vector.broadcast %cst_109 : f32 to vector<1x128xf32>
    %1032 = arith.subf %1031, %1030 : vector<1x128xf32>
    %1033 = vector.broadcast %1017 : vector<1x128xf32> to vector<4x128xf32>
    %1034 = arith.mulf %1029, %1033 : vector<4x128xf32>
    %1035 = vector.extract_strided_slice %913 {offsets = [0, 0], sizes = [4, 128], strides = [1, 1]} : vector<5x128xf32> to vector<4x128xf32>
    %1036 = vector.extract_strided_slice %1029 {offsets = [0, 0], sizes = [1, 128], strides = [1, 1]} : vector<4x128xf32> to vector<1x128xf32>
    %1037 = vector.broadcast %1036 : vector<1x128xf32> to vector<4x128xf32>
    %1038 = arith.mulf %1016, %1037 : vector<4x128xf32>
    %1039 = arith.addf %1035, %1038 : vector<4x128xf32>
    %1040 = vector.extract_strided_slice %1022 {offsets = [0, 0], sizes = [1, 128], strides = [1, 1]} : vector<4x128xf32> to vector<1x128xf32>
    %1041 = vector.broadcast %1040 : vector<1x128xf32> to vector<4x128xf32>
    %1042 = arith.mulf %1029, %1041 : vector<4x128xf32>
    %1043 = arith.addf %1039, %1042 : vector<4x128xf32>
    %1044 = vector.extract_strided_slice %1029 {offsets = [0, 0], sizes = [1, 128], strides = [1, 1]} : vector<4x128xf32> to vector<1x128xf32>
    %1045 = vector.broadcast %1044 : vector<1x128xf32> to vector<4x128xf32>
    %1046 = arith.mulf %1034, %1045 : vector<4x128xf32>
    %1047 = arith.addf %1043, %1046 : vector<4x128xf32>
    %1048 = vector.extract_strided_slice %931 {offsets = [0, 0], sizes = [4, 128], strides = [1, 1]} : vector<5x128xf32> to vector<4x128xf32>
    %1049 = vector.extract_strided_slice %1029 {offsets = [1, 0], sizes = [1, 128], strides = [1, 1]} : vector<4x128xf32> to vector<1x128xf32>
    %1050 = vector.broadcast %1049 : vector<1x128xf32> to vector<4x128xf32>
    %1051 = arith.mulf %1016, %1050 : vector<4x128xf32>
    %1052 = arith.addf %1048, %1051 : vector<4x128xf32>
    %1053 = vector.extract_strided_slice %1022 {offsets = [1, 0], sizes = [1, 128], strides = [1, 1]} : vector<4x128xf32> to vector<1x128xf32>
    %1054 = vector.broadcast %1053 : vector<1x128xf32> to vector<4x128xf32>
    %1055 = arith.mulf %1029, %1054 : vector<4x128xf32>
    %1056 = arith.addf %1052, %1055 : vector<4x128xf32>
    %1057 = vector.extract_strided_slice %1029 {offsets = [1, 0], sizes = [1, 128], strides = [1, 1]} : vector<4x128xf32> to vector<1x128xf32>
    %1058 = vector.broadcast %1057 : vector<1x128xf32> to vector<4x128xf32>
    %1059 = arith.mulf %1034, %1058 : vector<4x128xf32>
    %1060 = arith.addf %1056, %1059 : vector<4x128xf32>
    %1061 = vector.extract_strided_slice %949 {offsets = [0, 0], sizes = [4, 128], strides = [1, 1]} : vector<5x128xf32> to vector<4x128xf32>
    %1062 = vector.extract_strided_slice %1029 {offsets = [2, 0], sizes = [1, 128], strides = [1, 1]} : vector<4x128xf32> to vector<1x128xf32>
    %1063 = vector.broadcast %1062 : vector<1x128xf32> to vector<4x128xf32>
    %1064 = arith.mulf %1016, %1063 : vector<4x128xf32>
    %1065 = arith.addf %1061, %1064 : vector<4x128xf32>
    %1066 = vector.extract_strided_slice %1022 {offsets = [2, 0], sizes = [1, 128], strides = [1, 1]} : vector<4x128xf32> to vector<1x128xf32>
    %1067 = vector.broadcast %1066 : vector<1x128xf32> to vector<4x128xf32>
    %1068 = arith.mulf %1029, %1067 : vector<4x128xf32>
    %1069 = arith.addf %1065, %1068 : vector<4x128xf32>
    %1070 = vector.extract_strided_slice %1029 {offsets = [2, 0], sizes = [1, 128], strides = [1, 1]} : vector<4x128xf32> to vector<1x128xf32>
    %1071 = vector.broadcast %1070 : vector<1x128xf32> to vector<4x128xf32>
    %1072 = arith.mulf %1034, %1071 : vector<4x128xf32>
    %1073 = arith.addf %1069, %1072 : vector<4x128xf32>
    %1074 = vector.extract_strided_slice %967 {offsets = [0, 0], sizes = [4, 128], strides = [1, 1]} : vector<5x128xf32> to vector<4x128xf32>
    %1075 = vector.extract_strided_slice %1029 {offsets = [3, 0], sizes = [1, 128], strides = [1, 1]} : vector<4x128xf32> to vector<1x128xf32>
    %1076 = vector.broadcast %1075 : vector<1x128xf32> to vector<4x128xf32>
    %1077 = arith.mulf %1016, %1076 : vector<4x128xf32>
    %1078 = arith.addf %1074, %1077 : vector<4x128xf32>
    %1079 = vector.extract_strided_slice %1022 {offsets = [3, 0], sizes = [1, 128], strides = [1, 1]} : vector<4x128xf32> to vector<1x128xf32>
    %1080 = vector.broadcast %1079 : vector<1x128xf32> to vector<4x128xf32>
    %1081 = arith.mulf %1029, %1080 : vector<4x128xf32>
    %1082 = arith.addf %1078, %1081 : vector<4x128xf32>
    %1083 = vector.extract_strided_slice %1029 {offsets = [3, 0], sizes = [1, 128], strides = [1, 1]} : vector<4x128xf32> to vector<1x128xf32>
    %1084 = vector.broadcast %1083 : vector<1x128xf32> to vector<4x128xf32>
    %1085 = arith.mulf %1034, %1084 : vector<4x128xf32>
    %1086 = arith.addf %1082, %1085 : vector<4x128xf32>
    %1087 = vector.broadcast %1032 : vector<1x128xf32> to vector<4x128xf32>
    %1088 = arith.mulf %1016, %1087 : vector<4x128xf32>
    %1089 = arith.addf %1023, %1088 : vector<4x128xf32>
    %1090 = vector.broadcast %1024 : vector<1x128xf32> to vector<4x128xf32>
    %1091 = arith.mulf %1029, %1090 : vector<4x128xf32>
    %1092 = arith.addf %1089, %1091 : vector<4x128xf32>
    %1093 = vector.broadcast %1032 : vector<1x128xf32> to vector<4x128xf32>
    %1094 = arith.mulf %1034, %1093 : vector<4x128xf32>
    %1095 = arith.addf %1092, %1094 : vector<4x128xf32>
    %1096 = tpu.concatenate %1029, %1032 in 0 : vector<4x128xf32>, vector<1x128xf32> -> vector<5x128xf32>
    %c4_110 = arith.constant 4 : index
    %c0_111 = arith.constant 0 : index
    %c0_112 = arith.constant 0 : index
    %1097 = vector.load %arg9[%c4_110, %c0_111, %c0_112] : memref<8x5x128xf32, #tpu.memory_space<vmem>>, vector<1x5x128xf32>
    %1098 = vector.shape_cast %1097 : vector<1x5x128xf32> to vector<5x128xf32>
    %1099 = vector.shape_cast %1096 : vector<5x128xf32> to vector<1x5x128xf32>
    tpu.vector_store %arg9[%c4_110, %c0_111, %c0_112], %1099 {strides = array<i32>} : memref<8x5x128xf32, #tpu.memory_space<vmem>>, vector<1x5x128xf32>,
    %1100 = vector.broadcast %11 : vector<1x128xf32> to vector<4x128xf32>
    %1101 = arith.mulf %1047, %1100 : vector<4x128xf32>
    %1102 = vector.broadcast %21 : vector<1x128xf32> to vector<4x128xf32>
    %1103 = arith.mulf %1060, %1102 : vector<4x128xf32>
    %1104 = arith.addf %1101, %1103 : vector<4x128xf32>
    %1105 = vector.broadcast %31 : vector<1x128xf32> to vector<4x128xf32>
    %1106 = arith.mulf %1073, %1105 : vector<4x128xf32>
    %1107 = arith.addf %1104, %1106 : vector<4x128xf32>
    %1108 = vector.broadcast %41 : vector<1x128xf32> to vector<4x128xf32>
    %1109 = arith.mulf %1086, %1108 : vector<4x128xf32>
    %1110 = arith.addf %1107, %1109 : vector<4x128xf32>
    %1111 = vector.broadcast %13 : vector<1x128xf32> to vector<4x128xf32>
    %1112 = arith.mulf %1047, %1111 : vector<4x128xf32>
    %1113 = vector.broadcast %23 : vector<1x128xf32> to vector<4x128xf32>
    %1114 = arith.mulf %1060, %1113 : vector<4x128xf32>
    %1115 = arith.addf %1112, %1114 : vector<4x128xf32>
    %1116 = vector.broadcast %33 : vector<1x128xf32> to vector<4x128xf32>
    %1117 = arith.mulf %1073, %1116 : vector<4x128xf32>
    %1118 = arith.addf %1115, %1117 : vector<4x128xf32>
    %1119 = vector.broadcast %43 : vector<1x128xf32> to vector<4x128xf32>
    %1120 = arith.mulf %1086, %1119 : vector<4x128xf32>
    %1121 = arith.addf %1118, %1120 : vector<4x128xf32>
    %1122 = vector.broadcast %15 : vector<1x128xf32> to vector<4x128xf32>
    %1123 = arith.mulf %1047, %1122 : vector<4x128xf32>
    %1124 = vector.broadcast %25 : vector<1x128xf32> to vector<4x128xf32>
    %1125 = arith.mulf %1060, %1124 : vector<4x128xf32>
    %1126 = arith.addf %1123, %1125 : vector<4x128xf32>
    %1127 = vector.broadcast %35 : vector<1x128xf32> to vector<4x128xf32>
    %1128 = arith.mulf %1073, %1127 : vector<4x128xf32>
    %1129 = arith.addf %1126, %1128 : vector<4x128xf32>
    %1130 = vector.broadcast %45 : vector<1x128xf32> to vector<4x128xf32>
    %1131 = arith.mulf %1086, %1130 : vector<4x128xf32>
    %1132 = arith.addf %1129, %1131 : vector<4x128xf32>
    %1133 = vector.broadcast %17 : vector<1x128xf32> to vector<4x128xf32>
    %1134 = arith.mulf %1047, %1133 : vector<4x128xf32>
    %1135 = vector.broadcast %27 : vector<1x128xf32> to vector<4x128xf32>
    %1136 = arith.mulf %1060, %1135 : vector<4x128xf32>
    %1137 = arith.addf %1134, %1136 : vector<4x128xf32>
    %1138 = vector.broadcast %37 : vector<1x128xf32> to vector<4x128xf32>
    %1139 = arith.mulf %1073, %1138 : vector<4x128xf32>
    %1140 = arith.addf %1137, %1139 : vector<4x128xf32>
    %1141 = vector.broadcast %47 : vector<1x128xf32> to vector<4x128xf32>
    %1142 = arith.mulf %1086, %1141 : vector<4x128xf32>
    %1143 = arith.addf %1140, %1142 : vector<4x128xf32>
    %1144 = vector.broadcast %19 : vector<1x128xf32> to vector<4x128xf32>
    %1145 = arith.mulf %1047, %1144 : vector<4x128xf32>
    %1146 = vector.broadcast %29 : vector<1x128xf32> to vector<4x128xf32>
    %1147 = arith.mulf %1060, %1146 : vector<4x128xf32>
    %1148 = arith.addf %1145, %1147 : vector<4x128xf32>
    %1149 = vector.broadcast %39 : vector<1x128xf32> to vector<4x128xf32>
    %1150 = arith.mulf %1073, %1149 : vector<4x128xf32>
    %1151 = arith.addf %1148, %1150 : vector<4x128xf32>
    %1152 = vector.broadcast %49 : vector<1x128xf32> to vector<4x128xf32>
    %1153 = arith.mulf %1086, %1152 : vector<4x128xf32>
    %1154 = arith.addf %1151, %1153 : vector<4x128xf32>
    %c3_113 = arith.constant 3 : index
    %c0_114 = arith.constant 0 : index
    %c0_115 = arith.constant 0 : index
    %c0_116 = arith.constant 0 : index
    %1155 = vector.load %arg1[%c3_113, %c0_114, %c0_115, %c0_116] : memref<8x5x5x128xf32, #tpu.memory_space<vmem>>, vector<1x1x5x128xf32>
    %1156 = vector.shape_cast %1155 : vector<1x1x5x128xf32> to vector<5x128xf32>
    %1157 = vector.extract_strided_slice %1110 {offsets = [0, 0], sizes = [1, 128], strides = [1, 1]} : vector<4x128xf32> to vector<1x128xf32>
    %1158 = vector.broadcast %1157 : vector<1x128xf32> to vector<5x128xf32>
    %1159 = arith.mulf %3, %1158 : vector<5x128xf32>
    %1160 = vector.extract_strided_slice %1110 {offsets = [1, 0], sizes = [1, 128], strides = [1, 1]} : vector<4x128xf32> to vector<1x128xf32>
    %1161 = vector.broadcast %1160 : vector<1x128xf32> to vector<5x128xf32>
    %1162 = arith.mulf %5, %1161 : vector<5x128xf32>
    %1163 = arith.addf %1159, %1162 : vector<5x128xf32>
    %1164 = vector.extract_strided_slice %1110 {offsets = [2, 0], sizes = [1, 128], strides = [1, 1]} : vector<4x128xf32> to vector<1x128xf32>
    %1165 = vector.broadcast %1164 : vector<1x128xf32> to vector<5x128xf32>
    %1166 = arith.mulf %7, %1165 : vector<5x128xf32>
    %1167 = arith.addf %1163, %1166 : vector<5x128xf32>
    %1168 = vector.extract_strided_slice %1110 {offsets = [3, 0], sizes = [1, 128], strides = [1, 1]} : vector<4x128xf32> to vector<1x128xf32>
    %1169 = vector.broadcast %1168 : vector<1x128xf32> to vector<5x128xf32>
    %1170 = arith.mulf %9, %1169 : vector<5x128xf32>
    %1171 = arith.addf %1167, %1170 : vector<5x128xf32>
    %1172 = arith.addf %1156, %1171 : vector<5x128xf32>
    %c3_117 = arith.constant 3 : index
    %c1_118 = arith.constant 1 : index
    %c0_119 = arith.constant 0 : index
    %c0_120 = arith.constant 0 : index
    %1173 = vector.load %arg1[%c3_117, %c1_118, %c0_119, %c0_120] : memref<8x5x5x128xf32, #tpu.memory_space<vmem>>, vector<1x1x5x128xf32>
    %1174 = vector.shape_cast %1173 : vector<1x1x5x128xf32> to vector<5x128xf32>
    %1175 = vector.extract_strided_slice %1121 {offsets = [0, 0], sizes = [1, 128], strides = [1, 1]} : vector<4x128xf32> to vector<1x128xf32>
    %1176 = vector.broadcast %1175 : vector<1x128xf32> to vector<5x128xf32>
    %1177 = arith.mulf %3, %1176 : vector<5x128xf32>
    %1178 = vector.extract_strided_slice %1121 {offsets = [1, 0], sizes = [1, 128], strides = [1, 1]} : vector<4x128xf32> to vector<1x128xf32>
    %1179 = vector.broadcast %1178 : vector<1x128xf32> to vector<5x128xf32>
    %1180 = arith.mulf %5, %1179 : vector<5x128xf32>
    %1181 = arith.addf %1177, %1180 : vector<5x128xf32>
    %1182 = vector.extract_strided_slice %1121 {offsets = [2, 0], sizes = [1, 128], strides = [1, 1]} : vector<4x128xf32> to vector<1x128xf32>
    %1183 = vector.broadcast %1182 : vector<1x128xf32> to vector<5x128xf32>
    %1184 = arith.mulf %7, %1183 : vector<5x128xf32>
    %1185 = arith.addf %1181, %1184 : vector<5x128xf32>
    %1186 = vector.extract_strided_slice %1121 {offsets = [3, 0], sizes = [1, 128], strides = [1, 1]} : vector<4x128xf32> to vector<1x128xf32>
    %1187 = vector.broadcast %1186 : vector<1x128xf32> to vector<5x128xf32>
    %1188 = arith.mulf %9, %1187 : vector<5x128xf32>
    %1189 = arith.addf %1185, %1188 : vector<5x128xf32>
    %1190 = arith.addf %1174, %1189 : vector<5x128xf32>
    %c3_121 = arith.constant 3 : index
    %c2_122 = arith.constant 2 : index
    %c0_123 = arith.constant 0 : index
    %c0_124 = arith.constant 0 : index
    %1191 = vector.load %arg1[%c3_121, %c2_122, %c0_123, %c0_124] : memref<8x5x5x128xf32, #tpu.memory_space<vmem>>, vector<1x1x5x128xf32>
    %1192 = vector.shape_cast %1191 : vector<1x1x5x128xf32> to vector<5x128xf32>
    %1193 = vector.extract_strided_slice %1132 {offsets = [0, 0], sizes = [1, 128], strides = [1, 1]} : vector<4x128xf32> to vector<1x128xf32>
    %1194 = vector.broadcast %1193 : vector<1x128xf32> to vector<5x128xf32>
    %1195 = arith.mulf %3, %1194 : vector<5x128xf32>
    %1196 = vector.extract_strided_slice %1132 {offsets = [1, 0], sizes = [1, 128], strides = [1, 1]} : vector<4x128xf32> to vector<1x128xf32>
    %1197 = vector.broadcast %1196 : vector<1x128xf32> to vector<5x128xf32>
    %1198 = arith.mulf %5, %1197 : vector<5x128xf32>
    %1199 = arith.addf %1195, %1198 : vector<5x128xf32>
    %1200 = vector.extract_strided_slice %1132 {offsets = [2, 0], sizes = [1, 128], strides = [1, 1]} : vector<4x128xf32> to vector<1x128xf32>
    %1201 = vector.broadcast %1200 : vector<1x128xf32> to vector<5x128xf32>
    %1202 = arith.mulf %7, %1201 : vector<5x128xf32>
    %1203 = arith.addf %1199, %1202 : vector<5x128xf32>
    %1204 = vector.extract_strided_slice %1132 {offsets = [3, 0], sizes = [1, 128], strides = [1, 1]} : vector<4x128xf32> to vector<1x128xf32>
    %1205 = vector.broadcast %1204 : vector<1x128xf32> to vector<5x128xf32>
    %1206 = arith.mulf %9, %1205 : vector<5x128xf32>
    %1207 = arith.addf %1203, %1206 : vector<5x128xf32>
    %1208 = arith.addf %1192, %1207 : vector<5x128xf32>
    %c3_125 = arith.constant 3 : index
    %c3_126 = arith.constant 3 : index
    %c0_127 = arith.constant 0 : index
    %c0_128 = arith.constant 0 : index
    %1209 = vector.load %arg1[%c3_125, %c3_126, %c0_127, %c0_128] : memref<8x5x5x128xf32, #tpu.memory_space<vmem>>, vector<1x1x5x128xf32>
    %1210 = vector.shape_cast %1209 : vector<1x1x5x128xf32> to vector<5x128xf32>
    %1211 = vector.extract_strided_slice %1143 {offsets = [0, 0], sizes = [1, 128], strides = [1, 1]} : vector<4x128xf32> to vector<1x128xf32>
    %1212 = vector.broadcast %1211 : vector<1x128xf32> to vector<5x128xf32>
    %1213 = arith.mulf %3, %1212 : vector<5x128xf32>
    %1214 = vector.extract_strided_slice %1143 {offsets = [1, 0], sizes = [1, 128], strides = [1, 1]} : vector<4x128xf32> to vector<1x128xf32>
    %1215 = vector.broadcast %1214 : vector<1x128xf32> to vector<5x128xf32>
    %1216 = arith.mulf %5, %1215 : vector<5x128xf32>
    %1217 = arith.addf %1213, %1216 : vector<5x128xf32>
    %1218 = vector.extract_strided_slice %1143 {offsets = [2, 0], sizes = [1, 128], strides = [1, 1]} : vector<4x128xf32> to vector<1x128xf32>
    %1219 = vector.broadcast %1218 : vector<1x128xf32> to vector<5x128xf32>
    %1220 = arith.mulf %7, %1219 : vector<5x128xf32>
    %1221 = arith.addf %1217, %1220 : vector<5x128xf32>
    %1222 = vector.extract_strided_slice %1143 {offsets = [3, 0], sizes = [1, 128], strides = [1, 1]} : vector<4x128xf32> to vector<1x128xf32>
    %1223 = vector.broadcast %1222 : vector<1x128xf32> to vector<5x128xf32>
    %1224 = arith.mulf %9, %1223 : vector<5x128xf32>
    %1225 = arith.addf %1221, %1224 : vector<5x128xf32>
    %1226 = arith.addf %1210, %1225 : vector<5x128xf32>
    %c3_129 = arith.constant 3 : index
    %c4_130 = arith.constant 4 : index
    %c0_131 = arith.constant 0 : index
    %c0_132 = arith.constant 0 : index
    %1227 = vector.load %arg1[%c3_129, %c4_130, %c0_131, %c0_132] : memref<8x5x5x128xf32, #tpu.memory_space<vmem>>, vector<1x1x5x128xf32>
    %1228 = vector.shape_cast %1227 : vector<1x1x5x128xf32> to vector<5x128xf32>
    %1229 = vector.extract_strided_slice %1154 {offsets = [0, 0], sizes = [1, 128], strides = [1, 1]} : vector<4x128xf32> to vector<1x128xf32>
    %1230 = vector.broadcast %1229 : vector<1x128xf32> to vector<5x128xf32>
    %1231 = arith.mulf %3, %1230 : vector<5x128xf32>
    %1232 = vector.extract_strided_slice %1154 {offsets = [1, 0], sizes = [1, 128], strides = [1, 1]} : vector<4x128xf32> to vector<1x128xf32>
    %1233 = vector.broadcast %1232 : vector<1x128xf32> to vector<5x128xf32>
    %1234 = arith.mulf %5, %1233 : vector<5x128xf32>
    %1235 = arith.addf %1231, %1234 : vector<5x128xf32>
    %1236 = vector.extract_strided_slice %1154 {offsets = [2, 0], sizes = [1, 128], strides = [1, 1]} : vector<4x128xf32> to vector<1x128xf32>
    %1237 = vector.broadcast %1236 : vector<1x128xf32> to vector<5x128xf32>
    %1238 = arith.mulf %7, %1237 : vector<5x128xf32>
    %1239 = arith.addf %1235, %1238 : vector<5x128xf32>
    %1240 = vector.extract_strided_slice %1154 {offsets = [3, 0], sizes = [1, 128], strides = [1, 1]} : vector<4x128xf32> to vector<1x128xf32>
    %1241 = vector.broadcast %1240 : vector<1x128xf32> to vector<5x128xf32>
    %1242 = arith.mulf %9, %1241 : vector<5x128xf32>
    %1243 = arith.addf %1239, %1242 : vector<5x128xf32>
    %1244 = arith.addf %1228, %1243 : vector<5x128xf32>
    %1245 = vector.broadcast %55 : vector<1x128xf32> to vector<4x128xf32>
    %1246 = arith.mulf %1047, %1245 : vector<4x128xf32>
    %1247 = vector.broadcast %56 : vector<1x128xf32> to vector<4x128xf32>
    %1248 = arith.mulf %1060, %1247 : vector<4x128xf32>
    %1249 = arith.addf %1246, %1248 : vector<4x128xf32>
    %1250 = vector.broadcast %57 : vector<1x128xf32> to vector<4x128xf32>
    %1251 = arith.mulf %1073, %1250 : vector<4x128xf32>
    %1252 = arith.addf %1249, %1251 : vector<4x128xf32>
    %1253 = vector.broadcast %58 : vector<1x128xf32> to vector<4x128xf32>
    %1254 = arith.mulf %1086, %1253 : vector<4x128xf32>
    %1255 = arith.addf %1252, %1254 : vector<4x128xf32>
    %c3_133 = arith.constant 3 : index
    %c0_134 = arith.constant 0 : index
    %c0_135 = arith.constant 0 : index
    %1256 = vector.load %arg2[%c3_133, %c0_134, %c0_135] : memref<8x5x128xf32, #tpu.memory_space<vmem>>, vector<1x5x128xf32>
    %1257 = vector.shape_cast %1256 : vector<1x5x128xf32> to vector<5x128xf32>
    %1258 = arith.addf %1095, %1255 : vector<4x128xf32>
    %1259 = vector.extract_strided_slice %1258 {offsets = [0, 0], sizes = [1, 128], strides = [1, 1]} : vector<4x128xf32> to vector<1x128xf32>
    %1260 = vector.broadcast %1259 : vector<1x128xf32> to vector<5x128xf32>
    %1261 = arith.mulf %3, %1260 : vector<5x128xf32>
    %1262 = vector.extract_strided_slice %1258 {offsets = [1, 0], sizes = [1, 128], strides = [1, 1]} : vector<4x128xf32> to vector<1x128xf32>
    %1263 = vector.broadcast %1262 : vector<1x128xf32> to vector<5x128xf32>
    %1264 = arith.mulf %5, %1263 : vector<5x128xf32>
    %1265 = arith.addf %1261, %1264 : vector<5x128xf32>
    %1266 = vector.extract_strided_slice %1258 {offsets = [2, 0], sizes = [1, 128], strides = [1, 1]} : vector<4x128xf32> to vector<1x128xf32>
    %1267 = vector.broadcast %1266 : vector<1x128xf32> to vector<5x128xf32>
    %1268 = arith.mulf %7, %1267 : vector<5x128xf32>
    %1269 = arith.addf %1265, %1268 : vector<5x128xf32>
    %1270 = vector.extract_strided_slice %1258 {offsets = [3, 0], sizes = [1, 128], strides = [1, 1]} : vector<4x128xf32> to vector<1x128xf32>
    %1271 = vector.broadcast %1270 : vector<1x128xf32> to vector<5x128xf32>
    %1272 = arith.mulf %9, %1271 : vector<5x128xf32>
    %1273 = arith.addf %1269, %1272 : vector<5x128xf32>
    %1274 = arith.addf %1257, %1273 : vector<5x128xf32>
    %1275 = vector.extract_strided_slice %1244 {offsets = [0, 0], sizes = [4, 128], strides = [1, 1]} : vector<5x128xf32> to vector<4x128xf32>
    %1276 = vector.extract_strided_slice %1244 {offsets = [4, 0], sizes = [1, 128], strides = [1, 1]} : vector<5x128xf32> to vector<1x128xf32>
    %1277 = vector.extract_strided_slice %1172 {offsets = [4, 0], sizes = [1, 128], strides = [1, 1]} : vector<5x128xf32> to vector<1x128xf32>
    %1278 = vector.extract_strided_slice %1190 {offsets = [4, 0], sizes = [1, 128], strides = [1, 1]} : vector<5x128xf32> to vector<1x128xf32>
    %1279 = vector.extract_strided_slice %1208 {offsets = [4, 0], sizes = [1, 128], strides = [1, 1]} : vector<5x128xf32> to vector<1x128xf32>
    %1280 = vector.extract_strided_slice %1226 {offsets = [4, 0], sizes = [1, 128], strides = [1, 1]} : vector<5x128xf32> to vector<1x128xf32>
    %1281 = tpu.concatenate %1277, %1278, %1279, %1280 in 0 : vector<1x128xf32>, vector<1x128xf32>, vector<1x128xf32>, vector<1x128xf32> -> vector<4x128xf32>
    %1282 = vector.extract_strided_slice %1274 {offsets = [0, 0], sizes = [4, 128], strides = [1, 1]} : vector<5x128xf32> to vector<4x128xf32>
    %1283 = vector.extract_strided_slice %1274 {offsets = [4, 0], sizes = [1, 128], strides = [1, 1]} : vector<5x128xf32> to vector<1x128xf32>
    %1284 = tpu.reciprocal %1276 : vector<1x128xf32> -> vector<1x128xf32>
    %1285 = vector.broadcast %1284 : vector<1x128xf32> to vector<4x128xf32>
    %1286 = arith.mulf %1281, %1285 : vector<4x128xf32>
    %cst_136 = arith.constant 0.000000e+00 : f32
    %1287 = vector.broadcast %cst_136 : f32 to vector<4x128xf32>
    %1288 = arith.subf %1287, %1286 : vector<4x128xf32>
    %1289 = arith.mulf %1283, %1284 : vector<1x128xf32>
    %cst_137 = arith.constant 0.000000e+00 : f32
    %1290 = vector.broadcast %cst_137 : f32 to vector<1x128xf32>
    %1291 = arith.subf %1290, %1289 : vector<1x128xf32>
    %1292 = vector.broadcast %1276 : vector<1x128xf32> to vector<4x128xf32>
    %1293 = arith.mulf %1288, %1292 : vector<4x128xf32>
    %1294 = vector.extract_strided_slice %1172 {offsets = [0, 0], sizes = [4, 128], strides = [1, 1]} : vector<5x128xf32> to vector<4x128xf32>
    %1295 = vector.extract_strided_slice %1288 {offsets = [0, 0], sizes = [1, 128], strides = [1, 1]} : vector<4x128xf32> to vector<1x128xf32>
    %1296 = vector.broadcast %1295 : vector<1x128xf32> to vector<4x128xf32>
    %1297 = arith.mulf %1275, %1296 : vector<4x128xf32>
    %1298 = arith.addf %1294, %1297 : vector<4x128xf32>
    %1299 = vector.extract_strided_slice %1281 {offsets = [0, 0], sizes = [1, 128], strides = [1, 1]} : vector<4x128xf32> to vector<1x128xf32>
    %1300 = vector.broadcast %1299 : vector<1x128xf32> to vector<4x128xf32>
    %1301 = arith.mulf %1288, %1300 : vector<4x128xf32>
    %1302 = arith.addf %1298, %1301 : vector<4x128xf32>
    %1303 = vector.extract_strided_slice %1288 {offsets = [0, 0], sizes = [1, 128], strides = [1, 1]} : vector<4x128xf32> to vector<1x128xf32>
    %1304 = vector.broadcast %1303 : vector<1x128xf32> to vector<4x128xf32>
    %1305 = arith.mulf %1293, %1304 : vector<4x128xf32>
    %1306 = arith.addf %1302, %1305 : vector<4x128xf32>
    %1307 = vector.extract_strided_slice %1190 {offsets = [0, 0], sizes = [4, 128], strides = [1, 1]} : vector<5x128xf32> to vector<4x128xf32>
    %1308 = vector.extract_strided_slice %1288 {offsets = [1, 0], sizes = [1, 128], strides = [1, 1]} : vector<4x128xf32> to vector<1x128xf32>
    %1309 = vector.broadcast %1308 : vector<1x128xf32> to vector<4x128xf32>
    %1310 = arith.mulf %1275, %1309 : vector<4x128xf32>
    %1311 = arith.addf %1307, %1310 : vector<4x128xf32>
    %1312 = vector.extract_strided_slice %1281 {offsets = [1, 0], sizes = [1, 128], strides = [1, 1]} : vector<4x128xf32> to vector<1x128xf32>
    %1313 = vector.broadcast %1312 : vector<1x128xf32> to vector<4x128xf32>
    %1314 = arith.mulf %1288, %1313 : vector<4x128xf32>
    %1315 = arith.addf %1311, %1314 : vector<4x128xf32>
    %1316 = vector.extract_strided_slice %1288 {offsets = [1, 0], sizes = [1, 128], strides = [1, 1]} : vector<4x128xf32> to vector<1x128xf32>
    %1317 = vector.broadcast %1316 : vector<1x128xf32> to vector<4x128xf32>
    %1318 = arith.mulf %1293, %1317 : vector<4x128xf32>
    %1319 = arith.addf %1315, %1318 : vector<4x128xf32>
    %1320 = vector.extract_strided_slice %1208 {offsets = [0, 0], sizes = [4, 128], strides = [1, 1]} : vector<5x128xf32> to vector<4x128xf32>
    %1321 = vector.extract_strided_slice %1288 {offsets = [2, 0], sizes = [1, 128], strides = [1, 1]} : vector<4x128xf32> to vector<1x128xf32>
    %1322 = vector.broadcast %1321 : vector<1x128xf32> to vector<4x128xf32>
    %1323 = arith.mulf %1275, %1322 : vector<4x128xf32>
    %1324 = arith.addf %1320, %1323 : vector<4x128xf32>
    %1325 = vector.extract_strided_slice %1281 {offsets = [2, 0], sizes = [1, 128], strides = [1, 1]} : vector<4x128xf32> to vector<1x128xf32>
    %1326 = vector.broadcast %1325 : vector<1x128xf32> to vector<4x128xf32>
    %1327 = arith.mulf %1288, %1326 : vector<4x128xf32>
    %1328 = arith.addf %1324, %1327 : vector<4x128xf32>
    %1329 = vector.extract_strided_slice %1288 {offsets = [2, 0], sizes = [1, 128], strides = [1, 1]} : vector<4x128xf32> to vector<1x128xf32>
    %1330 = vector.broadcast %1329 : vector<1x128xf32> to vector<4x128xf32>
    %1331 = arith.mulf %1293, %1330 : vector<4x128xf32>
    %1332 = arith.addf %1328, %1331 : vector<4x128xf32>
    %1333 = vector.extract_strided_slice %1226 {offsets = [0, 0], sizes = [4, 128], strides = [1, 1]} : vector<5x128xf32> to vector<4x128xf32>
    %1334 = vector.extract_strided_slice %1288 {offsets = [3, 0], sizes = [1, 128], strides = [1, 1]} : vector<4x128xf32> to vector<1x128xf32>
    %1335 = vector.broadcast %1334 : vector<1x128xf32> to vector<4x128xf32>
    %1336 = arith.mulf %1275, %1335 : vector<4x128xf32>
    %1337 = arith.addf %1333, %1336 : vector<4x128xf32>
    %1338 = vector.extract_strided_slice %1281 {offsets = [3, 0], sizes = [1, 128], strides = [1, 1]} : vector<4x128xf32> to vector<1x128xf32>
    %1339 = vector.broadcast %1338 : vector<1x128xf32> to vector<4x128xf32>
    %1340 = arith.mulf %1288, %1339 : vector<4x128xf32>
    %1341 = arith.addf %1337, %1340 : vector<4x128xf32>
    %1342 = vector.extract_strided_slice %1288 {offsets = [3, 0], sizes = [1, 128], strides = [1, 1]} : vector<4x128xf32> to vector<1x128xf32>
    %1343 = vector.broadcast %1342 : vector<1x128xf32> to vector<4x128xf32>
    %1344 = arith.mulf %1293, %1343 : vector<4x128xf32>
    %1345 = arith.addf %1341, %1344 : vector<4x128xf32>
    %1346 = vector.broadcast %1291 : vector<1x128xf32> to vector<4x128xf32>
    %1347 = arith.mulf %1275, %1346 : vector<4x128xf32>
    %1348 = arith.addf %1282, %1347 : vector<4x128xf32>
    %1349 = vector.broadcast %1283 : vector<1x128xf32> to vector<4x128xf32>
    %1350 = arith.mulf %1288, %1349 : vector<4x128xf32>
    %1351 = arith.addf %1348, %1350 : vector<4x128xf32>
    %1352 = vector.broadcast %1291 : vector<1x128xf32> to vector<4x128xf32>
    %1353 = arith.mulf %1293, %1352 : vector<4x128xf32>
    %1354 = arith.addf %1351, %1353 : vector<4x128xf32>
    %1355 = tpu.concatenate %1288, %1291 in 0 : vector<4x128xf32>, vector<1x128xf32> -> vector<5x128xf32>
    %c3_138 = arith.constant 3 : index
    %c0_139 = arith.constant 0 : index
    %c0_140 = arith.constant 0 : index
    %1356 = vector.load %arg9[%c3_138, %c0_139, %c0_140] : memref<8x5x128xf32, #tpu.memory_space<vmem>>, vector<1x5x128xf32>
    %1357 = vector.shape_cast %1356 : vector<1x5x128xf32> to vector<5x128xf32>
    %1358 = vector.shape_cast %1355 : vector<5x128xf32> to vector<1x5x128xf32>
    tpu.vector_store %arg9[%c3_138, %c0_139, %c0_140], %1358 {strides = array<i32>} : memref<8x5x128xf32, #tpu.memory_space<vmem>>, vector<1x5x128xf32>,
    %1359 = vector.broadcast %11 : vector<1x128xf32> to vector<4x128xf32>
    %1360 = arith.mulf %1306, %1359 : vector<4x128xf32>
    %1361 = vector.broadcast %21 : vector<1x128xf32> to vector<4x128xf32>
    %1362 = arith.mulf %1319, %1361 : vector<4x128xf32>
    %1363 = arith.addf %1360, %1362 : vector<4x128xf32>
    %1364 = vector.broadcast %31 : vector<1x128xf32> to vector<4x128xf32>
    %1365 = arith.mulf %1332, %1364 : vector<4x128xf32>
    %1366 = arith.addf %1363, %1365 : vector<4x128xf32>
    %1367 = vector.broadcast %41 : vector<1x128xf32> to vector<4x128xf32>
    %1368 = arith.mulf %1345, %1367 : vector<4x128xf32>
    %1369 = arith.addf %1366, %1368 : vector<4x128xf32>
    %1370 = vector.broadcast %13 : vector<1x128xf32> to vector<4x128xf32>
    %1371 = arith.mulf %1306, %1370 : vector<4x128xf32>
    %1372 = vector.broadcast %23 : vector<1x128xf32> to vector<4x128xf32>
    %1373 = arith.mulf %1319, %1372 : vector<4x128xf32>
    %1374 = arith.addf %1371, %1373 : vector<4x128xf32>
    %1375 = vector.broadcast %33 : vector<1x128xf32> to vector<4x128xf32>
    %1376 = arith.mulf %1332, %1375 : vector<4x128xf32>
    %1377 = arith.addf %1374, %1376 : vector<4x128xf32>
    %1378 = vector.broadcast %43 : vector<1x128xf32> to vector<4x128xf32>
    %1379 = arith.mulf %1345, %1378 : vector<4x128xf32>
    %1380 = arith.addf %1377, %1379 : vector<4x128xf32>
    %1381 = vector.broadcast %15 : vector<1x128xf32> to vector<4x128xf32>
    %1382 = arith.mulf %1306, %1381 : vector<4x128xf32>
    %1383 = vector.broadcast %25 : vector<1x128xf32> to vector<4x128xf32>
    %1384 = arith.mulf %1319, %1383 : vector<4x128xf32>
    %1385 = arith.addf %1382, %1384 : vector<4x128xf32>
    %1386 = vector.broadcast %35 : vector<1x128xf32> to vector<4x128xf32>
    %1387 = arith.mulf %1332, %1386 : vector<4x128xf32>
    %1388 = arith.addf %1385, %1387 : vector<4x128xf32>
    %1389 = vector.broadcast %45 : vector<1x128xf32> to vector<4x128xf32>
    %1390 = arith.mulf %1345, %1389 : vector<4x128xf32>
    %1391 = arith.addf %1388, %1390 : vector<4x128xf32>
    %1392 = vector.broadcast %17 : vector<1x128xf32> to vector<4x128xf32>
    %1393 = arith.mulf %1306, %1392 : vector<4x128xf32>
    %1394 = vector.broadcast %27 : vector<1x128xf32> to vector<4x128xf32>
    %1395 = arith.mulf %1319, %1394 : vector<4x128xf32>
    %1396 = arith.addf %1393, %1395 : vector<4x128xf32>
    %1397 = vector.broadcast %37 : vector<1x128xf32> to vector<4x128xf32>
    %1398 = arith.mulf %1332, %1397 : vector<4x128xf32>
    %1399 = arith.addf %1396, %1398 : vector<4x128xf32>
    %1400 = vector.broadcast %47 : vector<1x128xf32> to vector<4x128xf32>
    %1401 = arith.mulf %1345, %1400 : vector<4x128xf32>
    %1402 = arith.addf %1399, %1401 : vector<4x128xf32>
    %1403 = vector.broadcast %19 : vector<1x128xf32> to vector<4x128xf32>
    %1404 = arith.mulf %1306, %1403 : vector<4x128xf32>
    %1405 = vector.broadcast %29 : vector<1x128xf32> to vector<4x128xf32>
    %1406 = arith.mulf %1319, %1405 : vector<4x128xf32>
    %1407 = arith.addf %1404, %1406 : vector<4x128xf32>
    %1408 = vector.broadcast %39 : vector<1x128xf32> to vector<4x128xf32>
    %1409 = arith.mulf %1332, %1408 : vector<4x128xf32>
    %1410 = arith.addf %1407, %1409 : vector<4x128xf32>
    %1411 = vector.broadcast %49 : vector<1x128xf32> to vector<4x128xf32>
    %1412 = arith.mulf %1345, %1411 : vector<4x128xf32>
    %1413 = arith.addf %1410, %1412 : vector<4x128xf32>
    %c2_141 = arith.constant 2 : index
    %c0_142 = arith.constant 0 : index
    %c0_143 = arith.constant 0 : index
    %c0_144 = arith.constant 0 : index
    %1414 = vector.load %arg1[%c2_141, %c0_142, %c0_143, %c0_144] : memref<8x5x5x128xf32, #tpu.memory_space<vmem>>, vector<1x1x5x128xf32>
    %1415 = vector.shape_cast %1414 : vector<1x1x5x128xf32> to vector<5x128xf32>
    %1416 = vector.extract_strided_slice %1369 {offsets = [0, 0], sizes = [1, 128], strides = [1, 1]} : vector<4x128xf32> to vector<1x128xf32>
    %1417 = vector.broadcast %1416 : vector<1x128xf32> to vector<5x128xf32>
    %1418 = arith.mulf %3, %1417 : vector<5x128xf32>
    %1419 = vector.extract_strided_slice %1369 {offsets = [1, 0], sizes = [1, 128], strides = [1, 1]} : vector<4x128xf32> to vector<1x128xf32>
    %1420 = vector.broadcast %1419 : vector<1x128xf32> to vector<5x128xf32>
    %1421 = arith.mulf %5, %1420 : vector<5x128xf32>
    %1422 = arith.addf %1418, %1421 : vector<5x128xf32>
    %1423 = vector.extract_strided_slice %1369 {offsets = [2, 0], sizes = [1, 128], strides = [1, 1]} : vector<4x128xf32> to vector<1x128xf32>
    %1424 = vector.broadcast %1423 : vector<1x128xf32> to vector<5x128xf32>
    %1425 = arith.mulf %7, %1424 : vector<5x128xf32>
    %1426 = arith.addf %1422, %1425 : vector<5x128xf32>
    %1427 = vector.extract_strided_slice %1369 {offsets = [3, 0], sizes = [1, 128], strides = [1, 1]} : vector<4x128xf32> to vector<1x128xf32>
    %1428 = vector.broadcast %1427 : vector<1x128xf32> to vector<5x128xf32>
    %1429 = arith.mulf %9, %1428 : vector<5x128xf32>
    %1430 = arith.addf %1426, %1429 : vector<5x128xf32>
    %1431 = arith.addf %1415, %1430 : vector<5x128xf32>
    %c2_145 = arith.constant 2 : index
    %c1_146 = arith.constant 1 : index
    %c0_147 = arith.constant 0 : index
    %c0_148 = arith.constant 0 : index
    %1432 = vector.load %arg1[%c2_145, %c1_146, %c0_147, %c0_148] : memref<8x5x5x128xf32, #tpu.memory_space<vmem>>, vector<1x1x5x128xf32>
    %1433 = vector.shape_cast %1432 : vector<1x1x5x128xf32> to vector<5x128xf32>
    %1434 = vector.extract_strided_slice %1380 {offsets = [0, 0], sizes = [1, 128], strides = [1, 1]} : vector<4x128xf32> to vector<1x128xf32>
    %1435 = vector.broadcast %1434 : vector<1x128xf32> to vector<5x128xf32>
    %1436 = arith.mulf %3, %1435 : vector<5x128xf32>
    %1437 = vector.extract_strided_slice %1380 {offsets = [1, 0], sizes = [1, 128], strides = [1, 1]} : vector<4x128xf32> to vector<1x128xf32>
    %1438 = vector.broadcast %1437 : vector<1x128xf32> to vector<5x128xf32>
    %1439 = arith.mulf %5, %1438 : vector<5x128xf32>
    %1440 = arith.addf %1436, %1439 : vector<5x128xf32>
    %1441 = vector.extract_strided_slice %1380 {offsets = [2, 0], sizes = [1, 128], strides = [1, 1]} : vector<4x128xf32> to vector<1x128xf32>
    %1442 = vector.broadcast %1441 : vector<1x128xf32> to vector<5x128xf32>
    %1443 = arith.mulf %7, %1442 : vector<5x128xf32>
    %1444 = arith.addf %1440, %1443 : vector<5x128xf32>
    %1445 = vector.extract_strided_slice %1380 {offsets = [3, 0], sizes = [1, 128], strides = [1, 1]} : vector<4x128xf32> to vector<1x128xf32>
    %1446 = vector.broadcast %1445 : vector<1x128xf32> to vector<5x128xf32>
    %1447 = arith.mulf %9, %1446 : vector<5x128xf32>
    %1448 = arith.addf %1444, %1447 : vector<5x128xf32>
    %1449 = arith.addf %1433, %1448 : vector<5x128xf32>
    %c2_149 = arith.constant 2 : index
    %c2_150 = arith.constant 2 : index
    %c0_151 = arith.constant 0 : index
    %c0_152 = arith.constant 0 : index
    %1450 = vector.load %arg1[%c2_149, %c2_150, %c0_151, %c0_152] : memref<8x5x5x128xf32, #tpu.memory_space<vmem>>, vector<1x1x5x128xf32>
    %1451 = vector.shape_cast %1450 : vector<1x1x5x128xf32> to vector<5x128xf32>
    %1452 = vector.extract_strided_slice %1391 {offsets = [0, 0], sizes = [1, 128], strides = [1, 1]} : vector<4x128xf32> to vector<1x128xf32>
    %1453 = vector.broadcast %1452 : vector<1x128xf32> to vector<5x128xf32>
    %1454 = arith.mulf %3, %1453 : vector<5x128xf32>
    %1455 = vector.extract_strided_slice %1391 {offsets = [1, 0], sizes = [1, 128], strides = [1, 1]} : vector<4x128xf32> to vector<1x128xf32>
    %1456 = vector.broadcast %1455 : vector<1x128xf32> to vector<5x128xf32>
    %1457 = arith.mulf %5, %1456 : vector<5x128xf32>
    %1458 = arith.addf %1454, %1457 : vector<5x128xf32>
    %1459 = vector.extract_strided_slice %1391 {offsets = [2, 0], sizes = [1, 128], strides = [1, 1]} : vector<4x128xf32> to vector<1x128xf32>
    %1460 = vector.broadcast %1459 : vector<1x128xf32> to vector<5x128xf32>
    %1461 = arith.mulf %7, %1460 : vector<5x128xf32>
    %1462 = arith.addf %1458, %1461 : vector<5x128xf32>
    %1463 = vector.extract_strided_slice %1391 {offsets = [3, 0], sizes = [1, 128], strides = [1, 1]} : vector<4x128xf32> to vector<1x128xf32>
    %1464 = vector.broadcast %1463 : vector<1x128xf32> to vector<5x128xf32>
    %1465 = arith.mulf %9, %1464 : vector<5x128xf32>
    %1466 = arith.addf %1462, %1465 : vector<5x128xf32>
    %1467 = arith.addf %1451, %1466 : vector<5x128xf32>
    %c2_153 = arith.constant 2 : index
    %c3_154 = arith.constant 3 : index
    %c0_155 = arith.constant 0 : index
    %c0_156 = arith.constant 0 : index
    %1468 = vector.load %arg1[%c2_153, %c3_154, %c0_155, %c0_156] : memref<8x5x5x128xf32, #tpu.memory_space<vmem>>, vector<1x1x5x128xf32>
    %1469 = vector.shape_cast %1468 : vector<1x1x5x128xf32> to vector<5x128xf32>
    %1470 = vector.extract_strided_slice %1402 {offsets = [0, 0], sizes = [1, 128], strides = [1, 1]} : vector<4x128xf32> to vector<1x128xf32>
    %1471 = vector.broadcast %1470 : vector<1x128xf32> to vector<5x128xf32>
    %1472 = arith.mulf %3, %1471 : vector<5x128xf32>
    %1473 = vector.extract_strided_slice %1402 {offsets = [1, 0], sizes = [1, 128], strides = [1, 1]} : vector<4x128xf32> to vector<1x128xf32>
    %1474 = vector.broadcast %1473 : vector<1x128xf32> to vector<5x128xf32>
    %1475 = arith.mulf %5, %1474 : vector<5x128xf32>
    %1476 = arith.addf %1472, %1475 : vector<5x128xf32>
    %1477 = vector.extract_strided_slice %1402 {offsets = [2, 0], sizes = [1, 128], strides = [1, 1]} : vector<4x128xf32> to vector<1x128xf32>
    %1478 = vector.broadcast %1477 : vector<1x128xf32> to vector<5x128xf32>
    %1479 = arith.mulf %7, %1478 : vector<5x128xf32>
    %1480 = arith.addf %1476, %1479 : vector<5x128xf32>
    %1481 = vector.extract_strided_slice %1402 {offsets = [3, 0], sizes = [1, 128], strides = [1, 1]} : vector<4x128xf32> to vector<1x128xf32>
    %1482 = vector.broadcast %1481 : vector<1x128xf32> to vector<5x128xf32>
    %1483 = arith.mulf %9, %1482 : vector<5x128xf32>
    %1484 = arith.addf %1480, %1483 : vector<5x128xf32>
    %1485 = arith.addf %1469, %1484 : vector<5x128xf32>
    %c2_157 = arith.constant 2 : index
    %c4_158 = arith.constant 4 : index
    %c0_159 = arith.constant 0 : index
    %c0_160 = arith.constant 0 : index
    %1486 = vector.load %arg1[%c2_157, %c4_158, %c0_159, %c0_160] : memref<8x5x5x128xf32, #tpu.memory_space<vmem>>, vector<1x1x5x128xf32>
    %1487 = vector.shape_cast %1486 : vector<1x1x5x128xf32> to vector<5x128xf32>
    %1488 = vector.extract_strided_slice %1413 {offsets = [0, 0], sizes = [1, 128], strides = [1, 1]} : vector<4x128xf32> to vector<1x128xf32>
    %1489 = vector.broadcast %1488 : vector<1x128xf32> to vector<5x128xf32>
    %1490 = arith.mulf %3, %1489 : vector<5x128xf32>
    %1491 = vector.extract_strided_slice %1413 {offsets = [1, 0], sizes = [1, 128], strides = [1, 1]} : vector<4x128xf32> to vector<1x128xf32>
    %1492 = vector.broadcast %1491 : vector<1x128xf32> to vector<5x128xf32>
    %1493 = arith.mulf %5, %1492 : vector<5x128xf32>
    %1494 = arith.addf %1490, %1493 : vector<5x128xf32>
    %1495 = vector.extract_strided_slice %1413 {offsets = [2, 0], sizes = [1, 128], strides = [1, 1]} : vector<4x128xf32> to vector<1x128xf32>
    %1496 = vector.broadcast %1495 : vector<1x128xf32> to vector<5x128xf32>
    %1497 = arith.mulf %7, %1496 : vector<5x128xf32>
    %1498 = arith.addf %1494, %1497 : vector<5x128xf32>
    %1499 = vector.extract_strided_slice %1413 {offsets = [3, 0], sizes = [1, 128], strides = [1, 1]} : vector<4x128xf32> to vector<1x128xf32>
    %1500 = vector.broadcast %1499 : vector<1x128xf32> to vector<5x128xf32>
    %1501 = arith.mulf %9, %1500 : vector<5x128xf32>
    %1502 = arith.addf %1498, %1501 : vector<5x128xf32>
    %1503 = arith.addf %1487, %1502 : vector<5x128xf32>
    %1504 = vector.broadcast %55 : vector<1x128xf32> to vector<4x128xf32>
    %1505 = arith.mulf %1306, %1504 : vector<4x128xf32>
    %1506 = vector.broadcast %56 : vector<1x128xf32> to vector<4x128xf32>
    %1507 = arith.mulf %1319, %1506 : vector<4x128xf32>
    %1508 = arith.addf %1505, %1507 : vector<4x128xf32>
    %1509 = vector.broadcast %57 : vector<1x128xf32> to vector<4x128xf32>
    %1510 = arith.mulf %1332, %1509 : vector<4x128xf32>
    %1511 = arith.addf %1508, %1510 : vector<4x128xf32>
    %1512 = vector.broadcast %58 : vector<1x128xf32> to vector<4x128xf32>
    %1513 = arith.mulf %1345, %1512 : vector<4x128xf32>
    %1514 = arith.addf %1511, %1513 : vector<4x128xf32>
    %c2_161 = arith.constant 2 : index
    %c0_162 = arith.constant 0 : index
    %c0_163 = arith.constant 0 : index
    %1515 = vector.load %arg2[%c2_161, %c0_162, %c0_163] : memref<8x5x128xf32, #tpu.memory_space<vmem>>, vector<1x5x128xf32>
    %1516 = vector.shape_cast %1515 : vector<1x5x128xf32> to vector<5x128xf32>
    %1517 = arith.addf %1354, %1514 : vector<4x128xf32>
    %1518 = vector.extract_strided_slice %1517 {offsets = [0, 0], sizes = [1, 128], strides = [1, 1]} : vector<4x128xf32> to vector<1x128xf32>
    %1519 = vector.broadcast %1518 : vector<1x128xf32> to vector<5x128xf32>
    %1520 = arith.mulf %3, %1519 : vector<5x128xf32>
    %1521 = vector.extract_strided_slice %1517 {offsets = [1, 0], sizes = [1, 128], strides = [1, 1]} : vector<4x128xf32> to vector<1x128xf32>
    %1522 = vector.broadcast %1521 : vector<1x128xf32> to vector<5x128xf32>
    %1523 = arith.mulf %5, %1522 : vector<5x128xf32>
    %1524 = arith.addf %1520, %1523 : vector<5x128xf32>
    %1525 = vector.extract_strided_slice %1517 {offsets = [2, 0], sizes = [1, 128], strides = [1, 1]} : vector<4x128xf32> to vector<1x128xf32>
    %1526 = vector.broadcast %1525 : vector<1x128xf32> to vector<5x128xf32>
    %1527 = arith.mulf %7, %1526 : vector<5x128xf32>
    %1528 = arith.addf %1524, %1527 : vector<5x128xf32>
    %1529 = vector.extract_strided_slice %1517 {offsets = [3, 0], sizes = [1, 128], strides = [1, 1]} : vector<4x128xf32> to vector<1x128xf32>
    %1530 = vector.broadcast %1529 : vector<1x128xf32> to vector<5x128xf32>
    %1531 = arith.mulf %9, %1530 : vector<5x128xf32>
    %1532 = arith.addf %1528, %1531 : vector<5x128xf32>
    %1533 = arith.addf %1516, %1532 : vector<5x128xf32>
    %1534 = vector.extract_strided_slice %1503 {offsets = [0, 0], sizes = [4, 128], strides = [1, 1]} : vector<5x128xf32> to vector<4x128xf32>
    %1535 = vector.extract_strided_slice %1503 {offsets = [4, 0], sizes = [1, 128], strides = [1, 1]} : vector<5x128xf32> to vector<1x128xf32>
    %1536 = vector.extract_strided_slice %1431 {offsets = [4, 0], sizes = [1, 128], strides = [1, 1]} : vector<5x128xf32> to vector<1x128xf32>
    %1537 = vector.extract_strided_slice %1449 {offsets = [4, 0], sizes = [1, 128], strides = [1, 1]} : vector<5x128xf32> to vector<1x128xf32>
    %1538 = vector.extract_strided_slice %1467 {offsets = [4, 0], sizes = [1, 128], strides = [1, 1]} : vector<5x128xf32> to vector<1x128xf32>
    %1539 = vector.extract_strided_slice %1485 {offsets = [4, 0], sizes = [1, 128], strides = [1, 1]} : vector<5x128xf32> to vector<1x128xf32>
    %1540 = tpu.concatenate %1536, %1537, %1538, %1539 in 0 : vector<1x128xf32>, vector<1x128xf32>, vector<1x128xf32>, vector<1x128xf32> -> vector<4x128xf32>
    %1541 = vector.extract_strided_slice %1533 {offsets = [0, 0], sizes = [4, 128], strides = [1, 1]} : vector<5x128xf32> to vector<4x128xf32>
    %1542 = vector.extract_strided_slice %1533 {offsets = [4, 0], sizes = [1, 128], strides = [1, 1]} : vector<5x128xf32> to vector<1x128xf32>
    %1543 = tpu.reciprocal %1535 : vector<1x128xf32> -> vector<1x128xf32>
    %1544 = vector.broadcast %1543 : vector<1x128xf32> to vector<4x128xf32>
    %1545 = arith.mulf %1540, %1544 : vector<4x128xf32>
    %cst_164 = arith.constant 0.000000e+00 : f32
    %1546 = vector.broadcast %cst_164 : f32 to vector<4x128xf32>
    %1547 = arith.subf %1546, %1545 : vector<4x128xf32>
    %1548 = arith.mulf %1542, %1543 : vector<1x128xf32>
    %cst_165 = arith.constant 0.000000e+00 : f32
    %1549 = vector.broadcast %cst_165 : f32 to vector<1x128xf32>
    %1550 = arith.subf %1549, %1548 : vector<1x128xf32>
    %1551 = vector.broadcast %1535 : vector<1x128xf32> to vector<4x128xf32>
    %1552 = arith.mulf %1547, %1551 : vector<4x128xf32>
    %1553 = vector.extract_strided_slice %1431 {offsets = [0, 0], sizes = [4, 128], strides = [1, 1]} : vector<5x128xf32> to vector<4x128xf32>
    %1554 = vector.extract_strided_slice %1547 {offsets = [0, 0], sizes = [1, 128], strides = [1, 1]} : vector<4x128xf32> to vector<1x128xf32>
    %1555 = vector.broadcast %1554 : vector<1x128xf32> to vector<4x128xf32>
    %1556 = arith.mulf %1534, %1555 : vector<4x128xf32>
    %1557 = arith.addf %1553, %1556 : vector<4x128xf32>
    %1558 = vector.extract_strided_slice %1540 {offsets = [0, 0], sizes = [1, 128], strides = [1, 1]} : vector<4x128xf32> to vector<1x128xf32>
    %1559 = vector.broadcast %1558 : vector<1x128xf32> to vector<4x128xf32>
    %1560 = arith.mulf %1547, %1559 : vector<4x128xf32>
    %1561 = arith.addf %1557, %1560 : vector<4x128xf32>
    %1562 = vector.extract_strided_slice %1547 {offsets = [0, 0], sizes = [1, 128], strides = [1, 1]} : vector<4x128xf32> to vector<1x128xf32>
    %1563 = vector.broadcast %1562 : vector<1x128xf32> to vector<4x128xf32>
    %1564 = arith.mulf %1552, %1563 : vector<4x128xf32>
    %1565 = arith.addf %1561, %1564 : vector<4x128xf32>
    %1566 = vector.extract_strided_slice %1449 {offsets = [0, 0], sizes = [4, 128], strides = [1, 1]} : vector<5x128xf32> to vector<4x128xf32>
    %1567 = vector.extract_strided_slice %1547 {offsets = [1, 0], sizes = [1, 128], strides = [1, 1]} : vector<4x128xf32> to vector<1x128xf32>
    %1568 = vector.broadcast %1567 : vector<1x128xf32> to vector<4x128xf32>
    %1569 = arith.mulf %1534, %1568 : vector<4x128xf32>
    %1570 = arith.addf %1566, %1569 : vector<4x128xf32>
    %1571 = vector.extract_strided_slice %1540 {offsets = [1, 0], sizes = [1, 128], strides = [1, 1]} : vector<4x128xf32> to vector<1x128xf32>
    %1572 = vector.broadcast %1571 : vector<1x128xf32> to vector<4x128xf32>
    %1573 = arith.mulf %1547, %1572 : vector<4x128xf32>
    %1574 = arith.addf %1570, %1573 : vector<4x128xf32>
    %1575 = vector.extract_strided_slice %1547 {offsets = [1, 0], sizes = [1, 128], strides = [1, 1]} : vector<4x128xf32> to vector<1x128xf32>
    %1576 = vector.broadcast %1575 : vector<1x128xf32> to vector<4x128xf32>
    %1577 = arith.mulf %1552, %1576 : vector<4x128xf32>
    %1578 = arith.addf %1574, %1577 : vector<4x128xf32>
    %1579 = vector.extract_strided_slice %1467 {offsets = [0, 0], sizes = [4, 128], strides = [1, 1]} : vector<5x128xf32> to vector<4x128xf32>
    %1580 = vector.extract_strided_slice %1547 {offsets = [2, 0], sizes = [1, 128], strides = [1, 1]} : vector<4x128xf32> to vector<1x128xf32>
    %1581 = vector.broadcast %1580 : vector<1x128xf32> to vector<4x128xf32>
    %1582 = arith.mulf %1534, %1581 : vector<4x128xf32>
    %1583 = arith.addf %1579, %1582 : vector<4x128xf32>
    %1584 = vector.extract_strided_slice %1540 {offsets = [2, 0], sizes = [1, 128], strides = [1, 1]} : vector<4x128xf32> to vector<1x128xf32>
    %1585 = vector.broadcast %1584 : vector<1x128xf32> to vector<4x128xf32>
    %1586 = arith.mulf %1547, %1585 : vector<4x128xf32>
    %1587 = arith.addf %1583, %1586 : vector<4x128xf32>
    %1588 = vector.extract_strided_slice %1547 {offsets = [2, 0], sizes = [1, 128], strides = [1, 1]} : vector<4x128xf32> to vector<1x128xf32>
    %1589 = vector.broadcast %1588 : vector<1x128xf32> to vector<4x128xf32>
    %1590 = arith.mulf %1552, %1589 : vector<4x128xf32>
    %1591 = arith.addf %1587, %1590 : vector<4x128xf32>
    %1592 = vector.extract_strided_slice %1485 {offsets = [0, 0], sizes = [4, 128], strides = [1, 1]} : vector<5x128xf32> to vector<4x128xf32>
    %1593 = vector.extract_strided_slice %1547 {offsets = [3, 0], sizes = [1, 128], strides = [1, 1]} : vector<4x128xf32> to vector<1x128xf32>
    %1594 = vector.broadcast %1593 : vector<1x128xf32> to vector<4x128xf32>
    %1595 = arith.mulf %1534, %1594 : vector<4x128xf32>
    %1596 = arith.addf %1592, %1595 : vector<4x128xf32>
    %1597 = vector.extract_strided_slice %1540 {offsets = [3, 0], sizes = [1, 128], strides = [1, 1]} : vector<4x128xf32> to vector<1x128xf32>
    %1598 = vector.broadcast %1597 : vector<1x128xf32> to vector<4x128xf32>
    %1599 = arith.mulf %1547, %1598 : vector<4x128xf32>
    %1600 = arith.addf %1596, %1599 : vector<4x128xf32>
    %1601 = vector.extract_strided_slice %1547 {offsets = [3, 0], sizes = [1, 128], strides = [1, 1]} : vector<4x128xf32> to vector<1x128xf32>
    %1602 = vector.broadcast %1601 : vector<1x128xf32> to vector<4x128xf32>
    %1603 = arith.mulf %1552, %1602 : vector<4x128xf32>
    %1604 = arith.addf %1600, %1603 : vector<4x128xf32>
    %1605 = vector.broadcast %1550 : vector<1x128xf32> to vector<4x128xf32>
    %1606 = arith.mulf %1534, %1605 : vector<4x128xf32>
    %1607 = arith.addf %1541, %1606 : vector<4x128xf32>
    %1608 = vector.broadcast %1542 : vector<1x128xf32> to vector<4x128xf32>
    %1609 = arith.mulf %1547, %1608 : vector<4x128xf32>
    %1610 = arith.addf %1607, %1609 : vector<4x128xf32>
    %1611 = vector.broadcast %1550 : vector<1x128xf32> to vector<4x128xf32>
    %1612 = arith.mulf %1552, %1611 : vector<4x128xf32>
    %1613 = arith.addf %1610, %1612 : vector<4x128xf32>
    %1614 = tpu.concatenate %1547, %1550 in 0 : vector<4x128xf32>, vector<1x128xf32> -> vector<5x128xf32>
    %c2_166 = arith.constant 2 : index
    %c0_167 = arith.constant 0 : index
    %c0_168 = arith.constant 0 : index
    %1615 = vector.load %arg9[%c2_166, %c0_167, %c0_168] : memref<8x5x128xf32, #tpu.memory_space<vmem>>, vector<1x5x128xf32>
    %1616 = vector.shape_cast %1615 : vector<1x5x128xf32> to vector<5x128xf32>
    %1617 = vector.shape_cast %1614 : vector<5x128xf32> to vector<1x5x128xf32>
    tpu.vector_store %arg9[%c2_166, %c0_167, %c0_168], %1617 {strides = array<i32>} : memref<8x5x128xf32, #tpu.memory_space<vmem>>, vector<1x5x128xf32>,
    %1618 = vector.broadcast %11 : vector<1x128xf32> to vector<4x128xf32>
    %1619 = arith.mulf %1565, %1618 : vector<4x128xf32>
    %1620 = vector.broadcast %21 : vector<1x128xf32> to vector<4x128xf32>
    %1621 = arith.mulf %1578, %1620 : vector<4x128xf32>
    %1622 = arith.addf %1619, %1621 : vector<4x128xf32>
    %1623 = vector.broadcast %31 : vector<1x128xf32> to vector<4x128xf32>
    %1624 = arith.mulf %1591, %1623 : vector<4x128xf32>
    %1625 = arith.addf %1622, %1624 : vector<4x128xf32>
    %1626 = vector.broadcast %41 : vector<1x128xf32> to vector<4x128xf32>
    %1627 = arith.mulf %1604, %1626 : vector<4x128xf32>
    %1628 = arith.addf %1625, %1627 : vector<4x128xf32>
    %1629 = vector.broadcast %13 : vector<1x128xf32> to vector<4x128xf32>
    %1630 = arith.mulf %1565, %1629 : vector<4x128xf32>
    %1631 = vector.broadcast %23 : vector<1x128xf32> to vector<4x128xf32>
    %1632 = arith.mulf %1578, %1631 : vector<4x128xf32>
    %1633 = arith.addf %1630, %1632 : vector<4x128xf32>
    %1634 = vector.broadcast %33 : vector<1x128xf32> to vector<4x128xf32>
    %1635 = arith.mulf %1591, %1634 : vector<4x128xf32>
    %1636 = arith.addf %1633, %1635 : vector<4x128xf32>
    %1637 = vector.broadcast %43 : vector<1x128xf32> to vector<4x128xf32>
    %1638 = arith.mulf %1604, %1637 : vector<4x128xf32>
    %1639 = arith.addf %1636, %1638 : vector<4x128xf32>
    %1640 = vector.broadcast %15 : vector<1x128xf32> to vector<4x128xf32>
    %1641 = arith.mulf %1565, %1640 : vector<4x128xf32>
    %1642 = vector.broadcast %25 : vector<1x128xf32> to vector<4x128xf32>
    %1643 = arith.mulf %1578, %1642 : vector<4x128xf32>
    %1644 = arith.addf %1641, %1643 : vector<4x128xf32>
    %1645 = vector.broadcast %35 : vector<1x128xf32> to vector<4x128xf32>
    %1646 = arith.mulf %1591, %1645 : vector<4x128xf32>
    %1647 = arith.addf %1644, %1646 : vector<4x128xf32>
    %1648 = vector.broadcast %45 : vector<1x128xf32> to vector<4x128xf32>
    %1649 = arith.mulf %1604, %1648 : vector<4x128xf32>
    %1650 = arith.addf %1647, %1649 : vector<4x128xf32>
    %1651 = vector.broadcast %17 : vector<1x128xf32> to vector<4x128xf32>
    %1652 = arith.mulf %1565, %1651 : vector<4x128xf32>
    %1653 = vector.broadcast %27 : vector<1x128xf32> to vector<4x128xf32>
    %1654 = arith.mulf %1578, %1653 : vector<4x128xf32>
    %1655 = arith.addf %1652, %1654 : vector<4x128xf32>
    %1656 = vector.broadcast %37 : vector<1x128xf32> to vector<4x128xf32>
    %1657 = arith.mulf %1591, %1656 : vector<4x128xf32>
    %1658 = arith.addf %1655, %1657 : vector<4x128xf32>
    %1659 = vector.broadcast %47 : vector<1x128xf32> to vector<4x128xf32>
    %1660 = arith.mulf %1604, %1659 : vector<4x128xf32>
    %1661 = arith.addf %1658, %1660 : vector<4x128xf32>
    %1662 = vector.broadcast %19 : vector<1x128xf32> to vector<4x128xf32>
    %1663 = arith.mulf %1565, %1662 : vector<4x128xf32>
    %1664 = vector.broadcast %29 : vector<1x128xf32> to vector<4x128xf32>
    %1665 = arith.mulf %1578, %1664 : vector<4x128xf32>
    %1666 = arith.addf %1663, %1665 : vector<4x128xf32>
    %1667 = vector.broadcast %39 : vector<1x128xf32> to vector<4x128xf32>
    %1668 = arith.mulf %1591, %1667 : vector<4x128xf32>
    %1669 = arith.addf %1666, %1668 : vector<4x128xf32>
    %1670 = vector.broadcast %49 : vector<1x128xf32> to vector<4x128xf32>
    %1671 = arith.mulf %1604, %1670 : vector<4x128xf32>
    %1672 = arith.addf %1669, %1671 : vector<4x128xf32>
    %c1_169 = arith.constant 1 : index
    %c0_170 = arith.constant 0 : index
    %c0_171 = arith.constant 0 : index
    %c0_172 = arith.constant 0 : index
    %1673 = vector.load %arg1[%c1_169, %c0_170, %c0_171, %c0_172] : memref<8x5x5x128xf32, #tpu.memory_space<vmem>>, vector<1x1x5x128xf32>
    %1674 = vector.shape_cast %1673 : vector<1x1x5x128xf32> to vector<5x128xf32>
    %1675 = vector.extract_strided_slice %1628 {offsets = [0, 0], sizes = [1, 128], strides = [1, 1]} : vector<4x128xf32> to vector<1x128xf32>
    %1676 = vector.broadcast %1675 : vector<1x128xf32> to vector<5x128xf32>
    %1677 = arith.mulf %3, %1676 : vector<5x128xf32>
    %1678 = vector.extract_strided_slice %1628 {offsets = [1, 0], sizes = [1, 128], strides = [1, 1]} : vector<4x128xf32> to vector<1x128xf32>
    %1679 = vector.broadcast %1678 : vector<1x128xf32> to vector<5x128xf32>
    %1680 = arith.mulf %5, %1679 : vector<5x128xf32>
    %1681 = arith.addf %1677, %1680 : vector<5x128xf32>
    %1682 = vector.extract_strided_slice %1628 {offsets = [2, 0], sizes = [1, 128], strides = [1, 1]} : vector<4x128xf32> to vector<1x128xf32>
    %1683 = vector.broadcast %1682 : vector<1x128xf32> to vector<5x128xf32>
    %1684 = arith.mulf %7, %1683 : vector<5x128xf32>
    %1685 = arith.addf %1681, %1684 : vector<5x128xf32>
    %1686 = vector.extract_strided_slice %1628 {offsets = [3, 0], sizes = [1, 128], strides = [1, 1]} : vector<4x128xf32> to vector<1x128xf32>
    %1687 = vector.broadcast %1686 : vector<1x128xf32> to vector<5x128xf32>
    %1688 = arith.mulf %9, %1687 : vector<5x128xf32>
    %1689 = arith.addf %1685, %1688 : vector<5x128xf32>
    %1690 = arith.addf %1674, %1689 : vector<5x128xf32>
    %c1_173 = arith.constant 1 : index
    %c1_174 = arith.constant 1 : index
    %c0_175 = arith.constant 0 : index
    %c0_176 = arith.constant 0 : index
    %1691 = vector.load %arg1[%c1_173, %c1_174, %c0_175, %c0_176] : memref<8x5x5x128xf32, #tpu.memory_space<vmem>>, vector<1x1x5x128xf32>
    %1692 = vector.shape_cast %1691 : vector<1x1x5x128xf32> to vector<5x128xf32>
    %1693 = vector.extract_strided_slice %1639 {offsets = [0, 0], sizes = [1, 128], strides = [1, 1]} : vector<4x128xf32> to vector<1x128xf32>
    %1694 = vector.broadcast %1693 : vector<1x128xf32> to vector<5x128xf32>
    %1695 = arith.mulf %3, %1694 : vector<5x128xf32>
    %1696 = vector.extract_strided_slice %1639 {offsets = [1, 0], sizes = [1, 128], strides = [1, 1]} : vector<4x128xf32> to vector<1x128xf32>
    %1697 = vector.broadcast %1696 : vector<1x128xf32> to vector<5x128xf32>
    %1698 = arith.mulf %5, %1697 : vector<5x128xf32>
    %1699 = arith.addf %1695, %1698 : vector<5x128xf32>
    %1700 = vector.extract_strided_slice %1639 {offsets = [2, 0], sizes = [1, 128], strides = [1, 1]} : vector<4x128xf32> to vector<1x128xf32>
    %1701 = vector.broadcast %1700 : vector<1x128xf32> to vector<5x128xf32>
    %1702 = arith.mulf %7, %1701 : vector<5x128xf32>
    %1703 = arith.addf %1699, %1702 : vector<5x128xf32>
    %1704 = vector.extract_strided_slice %1639 {offsets = [3, 0], sizes = [1, 128], strides = [1, 1]} : vector<4x128xf32> to vector<1x128xf32>
    %1705 = vector.broadcast %1704 : vector<1x128xf32> to vector<5x128xf32>
    %1706 = arith.mulf %9, %1705 : vector<5x128xf32>
    %1707 = arith.addf %1703, %1706 : vector<5x128xf32>
    %1708 = arith.addf %1692, %1707 : vector<5x128xf32>
    %c1_177 = arith.constant 1 : index
    %c2_178 = arith.constant 2 : index
    %c0_179 = arith.constant 0 : index
    %c0_180 = arith.constant 0 : index
    %1709 = vector.load %arg1[%c1_177, %c2_178, %c0_179, %c0_180] : memref<8x5x5x128xf32, #tpu.memory_space<vmem>>, vector<1x1x5x128xf32>
    %1710 = vector.shape_cast %1709 : vector<1x1x5x128xf32> to vector<5x128xf32>
    %1711 = vector.extract_strided_slice %1650 {offsets = [0, 0], sizes = [1, 128], strides = [1, 1]} : vector<4x128xf32> to vector<1x128xf32>
    %1712 = vector.broadcast %1711 : vector<1x128xf32> to vector<5x128xf32>
    %1713 = arith.mulf %3, %1712 : vector<5x128xf32>
    %1714 = vector.extract_strided_slice %1650 {offsets = [1, 0], sizes = [1, 128], strides = [1, 1]} : vector<4x128xf32> to vector<1x128xf32>
    %1715 = vector.broadcast %1714 : vector<1x128xf32> to vector<5x128xf32>
    %1716 = arith.mulf %5, %1715 : vector<5x128xf32>
    %1717 = arith.addf %1713, %1716 : vector<5x128xf32>
    %1718 = vector.extract_strided_slice %1650 {offsets = [2, 0], sizes = [1, 128], strides = [1, 1]} : vector<4x128xf32> to vector<1x128xf32>
    %1719 = vector.broadcast %1718 : vector<1x128xf32> to vector<5x128xf32>
    %1720 = arith.mulf %7, %1719 : vector<5x128xf32>
    %1721 = arith.addf %1717, %1720 : vector<5x128xf32>
    %1722 = vector.extract_strided_slice %1650 {offsets = [3, 0], sizes = [1, 128], strides = [1, 1]} : vector<4x128xf32> to vector<1x128xf32>
    %1723 = vector.broadcast %1722 : vector<1x128xf32> to vector<5x128xf32>
    %1724 = arith.mulf %9, %1723 : vector<5x128xf32>
    %1725 = arith.addf %1721, %1724 : vector<5x128xf32>
    %1726 = arith.addf %1710, %1725 : vector<5x128xf32>
    %c1_181 = arith.constant 1 : index
    %c3_182 = arith.constant 3 : index
    %c0_183 = arith.constant 0 : index
    %c0_184 = arith.constant 0 : index
    %1727 = vector.load %arg1[%c1_181, %c3_182, %c0_183, %c0_184] : memref<8x5x5x128xf32, #tpu.memory_space<vmem>>, vector<1x1x5x128xf32>
    %1728 = vector.shape_cast %1727 : vector<1x1x5x128xf32> to vector<5x128xf32>
    %1729 = vector.extract_strided_slice %1661 {offsets = [0, 0], sizes = [1, 128], strides = [1, 1]} : vector<4x128xf32> to vector<1x128xf32>
    %1730 = vector.broadcast %1729 : vector<1x128xf32> to vector<5x128xf32>
    %1731 = arith.mulf %3, %1730 : vector<5x128xf32>
    %1732 = vector.extract_strided_slice %1661 {offsets = [1, 0], sizes = [1, 128], strides = [1, 1]} : vector<4x128xf32> to vector<1x128xf32>
    %1733 = vector.broadcast %1732 : vector<1x128xf32> to vector<5x128xf32>
    %1734 = arith.mulf %5, %1733 : vector<5x128xf32>
    %1735 = arith.addf %1731, %1734 : vector<5x128xf32>
    %1736 = vector.extract_strided_slice %1661 {offsets = [2, 0], sizes = [1, 128], strides = [1, 1]} : vector<4x128xf32> to vector<1x128xf32>
    %1737 = vector.broadcast %1736 : vector<1x128xf32> to vector<5x128xf32>
    %1738 = arith.mulf %7, %1737 : vector<5x128xf32>
    %1739 = arith.addf %1735, %1738 : vector<5x128xf32>
    %1740 = vector.extract_strided_slice %1661 {offsets = [3, 0], sizes = [1, 128], strides = [1, 1]} : vector<4x128xf32> to vector<1x128xf32>
    %1741 = vector.broadcast %1740 : vector<1x128xf32> to vector<5x128xf32>
    %1742 = arith.mulf %9, %1741 : vector<5x128xf32>
    %1743 = arith.addf %1739, %1742 : vector<5x128xf32>
    %1744 = arith.addf %1728, %1743 : vector<5x128xf32>
    %c1_185 = arith.constant 1 : index
    %c4_186 = arith.constant 4 : index
    %c0_187 = arith.constant 0 : index
    %c0_188 = arith.constant 0 : index
    %1745 = vector.load %arg1[%c1_185, %c4_186, %c0_187, %c0_188] : memref<8x5x5x128xf32, #tpu.memory_space<vmem>>, vector<1x1x5x128xf32>
    %1746 = vector.shape_cast %1745 : vector<1x1x5x128xf32> to vector<5x128xf32>
    %1747 = vector.extract_strided_slice %1672 {offsets = [0, 0], sizes = [1, 128], strides = [1, 1]} : vector<4x128xf32> to vector<1x128xf32>
    %1748 = vector.broadcast %1747 : vector<1x128xf32> to vector<5x128xf32>
    %1749 = arith.mulf %3, %1748 : vector<5x128xf32>
    %1750 = vector.extract_strided_slice %1672 {offsets = [1, 0], sizes = [1, 128], strides = [1, 1]} : vector<4x128xf32> to vector<1x128xf32>
    %1751 = vector.broadcast %1750 : vector<1x128xf32> to vector<5x128xf32>
    %1752 = arith.mulf %5, %1751 : vector<5x128xf32>
    %1753 = arith.addf %1749, %1752 : vector<5x128xf32>
    %1754 = vector.extract_strided_slice %1672 {offsets = [2, 0], sizes = [1, 128], strides = [1, 1]} : vector<4x128xf32> to vector<1x128xf32>
    %1755 = vector.broadcast %1754 : vector<1x128xf32> to vector<5x128xf32>
    %1756 = arith.mulf %7, %1755 : vector<5x128xf32>
    %1757 = arith.addf %1753, %1756 : vector<5x128xf32>
    %1758 = vector.extract_strided_slice %1672 {offsets = [3, 0], sizes = [1, 128], strides = [1, 1]} : vector<4x128xf32> to vector<1x128xf32>
    %1759 = vector.broadcast %1758 : vector<1x128xf32> to vector<5x128xf32>
    %1760 = arith.mulf %9, %1759 : vector<5x128xf32>
    %1761 = arith.addf %1757, %1760 : vector<5x128xf32>
    %1762 = arith.addf %1746, %1761 : vector<5x128xf32>
    %1763 = vector.broadcast %55 : vector<1x128xf32> to vector<4x128xf32>
    %1764 = arith.mulf %1565, %1763 : vector<4x128xf32>
    %1765 = vector.broadcast %56 : vector<1x128xf32> to vector<4x128xf32>
    %1766 = arith.mulf %1578, %1765 : vector<4x128xf32>
    %1767 = arith.addf %1764, %1766 : vector<4x128xf32>
    %1768 = vector.broadcast %57 : vector<1x128xf32> to vector<4x128xf32>
    %1769 = arith.mulf %1591, %1768 : vector<4x128xf32>
    %1770 = arith.addf %1767, %1769 : vector<4x128xf32>
    %1771 = vector.broadcast %58 : vector<1x128xf32> to vector<4x128xf32>
    %1772 = arith.mulf %1604, %1771 : vector<4x128xf32>
    %1773 = arith.addf %1770, %1772 : vector<4x128xf32>
    %c1_189 = arith.constant 1 : index
    %c0_190 = arith.constant 0 : index
    %c0_191 = arith.constant 0 : index
    %1774 = vector.load %arg2[%c1_189, %c0_190, %c0_191] : memref<8x5x128xf32, #tpu.memory_space<vmem>>, vector<1x5x128xf32>
    %1775 = vector.shape_cast %1774 : vector<1x5x128xf32> to vector<5x128xf32>
    %1776 = arith.addf %1613, %1773 : vector<4x128xf32>
    %1777 = vector.extract_strided_slice %1776 {offsets = [0, 0], sizes = [1, 128], strides = [1, 1]} : vector<4x128xf32> to vector<1x128xf32>
    %1778 = vector.broadcast %1777 : vector<1x128xf32> to vector<5x128xf32>
    %1779 = arith.mulf %3, %1778 : vector<5x128xf32>
    %1780 = vector.extract_strided_slice %1776 {offsets = [1, 0], sizes = [1, 128], strides = [1, 1]} : vector<4x128xf32> to vector<1x128xf32>
    %1781 = vector.broadcast %1780 : vector<1x128xf32> to vector<5x128xf32>
    %1782 = arith.mulf %5, %1781 : vector<5x128xf32>
    %1783 = arith.addf %1779, %1782 : vector<5x128xf32>
    %1784 = vector.extract_strided_slice %1776 {offsets = [2, 0], sizes = [1, 128], strides = [1, 1]} : vector<4x128xf32> to vector<1x128xf32>
    %1785 = vector.broadcast %1784 : vector<1x128xf32> to vector<5x128xf32>
    %1786 = arith.mulf %7, %1785 : vector<5x128xf32>
    %1787 = arith.addf %1783, %1786 : vector<5x128xf32>
    %1788 = vector.extract_strided_slice %1776 {offsets = [3, 0], sizes = [1, 128], strides = [1, 1]} : vector<4x128xf32> to vector<1x128xf32>
    %1789 = vector.broadcast %1788 : vector<1x128xf32> to vector<5x128xf32>
    %1790 = arith.mulf %9, %1789 : vector<5x128xf32>
    %1791 = arith.addf %1787, %1790 : vector<5x128xf32>
    %1792 = arith.addf %1775, %1791 : vector<5x128xf32>
    %1793 = vector.extract_strided_slice %1762 {offsets = [0, 0], sizes = [4, 128], strides = [1, 1]} : vector<5x128xf32> to vector<4x128xf32>
    %1794 = vector.extract_strided_slice %1762 {offsets = [4, 0], sizes = [1, 128], strides = [1, 1]} : vector<5x128xf32> to vector<1x128xf32>
    %1795 = vector.extract_strided_slice %1690 {offsets = [4, 0], sizes = [1, 128], strides = [1, 1]} : vector<5x128xf32> to vector<1x128xf32>
    %1796 = vector.extract_strided_slice %1708 {offsets = [4, 0], sizes = [1, 128], strides = [1, 1]} : vector<5x128xf32> to vector<1x128xf32>
    %1797 = vector.extract_strided_slice %1726 {offsets = [4, 0], sizes = [1, 128], strides = [1, 1]} : vector<5x128xf32> to vector<1x128xf32>
    %1798 = vector.extract_strided_slice %1744 {offsets = [4, 0], sizes = [1, 128], strides = [1, 1]} : vector<5x128xf32> to vector<1x128xf32>
    %1799 = tpu.concatenate %1795, %1796, %1797, %1798 in 0 : vector<1x128xf32>, vector<1x128xf32>, vector<1x128xf32>, vector<1x128xf32> -> vector<4x128xf32>
    %1800 = vector.extract_strided_slice %1792 {offsets = [0, 0], sizes = [4, 128], strides = [1, 1]} : vector<5x128xf32> to vector<4x128xf32>
    %1801 = vector.extract_strided_slice %1792 {offsets = [4, 0], sizes = [1, 128], strides = [1, 1]} : vector<5x128xf32> to vector<1x128xf32>
    %1802 = tpu.reciprocal %1794 : vector<1x128xf32> -> vector<1x128xf32>
    %1803 = vector.broadcast %1802 : vector<1x128xf32> to vector<4x128xf32>
    %1804 = arith.mulf %1799, %1803 : vector<4x128xf32>
    %cst_192 = arith.constant 0.000000e+00 : f32
    %1805 = vector.broadcast %cst_192 : f32 to vector<4x128xf32>
    %1806 = arith.subf %1805, %1804 : vector<4x128xf32>
    %1807 = arith.mulf %1801, %1802 : vector<1x128xf32>
    %cst_193 = arith.constant 0.000000e+00 : f32
    %1808 = vector.broadcast %cst_193 : f32 to vector<1x128xf32>
    %1809 = arith.subf %1808, %1807 : vector<1x128xf32>
    %1810 = vector.broadcast %1794 : vector<1x128xf32> to vector<4x128xf32>
    %1811 = arith.mulf %1806, %1810 : vector<4x128xf32>
    %1812 = vector.extract_strided_slice %1690 {offsets = [0, 0], sizes = [4, 128], strides = [1, 1]} : vector<5x128xf32> to vector<4x128xf32>
    %1813 = vector.extract_strided_slice %1806 {offsets = [0, 0], sizes = [1, 128], strides = [1, 1]} : vector<4x128xf32> to vector<1x128xf32>
    %1814 = vector.broadcast %1813 : vector<1x128xf32> to vector<4x128xf32>
    %1815 = arith.mulf %1793, %1814 : vector<4x128xf32>
    %1816 = arith.addf %1812, %1815 : vector<4x128xf32>
    %1817 = vector.extract_strided_slice %1799 {offsets = [0, 0], sizes = [1, 128], strides = [1, 1]} : vector<4x128xf32> to vector<1x128xf32>
    %1818 = vector.broadcast %1817 : vector<1x128xf32> to vector<4x128xf32>
    %1819 = arith.mulf %1806, %1818 : vector<4x128xf32>
    %1820 = arith.addf %1816, %1819 : vector<4x128xf32>
    %1821 = vector.extract_strided_slice %1806 {offsets = [0, 0], sizes = [1, 128], strides = [1, 1]} : vector<4x128xf32> to vector<1x128xf32>
    %1822 = vector.broadcast %1821 : vector<1x128xf32> to vector<4x128xf32>
    %1823 = arith.mulf %1811, %1822 : vector<4x128xf32>
    %1824 = arith.addf %1820, %1823 : vector<4x128xf32>
    %1825 = vector.extract_strided_slice %1708 {offsets = [0, 0], sizes = [4, 128], strides = [1, 1]} : vector<5x128xf32> to vector<4x128xf32>
    %1826 = vector.extract_strided_slice %1806 {offsets = [1, 0], sizes = [1, 128], strides = [1, 1]} : vector<4x128xf32> to vector<1x128xf32>
    %1827 = vector.broadcast %1826 : vector<1x128xf32> to vector<4x128xf32>
    %1828 = arith.mulf %1793, %1827 : vector<4x128xf32>
    %1829 = arith.addf %1825, %1828 : vector<4x128xf32>
    %1830 = vector.extract_strided_slice %1799 {offsets = [1, 0], sizes = [1, 128], strides = [1, 1]} : vector<4x128xf32> to vector<1x128xf32>
    %1831 = vector.broadcast %1830 : vector<1x128xf32> to vector<4x128xf32>
    %1832 = arith.mulf %1806, %1831 : vector<4x128xf32>
    %1833 = arith.addf %1829, %1832 : vector<4x128xf32>
    %1834 = vector.extract_strided_slice %1806 {offsets = [1, 0], sizes = [1, 128], strides = [1, 1]} : vector<4x128xf32> to vector<1x128xf32>
    %1835 = vector.broadcast %1834 : vector<1x128xf32> to vector<4x128xf32>
    %1836 = arith.mulf %1811, %1835 : vector<4x128xf32>
    %1837 = arith.addf %1833, %1836 : vector<4x128xf32>
    %1838 = vector.extract_strided_slice %1726 {offsets = [0, 0], sizes = [4, 128], strides = [1, 1]} : vector<5x128xf32> to vector<4x128xf32>
    %1839 = vector.extract_strided_slice %1806 {offsets = [2, 0], sizes = [1, 128], strides = [1, 1]} : vector<4x128xf32> to vector<1x128xf32>
    %1840 = vector.broadcast %1839 : vector<1x128xf32> to vector<4x128xf32>
    %1841 = arith.mulf %1793, %1840 : vector<4x128xf32>
    %1842 = arith.addf %1838, %1841 : vector<4x128xf32>
    %1843 = vector.extract_strided_slice %1799 {offsets = [2, 0], sizes = [1, 128], strides = [1, 1]} : vector<4x128xf32> to vector<1x128xf32>
    %1844 = vector.broadcast %1843 : vector<1x128xf32> to vector<4x128xf32>
    %1845 = arith.mulf %1806, %1844 : vector<4x128xf32>
    %1846 = arith.addf %1842, %1845 : vector<4x128xf32>
    %1847 = vector.extract_strided_slice %1806 {offsets = [2, 0], sizes = [1, 128], strides = [1, 1]} : vector<4x128xf32> to vector<1x128xf32>
    %1848 = vector.broadcast %1847 : vector<1x128xf32> to vector<4x128xf32>
    %1849 = arith.mulf %1811, %1848 : vector<4x128xf32>
    %1850 = arith.addf %1846, %1849 : vector<4x128xf32>
    %1851 = vector.extract_strided_slice %1744 {offsets = [0, 0], sizes = [4, 128], strides = [1, 1]} : vector<5x128xf32> to vector<4x128xf32>
    %1852 = vector.extract_strided_slice %1806 {offsets = [3, 0], sizes = [1, 128], strides = [1, 1]} : vector<4x128xf32> to vector<1x128xf32>
    %1853 = vector.broadcast %1852 : vector<1x128xf32> to vector<4x128xf32>
    %1854 = arith.mulf %1793, %1853 : vector<4x128xf32>
    %1855 = arith.addf %1851, %1854 : vector<4x128xf32>
    %1856 = vector.extract_strided_slice %1799 {offsets = [3, 0], sizes = [1, 128], strides = [1, 1]} : vector<4x128xf32> to vector<1x128xf32>
    %1857 = vector.broadcast %1856 : vector<1x128xf32> to vector<4x128xf32>
    %1858 = arith.mulf %1806, %1857 : vector<4x128xf32>
    %1859 = arith.addf %1855, %1858 : vector<4x128xf32>
    %1860 = vector.extract_strided_slice %1806 {offsets = [3, 0], sizes = [1, 128], strides = [1, 1]} : vector<4x128xf32> to vector<1x128xf32>
    %1861 = vector.broadcast %1860 : vector<1x128xf32> to vector<4x128xf32>
    %1862 = arith.mulf %1811, %1861 : vector<4x128xf32>
    %1863 = arith.addf %1859, %1862 : vector<4x128xf32>
    %1864 = vector.broadcast %1809 : vector<1x128xf32> to vector<4x128xf32>
    %1865 = arith.mulf %1793, %1864 : vector<4x128xf32>
    %1866 = arith.addf %1800, %1865 : vector<4x128xf32>
    %1867 = vector.broadcast %1801 : vector<1x128xf32> to vector<4x128xf32>
    %1868 = arith.mulf %1806, %1867 : vector<4x128xf32>
    %1869 = arith.addf %1866, %1868 : vector<4x128xf32>
    %1870 = vector.broadcast %1809 : vector<1x128xf32> to vector<4x128xf32>
    %1871 = arith.mulf %1811, %1870 : vector<4x128xf32>
    %1872 = arith.addf %1869, %1871 : vector<4x128xf32>
    %1873 = tpu.concatenate %1806, %1809 in 0 : vector<4x128xf32>, vector<1x128xf32> -> vector<5x128xf32>
    %c1_194 = arith.constant 1 : index
    %c0_195 = arith.constant 0 : index
    %c0_196 = arith.constant 0 : index
    %1874 = vector.load %arg9[%c1_194, %c0_195, %c0_196] : memref<8x5x128xf32, #tpu.memory_space<vmem>>, vector<1x5x128xf32>
    %1875 = vector.shape_cast %1874 : vector<1x5x128xf32> to vector<5x128xf32>
    %1876 = vector.shape_cast %1873 : vector<5x128xf32> to vector<1x5x128xf32>
    tpu.vector_store %arg9[%c1_194, %c0_195, %c0_196], %1876 {strides = array<i32>} : memref<8x5x128xf32, #tpu.memory_space<vmem>>, vector<1x5x128xf32>,
    %1877 = vector.broadcast %11 : vector<1x128xf32> to vector<4x128xf32>
    %1878 = arith.mulf %1824, %1877 : vector<4x128xf32>
    %1879 = vector.broadcast %21 : vector<1x128xf32> to vector<4x128xf32>
    %1880 = arith.mulf %1837, %1879 : vector<4x128xf32>
    %1881 = arith.addf %1878, %1880 : vector<4x128xf32>
    %1882 = vector.broadcast %31 : vector<1x128xf32> to vector<4x128xf32>
    %1883 = arith.mulf %1850, %1882 : vector<4x128xf32>
    %1884 = arith.addf %1881, %1883 : vector<4x128xf32>
    %1885 = vector.broadcast %41 : vector<1x128xf32> to vector<4x128xf32>
    %1886 = arith.mulf %1863, %1885 : vector<4x128xf32>
    %1887 = arith.addf %1884, %1886 : vector<4x128xf32>
    %1888 = vector.broadcast %13 : vector<1x128xf32> to vector<4x128xf32>
    %1889 = arith.mulf %1824, %1888 : vector<4x128xf32>
    %1890 = vector.broadcast %23 : vector<1x128xf32> to vector<4x128xf32>
    %1891 = arith.mulf %1837, %1890 : vector<4x128xf32>
    %1892 = arith.addf %1889, %1891 : vector<4x128xf32>
    %1893 = vector.broadcast %33 : vector<1x128xf32> to vector<4x128xf32>
    %1894 = arith.mulf %1850, %1893 : vector<4x128xf32>
    %1895 = arith.addf %1892, %1894 : vector<4x128xf32>
    %1896 = vector.broadcast %43 : vector<1x128xf32> to vector<4x128xf32>
    %1897 = arith.mulf %1863, %1896 : vector<4x128xf32>
    %1898 = arith.addf %1895, %1897 : vector<4x128xf32>
    %1899 = vector.broadcast %15 : vector<1x128xf32> to vector<4x128xf32>
    %1900 = arith.mulf %1824, %1899 : vector<4x128xf32>
    %1901 = vector.broadcast %25 : vector<1x128xf32> to vector<4x128xf32>
    %1902 = arith.mulf %1837, %1901 : vector<4x128xf32>
    %1903 = arith.addf %1900, %1902 : vector<4x128xf32>
    %1904 = vector.broadcast %35 : vector<1x128xf32> to vector<4x128xf32>
    %1905 = arith.mulf %1850, %1904 : vector<4x128xf32>
    %1906 = arith.addf %1903, %1905 : vector<4x128xf32>
    %1907 = vector.broadcast %45 : vector<1x128xf32> to vector<4x128xf32>
    %1908 = arith.mulf %1863, %1907 : vector<4x128xf32>
    %1909 = arith.addf %1906, %1908 : vector<4x128xf32>
    %1910 = vector.broadcast %17 : vector<1x128xf32> to vector<4x128xf32>
    %1911 = arith.mulf %1824, %1910 : vector<4x128xf32>
    %1912 = vector.broadcast %27 : vector<1x128xf32> to vector<4x128xf32>
    %1913 = arith.mulf %1837, %1912 : vector<4x128xf32>
    %1914 = arith.addf %1911, %1913 : vector<4x128xf32>
    %1915 = vector.broadcast %37 : vector<1x128xf32> to vector<4x128xf32>
    %1916 = arith.mulf %1850, %1915 : vector<4x128xf32>
    %1917 = arith.addf %1914, %1916 : vector<4x128xf32>
    %1918 = vector.broadcast %47 : vector<1x128xf32> to vector<4x128xf32>
    %1919 = arith.mulf %1863, %1918 : vector<4x128xf32>
    %1920 = arith.addf %1917, %1919 : vector<4x128xf32>
    %1921 = vector.broadcast %19 : vector<1x128xf32> to vector<4x128xf32>
    %1922 = arith.mulf %1824, %1921 : vector<4x128xf32>
    %1923 = vector.broadcast %29 : vector<1x128xf32> to vector<4x128xf32>
    %1924 = arith.mulf %1837, %1923 : vector<4x128xf32>
    %1925 = arith.addf %1922, %1924 : vector<4x128xf32>
    %1926 = vector.broadcast %39 : vector<1x128xf32> to vector<4x128xf32>
    %1927 = arith.mulf %1850, %1926 : vector<4x128xf32>
    %1928 = arith.addf %1925, %1927 : vector<4x128xf32>
    %1929 = vector.broadcast %49 : vector<1x128xf32> to vector<4x128xf32>
    %1930 = arith.mulf %1863, %1929 : vector<4x128xf32>
    %1931 = arith.addf %1928, %1930 : vector<4x128xf32>
    %c0_197 = arith.constant 0 : index
    %c0_198 = arith.constant 0 : index
    %c0_199 = arith.constant 0 : index
    %c0_200 = arith.constant 0 : index
    %1932 = vector.load %arg1[%c0_197, %c0_198, %c0_199, %c0_200] : memref<8x5x5x128xf32, #tpu.memory_space<vmem>>, vector<1x1x5x128xf32>
    %1933 = vector.shape_cast %1932 : vector<1x1x5x128xf32> to vector<5x128xf32>
    %1934 = vector.extract_strided_slice %1887 {offsets = [0, 0], sizes = [1, 128], strides = [1, 1]} : vector<4x128xf32> to vector<1x128xf32>
    %1935 = vector.broadcast %1934 : vector<1x128xf32> to vector<5x128xf32>
    %1936 = arith.mulf %3, %1935 : vector<5x128xf32>
    %1937 = vector.extract_strided_slice %1887 {offsets = [1, 0], sizes = [1, 128], strides = [1, 1]} : vector<4x128xf32> to vector<1x128xf32>
    %1938 = vector.broadcast %1937 : vector<1x128xf32> to vector<5x128xf32>
    %1939 = arith.mulf %5, %1938 : vector<5x128xf32>
    %1940 = arith.addf %1936, %1939 : vector<5x128xf32>
    %1941 = vector.extract_strided_slice %1887 {offsets = [2, 0], sizes = [1, 128], strides = [1, 1]} : vector<4x128xf32> to vector<1x128xf32>
    %1942 = vector.broadcast %1941 : vector<1x128xf32> to vector<5x128xf32>
    %1943 = arith.mulf %7, %1942 : vector<5x128xf32>
    %1944 = arith.addf %1940, %1943 : vector<5x128xf32>
    %1945 = vector.extract_strided_slice %1887 {offsets = [3, 0], sizes = [1, 128], strides = [1, 1]} : vector<4x128xf32> to vector<1x128xf32>
    %1946 = vector.broadcast %1945 : vector<1x128xf32> to vector<5x128xf32>
    %1947 = arith.mulf %9, %1946 : vector<5x128xf32>
    %1948 = arith.addf %1944, %1947 : vector<5x128xf32>
    %1949 = arith.addf %1933, %1948 : vector<5x128xf32>
    %c0_201 = arith.constant 0 : index
    %c1_202 = arith.constant 1 : index
    %c0_203 = arith.constant 0 : index
    %c0_204 = arith.constant 0 : index
    %1950 = vector.load %arg1[%c0_201, %c1_202, %c0_203, %c0_204] : memref<8x5x5x128xf32, #tpu.memory_space<vmem>>, vector<1x1x5x128xf32>
    %1951 = vector.shape_cast %1950 : vector<1x1x5x128xf32> to vector<5x128xf32>
    %1952 = vector.extract_strided_slice %1898 {offsets = [0, 0], sizes = [1, 128], strides = [1, 1]} : vector<4x128xf32> to vector<1x128xf32>
    %1953 = vector.broadcast %1952 : vector<1x128xf32> to vector<5x128xf32>
    %1954 = arith.mulf %3, %1953 : vector<5x128xf32>
    %1955 = vector.extract_strided_slice %1898 {offsets = [1, 0], sizes = [1, 128], strides = [1, 1]} : vector<4x128xf32> to vector<1x128xf32>
    %1956 = vector.broadcast %1955 : vector<1x128xf32> to vector<5x128xf32>
    %1957 = arith.mulf %5, %1956 : vector<5x128xf32>
    %1958 = arith.addf %1954, %1957 : vector<5x128xf32>
    %1959 = vector.extract_strided_slice %1898 {offsets = [2, 0], sizes = [1, 128], strides = [1, 1]} : vector<4x128xf32> to vector<1x128xf32>
    %1960 = vector.broadcast %1959 : vector<1x128xf32> to vector<5x128xf32>
    %1961 = arith.mulf %7, %1960 : vector<5x128xf32>
    %1962 = arith.addf %1958, %1961 : vector<5x128xf32>
    %1963 = vector.extract_strided_slice %1898 {offsets = [3, 0], sizes = [1, 128], strides = [1, 1]} : vector<4x128xf32> to vector<1x128xf32>
    %1964 = vector.broadcast %1963 : vector<1x128xf32> to vector<5x128xf32>
    %1965 = arith.mulf %9, %1964 : vector<5x128xf32>
    %1966 = arith.addf %1962, %1965 : vector<5x128xf32>
    %1967 = arith.addf %1951, %1966 : vector<5x128xf32>
    %c0_205 = arith.constant 0 : index
    %c2_206 = arith.constant 2 : index
    %c0_207 = arith.constant 0 : index
    %c0_208 = arith.constant 0 : index
    %1968 = vector.load %arg1[%c0_205, %c2_206, %c0_207, %c0_208] : memref<8x5x5x128xf32, #tpu.memory_space<vmem>>, vector<1x1x5x128xf32>
    %1969 = vector.shape_cast %1968 : vector<1x1x5x128xf32> to vector<5x128xf32>
    %1970 = vector.extract_strided_slice %1909 {offsets = [0, 0], sizes = [1, 128], strides = [1, 1]} : vector<4x128xf32> to vector<1x128xf32>
    %1971 = vector.broadcast %1970 : vector<1x128xf32> to vector<5x128xf32>
    %1972 = arith.mulf %3, %1971 : vector<5x128xf32>
    %1973 = vector.extract_strided_slice %1909 {offsets = [1, 0], sizes = [1, 128], strides = [1, 1]} : vector<4x128xf32> to vector<1x128xf32>
    %1974 = vector.broadcast %1973 : vector<1x128xf32> to vector<5x128xf32>
    %1975 = arith.mulf %5, %1974 : vector<5x128xf32>
    %1976 = arith.addf %1972, %1975 : vector<5x128xf32>
    %1977 = vector.extract_strided_slice %1909 {offsets = [2, 0], sizes = [1, 128], strides = [1, 1]} : vector<4x128xf32> to vector<1x128xf32>
    %1978 = vector.broadcast %1977 : vector<1x128xf32> to vector<5x128xf32>
    %1979 = arith.mulf %7, %1978 : vector<5x128xf32>
    %1980 = arith.addf %1976, %1979 : vector<5x128xf32>
    %1981 = vector.extract_strided_slice %1909 {offsets = [3, 0], sizes = [1, 128], strides = [1, 1]} : vector<4x128xf32> to vector<1x128xf32>
    %1982 = vector.broadcast %1981 : vector<1x128xf32> to vector<5x128xf32>
    %1983 = arith.mulf %9, %1982 : vector<5x128xf32>
    %1984 = arith.addf %1980, %1983 : vector<5x128xf32>
    %1985 = arith.addf %1969, %1984 : vector<5x128xf32>
    %c0_209 = arith.constant 0 : index
    %c3_210 = arith.constant 3 : index
    %c0_211 = arith.constant 0 : index
    %c0_212 = arith.constant 0 : index
    %1986 = vector.load %arg1[%c0_209, %c3_210, %c0_211, %c0_212] : memref<8x5x5x128xf32, #tpu.memory_space<vmem>>, vector<1x1x5x128xf32>
    %1987 = vector.shape_cast %1986 : vector<1x1x5x128xf32> to vector<5x128xf32>
    %1988 = vector.extract_strided_slice %1920 {offsets = [0, 0], sizes = [1, 128], strides = [1, 1]} : vector<4x128xf32> to vector<1x128xf32>
    %1989 = vector.broadcast %1988 : vector<1x128xf32> to vector<5x128xf32>
    %1990 = arith.mulf %3, %1989 : vector<5x128xf32>
    %1991 = vector.extract_strided_slice %1920 {offsets = [1, 0], sizes = [1, 128], strides = [1, 1]} : vector<4x128xf32> to vector<1x128xf32>
    %1992 = vector.broadcast %1991 : vector<1x128xf32> to vector<5x128xf32>
    %1993 = arith.mulf %5, %1992 : vector<5x128xf32>
    %1994 = arith.addf %1990, %1993 : vector<5x128xf32>
    %1995 = vector.extract_strided_slice %1920 {offsets = [2, 0], sizes = [1, 128], strides = [1, 1]} : vector<4x128xf32> to vector<1x128xf32>
    %1996 = vector.broadcast %1995 : vector<1x128xf32> to vector<5x128xf32>
    %1997 = arith.mulf %7, %1996 : vector<5x128xf32>
    %1998 = arith.addf %1994, %1997 : vector<5x128xf32>
    %1999 = vector.extract_strided_slice %1920 {offsets = [3, 0], sizes = [1, 128], strides = [1, 1]} : vector<4x128xf32> to vector<1x128xf32>
    %2000 = vector.broadcast %1999 : vector<1x128xf32> to vector<5x128xf32>
    %2001 = arith.mulf %9, %2000 : vector<5x128xf32>
    %2002 = arith.addf %1998, %2001 : vector<5x128xf32>
    %2003 = arith.addf %1987, %2002 : vector<5x128xf32>
    %c0_213 = arith.constant 0 : index
    %c4_214 = arith.constant 4 : index
    %c0_215 = arith.constant 0 : index
    %c0_216 = arith.constant 0 : index
    %2004 = vector.load %arg1[%c0_213, %c4_214, %c0_215, %c0_216] : memref<8x5x5x128xf32, #tpu.memory_space<vmem>>, vector<1x1x5x128xf32>
    %2005 = vector.shape_cast %2004 : vector<1x1x5x128xf32> to vector<5x128xf32>
    %2006 = vector.extract_strided_slice %1931 {offsets = [0, 0], sizes = [1, 128], strides = [1, 1]} : vector<4x128xf32> to vector<1x128xf32>
    %2007 = vector.broadcast %2006 : vector<1x128xf32> to vector<5x128xf32>
    %2008 = arith.mulf %3, %2007 : vector<5x128xf32>
    %2009 = vector.extract_strided_slice %1931 {offsets = [1, 0], sizes = [1, 128], strides = [1, 1]} : vector<4x128xf32> to vector<1x128xf32>
    %2010 = vector.broadcast %2009 : vector<1x128xf32> to vector<5x128xf32>
    %2011 = arith.mulf %5, %2010 : vector<5x128xf32>
    %2012 = arith.addf %2008, %2011 : vector<5x128xf32>
    %2013 = vector.extract_strided_slice %1931 {offsets = [2, 0], sizes = [1, 128], strides = [1, 1]} : vector<4x128xf32> to vector<1x128xf32>
    %2014 = vector.broadcast %2013 : vector<1x128xf32> to vector<5x128xf32>
    %2015 = arith.mulf %7, %2014 : vector<5x128xf32>
    %2016 = arith.addf %2012, %2015 : vector<5x128xf32>
    %2017 = vector.extract_strided_slice %1931 {offsets = [3, 0], sizes = [1, 128], strides = [1, 1]} : vector<4x128xf32> to vector<1x128xf32>
    %2018 = vector.broadcast %2017 : vector<1x128xf32> to vector<5x128xf32>
    %2019 = arith.mulf %9, %2018 : vector<5x128xf32>
    %2020 = arith.addf %2016, %2019 : vector<5x128xf32>
    %2021 = arith.addf %2005, %2020 : vector<5x128xf32>
    %2022 = vector.broadcast %55 : vector<1x128xf32> to vector<4x128xf32>
    %2023 = arith.mulf %1824, %2022 : vector<4x128xf32>
    %2024 = vector.broadcast %56 : vector<1x128xf32> to vector<4x128xf32>
    %2025 = arith.mulf %1837, %2024 : vector<4x128xf32>
    %2026 = arith.addf %2023, %2025 : vector<4x128xf32>
    %2027 = vector.broadcast %57 : vector<1x128xf32> to vector<4x128xf32>
    %2028 = arith.mulf %1850, %2027 : vector<4x128xf32>
    %2029 = arith.addf %2026, %2028 : vector<4x128xf32>
    %2030 = vector.broadcast %58 : vector<1x128xf32> to vector<4x128xf32>
    %2031 = arith.mulf %1863, %2030 : vector<4x128xf32>
    %2032 = arith.addf %2029, %2031 : vector<4x128xf32>
    %c0_217 = arith.constant 0 : index
    %c0_218 = arith.constant 0 : index
    %c0_219 = arith.constant 0 : index
    %2033 = vector.load %arg2[%c0_217, %c0_218, %c0_219] : memref<8x5x128xf32, #tpu.memory_space<vmem>>, vector<1x5x128xf32>
    %2034 = vector.shape_cast %2033 : vector<1x5x128xf32> to vector<5x128xf32>
    %2035 = arith.addf %1872, %2032 : vector<4x128xf32>
    %2036 = vector.extract_strided_slice %2035 {offsets = [0, 0], sizes = [1, 128], strides = [1, 1]} : vector<4x128xf32> to vector<1x128xf32>
    %2037 = vector.broadcast %2036 : vector<1x128xf32> to vector<5x128xf32>
    %2038 = arith.mulf %3, %2037 : vector<5x128xf32>
    %2039 = vector.extract_strided_slice %2035 {offsets = [1, 0], sizes = [1, 128], strides = [1, 1]} : vector<4x128xf32> to vector<1x128xf32>
    %2040 = vector.broadcast %2039 : vector<1x128xf32> to vector<5x128xf32>
    %2041 = arith.mulf %5, %2040 : vector<5x128xf32>
    %2042 = arith.addf %2038, %2041 : vector<5x128xf32>
    %2043 = vector.extract_strided_slice %2035 {offsets = [2, 0], sizes = [1, 128], strides = [1, 1]} : vector<4x128xf32> to vector<1x128xf32>
    %2044 = vector.broadcast %2043 : vector<1x128xf32> to vector<5x128xf32>
    %2045 = arith.mulf %7, %2044 : vector<5x128xf32>
    %2046 = arith.addf %2042, %2045 : vector<5x128xf32>
    %2047 = vector.extract_strided_slice %2035 {offsets = [3, 0], sizes = [1, 128], strides = [1, 1]} : vector<4x128xf32> to vector<1x128xf32>
    %2048 = vector.broadcast %2047 : vector<1x128xf32> to vector<5x128xf32>
    %2049 = arith.mulf %9, %2048 : vector<5x128xf32>
    %2050 = arith.addf %2046, %2049 : vector<5x128xf32>
    %2051 = arith.addf %2034, %2050 : vector<5x128xf32>
    %2052 = vector.extract_strided_slice %2021 {offsets = [4, 0], sizes = [1, 128], strides = [1, 1]} : vector<5x128xf32> to vector<1x128xf32>
    %2053 = vector.extract_strided_slice %1949 {offsets = [4, 0], sizes = [1, 128], strides = [1, 1]} : vector<5x128xf32> to vector<1x128xf32>
    %2054 = vector.extract_strided_slice %1967 {offsets = [4, 0], sizes = [1, 128], strides = [1, 1]} : vector<5x128xf32> to vector<1x128xf32>
    %2055 = vector.extract_strided_slice %1985 {offsets = [4, 0], sizes = [1, 128], strides = [1, 1]} : vector<5x128xf32> to vector<1x128xf32>
    %2056 = vector.extract_strided_slice %2003 {offsets = [4, 0], sizes = [1, 128], strides = [1, 1]} : vector<5x128xf32> to vector<1x128xf32>
    %2057 = tpu.concatenate %2053, %2054, %2055, %2056 in 0 : vector<1x128xf32>, vector<1x128xf32>, vector<1x128xf32>, vector<1x128xf32> -> vector<4x128xf32>
    %2058 = vector.extract_strided_slice %2051 {offsets = [4, 0], sizes = [1, 128], strides = [1, 1]} : vector<5x128xf32> to vector<1x128xf32>
    %2059 = tpu.reciprocal %2052 : vector<1x128xf32> -> vector<1x128xf32>
    %2060 = vector.broadcast %2059 : vector<1x128xf32> to vector<4x128xf32>
    %2061 = arith.mulf %2057, %2060 : vector<4x128xf32>
    %cst_220 = arith.constant 0.000000e+00 : f32
    %2062 = vector.broadcast %cst_220 : f32 to vector<4x128xf32>
    %2063 = arith.subf %2062, %2061 : vector<4x128xf32>
    %2064 = arith.mulf %2058, %2059 : vector<1x128xf32>
    %cst_221 = arith.constant 0.000000e+00 : f32
    %2065 = vector.broadcast %cst_221 : f32 to vector<1x128xf32>
    %2066 = arith.subf %2065, %2064 : vector<1x128xf32>
    %2067 = tpu.concatenate %2063, %2066 in 0 : vector<4x128xf32>, vector<1x128xf32> -> vector<5x128xf32>
    %c0_222 = arith.constant 0 : index
    %c0_223 = arith.constant 0 : index
    %c0_224 = arith.constant 0 : index
    %2068 = vector.load %arg9[%c0_222, %c0_223, %c0_224] : memref<8x5x128xf32, #tpu.memory_space<vmem>>, vector<1x5x128xf32>
    %2069 = vector.shape_cast %2068 : vector<1x5x128xf32> to vector<5x128xf32>
    %2070 = vector.shape_cast %2067 : vector<5x128xf32> to vector<1x5x128xf32>
    tpu.vector_store %arg9[%c0_222, %c0_223, %c0_224], %2070 {strides = array<i32>} : memref<8x5x128xf32, #tpu.memory_space<vmem>>, vector<1x5x128xf32>,
    %c0_225 = arith.constant 0 : index
    %c0_226 = arith.constant 0 : index
    %2071 = vector.load %arg5[%c0_225, %c0_226] : memref<4x128xf32, #tpu.memory_space<vmem>>, vector<4x128xf32>
    %c0_227 = arith.constant 0 : index
    %c0_228 = arith.constant 0 : index
    %c0_229 = arith.constant 0 : index
    %2072 = vector.load %arg6[%c0_227, %c0_228, %c0_229] : memref<9x4x128xf32, #tpu.memory_space<vmem>>, vector<1x4x128xf32>
    %2073 = vector.shape_cast %2072 : vector<1x4x128xf32> to vector<4x128xf32>
    %2074 = vector.shape_cast %2071 : vector<4x128xf32> to vector<1x4x128xf32>
    tpu.vector_store %arg6[%c0_227, %c0_228, %c0_229], %2074 {strides = array<i32>} : memref<9x4x128xf32, #tpu.memory_space<vmem>>, vector<1x4x128xf32>,
    %cst_230 = arith.constant 0.000000e+00 : f32
    %2075 = vector.broadcast %cst_230 : f32 to vector<1x128xf32>
    %c0_231 = arith.constant 0 : index
    %c0_232 = arith.constant 0 : index
    %2076 = vector.load %arg5[%c0_231, %c0_232] : memref<4x128xf32, #tpu.memory_space<vmem>>, vector<4x128xf32>
    %c0_233 = arith.constant 0 : index
    %c0_234 = arith.constant 0 : index
    %c0_235 = arith.constant 0 : index
    %2077 = vector.load %arg9[%c0_233, %c0_234, %c0_235] : memref<8x5x128xf32, #tpu.memory_space<vmem>>, vector<1x5x128xf32>
    %2078 = vector.shape_cast %2077 : vector<1x5x128xf32> to vector<5x128xf32>
    %2079 = vector.extract_strided_slice %2078 {offsets = [0, 0], sizes = [4, 128], strides = [1, 1]} : vector<5x128xf32> to vector<4x128xf32>
    %2080 = vector.extract_strided_slice %2078 {offsets = [4, 0], sizes = [1, 128], strides = [1, 1]} : vector<5x128xf32> to vector<1x128xf32>
    %2081 = arith.mulf %2079, %2076 : vector<4x128xf32>
    %cst_236 = arith.constant dense<0.000000e+00> : vector<128xf32>
    %2082 = vector.multi_reduction <add>, %2081, %cst_236 [0] : vector<4x128xf32> to vector<128xf32>
    %2083 = vector.shape_cast %2082 : vector<128xf32> to vector<1x128xf32>
    %2084 = arith.addf %2083, %2080 : vector<1x128xf32>
    %2085 = tpu.concatenate %2076, %2084 in 0 : vector<4x128xf32>, vector<1x128xf32> -> vector<5x128xf32>
    %c0_237 = arith.constant 0 : index
    %c0_238 = arith.constant 0 : index
    %c0_239 = arith.constant 0 : index
    %c0_240 = arith.constant 0 : index
    %2086 = vector.load %arg1[%c0_237, %c0_238, %c0_239, %c0_240] : memref<8x5x5x128xf32, #tpu.memory_space<vmem>>, vector<1x1x5x128xf32>
    %2087 = vector.shape_cast %2086 : vector<1x1x5x128xf32> to vector<5x128xf32>
    %2088 = vector.extract_strided_slice %2085 {offsets = [0, 0], sizes = [1, 128], strides = [1, 1]} : vector<5x128xf32> to vector<1x128xf32>
    %2089 = vector.broadcast %2088 : vector<1x128xf32> to vector<5x128xf32>
    %2090 = arith.mulf %2087, %2089 : vector<5x128xf32>
    %c0_241 = arith.constant 0 : index
    %c1_242 = arith.constant 1 : index
    %c0_243 = arith.constant 0 : index
    %c0_244 = arith.constant 0 : index
    %2091 = vector.load %arg1[%c0_241, %c1_242, %c0_243, %c0_244] : memref<8x5x5x128xf32, #tpu.memory_space<vmem>>, vector<1x1x5x128xf32>
    %2092 = vector.shape_cast %2091 : vector<1x1x5x128xf32> to vector<5x128xf32>
    %2093 = vector.extract_strided_slice %2085 {offsets = [1, 0], sizes = [1, 128], strides = [1, 1]} : vector<5x128xf32> to vector<1x128xf32>
    %2094 = vector.broadcast %2093 : vector<1x128xf32> to vector<5x128xf32>
    %2095 = arith.mulf %2092, %2094 : vector<5x128xf32>
    %2096 = arith.addf %2090, %2095 : vector<5x128xf32>
    %c0_245 = arith.constant 0 : index
    %c2_246 = arith.constant 2 : index
    %c0_247 = arith.constant 0 : index
    %c0_248 = arith.constant 0 : index
    %2097 = vector.load %arg1[%c0_245, %c2_246, %c0_247, %c0_248] : memref<8x5x5x128xf32, #tpu.memory_space<vmem>>, vector<1x1x5x128xf32>
    %2098 = vector.shape_cast %2097 : vector<1x1x5x128xf32> to vector<5x128xf32>
    %2099 = vector.extract_strided_slice %2085 {offsets = [2, 0], sizes = [1, 128], strides = [1, 1]} : vector<5x128xf32> to vector<1x128xf32>
    %2100 = vector.broadcast %2099 : vector<1x128xf32> to vector<5x128xf32>
    %2101 = arith.mulf %2098, %2100 : vector<5x128xf32>
    %2102 = arith.addf %2096, %2101 : vector<5x128xf32>
    %c0_249 = arith.constant 0 : index
    %c3_250 = arith.constant 3 : index
    %c0_251 = arith.constant 0 : index
    %c0_252 = arith.constant 0 : index
    %2103 = vector.load %arg1[%c0_249, %c3_250, %c0_251, %c0_252] : memref<8x5x5x128xf32, #tpu.memory_space<vmem>>, vector<1x1x5x128xf32>
    %2104 = vector.shape_cast %2103 : vector<1x1x5x128xf32> to vector<5x128xf32>
    %2105 = vector.extract_strided_slice %2085 {offsets = [3, 0], sizes = [1, 128], strides = [1, 1]} : vector<5x128xf32> to vector<1x128xf32>
    %2106 = vector.broadcast %2105 : vector<1x128xf32> to vector<5x128xf32>
    %2107 = arith.mulf %2104, %2106 : vector<5x128xf32>
    %2108 = arith.addf %2102, %2107 : vector<5x128xf32>
    %c0_253 = arith.constant 0 : index
    %c4_254 = arith.constant 4 : index
    %c0_255 = arith.constant 0 : index
    %c0_256 = arith.constant 0 : index
    %2109 = vector.load %arg1[%c0_253, %c4_254, %c0_255, %c0_256] : memref<8x5x5x128xf32, #tpu.memory_space<vmem>>, vector<1x1x5x128xf32>
    %2110 = vector.shape_cast %2109 : vector<1x1x5x128xf32> to vector<5x128xf32>
    %2111 = vector.extract_strided_slice %2085 {offsets = [4, 0], sizes = [1, 128], strides = [1, 1]} : vector<5x128xf32> to vector<1x128xf32>
    %2112 = vector.broadcast %2111 : vector<1x128xf32> to vector<5x128xf32>
    %2113 = arith.mulf %2110, %2112 : vector<5x128xf32>
    %2114 = arith.addf %2108, %2113 : vector<5x128xf32>
    %2115 = arith.mulf %2085, %2114 : vector<5x128xf32>
    %cst_257 = arith.constant dense<0.000000e+00> : vector<128xf32>
    %2116 = vector.multi_reduction <add>, %2115, %cst_257 [0] : vector<5x128xf32> to vector<128xf32>
    %2117 = vector.shape_cast %2116 : vector<128xf32> to vector<1x128xf32>
    %c0_258 = arith.constant 0 : index
    %c0_259 = arith.constant 0 : index
    %c0_260 = arith.constant 0 : index
    %2118 = vector.load %arg2[%c0_258, %c0_259, %c0_260] : memref<8x5x128xf32, #tpu.memory_space<vmem>>, vector<1x5x128xf32>
    %2119 = vector.shape_cast %2118 : vector<1x5x128xf32> to vector<5x128xf32>
    %2120 = arith.mulf %2119, %2085 : vector<5x128xf32>
    %cst_261 = arith.constant dense<0.000000e+00> : vector<128xf32>
    %2121 = vector.multi_reduction <add>, %2120, %cst_261 [0] : vector<5x128xf32> to vector<128xf32>
    %2122 = vector.shape_cast %2121 : vector<128xf32> to vector<1x128xf32>
    %cst_262 = arith.constant 5.000000e-01 : f32
    %2123 = vector.broadcast %cst_262 : f32 to vector<1x128xf32>
    %2124 = arith.mulf %2123, %2117 : vector<1x128xf32>
    %2125 = arith.addf %2075, %2124 : vector<1x128xf32>
    %2126 = arith.addf %2125, %2122 : vector<1x128xf32>
    %2127 = vector.extract_strided_slice %2085 {offsets = [0, 0], sizes = [1, 128], strides = [1, 1]} : vector<5x128xf32> to vector<1x128xf32>
    %2128 = vector.broadcast %2127 : vector<1x128xf32> to vector<4x128xf32>
    %2129 = arith.mulf %50, %2128 : vector<4x128xf32>
    %2130 = arith.addf %1, %2129 : vector<4x128xf32>
    %2131 = vector.extract_strided_slice %2085 {offsets = [1, 0], sizes = [1, 128], strides = [1, 1]} : vector<5x128xf32> to vector<1x128xf32>
    %2132 = vector.broadcast %2131 : vector<1x128xf32> to vector<4x128xf32>
    %2133 = arith.mulf %51, %2132 : vector<4x128xf32>
    %2134 = arith.addf %2130, %2133 : vector<4x128xf32>
    %2135 = vector.extract_strided_slice %2085 {offsets = [2, 0], sizes = [1, 128], strides = [1, 1]} : vector<5x128xf32> to vector<1x128xf32>
    %2136 = vector.broadcast %2135 : vector<1x128xf32> to vector<4x128xf32>
    %2137 = arith.mulf %52, %2136 : vector<4x128xf32>
    %2138 = arith.addf %2134, %2137 : vector<4x128xf32>
    %2139 = vector.extract_strided_slice %2085 {offsets = [3, 0], sizes = [1, 128], strides = [1, 1]} : vector<5x128xf32> to vector<1x128xf32>
    %2140 = vector.broadcast %2139 : vector<1x128xf32> to vector<4x128xf32>
    %2141 = arith.mulf %53, %2140 : vector<4x128xf32>
    %2142 = arith.addf %2138, %2141 : vector<4x128xf32>
    %2143 = vector.extract_strided_slice %2085 {offsets = [4, 0], sizes = [1, 128], strides = [1, 1]} : vector<5x128xf32> to vector<1x128xf32>
    %2144 = vector.broadcast %2143 : vector<1x128xf32> to vector<4x128xf32>
    %2145 = arith.mulf %54, %2144 : vector<4x128xf32>
    %2146 = arith.addf %2142, %2145 : vector<4x128xf32>
    %c0_263 = arith.constant 0 : index
    %c0_264 = arith.constant 0 : index
    %c0_265 = arith.constant 0 : index
    %2147 = vector.load %arg7[%c0_263, %c0_264, %c0_265] : memref<8x1x128xf32, #tpu.memory_space<vmem>>, vector<1x1x128xf32>
    %2148 = vector.shape_cast %2147 : vector<1x1x128xf32> to vector<1x128xf32>
    %2149 = vector.shape_cast %2084 : vector<1x128xf32> to vector<1x1x128xf32>
    tpu.vector_store %arg7[%c0_263, %c0_264, %c0_265], %2149 {strides = array<i32>} : memref<8x1x128xf32, #tpu.memory_space<vmem>>, vector<1x1x128xf32>,
    %c1_266 = arith.constant 1 : index
    %c0_267 = arith.constant 0 : index
    %c0_268 = arith.constant 0 : index
    %2150 = vector.load %arg6[%c1_266, %c0_267, %c0_268] : memref<9x4x128xf32, #tpu.memory_space<vmem>>, vector<1x4x128xf32>
    %2151 = vector.shape_cast %2150 : vector<1x4x128xf32> to vector<4x128xf32>
    %2152 = vector.shape_cast %2146 : vector<4x128xf32> to vector<1x4x128xf32>
    tpu.vector_store %arg6[%c1_266, %c0_267, %c0_268], %2152 {strides = array<i32>} : memref<9x4x128xf32, #tpu.memory_space<vmem>>, vector<1x4x128xf32>,
    %c1_269 = arith.constant 1 : index
    %c0_270 = arith.constant 0 : index
    %c0_271 = arith.constant 0 : index
    %2153 = vector.load %arg9[%c1_269, %c0_270, %c0_271] : memref<8x5x128xf32, #tpu.memory_space<vmem>>, vector<1x5x128xf32>
    %2154 = vector.shape_cast %2153 : vector<1x5x128xf32> to vector<5x128xf32>
    %2155 = vector.extract_strided_slice %2154 {offsets = [0, 0], sizes = [4, 128], strides = [1, 1]} : vector<5x128xf32> to vector<4x128xf32>
    %2156 = vector.extract_strided_slice %2154 {offsets = [4, 0], sizes = [1, 128], strides = [1, 1]} : vector<5x128xf32> to vector<1x128xf32>
    %2157 = arith.mulf %2155, %2146 : vector<4x128xf32>
    %cst_272 = arith.constant dense<0.000000e+00> : vector<128xf32>
    %2158 = vector.multi_reduction <add>, %2157, %cst_272 [0] : vector<4x128xf32> to vector<128xf32>
    %2159 = vector.shape_cast %2158 : vector<128xf32> to vector<1x128xf32>
    %2160 = arith.addf %2159, %2156 : vector<1x128xf32>
    %2161 = tpu.concatenate %2146, %2160 in 0 : vector<4x128xf32>, vector<1x128xf32> -> vector<5x128xf32>
    %c1_273 = arith.constant 1 : index
    %c0_274 = arith.constant 0 : index
    %c0_275 = arith.constant 0 : index
    %c0_276 = arith.constant 0 : index
    %2162 = vector.load %arg1[%c1_273, %c0_274, %c0_275, %c0_276] : memref<8x5x5x128xf32, #tpu.memory_space<vmem>>, vector<1x1x5x128xf32>
    %2163 = vector.shape_cast %2162 : vector<1x1x5x128xf32> to vector<5x128xf32>
    %2164 = vector.extract_strided_slice %2161 {offsets = [0, 0], sizes = [1, 128], strides = [1, 1]} : vector<5x128xf32> to vector<1x128xf32>
    %2165 = vector.broadcast %2164 : vector<1x128xf32> to vector<5x128xf32>
    %2166 = arith.mulf %2163, %2165 : vector<5x128xf32>
    %c1_277 = arith.constant 1 : index
    %c1_278 = arith.constant 1 : index
    %c0_279 = arith.constant 0 : index
    %c0_280 = arith.constant 0 : index
    %2167 = vector.load %arg1[%c1_277, %c1_278, %c0_279, %c0_280] : memref<8x5x5x128xf32, #tpu.memory_space<vmem>>, vector<1x1x5x128xf32>
    %2168 = vector.shape_cast %2167 : vector<1x1x5x128xf32> to vector<5x128xf32>
    %2169 = vector.extract_strided_slice %2161 {offsets = [1, 0], sizes = [1, 128], strides = [1, 1]} : vector<5x128xf32> to vector<1x128xf32>
    %2170 = vector.broadcast %2169 : vector<1x128xf32> to vector<5x128xf32>
    %2171 = arith.mulf %2168, %2170 : vector<5x128xf32>
    %2172 = arith.addf %2166, %2171 : vector<5x128xf32>
    %c1_281 = arith.constant 1 : index
    %c2_282 = arith.constant 2 : index
    %c0_283 = arith.constant 0 : index
    %c0_284 = arith.constant 0 : index
    %2173 = vector.load %arg1[%c1_281, %c2_282, %c0_283, %c0_284] : memref<8x5x5x128xf32, #tpu.memory_space<vmem>>, vector<1x1x5x128xf32>
    %2174 = vector.shape_cast %2173 : vector<1x1x5x128xf32> to vector<5x128xf32>
    %2175 = vector.extract_strided_slice %2161 {offsets = [2, 0], sizes = [1, 128], strides = [1, 1]} : vector<5x128xf32> to vector<1x128xf32>
    %2176 = vector.broadcast %2175 : vector<1x128xf32> to vector<5x128xf32>
    %2177 = arith.mulf %2174, %2176 : vector<5x128xf32>
    %2178 = arith.addf %2172, %2177 : vector<5x128xf32>
    %c1_285 = arith.constant 1 : index
    %c3_286 = arith.constant 3 : index
    %c0_287 = arith.constant 0 : index
    %c0_288 = arith.constant 0 : index
    %2179 = vector.load %arg1[%c1_285, %c3_286, %c0_287, %c0_288] : memref<8x5x5x128xf32, #tpu.memory_space<vmem>>, vector<1x1x5x128xf32>
    %2180 = vector.shape_cast %2179 : vector<1x1x5x128xf32> to vector<5x128xf32>
    %2181 = vector.extract_strided_slice %2161 {offsets = [3, 0], sizes = [1, 128], strides = [1, 1]} : vector<5x128xf32> to vector<1x128xf32>
    %2182 = vector.broadcast %2181 : vector<1x128xf32> to vector<5x128xf32>
    %2183 = arith.mulf %2180, %2182 : vector<5x128xf32>
    %2184 = arith.addf %2178, %2183 : vector<5x128xf32>
    %c1_289 = arith.constant 1 : index
    %c4_290 = arith.constant 4 : index
    %c0_291 = arith.constant 0 : index
    %c0_292 = arith.constant 0 : index
    %2185 = vector.load %arg1[%c1_289, %c4_290, %c0_291, %c0_292] : memref<8x5x5x128xf32, #tpu.memory_space<vmem>>, vector<1x1x5x128xf32>
    %2186 = vector.shape_cast %2185 : vector<1x1x5x128xf32> to vector<5x128xf32>
    %2187 = vector.extract_strided_slice %2161 {offsets = [4, 0], sizes = [1, 128], strides = [1, 1]} : vector<5x128xf32> to vector<1x128xf32>
    %2188 = vector.broadcast %2187 : vector<1x128xf32> to vector<5x128xf32>
    %2189 = arith.mulf %2186, %2188 : vector<5x128xf32>
    %2190 = arith.addf %2184, %2189 : vector<5x128xf32>
    %2191 = arith.mulf %2161, %2190 : vector<5x128xf32>
    %cst_293 = arith.constant dense<0.000000e+00> : vector<128xf32>
    %2192 = vector.multi_reduction <add>, %2191, %cst_293 [0] : vector<5x128xf32> to vector<128xf32>
    %2193 = vector.shape_cast %2192 : vector<128xf32> to vector<1x128xf32>
    %c1_294 = arith.constant 1 : index
    %c0_295 = arith.constant 0 : index
    %c0_296 = arith.constant 0 : index
    %2194 = vector.load %arg2[%c1_294, %c0_295, %c0_296] : memref<8x5x128xf32, #tpu.memory_space<vmem>>, vector<1x5x128xf32>
    %2195 = vector.shape_cast %2194 : vector<1x5x128xf32> to vector<5x128xf32>
    %2196 = arith.mulf %2195, %2161 : vector<5x128xf32>
    %cst_297 = arith.constant dense<0.000000e+00> : vector<128xf32>
    %2197 = vector.multi_reduction <add>, %2196, %cst_297 [0] : vector<5x128xf32> to vector<128xf32>
    %2198 = vector.shape_cast %2197 : vector<128xf32> to vector<1x128xf32>
    %cst_298 = arith.constant 5.000000e-01 : f32
    %2199 = vector.broadcast %cst_298 : f32 to vector<1x128xf32>
    %2200 = arith.mulf %2199, %2193 : vector<1x128xf32>
    %2201 = arith.addf %2126, %2200 : vector<1x128xf32>
    %2202 = arith.addf %2201, %2198 : vector<1x128xf32>
    %2203 = vector.extract_strided_slice %2161 {offsets = [0, 0], sizes = [1, 128], strides = [1, 1]} : vector<5x128xf32> to vector<1x128xf32>
    %2204 = vector.broadcast %2203 : vector<1x128xf32> to vector<4x128xf32>
    %2205 = arith.mulf %50, %2204 : vector<4x128xf32>
    %2206 = arith.addf %1, %2205 : vector<4x128xf32>
    %2207 = vector.extract_strided_slice %2161 {offsets = [1, 0], sizes = [1, 128], strides = [1, 1]} : vector<5x128xf32> to vector<1x128xf32>
    %2208 = vector.broadcast %2207 : vector<1x128xf32> to vector<4x128xf32>
    %2209 = arith.mulf %51, %2208 : vector<4x128xf32>
    %2210 = arith.addf %2206, %2209 : vector<4x128xf32>
    %2211 = vector.extract_strided_slice %2161 {offsets = [2, 0], sizes = [1, 128], strides = [1, 1]} : vector<5x128xf32> to vector<1x128xf32>
    %2212 = vector.broadcast %2211 : vector<1x128xf32> to vector<4x128xf32>
    %2213 = arith.mulf %52, %2212 : vector<4x128xf32>
    %2214 = arith.addf %2210, %2213 : vector<4x128xf32>
    %2215 = vector.extract_strided_slice %2161 {offsets = [3, 0], sizes = [1, 128], strides = [1, 1]} : vector<5x128xf32> to vector<1x128xf32>
    %2216 = vector.broadcast %2215 : vector<1x128xf32> to vector<4x128xf32>
    %2217 = arith.mulf %53, %2216 : vector<4x128xf32>
    %2218 = arith.addf %2214, %2217 : vector<4x128xf32>
    %2219 = vector.extract_strided_slice %2161 {offsets = [4, 0], sizes = [1, 128], strides = [1, 1]} : vector<5x128xf32> to vector<1x128xf32>
    %2220 = vector.broadcast %2219 : vector<1x128xf32> to vector<4x128xf32>
    %2221 = arith.mulf %54, %2220 : vector<4x128xf32>
    %2222 = arith.addf %2218, %2221 : vector<4x128xf32>
    %c1_299 = arith.constant 1 : index
    %c0_300 = arith.constant 0 : index
    %c0_301 = arith.constant 0 : index
    %2223 = vector.load %arg7[%c1_299, %c0_300, %c0_301] : memref<8x1x128xf32, #tpu.memory_space<vmem>>, vector<1x1x128xf32>
    %2224 = vector.shape_cast %2223 : vector<1x1x128xf32> to vector<1x128xf32>
    %2225 = vector.shape_cast %2160 : vector<1x128xf32> to vector<1x1x128xf32>
    tpu.vector_store %arg7[%c1_299, %c0_300, %c0_301], %2225 {strides = array<i32>} : memref<8x1x128xf32, #tpu.memory_space<vmem>>, vector<1x1x128xf32>,
    %c2_302 = arith.constant 2 : index
    %c0_303 = arith.constant 0 : index
    %c0_304 = arith.constant 0 : index
    %2226 = vector.load %arg6[%c2_302, %c0_303, %c0_304] : memref<9x4x128xf32, #tpu.memory_space<vmem>>, vector<1x4x128xf32>
    %2227 = vector.shape_cast %2226 : vector<1x4x128xf32> to vector<4x128xf32>
    %2228 = vector.shape_cast %2222 : vector<4x128xf32> to vector<1x4x128xf32>
    tpu.vector_store %arg6[%c2_302, %c0_303, %c0_304], %2228 {strides = array<i32>} : memref<9x4x128xf32, #tpu.memory_space<vmem>>, vector<1x4x128xf32>,
    %c2_305 = arith.constant 2 : index
    %c0_306 = arith.constant 0 : index
    %c0_307 = arith.constant 0 : index
    %2229 = vector.load %arg9[%c2_305, %c0_306, %c0_307] : memref<8x5x128xf32, #tpu.memory_space<vmem>>, vector<1x5x128xf32>
    %2230 = vector.shape_cast %2229 : vector<1x5x128xf32> to vector<5x128xf32>
    %2231 = vector.extract_strided_slice %2230 {offsets = [0, 0], sizes = [4, 128], strides = [1, 1]} : vector<5x128xf32> to vector<4x128xf32>
    %2232 = vector.extract_strided_slice %2230 {offsets = [4, 0], sizes = [1, 128], strides = [1, 1]} : vector<5x128xf32> to vector<1x128xf32>
    %2233 = arith.mulf %2231, %2222 : vector<4x128xf32>
    %cst_308 = arith.constant dense<0.000000e+00> : vector<128xf32>
    %2234 = vector.multi_reduction <add>, %2233, %cst_308 [0] : vector<4x128xf32> to vector<128xf32>
    %2235 = vector.shape_cast %2234 : vector<128xf32> to vector<1x128xf32>
    %2236 = arith.addf %2235, %2232 : vector<1x128xf32>
    %2237 = tpu.concatenate %2222, %2236 in 0 : vector<4x128xf32>, vector<1x128xf32> -> vector<5x128xf32>
    %c2_309 = arith.constant 2 : index
    %c0_310 = arith.constant 0 : index
    %c0_311 = arith.constant 0 : index
    %c0_312 = arith.constant 0 : index
    %2238 = vector.load %arg1[%c2_309, %c0_310, %c0_311, %c0_312] : memref<8x5x5x128xf32, #tpu.memory_space<vmem>>, vector<1x1x5x128xf32>
    %2239 = vector.shape_cast %2238 : vector<1x1x5x128xf32> to vector<5x128xf32>
    %2240 = vector.extract_strided_slice %2237 {offsets = [0, 0], sizes = [1, 128], strides = [1, 1]} : vector<5x128xf32> to vector<1x128xf32>
    %2241 = vector.broadcast %2240 : vector<1x128xf32> to vector<5x128xf32>
    %2242 = arith.mulf %2239, %2241 : vector<5x128xf32>
    %c2_313 = arith.constant 2 : index
    %c1_314 = arith.constant 1 : index
    %c0_315 = arith.constant 0 : index
    %c0_316 = arith.constant 0 : index
    %2243 = vector.load %arg1[%c2_313, %c1_314, %c0_315, %c0_316] : memref<8x5x5x128xf32, #tpu.memory_space<vmem>>, vector<1x1x5x128xf32>
    %2244 = vector.shape_cast %2243 : vector<1x1x5x128xf32> to vector<5x128xf32>
    %2245 = vector.extract_strided_slice %2237 {offsets = [1, 0], sizes = [1, 128], strides = [1, 1]} : vector<5x128xf32> to vector<1x128xf32>
    %2246 = vector.broadcast %2245 : vector<1x128xf32> to vector<5x128xf32>
    %2247 = arith.mulf %2244, %2246 : vector<5x128xf32>
    %2248 = arith.addf %2242, %2247 : vector<5x128xf32>
    %c2_317 = arith.constant 2 : index
    %c2_318 = arith.constant 2 : index
    %c0_319 = arith.constant 0 : index
    %c0_320 = arith.constant 0 : index
    %2249 = vector.load %arg1[%c2_317, %c2_318, %c0_319, %c0_320] : memref<8x5x5x128xf32, #tpu.memory_space<vmem>>, vector<1x1x5x128xf32>
    %2250 = vector.shape_cast %2249 : vector<1x1x5x128xf32> to vector<5x128xf32>
    %2251 = vector.extract_strided_slice %2237 {offsets = [2, 0], sizes = [1, 128], strides = [1, 1]} : vector<5x128xf32> to vector<1x128xf32>
    %2252 = vector.broadcast %2251 : vector<1x128xf32> to vector<5x128xf32>
    %2253 = arith.mulf %2250, %2252 : vector<5x128xf32>
    %2254 = arith.addf %2248, %2253 : vector<5x128xf32>
    %c2_321 = arith.constant 2 : index
    %c3_322 = arith.constant 3 : index
    %c0_323 = arith.constant 0 : index
    %c0_324 = arith.constant 0 : index
    %2255 = vector.load %arg1[%c2_321, %c3_322, %c0_323, %c0_324] : memref<8x5x5x128xf32, #tpu.memory_space<vmem>>, vector<1x1x5x128xf32>
    %2256 = vector.shape_cast %2255 : vector<1x1x5x128xf32> to vector<5x128xf32>
    %2257 = vector.extract_strided_slice %2237 {offsets = [3, 0], sizes = [1, 128], strides = [1, 1]} : vector<5x128xf32> to vector<1x128xf32>
    %2258 = vector.broadcast %2257 : vector<1x128xf32> to vector<5x128xf32>
    %2259 = arith.mulf %2256, %2258 : vector<5x128xf32>
    %2260 = arith.addf %2254, %2259 : vector<5x128xf32>
    %c2_325 = arith.constant 2 : index
    %c4_326 = arith.constant 4 : index
    %c0_327 = arith.constant 0 : index
    %c0_328 = arith.constant 0 : index
    %2261 = vector.load %arg1[%c2_325, %c4_326, %c0_327, %c0_328] : memref<8x5x5x128xf32, #tpu.memory_space<vmem>>, vector<1x1x5x128xf32>
    %2262 = vector.shape_cast %2261 : vector<1x1x5x128xf32> to vector<5x128xf32>
    %2263 = vector.extract_strided_slice %2237 {offsets = [4, 0], sizes = [1, 128], strides = [1, 1]} : vector<5x128xf32> to vector<1x128xf32>
    %2264 = vector.broadcast %2263 : vector<1x128xf32> to vector<5x128xf32>
    %2265 = arith.mulf %2262, %2264 : vector<5x128xf32>
    %2266 = arith.addf %2260, %2265 : vector<5x128xf32>
    %2267 = arith.mulf %2237, %2266 : vector<5x128xf32>
    %cst_329 = arith.constant dense<0.000000e+00> : vector<128xf32>
    %2268 = vector.multi_reduction <add>, %2267, %cst_329 [0] : vector<5x128xf32> to vector<128xf32>
    %2269 = vector.shape_cast %2268 : vector<128xf32> to vector<1x128xf32>
    %c2_330 = arith.constant 2 : index
    %c0_331 = arith.constant 0 : index
    %c0_332 = arith.constant 0 : index
    %2270 = vector.load %arg2[%c2_330, %c0_331, %c0_332] : memref<8x5x128xf32, #tpu.memory_space<vmem>>, vector<1x5x128xf32>
    %2271 = vector.shape_cast %2270 : vector<1x5x128xf32> to vector<5x128xf32>
    %2272 = arith.mulf %2271, %2237 : vector<5x128xf32>
    %cst_333 = arith.constant dense<0.000000e+00> : vector<128xf32>
    %2273 = vector.multi_reduction <add>, %2272, %cst_333 [0] : vector<5x128xf32> to vector<128xf32>
    %2274 = vector.shape_cast %2273 : vector<128xf32> to vector<1x128xf32>
    %cst_334 = arith.constant 5.000000e-01 : f32
    %2275 = vector.broadcast %cst_334 : f32 to vector<1x128xf32>
    %2276 = arith.mulf %2275, %2269 : vector<1x128xf32>
    %2277 = arith.addf %2202, %2276 : vector<1x128xf32>
    %2278 = arith.addf %2277, %2274 : vector<1x128xf32>
    %2279 = vector.extract_strided_slice %2237 {offsets = [0, 0], sizes = [1, 128], strides = [1, 1]} : vector<5x128xf32> to vector<1x128xf32>
    %2280 = vector.broadcast %2279 : vector<1x128xf32> to vector<4x128xf32>
    %2281 = arith.mulf %50, %2280 : vector<4x128xf32>
    %2282 = arith.addf %1, %2281 : vector<4x128xf32>
    %2283 = vector.extract_strided_slice %2237 {offsets = [1, 0], sizes = [1, 128], strides = [1, 1]} : vector<5x128xf32> to vector<1x128xf32>
    %2284 = vector.broadcast %2283 : vector<1x128xf32> to vector<4x128xf32>
    %2285 = arith.mulf %51, %2284 : vector<4x128xf32>
    %2286 = arith.addf %2282, %2285 : vector<4x128xf32>
    %2287 = vector.extract_strided_slice %2237 {offsets = [2, 0], sizes = [1, 128], strides = [1, 1]} : vector<5x128xf32> to vector<1x128xf32>
    %2288 = vector.broadcast %2287 : vector<1x128xf32> to vector<4x128xf32>
    %2289 = arith.mulf %52, %2288 : vector<4x128xf32>
    %2290 = arith.addf %2286, %2289 : vector<4x128xf32>
    %2291 = vector.extract_strided_slice %2237 {offsets = [3, 0], sizes = [1, 128], strides = [1, 1]} : vector<5x128xf32> to vector<1x128xf32>
    %2292 = vector.broadcast %2291 : vector<1x128xf32> to vector<4x128xf32>
    %2293 = arith.mulf %53, %2292 : vector<4x128xf32>
    %2294 = arith.addf %2290, %2293 : vector<4x128xf32>
    %2295 = vector.extract_strided_slice %2237 {offsets = [4, 0], sizes = [1, 128], strides = [1, 1]} : vector<5x128xf32> to vector<1x128xf32>
    %2296 = vector.broadcast %2295 : vector<1x128xf32> to vector<4x128xf32>
    %2297 = arith.mulf %54, %2296 : vector<4x128xf32>
    %2298 = arith.addf %2294, %2297 : vector<4x128xf32>
    %c2_335 = arith.constant 2 : index
    %c0_336 = arith.constant 0 : index
    %c0_337 = arith.constant 0 : index
    %2299 = vector.load %arg7[%c2_335, %c0_336, %c0_337] : memref<8x1x128xf32, #tpu.memory_space<vmem>>, vector<1x1x128xf32>
    %2300 = vector.shape_cast %2299 : vector<1x1x128xf32> to vector<1x128xf32>
    %2301 = vector.shape_cast %2236 : vector<1x128xf32> to vector<1x1x128xf32>
    tpu.vector_store %arg7[%c2_335, %c0_336, %c0_337], %2301 {strides = array<i32>} : memref<8x1x128xf32, #tpu.memory_space<vmem>>, vector<1x1x128xf32>,
    %c3_338 = arith.constant 3 : index
    %c0_339 = arith.constant 0 : index
    %c0_340 = arith.constant 0 : index
    %2302 = vector.load %arg6[%c3_338, %c0_339, %c0_340] : memref<9x4x128xf32, #tpu.memory_space<vmem>>, vector<1x4x128xf32>
    %2303 = vector.shape_cast %2302 : vector<1x4x128xf32> to vector<4x128xf32>
    %2304 = vector.shape_cast %2298 : vector<4x128xf32> to vector<1x4x128xf32>
    tpu.vector_store %arg6[%c3_338, %c0_339, %c0_340], %2304 {strides = array<i32>} : memref<9x4x128xf32, #tpu.memory_space<vmem>>, vector<1x4x128xf32>,
    %c3_341 = arith.constant 3 : index
    %c0_342 = arith.constant 0 : index
    %c0_343 = arith.constant 0 : index
    %2305 = vector.load %arg9[%c3_341, %c0_342, %c0_343] : memref<8x5x128xf32, #tpu.memory_space<vmem>>, vector<1x5x128xf32>
    %2306 = vector.shape_cast %2305 : vector<1x5x128xf32> to vector<5x128xf32>
    %2307 = vector.extract_strided_slice %2306 {offsets = [0, 0], sizes = [4, 128], strides = [1, 1]} : vector<5x128xf32> to vector<4x128xf32>
    %2308 = vector.extract_strided_slice %2306 {offsets = [4, 0], sizes = [1, 128], strides = [1, 1]} : vector<5x128xf32> to vector<1x128xf32>
    %2309 = arith.mulf %2307, %2298 : vector<4x128xf32>
    %cst_344 = arith.constant dense<0.000000e+00> : vector<128xf32>
    %2310 = vector.multi_reduction <add>, %2309, %cst_344 [0] : vector<4x128xf32> to vector<128xf32>
    %2311 = vector.shape_cast %2310 : vector<128xf32> to vector<1x128xf32>
    %2312 = arith.addf %2311, %2308 : vector<1x128xf32>
    %2313 = tpu.concatenate %2298, %2312 in 0 : vector<4x128xf32>, vector<1x128xf32> -> vector<5x128xf32>
    %c3_345 = arith.constant 3 : index
    %c0_346 = arith.constant 0 : index
    %c0_347 = arith.constant 0 : index
    %c0_348 = arith.constant 0 : index
    %2314 = vector.load %arg1[%c3_345, %c0_346, %c0_347, %c0_348] : memref<8x5x5x128xf32, #tpu.memory_space<vmem>>, vector<1x1x5x128xf32>
    %2315 = vector.shape_cast %2314 : vector<1x1x5x128xf32> to vector<5x128xf32>
    %2316 = vector.extract_strided_slice %2313 {offsets = [0, 0], sizes = [1, 128], strides = [1, 1]} : vector<5x128xf32> to vector<1x128xf32>
    %2317 = vector.broadcast %2316 : vector<1x128xf32> to vector<5x128xf32>
    %2318 = arith.mulf %2315, %2317 : vector<5x128xf32>
    %c3_349 = arith.constant 3 : index
    %c1_350 = arith.constant 1 : index
    %c0_351 = arith.constant 0 : index
    %c0_352 = arith.constant 0 : index
    %2319 = vector.load %arg1[%c3_349, %c1_350, %c0_351, %c0_352] : memref<8x5x5x128xf32, #tpu.memory_space<vmem>>, vector<1x1x5x128xf32>
    %2320 = vector.shape_cast %2319 : vector<1x1x5x128xf32> to vector<5x128xf32>
    %2321 = vector.extract_strided_slice %2313 {offsets = [1, 0], sizes = [1, 128], strides = [1, 1]} : vector<5x128xf32> to vector<1x128xf32>
    %2322 = vector.broadcast %2321 : vector<1x128xf32> to vector<5x128xf32>
    %2323 = arith.mulf %2320, %2322 : vector<5x128xf32>
    %2324 = arith.addf %2318, %2323 : vector<5x128xf32>
    %c3_353 = arith.constant 3 : index
    %c2_354 = arith.constant 2 : index
    %c0_355 = arith.constant 0 : index
    %c0_356 = arith.constant 0 : index
    %2325 = vector.load %arg1[%c3_353, %c2_354, %c0_355, %c0_356] : memref<8x5x5x128xf32, #tpu.memory_space<vmem>>, vector<1x1x5x128xf32>
    %2326 = vector.shape_cast %2325 : vector<1x1x5x128xf32> to vector<5x128xf32>
    %2327 = vector.extract_strided_slice %2313 {offsets = [2, 0], sizes = [1, 128], strides = [1, 1]} : vector<5x128xf32> to vector<1x128xf32>
    %2328 = vector.broadcast %2327 : vector<1x128xf32> to vector<5x128xf32>
    %2329 = arith.mulf %2326, %2328 : vector<5x128xf32>
    %2330 = arith.addf %2324, %2329 : vector<5x128xf32>
    %c3_357 = arith.constant 3 : index
    %c3_358 = arith.constant 3 : index
    %c0_359 = arith.constant 0 : index
    %c0_360 = arith.constant 0 : index
    %2331 = vector.load %arg1[%c3_357, %c3_358, %c0_359, %c0_360] : memref<8x5x5x128xf32, #tpu.memory_space<vmem>>, vector<1x1x5x128xf32>
    %2332 = vector.shape_cast %2331 : vector<1x1x5x128xf32> to vector<5x128xf32>
    %2333 = vector.extract_strided_slice %2313 {offsets = [3, 0], sizes = [1, 128], strides = [1, 1]} : vector<5x128xf32> to vector<1x128xf32>
    %2334 = vector.broadcast %2333 : vector<1x128xf32> to vector<5x128xf32>
    %2335 = arith.mulf %2332, %2334 : vector<5x128xf32>
    %2336 = arith.addf %2330, %2335 : vector<5x128xf32>
    %c3_361 = arith.constant 3 : index
    %c4_362 = arith.constant 4 : index
    %c0_363 = arith.constant 0 : index
    %c0_364 = arith.constant 0 : index
    %2337 = vector.load %arg1[%c3_361, %c4_362, %c0_363, %c0_364] : memref<8x5x5x128xf32, #tpu.memory_space<vmem>>, vector<1x1x5x128xf32>
    %2338 = vector.shape_cast %2337 : vector<1x1x5x128xf32> to vector<5x128xf32>
    %2339 = vector.extract_strided_slice %2313 {offsets = [4, 0], sizes = [1, 128], strides = [1, 1]} : vector<5x128xf32> to vector<1x128xf32>
    %2340 = vector.broadcast %2339 : vector<1x128xf32> to vector<5x128xf32>
    %2341 = arith.mulf %2338, %2340 : vector<5x128xf32>
    %2342 = arith.addf %2336, %2341 : vector<5x128xf32>
    %2343 = arith.mulf %2313, %2342 : vector<5x128xf32>
    %cst_365 = arith.constant dense<0.000000e+00> : vector<128xf32>
    %2344 = vector.multi_reduction <add>, %2343, %cst_365 [0] : vector<5x128xf32> to vector<128xf32>
    %2345 = vector.shape_cast %2344 : vector<128xf32> to vector<1x128xf32>
    %c3_366 = arith.constant 3 : index
    %c0_367 = arith.constant 0 : index
    %c0_368 = arith.constant 0 : index
    %2346 = vector.load %arg2[%c3_366, %c0_367, %c0_368] : memref<8x5x128xf32, #tpu.memory_space<vmem>>, vector<1x5x128xf32>
    %2347 = vector.shape_cast %2346 : vector<1x5x128xf32> to vector<5x128xf32>
    %2348 = arith.mulf %2347, %2313 : vector<5x128xf32>
    %cst_369 = arith.constant dense<0.000000e+00> : vector<128xf32>
    %2349 = vector.multi_reduction <add>, %2348, %cst_369 [0] : vector<5x128xf32> to vector<128xf32>
    %2350 = vector.shape_cast %2349 : vector<128xf32> to vector<1x128xf32>
    %cst_370 = arith.constant 5.000000e-01 : f32
    %2351 = vector.broadcast %cst_370 : f32 to vector<1x128xf32>
    %2352 = arith.mulf %2351, %2345 : vector<1x128xf32>
    %2353 = arith.addf %2278, %2352 : vector<1x128xf32>
    %2354 = arith.addf %2353, %2350 : vector<1x128xf32>
    %2355 = vector.extract_strided_slice %2313 {offsets = [0, 0], sizes = [1, 128], strides = [1, 1]} : vector<5x128xf32> to vector<1x128xf32>
    %2356 = vector.broadcast %2355 : vector<1x128xf32> to vector<4x128xf32>
    %2357 = arith.mulf %50, %2356 : vector<4x128xf32>
    %2358 = arith.addf %1, %2357 : vector<4x128xf32>
    %2359 = vector.extract_strided_slice %2313 {offsets = [1, 0], sizes = [1, 128], strides = [1, 1]} : vector<5x128xf32> to vector<1x128xf32>
    %2360 = vector.broadcast %2359 : vector<1x128xf32> to vector<4x128xf32>
    %2361 = arith.mulf %51, %2360 : vector<4x128xf32>
    %2362 = arith.addf %2358, %2361 : vector<4x128xf32>
    %2363 = vector.extract_strided_slice %2313 {offsets = [2, 0], sizes = [1, 128], strides = [1, 1]} : vector<5x128xf32> to vector<1x128xf32>
    %2364 = vector.broadcast %2363 : vector<1x128xf32> to vector<4x128xf32>
    %2365 = arith.mulf %52, %2364 : vector<4x128xf32>
    %2366 = arith.addf %2362, %2365 : vector<4x128xf32>
    %2367 = vector.extract_strided_slice %2313 {offsets = [3, 0], sizes = [1, 128], strides = [1, 1]} : vector<5x128xf32> to vector<1x128xf32>
    %2368 = vector.broadcast %2367 : vector<1x128xf32> to vector<4x128xf32>
    %2369 = arith.mulf %53, %2368 : vector<4x128xf32>
    %2370 = arith.addf %2366, %2369 : vector<4x128xf32>
    %2371 = vector.extract_strided_slice %2313 {offsets = [4, 0], sizes = [1, 128], strides = [1, 1]} : vector<5x128xf32> to vector<1x128xf32>
    %2372 = vector.broadcast %2371 : vector<1x128xf32> to vector<4x128xf32>
    %2373 = arith.mulf %54, %2372 : vector<4x128xf32>
    %2374 = arith.addf %2370, %2373 : vector<4x128xf32>
    %c3_371 = arith.constant 3 : index
    %c0_372 = arith.constant 0 : index
    %c0_373 = arith.constant 0 : index
    %2375 = vector.load %arg7[%c3_371, %c0_372, %c0_373] : memref<8x1x128xf32, #tpu.memory_space<vmem>>, vector<1x1x128xf32>
    %2376 = vector.shape_cast %2375 : vector<1x1x128xf32> to vector<1x128xf32>
    %2377 = vector.shape_cast %2312 : vector<1x128xf32> to vector<1x1x128xf32>
    tpu.vector_store %arg7[%c3_371, %c0_372, %c0_373], %2377 {strides = array<i32>} : memref<8x1x128xf32, #tpu.memory_space<vmem>>, vector<1x1x128xf32>,
    %c4_374 = arith.constant 4 : index
    %c0_375 = arith.constant 0 : index
    %c0_376 = arith.constant 0 : index
    %2378 = vector.load %arg6[%c4_374, %c0_375, %c0_376] : memref<9x4x128xf32, #tpu.memory_space<vmem>>, vector<1x4x128xf32>
    %2379 = vector.shape_cast %2378 : vector<1x4x128xf32> to vector<4x128xf32>
    %2380 = vector.shape_cast %2374 : vector<4x128xf32> to vector<1x4x128xf32>
    tpu.vector_store %arg6[%c4_374, %c0_375, %c0_376], %2380 {strides = array<i32>} : memref<9x4x128xf32, #tpu.memory_space<vmem>>, vector<1x4x128xf32>,
    %c4_377 = arith.constant 4 : index
    %c0_378 = arith.constant 0 : index
    %c0_379 = arith.constant 0 : index
    %2381 = vector.load %arg9[%c4_377, %c0_378, %c0_379] : memref<8x5x128xf32, #tpu.memory_space<vmem>>, vector<1x5x128xf32>
    %2382 = vector.shape_cast %2381 : vector<1x5x128xf32> to vector<5x128xf32>
    %2383 = vector.extract_strided_slice %2382 {offsets = [0, 0], sizes = [4, 128], strides = [1, 1]} : vector<5x128xf32> to vector<4x128xf32>
    %2384 = vector.extract_strided_slice %2382 {offsets = [4, 0], sizes = [1, 128], strides = [1, 1]} : vector<5x128xf32> to vector<1x128xf32>
    %2385 = arith.mulf %2383, %2374 : vector<4x128xf32>
    %cst_380 = arith.constant dense<0.000000e+00> : vector<128xf32>
    %2386 = vector.multi_reduction <add>, %2385, %cst_380 [0] : vector<4x128xf32> to vector<128xf32>
    %2387 = vector.shape_cast %2386 : vector<128xf32> to vector<1x128xf32>
    %2388 = arith.addf %2387, %2384 : vector<1x128xf32>
    %2389 = tpu.concatenate %2374, %2388 in 0 : vector<4x128xf32>, vector<1x128xf32> -> vector<5x128xf32>
    %c4_381 = arith.constant 4 : index
    %c0_382 = arith.constant 0 : index
    %c0_383 = arith.constant 0 : index
    %c0_384 = arith.constant 0 : index
    %2390 = vector.load %arg1[%c4_381, %c0_382, %c0_383, %c0_384] : memref<8x5x5x128xf32, #tpu.memory_space<vmem>>, vector<1x1x5x128xf32>
    %2391 = vector.shape_cast %2390 : vector<1x1x5x128xf32> to vector<5x128xf32>
    %2392 = vector.extract_strided_slice %2389 {offsets = [0, 0], sizes = [1, 128], strides = [1, 1]} : vector<5x128xf32> to vector<1x128xf32>
    %2393 = vector.broadcast %2392 : vector<1x128xf32> to vector<5x128xf32>
    %2394 = arith.mulf %2391, %2393 : vector<5x128xf32>
    %c4_385 = arith.constant 4 : index
    %c1_386 = arith.constant 1 : index
    %c0_387 = arith.constant 0 : index
    %c0_388 = arith.constant 0 : index
    %2395 = vector.load %arg1[%c4_385, %c1_386, %c0_387, %c0_388] : memref<8x5x5x128xf32, #tpu.memory_space<vmem>>, vector<1x1x5x128xf32>
    %2396 = vector.shape_cast %2395 : vector<1x1x5x128xf32> to vector<5x128xf32>
    %2397 = vector.extract_strided_slice %2389 {offsets = [1, 0], sizes = [1, 128], strides = [1, 1]} : vector<5x128xf32> to vector<1x128xf32>
    %2398 = vector.broadcast %2397 : vector<1x128xf32> to vector<5x128xf32>
    %2399 = arith.mulf %2396, %2398 : vector<5x128xf32>
    %2400 = arith.addf %2394, %2399 : vector<5x128xf32>
    %c4_389 = arith.constant 4 : index
    %c2_390 = arith.constant 2 : index
    %c0_391 = arith.constant 0 : index
    %c0_392 = arith.constant 0 : index
    %2401 = vector.load %arg1[%c4_389, %c2_390, %c0_391, %c0_392] : memref<8x5x5x128xf32, #tpu.memory_space<vmem>>, vector<1x1x5x128xf32>
    %2402 = vector.shape_cast %2401 : vector<1x1x5x128xf32> to vector<5x128xf32>
    %2403 = vector.extract_strided_slice %2389 {offsets = [2, 0], sizes = [1, 128], strides = [1, 1]} : vector<5x128xf32> to vector<1x128xf32>
    %2404 = vector.broadcast %2403 : vector<1x128xf32> to vector<5x128xf32>
    %2405 = arith.mulf %2402, %2404 : vector<5x128xf32>
    %2406 = arith.addf %2400, %2405 : vector<5x128xf32>
    %c4_393 = arith.constant 4 : index
    %c3_394 = arith.constant 3 : index
    %c0_395 = arith.constant 0 : index
    %c0_396 = arith.constant 0 : index
    %2407 = vector.load %arg1[%c4_393, %c3_394, %c0_395, %c0_396] : memref<8x5x5x128xf32, #tpu.memory_space<vmem>>, vector<1x1x5x128xf32>
    %2408 = vector.shape_cast %2407 : vector<1x1x5x128xf32> to vector<5x128xf32>
    %2409 = vector.extract_strided_slice %2389 {offsets = [3, 0], sizes = [1, 128], strides = [1, 1]} : vector<5x128xf32> to vector<1x128xf32>
    %2410 = vector.broadcast %2409 : vector<1x128xf32> to vector<5x128xf32>
    %2411 = arith.mulf %2408, %2410 : vector<5x128xf32>
    %2412 = arith.addf %2406, %2411 : vector<5x128xf32>
    %c4_397 = arith.constant 4 : index
    %c4_398 = arith.constant 4 : index
    %c0_399 = arith.constant 0 : index
    %c0_400 = arith.constant 0 : index
    %2413 = vector.load %arg1[%c4_397, %c4_398, %c0_399, %c0_400] : memref<8x5x5x128xf32, #tpu.memory_space<vmem>>, vector<1x1x5x128xf32>
    %2414 = vector.shape_cast %2413 : vector<1x1x5x128xf32> to vector<5x128xf32>
    %2415 = vector.extract_strided_slice %2389 {offsets = [4, 0], sizes = [1, 128], strides = [1, 1]} : vector<5x128xf32> to vector<1x128xf32>
    %2416 = vector.broadcast %2415 : vector<1x128xf32> to vector<5x128xf32>
    %2417 = arith.mulf %2414, %2416 : vector<5x128xf32>
    %2418 = arith.addf %2412, %2417 : vector<5x128xf32>
    %2419 = arith.mulf %2389, %2418 : vector<5x128xf32>
    %cst_401 = arith.constant dense<0.000000e+00> : vector<128xf32>
    %2420 = vector.multi_reduction <add>, %2419, %cst_401 [0] : vector<5x128xf32> to vector<128xf32>
    %2421 = vector.shape_cast %2420 : vector<128xf32> to vector<1x128xf32>
    %c4_402 = arith.constant 4 : index
    %c0_403 = arith.constant 0 : index
    %c0_404 = arith.constant 0 : index
    %2422 = vector.load %arg2[%c4_402, %c0_403, %c0_404] : memref<8x5x128xf32, #tpu.memory_space<vmem>>, vector<1x5x128xf32>
    %2423 = vector.shape_cast %2422 : vector<1x5x128xf32> to vector<5x128xf32>
    %2424 = arith.mulf %2423, %2389 : vector<5x128xf32>
    %cst_405 = arith.constant dense<0.000000e+00> : vector<128xf32>
    %2425 = vector.multi_reduction <add>, %2424, %cst_405 [0] : vector<5x128xf32> to vector<128xf32>
    %2426 = vector.shape_cast %2425 : vector<128xf32> to vector<1x128xf32>
    %cst_406 = arith.constant 5.000000e-01 : f32
    %2427 = vector.broadcast %cst_406 : f32 to vector<1x128xf32>
    %2428 = arith.mulf %2427, %2421 : vector<1x128xf32>
    %2429 = arith.addf %2354, %2428 : vector<1x128xf32>
    %2430 = arith.addf %2429, %2426 : vector<1x128xf32>
    %2431 = vector.extract_strided_slice %2389 {offsets = [0, 0], sizes = [1, 128], strides = [1, 1]} : vector<5x128xf32> to vector<1x128xf32>
    %2432 = vector.broadcast %2431 : vector<1x128xf32> to vector<4x128xf32>
    %2433 = arith.mulf %50, %2432 : vector<4x128xf32>
    %2434 = arith.addf %1, %2433 : vector<4x128xf32>
    %2435 = vector.extract_strided_slice %2389 {offsets = [1, 0], sizes = [1, 128], strides = [1, 1]} : vector<5x128xf32> to vector<1x128xf32>
    %2436 = vector.broadcast %2435 : vector<1x128xf32> to vector<4x128xf32>
    %2437 = arith.mulf %51, %2436 : vector<4x128xf32>
    %2438 = arith.addf %2434, %2437 : vector<4x128xf32>
    %2439 = vector.extract_strided_slice %2389 {offsets = [2, 0], sizes = [1, 128], strides = [1, 1]} : vector<5x128xf32> to vector<1x128xf32>
    %2440 = vector.broadcast %2439 : vector<1x128xf32> to vector<4x128xf32>
    %2441 = arith.mulf %52, %2440 : vector<4x128xf32>
    %2442 = arith.addf %2438, %2441 : vector<4x128xf32>
    %2443 = vector.extract_strided_slice %2389 {offsets = [3, 0], sizes = [1, 128], strides = [1, 1]} : vector<5x128xf32> to vector<1x128xf32>
    %2444 = vector.broadcast %2443 : vector<1x128xf32> to vector<4x128xf32>
    %2445 = arith.mulf %53, %2444 : vector<4x128xf32>
    %2446 = arith.addf %2442, %2445 : vector<4x128xf32>
    %2447 = vector.extract_strided_slice %2389 {offsets = [4, 0], sizes = [1, 128], strides = [1, 1]} : vector<5x128xf32> to vector<1x128xf32>
    %2448 = vector.broadcast %2447 : vector<1x128xf32> to vector<4x128xf32>
    %2449 = arith.mulf %54, %2448 : vector<4x128xf32>
    %2450 = arith.addf %2446, %2449 : vector<4x128xf32>
    %c4_407 = arith.constant 4 : index
    %c0_408 = arith.constant 0 : index
    %c0_409 = arith.constant 0 : index
    %2451 = vector.load %arg7[%c4_407, %c0_408, %c0_409] : memref<8x1x128xf32, #tpu.memory_space<vmem>>, vector<1x1x128xf32>
    %2452 = vector.shape_cast %2451 : vector<1x1x128xf32> to vector<1x128xf32>
    %2453 = vector.shape_cast %2388 : vector<1x128xf32> to vector<1x1x128xf32>
    tpu.vector_store %arg7[%c4_407, %c0_408, %c0_409], %2453 {strides = array<i32>} : memref<8x1x128xf32, #tpu.memory_space<vmem>>, vector<1x1x128xf32>,
    %c5_410 = arith.constant 5 : index
    %c0_411 = arith.constant 0 : index
    %c0_412 = arith.constant 0 : index
    %2454 = vector.load %arg6[%c5_410, %c0_411, %c0_412] : memref<9x4x128xf32, #tpu.memory_space<vmem>>, vector<1x4x128xf32>
    %2455 = vector.shape_cast %2454 : vector<1x4x128xf32> to vector<4x128xf32>
    %2456 = vector.shape_cast %2450 : vector<4x128xf32> to vector<1x4x128xf32>
    tpu.vector_store %arg6[%c5_410, %c0_411, %c0_412], %2456 {strides = array<i32>} : memref<9x4x128xf32, #tpu.memory_space<vmem>>, vector<1x4x128xf32>,
    %c5_413 = arith.constant 5 : index
    %c0_414 = arith.constant 0 : index
    %c0_415 = arith.constant 0 : index
    %2457 = vector.load %arg9[%c5_413, %c0_414, %c0_415] : memref<8x5x128xf32, #tpu.memory_space<vmem>>, vector<1x5x128xf32>
    %2458 = vector.shape_cast %2457 : vector<1x5x128xf32> to vector<5x128xf32>
    %2459 = vector.extract_strided_slice %2458 {offsets = [0, 0], sizes = [4, 128], strides = [1, 1]} : vector<5x128xf32> to vector<4x128xf32>
    %2460 = vector.extract_strided_slice %2458 {offsets = [4, 0], sizes = [1, 128], strides = [1, 1]} : vector<5x128xf32> to vector<1x128xf32>
    %2461 = arith.mulf %2459, %2450 : vector<4x128xf32>
    %cst_416 = arith.constant dense<0.000000e+00> : vector<128xf32>
    %2462 = vector.multi_reduction <add>, %2461, %cst_416 [0] : vector<4x128xf32> to vector<128xf32>
    %2463 = vector.shape_cast %2462 : vector<128xf32> to vector<1x128xf32>
    %2464 = arith.addf %2463, %2460 : vector<1x128xf32>
    %2465 = tpu.concatenate %2450, %2464 in 0 : vector<4x128xf32>, vector<1x128xf32> -> vector<5x128xf32>
    %c5_417 = arith.constant 5 : index
    %c0_418 = arith.constant 0 : index
    %c0_419 = arith.constant 0 : index
    %c0_420 = arith.constant 0 : index
    %2466 = vector.load %arg1[%c5_417, %c0_418, %c0_419, %c0_420] : memref<8x5x5x128xf32, #tpu.memory_space<vmem>>, vector<1x1x5x128xf32>
    %2467 = vector.shape_cast %2466 : vector<1x1x5x128xf32> to vector<5x128xf32>
    %2468 = vector.extract_strided_slice %2465 {offsets = [0, 0], sizes = [1, 128], strides = [1, 1]} : vector<5x128xf32> to vector<1x128xf32>
    %2469 = vector.broadcast %2468 : vector<1x128xf32> to vector<5x128xf32>
    %2470 = arith.mulf %2467, %2469 : vector<5x128xf32>
    %c5_421 = arith.constant 5 : index
    %c1_422 = arith.constant 1 : index
    %c0_423 = arith.constant 0 : index
    %c0_424 = arith.constant 0 : index
    %2471 = vector.load %arg1[%c5_421, %c1_422, %c0_423, %c0_424] : memref<8x5x5x128xf32, #tpu.memory_space<vmem>>, vector<1x1x5x128xf32>
    %2472 = vector.shape_cast %2471 : vector<1x1x5x128xf32> to vector<5x128xf32>
    %2473 = vector.extract_strided_slice %2465 {offsets = [1, 0], sizes = [1, 128], strides = [1, 1]} : vector<5x128xf32> to vector<1x128xf32>
    %2474 = vector.broadcast %2473 : vector<1x128xf32> to vector<5x128xf32>
    %2475 = arith.mulf %2472, %2474 : vector<5x128xf32>
    %2476 = arith.addf %2470, %2475 : vector<5x128xf32>
    %c5_425 = arith.constant 5 : index
    %c2_426 = arith.constant 2 : index
    %c0_427 = arith.constant 0 : index
    %c0_428 = arith.constant 0 : index
    %2477 = vector.load %arg1[%c5_425, %c2_426, %c0_427, %c0_428] : memref<8x5x5x128xf32, #tpu.memory_space<vmem>>, vector<1x1x5x128xf32>
    %2478 = vector.shape_cast %2477 : vector<1x1x5x128xf32> to vector<5x128xf32>
    %2479 = vector.extract_strided_slice %2465 {offsets = [2, 0], sizes = [1, 128], strides = [1, 1]} : vector<5x128xf32> to vector<1x128xf32>
    %2480 = vector.broadcast %2479 : vector<1x128xf32> to vector<5x128xf32>
    %2481 = arith.mulf %2478, %2480 : vector<5x128xf32>
    %2482 = arith.addf %2476, %2481 : vector<5x128xf32>
    %c5_429 = arith.constant 5 : index
    %c3_430 = arith.constant 3 : index
    %c0_431 = arith.constant 0 : index
    %c0_432 = arith.constant 0 : index
    %2483 = vector.load %arg1[%c5_429, %c3_430, %c0_431, %c0_432] : memref<8x5x5x128xf32, #tpu.memory_space<vmem>>, vector<1x1x5x128xf32>
    %2484 = vector.shape_cast %2483 : vector<1x1x5x128xf32> to vector<5x128xf32>
    %2485 = vector.extract_strided_slice %2465 {offsets = [3, 0], sizes = [1, 128], strides = [1, 1]} : vector<5x128xf32> to vector<1x128xf32>
    %2486 = vector.broadcast %2485 : vector<1x128xf32> to vector<5x128xf32>
    %2487 = arith.mulf %2484, %2486 : vector<5x128xf32>
    %2488 = arith.addf %2482, %2487 : vector<5x128xf32>
    %c5_433 = arith.constant 5 : index
    %c4_434 = arith.constant 4 : index
    %c0_435 = arith.constant 0 : index
    %c0_436 = arith.constant 0 : index
    %2489 = vector.load %arg1[%c5_433, %c4_434, %c0_435, %c0_436] : memref<8x5x5x128xf32, #tpu.memory_space<vmem>>, vector<1x1x5x128xf32>
    %2490 = vector.shape_cast %2489 : vector<1x1x5x128xf32> to vector<5x128xf32>
    %2491 = vector.extract_strided_slice %2465 {offsets = [4, 0], sizes = [1, 128], strides = [1, 1]} : vector<5x128xf32> to vector<1x128xf32>
    %2492 = vector.broadcast %2491 : vector<1x128xf32> to vector<5x128xf32>
    %2493 = arith.mulf %2490, %2492 : vector<5x128xf32>
    %2494 = arith.addf %2488, %2493 : vector<5x128xf32>
    %2495 = arith.mulf %2465, %2494 : vector<5x128xf32>
    %cst_437 = arith.constant dense<0.000000e+00> : vector<128xf32>
    %2496 = vector.multi_reduction <add>, %2495, %cst_437 [0] : vector<5x128xf32> to vector<128xf32>
    %2497 = vector.shape_cast %2496 : vector<128xf32> to vector<1x128xf32>
    %c5_438 = arith.constant 5 : index
    %c0_439 = arith.constant 0 : index
    %c0_440 = arith.constant 0 : index
    %2498 = vector.load %arg2[%c5_438, %c0_439, %c0_440] : memref<8x5x128xf32, #tpu.memory_space<vmem>>, vector<1x5x128xf32>
    %2499 = vector.shape_cast %2498 : vector<1x5x128xf32> to vector<5x128xf32>
    %2500 = arith.mulf %2499, %2465 : vector<5x128xf32>
    %cst_441 = arith.constant dense<0.000000e+00> : vector<128xf32>
    %2501 = vector.multi_reduction <add>, %2500, %cst_441 [0] : vector<5x128xf32> to vector<128xf32>
    %2502 = vector.shape_cast %2501 : vector<128xf32> to vector<1x128xf32>
    %cst_442 = arith.constant 5.000000e-01 : f32
    %2503 = vector.broadcast %cst_442 : f32 to vector<1x128xf32>
    %2504 = arith.mulf %2503, %2497 : vector<1x128xf32>
    %2505 = arith.addf %2430, %2504 : vector<1x128xf32>
    %2506 = arith.addf %2505, %2502 : vector<1x128xf32>
    %2507 = vector.extract_strided_slice %2465 {offsets = [0, 0], sizes = [1, 128], strides = [1, 1]} : vector<5x128xf32> to vector<1x128xf32>
    %2508 = vector.broadcast %2507 : vector<1x128xf32> to vector<4x128xf32>
    %2509 = arith.mulf %50, %2508 : vector<4x128xf32>
    %2510 = arith.addf %1, %2509 : vector<4x128xf32>
    %2511 = vector.extract_strided_slice %2465 {offsets = [1, 0], sizes = [1, 128], strides = [1, 1]} : vector<5x128xf32> to vector<1x128xf32>
    %2512 = vector.broadcast %2511 : vector<1x128xf32> to vector<4x128xf32>
    %2513 = arith.mulf %51, %2512 : vector<4x128xf32>
    %2514 = arith.addf %2510, %2513 : vector<4x128xf32>
    %2515 = vector.extract_strided_slice %2465 {offsets = [2, 0], sizes = [1, 128], strides = [1, 1]} : vector<5x128xf32> to vector<1x128xf32>
    %2516 = vector.broadcast %2515 : vector<1x128xf32> to vector<4x128xf32>
    %2517 = arith.mulf %52, %2516 : vector<4x128xf32>
    %2518 = arith.addf %2514, %2517 : vector<4x128xf32>
    %2519 = vector.extract_strided_slice %2465 {offsets = [3, 0], sizes = [1, 128], strides = [1, 1]} : vector<5x128xf32> to vector<1x128xf32>
    %2520 = vector.broadcast %2519 : vector<1x128xf32> to vector<4x128xf32>
    %2521 = arith.mulf %53, %2520 : vector<4x128xf32>
    %2522 = arith.addf %2518, %2521 : vector<4x128xf32>
    %2523 = vector.extract_strided_slice %2465 {offsets = [4, 0], sizes = [1, 128], strides = [1, 1]} : vector<5x128xf32> to vector<1x128xf32>
    %2524 = vector.broadcast %2523 : vector<1x128xf32> to vector<4x128xf32>
    %2525 = arith.mulf %54, %2524 : vector<4x128xf32>
    %2526 = arith.addf %2522, %2525 : vector<4x128xf32>
    %c5_443 = arith.constant 5 : index
    %c0_444 = arith.constant 0 : index
    %c0_445 = arith.constant 0 : index
    %2527 = vector.load %arg7[%c5_443, %c0_444, %c0_445] : memref<8x1x128xf32, #tpu.memory_space<vmem>>, vector<1x1x128xf32>
    %2528 = vector.shape_cast %2527 : vector<1x1x128xf32> to vector<1x128xf32>
    %2529 = vector.shape_cast %2464 : vector<1x128xf32> to vector<1x1x128xf32>
    tpu.vector_store %arg7[%c5_443, %c0_444, %c0_445], %2529 {strides = array<i32>} : memref<8x1x128xf32, #tpu.memory_space<vmem>>, vector<1x1x128xf32>,
    %c6_446 = arith.constant 6 : index
    %c0_447 = arith.constant 0 : index
    %c0_448 = arith.constant 0 : index
    %2530 = vector.load %arg6[%c6_446, %c0_447, %c0_448] : memref<9x4x128xf32, #tpu.memory_space<vmem>>, vector<1x4x128xf32>
    %2531 = vector.shape_cast %2530 : vector<1x4x128xf32> to vector<4x128xf32>
    %2532 = vector.shape_cast %2526 : vector<4x128xf32> to vector<1x4x128xf32>
    tpu.vector_store %arg6[%c6_446, %c0_447, %c0_448], %2532 {strides = array<i32>} : memref<9x4x128xf32, #tpu.memory_space<vmem>>, vector<1x4x128xf32>,
    %c6_449 = arith.constant 6 : index
    %c0_450 = arith.constant 0 : index
    %c0_451 = arith.constant 0 : index
    %2533 = vector.load %arg9[%c6_449, %c0_450, %c0_451] : memref<8x5x128xf32, #tpu.memory_space<vmem>>, vector<1x5x128xf32>
    %2534 = vector.shape_cast %2533 : vector<1x5x128xf32> to vector<5x128xf32>
    %2535 = vector.extract_strided_slice %2534 {offsets = [0, 0], sizes = [4, 128], strides = [1, 1]} : vector<5x128xf32> to vector<4x128xf32>
    %2536 = vector.extract_strided_slice %2534 {offsets = [4, 0], sizes = [1, 128], strides = [1, 1]} : vector<5x128xf32> to vector<1x128xf32>
    %2537 = arith.mulf %2535, %2526 : vector<4x128xf32>
    %cst_452 = arith.constant dense<0.000000e+00> : vector<128xf32>
    %2538 = vector.multi_reduction <add>, %2537, %cst_452 [0] : vector<4x128xf32> to vector<128xf32>
    %2539 = vector.shape_cast %2538 : vector<128xf32> to vector<1x128xf32>
    %2540 = arith.addf %2539, %2536 : vector<1x128xf32>
    %2541 = tpu.concatenate %2526, %2540 in 0 : vector<4x128xf32>, vector<1x128xf32> -> vector<5x128xf32>
    %c6_453 = arith.constant 6 : index
    %c0_454 = arith.constant 0 : index
    %c0_455 = arith.constant 0 : index
    %c0_456 = arith.constant 0 : index
    %2542 = vector.load %arg1[%c6_453, %c0_454, %c0_455, %c0_456] : memref<8x5x5x128xf32, #tpu.memory_space<vmem>>, vector<1x1x5x128xf32>
    %2543 = vector.shape_cast %2542 : vector<1x1x5x128xf32> to vector<5x128xf32>
    %2544 = vector.extract_strided_slice %2541 {offsets = [0, 0], sizes = [1, 128], strides = [1, 1]} : vector<5x128xf32> to vector<1x128xf32>
    %2545 = vector.broadcast %2544 : vector<1x128xf32> to vector<5x128xf32>
    %2546 = arith.mulf %2543, %2545 : vector<5x128xf32>
    %c6_457 = arith.constant 6 : index
    %c1_458 = arith.constant 1 : index
    %c0_459 = arith.constant 0 : index
    %c0_460 = arith.constant 0 : index
    %2547 = vector.load %arg1[%c6_457, %c1_458, %c0_459, %c0_460] : memref<8x5x5x128xf32, #tpu.memory_space<vmem>>, vector<1x1x5x128xf32>
    %2548 = vector.shape_cast %2547 : vector<1x1x5x128xf32> to vector<5x128xf32>
    %2549 = vector.extract_strided_slice %2541 {offsets = [1, 0], sizes = [1, 128], strides = [1, 1]} : vector<5x128xf32> to vector<1x128xf32>
    %2550 = vector.broadcast %2549 : vector<1x128xf32> to vector<5x128xf32>
    %2551 = arith.mulf %2548, %2550 : vector<5x128xf32>
    %2552 = arith.addf %2546, %2551 : vector<5x128xf32>
    %c6_461 = arith.constant 6 : index
    %c2_462 = arith.constant 2 : index
    %c0_463 = arith.constant 0 : index
    %c0_464 = arith.constant 0 : index
    %2553 = vector.load %arg1[%c6_461, %c2_462, %c0_463, %c0_464] : memref<8x5x5x128xf32, #tpu.memory_space<vmem>>, vector<1x1x5x128xf32>
    %2554 = vector.shape_cast %2553 : vector<1x1x5x128xf32> to vector<5x128xf32>
    %2555 = vector.extract_strided_slice %2541 {offsets = [2, 0], sizes = [1, 128], strides = [1, 1]} : vector<5x128xf32> to vector<1x128xf32>
    %2556 = vector.broadcast %2555 : vector<1x128xf32> to vector<5x128xf32>
    %2557 = arith.mulf %2554, %2556 : vector<5x128xf32>
    %2558 = arith.addf %2552, %2557 : vector<5x128xf32>
    %c6_465 = arith.constant 6 : index
    %c3_466 = arith.constant 3 : index
    %c0_467 = arith.constant 0 : index
    %c0_468 = arith.constant 0 : index
    %2559 = vector.load %arg1[%c6_465, %c3_466, %c0_467, %c0_468] : memref<8x5x5x128xf32, #tpu.memory_space<vmem>>, vector<1x1x5x128xf32>
    %2560 = vector.shape_cast %2559 : vector<1x1x5x128xf32> to vector<5x128xf32>
    %2561 = vector.extract_strided_slice %2541 {offsets = [3, 0], sizes = [1, 128], strides = [1, 1]} : vector<5x128xf32> to vector<1x128xf32>
    %2562 = vector.broadcast %2561 : vector<1x128xf32> to vector<5x128xf32>
    %2563 = arith.mulf %2560, %2562 : vector<5x128xf32>
    %2564 = arith.addf %2558, %2563 : vector<5x128xf32>
    %c6_469 = arith.constant 6 : index
    %c4_470 = arith.constant 4 : index
    %c0_471 = arith.constant 0 : index
    %c0_472 = arith.constant 0 : index
    %2565 = vector.load %arg1[%c6_469, %c4_470, %c0_471, %c0_472] : memref<8x5x5x128xf32, #tpu.memory_space<vmem>>, vector<1x1x5x128xf32>
    %2566 = vector.shape_cast %2565 : vector<1x1x5x128xf32> to vector<5x128xf32>
    %2567 = vector.extract_strided_slice %2541 {offsets = [4, 0], sizes = [1, 128], strides = [1, 1]} : vector<5x128xf32> to vector<1x128xf32>
    %2568 = vector.broadcast %2567 : vector<1x128xf32> to vector<5x128xf32>
    %2569 = arith.mulf %2566, %2568 : vector<5x128xf32>
    %2570 = arith.addf %2564, %2569 : vector<5x128xf32>
    %2571 = arith.mulf %2541, %2570 : vector<5x128xf32>
    %cst_473 = arith.constant dense<0.000000e+00> : vector<128xf32>
    %2572 = vector.multi_reduction <add>, %2571, %cst_473 [0] : vector<5x128xf32> to vector<128xf32>
    %2573 = vector.shape_cast %2572 : vector<128xf32> to vector<1x128xf32>
    %c6_474 = arith.constant 6 : index
    %c0_475 = arith.constant 0 : index
    %c0_476 = arith.constant 0 : index
    %2574 = vector.load %arg2[%c6_474, %c0_475, %c0_476] : memref<8x5x128xf32, #tpu.memory_space<vmem>>, vector<1x5x128xf32>
    %2575 = vector.shape_cast %2574 : vector<1x5x128xf32> to vector<5x128xf32>
    %2576 = arith.mulf %2575, %2541 : vector<5x128xf32>
    %cst_477 = arith.constant dense<0.000000e+00> : vector<128xf32>
    %2577 = vector.multi_reduction <add>, %2576, %cst_477 [0] : vector<5x128xf32> to vector<128xf32>
    %2578 = vector.shape_cast %2577 : vector<128xf32> to vector<1x128xf32>
    %cst_478 = arith.constant 5.000000e-01 : f32
    %2579 = vector.broadcast %cst_478 : f32 to vector<1x128xf32>
    %2580 = arith.mulf %2579, %2573 : vector<1x128xf32>
    %2581 = arith.addf %2506, %2580 : vector<1x128xf32>
    %2582 = arith.addf %2581, %2578 : vector<1x128xf32>
    %2583 = vector.extract_strided_slice %2541 {offsets = [0, 0], sizes = [1, 128], strides = [1, 1]} : vector<5x128xf32> to vector<1x128xf32>
    %2584 = vector.broadcast %2583 : vector<1x128xf32> to vector<4x128xf32>
    %2585 = arith.mulf %50, %2584 : vector<4x128xf32>
    %2586 = arith.addf %1, %2585 : vector<4x128xf32>
    %2587 = vector.extract_strided_slice %2541 {offsets = [1, 0], sizes = [1, 128], strides = [1, 1]} : vector<5x128xf32> to vector<1x128xf32>
    %2588 = vector.broadcast %2587 : vector<1x128xf32> to vector<4x128xf32>
    %2589 = arith.mulf %51, %2588 : vector<4x128xf32>
    %2590 = arith.addf %2586, %2589 : vector<4x128xf32>
    %2591 = vector.extract_strided_slice %2541 {offsets = [2, 0], sizes = [1, 128], strides = [1, 1]} : vector<5x128xf32> to vector<1x128xf32>
    %2592 = vector.broadcast %2591 : vector<1x128xf32> to vector<4x128xf32>
    %2593 = arith.mulf %52, %2592 : vector<4x128xf32>
    %2594 = arith.addf %2590, %2593 : vector<4x128xf32>
    %2595 = vector.extract_strided_slice %2541 {offsets = [3, 0], sizes = [1, 128], strides = [1, 1]} : vector<5x128xf32> to vector<1x128xf32>
    %2596 = vector.broadcast %2595 : vector<1x128xf32> to vector<4x128xf32>
    %2597 = arith.mulf %53, %2596 : vector<4x128xf32>
    %2598 = arith.addf %2594, %2597 : vector<4x128xf32>
    %2599 = vector.extract_strided_slice %2541 {offsets = [4, 0], sizes = [1, 128], strides = [1, 1]} : vector<5x128xf32> to vector<1x128xf32>
    %2600 = vector.broadcast %2599 : vector<1x128xf32> to vector<4x128xf32>
    %2601 = arith.mulf %54, %2600 : vector<4x128xf32>
    %2602 = arith.addf %2598, %2601 : vector<4x128xf32>
    %c6_479 = arith.constant 6 : index
    %c0_480 = arith.constant 0 : index
    %c0_481 = arith.constant 0 : index
    %2603 = vector.load %arg7[%c6_479, %c0_480, %c0_481] : memref<8x1x128xf32, #tpu.memory_space<vmem>>, vector<1x1x128xf32>
    %2604 = vector.shape_cast %2603 : vector<1x1x128xf32> to vector<1x128xf32>
    %2605 = vector.shape_cast %2540 : vector<1x128xf32> to vector<1x1x128xf32>
    tpu.vector_store %arg7[%c6_479, %c0_480, %c0_481], %2605 {strides = array<i32>} : memref<8x1x128xf32, #tpu.memory_space<vmem>>, vector<1x1x128xf32>,
    %c7_482 = arith.constant 7 : index
    %c0_483 = arith.constant 0 : index
    %c0_484 = arith.constant 0 : index
    %2606 = vector.load %arg6[%c7_482, %c0_483, %c0_484] : memref<9x4x128xf32, #tpu.memory_space<vmem>>, vector<1x4x128xf32>
    %2607 = vector.shape_cast %2606 : vector<1x4x128xf32> to vector<4x128xf32>
    %2608 = vector.shape_cast %2602 : vector<4x128xf32> to vector<1x4x128xf32>
    tpu.vector_store %arg6[%c7_482, %c0_483, %c0_484], %2608 {strides = array<i32>} : memref<9x4x128xf32, #tpu.memory_space<vmem>>, vector<1x4x128xf32>,
    %c7_485 = arith.constant 7 : index
    %c0_486 = arith.constant 0 : index
    %c0_487 = arith.constant 0 : index
    %2609 = vector.load %arg9[%c7_485, %c0_486, %c0_487] : memref<8x5x128xf32, #tpu.memory_space<vmem>>, vector<1x5x128xf32>
    %2610 = vector.shape_cast %2609 : vector<1x5x128xf32> to vector<5x128xf32>
    %2611 = vector.extract_strided_slice %2610 {offsets = [0, 0], sizes = [4, 128], strides = [1, 1]} : vector<5x128xf32> to vector<4x128xf32>
    %2612 = vector.extract_strided_slice %2610 {offsets = [4, 0], sizes = [1, 128], strides = [1, 1]} : vector<5x128xf32> to vector<1x128xf32>
    %2613 = arith.mulf %2611, %2602 : vector<4x128xf32>
    %cst_488 = arith.constant dense<0.000000e+00> : vector<128xf32>
    %2614 = vector.multi_reduction <add>, %2613, %cst_488 [0] : vector<4x128xf32> to vector<128xf32>
    %2615 = vector.shape_cast %2614 : vector<128xf32> to vector<1x128xf32>
    %2616 = arith.addf %2615, %2612 : vector<1x128xf32>
    %2617 = tpu.concatenate %2602, %2616 in 0 : vector<4x128xf32>, vector<1x128xf32> -> vector<5x128xf32>
    %c7_489 = arith.constant 7 : index
    %c0_490 = arith.constant 0 : index
    %c0_491 = arith.constant 0 : index
    %c0_492 = arith.constant 0 : index
    %2618 = vector.load %arg1[%c7_489, %c0_490, %c0_491, %c0_492] : memref<8x5x5x128xf32, #tpu.memory_space<vmem>>, vector<1x1x5x128xf32>
    %2619 = vector.shape_cast %2618 : vector<1x1x5x128xf32> to vector<5x128xf32>
    %2620 = vector.extract_strided_slice %2617 {offsets = [0, 0], sizes = [1, 128], strides = [1, 1]} : vector<5x128xf32> to vector<1x128xf32>
    %2621 = vector.broadcast %2620 : vector<1x128xf32> to vector<5x128xf32>
    %2622 = arith.mulf %2619, %2621 : vector<5x128xf32>
    %c7_493 = arith.constant 7 : index
    %c1_494 = arith.constant 1 : index
    %c0_495 = arith.constant 0 : index
    %c0_496 = arith.constant 0 : index
    %2623 = vector.load %arg1[%c7_493, %c1_494, %c0_495, %c0_496] : memref<8x5x5x128xf32, #tpu.memory_space<vmem>>, vector<1x1x5x128xf32>
    %2624 = vector.shape_cast %2623 : vector<1x1x5x128xf32> to vector<5x128xf32>
    %2625 = vector.extract_strided_slice %2617 {offsets = [1, 0], sizes = [1, 128], strides = [1, 1]} : vector<5x128xf32> to vector<1x128xf32>
    %2626 = vector.broadcast %2625 : vector<1x128xf32> to vector<5x128xf32>
    %2627 = arith.mulf %2624, %2626 : vector<5x128xf32>
    %2628 = arith.addf %2622, %2627 : vector<5x128xf32>
    %c7_497 = arith.constant 7 : index
    %c2_498 = arith.constant 2 : index
    %c0_499 = arith.constant 0 : index
    %c0_500 = arith.constant 0 : index
    %2629 = vector.load %arg1[%c7_497, %c2_498, %c0_499, %c0_500] : memref<8x5x5x128xf32, #tpu.memory_space<vmem>>, vector<1x1x5x128xf32>
    %2630 = vector.shape_cast %2629 : vector<1x1x5x128xf32> to vector<5x128xf32>
    %2631 = vector.extract_strided_slice %2617 {offsets = [2, 0], sizes = [1, 128], strides = [1, 1]} : vector<5x128xf32> to vector<1x128xf32>
    %2632 = vector.broadcast %2631 : vector<1x128xf32> to vector<5x128xf32>
    %2633 = arith.mulf %2630, %2632 : vector<5x128xf32>
    %2634 = arith.addf %2628, %2633 : vector<5x128xf32>
    %c7_501 = arith.constant 7 : index
    %c3_502 = arith.constant 3 : index
    %c0_503 = arith.constant 0 : index
    %c0_504 = arith.constant 0 : index
    %2635 = vector.load %arg1[%c7_501, %c3_502, %c0_503, %c0_504] : memref<8x5x5x128xf32, #tpu.memory_space<vmem>>, vector<1x1x5x128xf32>
    %2636 = vector.shape_cast %2635 : vector<1x1x5x128xf32> to vector<5x128xf32>
    %2637 = vector.extract_strided_slice %2617 {offsets = [3, 0], sizes = [1, 128], strides = [1, 1]} : vector<5x128xf32> to vector<1x128xf32>
    %2638 = vector.broadcast %2637 : vector<1x128xf32> to vector<5x128xf32>
    %2639 = arith.mulf %2636, %2638 : vector<5x128xf32>
    %2640 = arith.addf %2634, %2639 : vector<5x128xf32>
    %c7_505 = arith.constant 7 : index
    %c4_506 = arith.constant 4 : index
    %c0_507 = arith.constant 0 : index
    %c0_508 = arith.constant 0 : index
    %2641 = vector.load %arg1[%c7_505, %c4_506, %c0_507, %c0_508] : memref<8x5x5x128xf32, #tpu.memory_space<vmem>>, vector<1x1x5x128xf32>
    %2642 = vector.shape_cast %2641 : vector<1x1x5x128xf32> to vector<5x128xf32>
    %2643 = vector.extract_strided_slice %2617 {offsets = [4, 0], sizes = [1, 128], strides = [1, 1]} : vector<5x128xf32> to vector<1x128xf32>
    %2644 = vector.broadcast %2643 : vector<1x128xf32> to vector<5x128xf32>
    %2645 = arith.mulf %2642, %2644 : vector<5x128xf32>
    %2646 = arith.addf %2640, %2645 : vector<5x128xf32>
    %2647 = arith.mulf %2617, %2646 : vector<5x128xf32>
    %cst_509 = arith.constant dense<0.000000e+00> : vector<128xf32>
    %2648 = vector.multi_reduction <add>, %2647, %cst_509 [0] : vector<5x128xf32> to vector<128xf32>
    %2649 = vector.shape_cast %2648 : vector<128xf32> to vector<1x128xf32>
    %c7_510 = arith.constant 7 : index
    %c0_511 = arith.constant 0 : index
    %c0_512 = arith.constant 0 : index
    %2650 = vector.load %arg2[%c7_510, %c0_511, %c0_512] : memref<8x5x128xf32, #tpu.memory_space<vmem>>, vector<1x5x128xf32>
    %2651 = vector.shape_cast %2650 : vector<1x5x128xf32> to vector<5x128xf32>
    %2652 = arith.mulf %2651, %2617 : vector<5x128xf32>
    %cst_513 = arith.constant dense<0.000000e+00> : vector<128xf32>
    %2653 = vector.multi_reduction <add>, %2652, %cst_513 [0] : vector<5x128xf32> to vector<128xf32>
    %2654 = vector.shape_cast %2653 : vector<128xf32> to vector<1x128xf32>
    %cst_514 = arith.constant 5.000000e-01 : f32
    %2655 = vector.broadcast %cst_514 : f32 to vector<1x128xf32>
    %2656 = arith.mulf %2655, %2649 : vector<1x128xf32>
    %2657 = arith.addf %2582, %2656 : vector<1x128xf32>
    %2658 = arith.addf %2657, %2654 : vector<1x128xf32>
    %2659 = vector.extract_strided_slice %2617 {offsets = [0, 0], sizes = [1, 128], strides = [1, 1]} : vector<5x128xf32> to vector<1x128xf32>
    %2660 = vector.broadcast %2659 : vector<1x128xf32> to vector<4x128xf32>
    %2661 = arith.mulf %50, %2660 : vector<4x128xf32>
    %2662 = arith.addf %1, %2661 : vector<4x128xf32>
    %2663 = vector.extract_strided_slice %2617 {offsets = [1, 0], sizes = [1, 128], strides = [1, 1]} : vector<5x128xf32> to vector<1x128xf32>
    %2664 = vector.broadcast %2663 : vector<1x128xf32> to vector<4x128xf32>
    %2665 = arith.mulf %51, %2664 : vector<4x128xf32>
    %2666 = arith.addf %2662, %2665 : vector<4x128xf32>
    %2667 = vector.extract_strided_slice %2617 {offsets = [2, 0], sizes = [1, 128], strides = [1, 1]} : vector<5x128xf32> to vector<1x128xf32>
    %2668 = vector.broadcast %2667 : vector<1x128xf32> to vector<4x128xf32>
    %2669 = arith.mulf %52, %2668 : vector<4x128xf32>
    %2670 = arith.addf %2666, %2669 : vector<4x128xf32>
    %2671 = vector.extract_strided_slice %2617 {offsets = [3, 0], sizes = [1, 128], strides = [1, 1]} : vector<5x128xf32> to vector<1x128xf32>
    %2672 = vector.broadcast %2671 : vector<1x128xf32> to vector<4x128xf32>
    %2673 = arith.mulf %53, %2672 : vector<4x128xf32>
    %2674 = arith.addf %2670, %2673 : vector<4x128xf32>
    %2675 = vector.extract_strided_slice %2617 {offsets = [4, 0], sizes = [1, 128], strides = [1, 1]} : vector<5x128xf32> to vector<1x128xf32>
    %2676 = vector.broadcast %2675 : vector<1x128xf32> to vector<4x128xf32>
    %2677 = arith.mulf %54, %2676 : vector<4x128xf32>
    %2678 = arith.addf %2674, %2677 : vector<4x128xf32>
    %c7_515 = arith.constant 7 : index
    %c0_516 = arith.constant 0 : index
    %c0_517 = arith.constant 0 : index
    %2679 = vector.load %arg7[%c7_515, %c0_516, %c0_517] : memref<8x1x128xf32, #tpu.memory_space<vmem>>, vector<1x1x128xf32>
    %2680 = vector.shape_cast %2679 : vector<1x1x128xf32> to vector<1x128xf32>
    %2681 = vector.shape_cast %2616 : vector<1x128xf32> to vector<1x1x128xf32>
    tpu.vector_store %arg7[%c7_515, %c0_516, %c0_517], %2681 {strides = array<i32>} : memref<8x1x128xf32, #tpu.memory_space<vmem>>, vector<1x1x128xf32>,
    %c8 = arith.constant 8 : index
    %c0_518 = arith.constant 0 : index
    %c0_519 = arith.constant 0 : index
    %2682 = vector.load %arg6[%c8, %c0_518, %c0_519] : memref<9x4x128xf32, #tpu.memory_space<vmem>>, vector<1x4x128xf32>
    %2683 = vector.shape_cast %2682 : vector<1x4x128xf32> to vector<4x128xf32>
    %2684 = vector.shape_cast %2678 : vector<4x128xf32> to vector<1x4x128xf32>
    tpu.vector_store %arg6[%c8, %c0_518, %c0_519], %2684 {strides = array<i32>} : memref<9x4x128xf32, #tpu.memory_space<vmem>>, vector<1x4x128xf32>,
    %c0_520 = arith.constant 0 : index
    %c0_521 = arith.constant 0 : index
    %2685 = vector.load %arg8[%c0_520, %c0_521] : memref<1x128xf32, #tpu.memory_space<vmem>>, vector<1x128xf32>
    tpu.vector_store %arg8[%c0_520, %c0_521], %2658 {strides = array<i32>} : memref<1x128xf32, #tpu.memory_space<vmem>>, vector<1x128xf32>,
    return
  }
  func.func @transform_0(%arg0: i32) -> (i32, i32, i32, i32) {
    %c0_i32 = arith.constant 0 : i32
    %c0_i32_0 = arith.constant 0 : i32
    %c0_i32_1 = arith.constant 0 : i32
    %c0_i32_2 = arith.constant 0 : i32
    return %c0_i32, %c0_i32_0, %c0_i32_1, %arg0 : i32, i32, i32, i32
  }
  func.func @transform_1(%arg0: i32) -> (i32, i32, i32) {
    %c0_i32 = arith.constant 0 : i32
    %c0_i32_0 = arith.constant 0 : i32
    %c0_i32_1 = arith.constant 0 : i32
    return %c0_i32, %c0_i32_0, %arg0 : i32, i32, i32
  }
  func.func @transform_2(%arg0: i32) -> (i32, i32, i32) {
    %c0_i32 = arith.constant 0 : i32
    %c0_i32_0 = arith.constant 0 : i32
    %c0_i32_1 = arith.constant 0 : i32
    %c0_i32_2 = arith.constant 0 : i32
    return %c0_i32, %c0_i32_0, %c0_i32_1 : i32, i32, i32
  }
  func.func @transform_3(%arg0: i32) -> (i32, i32) {
    %c0_i32 = arith.constant 0 : i32
    %c0_i32_0 = arith.constant 0 : i32
    %c0_i32_1 = arith.constant 0 : i32
    return %c0_i32, %c0_i32_0 : i32, i32
  }
  func.func @transform_4(%arg0: i32) -> (i32, i32) {
    %c0_i32 = arith.constant 0 : i32
    %c0_i32_0 = arith.constant 0 : i32
    return %c0_i32, %arg0 : i32, i32
  }
  func.func @transform_5(%arg0: i32) -> (i32, i32, i32) {
    %c0_i32 = arith.constant 0 : i32
    %c0_i32_0 = arith.constant 0 : i32
    %c0_i32_1 = arith.constant 0 : i32
    return %c0_i32, %c0_i32_0, %arg0 : i32, i32, i32
  }
  func.func @transform_6(%arg0: i32) -> (i32, i32, i32) {
    %c0_i32 = arith.constant 0 : i32
    %c0_i32_0 = arith.constant 0 : i32
    %c0_i32_1 = arith.constant 0 : i32
    return %c0_i32, %c0_i32_0, %arg0 : i32, i32, i32
  }
  func.func @transform_7(%arg0: i32) -> (i32, i32) {
    %c0_i32 = arith.constant 0 : i32
    %c0_i32_0 = arith.constant 0 : i32
    return %c0_i32, %arg0 : i32, i32
  }
}

</mosaic_0001>

<llo_original>
// kernel: _run_lqr.1
$region0: #{_run_lqr.1}
  #allocation0 [shape = 'u32[]', space=smem, size = 0x4, offset = 0x4, fixed_abs, tag = 'smem constant byte address 0x4 - core index']
  #allocation1 [shape = 'u32[144,128]{1,0:T(1,128)}', space=vmem, size = 0x12000, scoped, tag = 'internal scratch']
  #allocation2 [shape = 'f32[8,5,128]{2,1,0:T(8,128)}', space=vmem, size = 0x8000, scoped, tag = 'scratch operand']
  %s0 = inlined_call_operand.vmem [shape: f32[8,5,5,128], index: 0, kind: input, shape index: {}]
  %s1 = inlined_call_operand.vmem [shape: f32[8,5,128], index: 1, kind: input, shape index: {}]
  %s2 = inlined_call_operand.vmem [shape: f32[4,5,128], index: 2, kind: input, shape index: {}]
  %s3 = inlined_call_operand.vmem [shape: f32[4,128], index: 3, kind: input, shape index: {}]
  %s4 = inlined_call_operand.vmem [shape: f32[4,128], index: 4, kind: input, shape index: {}]
  %s5 = inlined_call_operand.vmem [shape: f32[9,4,128], index: 5, kind: output, shape index: {0}]
  %s6 = inlined_call_operand.vmem [shape: f32[8,1,128], index: 6, kind: output, shape index: {1}]
  %s7 = inlined_call_operand.vmem [shape: f32[1,128], index: 7, kind: output, shape index: {2}]
  %8 = xla_tuple %s5, %s6, %s7
  %s9 = sld [smem:[#allocation0]]
  $region46: #{_run_lqr.1} parent=0
    _
  %s11 = ssub.s32 1, %s9
  %s12 = scalar_select 0, %s11, %s9
  // Predicated region
  $region2: #{_run_lqr.1} parent=0 // pred_check
    _
  $region3: #{_run_lqr.1} parent=0 // pred_check_branch
    %14 = sbr.rel (0) target = $region5
  $region4: #{_run_lqr.1} parent=0 // pred_region
    _
  $region5: #{_run_lqr.1} parent=0 // pred_fallthru
    _
  // Predicated region
  $region6: #{_run_lqr.1} parent=0 // pred_check
    _
  $region7: #{_run_lqr.1} parent=0 // pred_check_branch
    %16 = sbr.rel (0) target = $region9
  $region8: #{_run_lqr.1} parent=0 // pred_region
    _
  $region9: #{_run_lqr.1} parent=0 // pred_fallthru
    _
  // Predicated region
  $region10: #{_run_lqr.1} parent=0 // pred_check
    _
  $region11: #{_run_lqr.1} parent=0 // pred_check_branch
    %18 = sbr.rel (0) target = $region13
  $region12: #{_run_lqr.1} parent=0 // pred_region
    _
  $region13: #{_run_lqr.1} parent=0 // pred_fallthru
    _
  // Predicated region
  $region14: #{_run_lqr.1} parent=0 // pred_check
    _
  $region15: #{_run_lqr.1} parent=0 // pred_check_branch
    %20 = sbr.rel (0) target = $region17
  $region16: #{_run_lqr.1} parent=0 // pred_region
    _
  $region17: #{_run_lqr.1} parent=0 // pred_fallthru
    _
  // Predicated region
  $region18: #{_run_lqr.1} parent=0 // pred_check
    _
  $region19: #{_run_lqr.1} parent=0 // pred_check_branch
    %22 = sbr.rel (0) target = $region21
  $region20: #{_run_lqr.1} parent=0 // pred_region
    _
  $region21: #{_run_lqr.1} parent=0 // pred_fallthru
    _
  %v23 = vld [vmem:[%s2] sm:$0x1f]
  %v24 = vld [vmem:[%s2 + $0x8] sm:$0x1f]
  %v25 = vld [vmem:[%s2 + $0x10] sm:$0x1f]
  %v26 = vld [vmem:[%s2 + $0x18] sm:$0x1f]
  %v27 = vld [vmem:[%s3] sm:$0xf]
  %v29 = vrot.slane %v24, 7
  %v32 = vrot.slane %v25, 6
  %v35 = vrot.slane %v26, 5
  %vm37 = vcmask 1040384
  %v38 = vsel %vm37, %v23, %v29
  %vm39 = vcmask 1041408
  %v40 = vsel %vm39, %v38, %v32
  %vm41 = vcmask 1042432
  %v42 = vsel %vm41, %v40, %v35
  %v44 = vrot.slane %v23, 1
  %v46 = vrot.slane %v25, 7
  %v48 = vrot.slane %v26, 6
  %v50 = vsel %vm37, %v44, %v24
  %v51 = vsel %vm39, %v50, %v46
  %v52 = vsel %vm41, %v51, %v48
  %v53 = vrot.slane %v23, 2
  %v55 = vrot.slane %v24, 1
  %v57 = vrot.slane %v26, 7
  %v59 = vsel %vm37, %v53, %v55
  %v60 = vsel %vm39, %v59, %v25
  %v61 = vsel %vm41, %v60, %v57
  %v62 = vrot.slane %v23, 3
  %v64 = vrot.slane %v24, 2
  %v66 = vrot.slane %v25, 1
  %v68 = vsel %vm37, %v62, %v64
  %v69 = vsel %vm39, %v68, %v66
  %v70 = vsel %vm41, %v69, %v26
  %v71 = vrot.slane %v23, 4
  %v73 = vrot.slane %v24, 3
  %v75 = vrot.slane %v25, 2
  %v77 = vrot.slane %v26, 1
  %v79 = vsel %vm37, %v71, %v73
  %v80 = vsel %vm39, %v79, %v75
  %v81 = vsel %vm41, %v80, %v77
  %v82 = vlaneseq
  %v83 = vshrl.u32 %v82, 7
  %v84 = vsub.s32 0, %v83
  %v85 = vrot.slane %v23, %v84
  %v86 = vmul.f32 %v85, 0.0
  %v87 = vlaneseq
  %v88 = vshrl.u32 %v87, 7
  %v89 = vsub.s32 0, %v88
  %v90 = vrot.slane %v24, %v89
  %v91 = vmul.f32 %v90, 0.0
  %v92 = vadd.f32 %v86, %v91
  %v93 = vlaneseq
  %v94 = vshrl.u32 %v93, 7
  %v95 = vsub.s32 0, %v94
  %v96 = vrot.slane %v25, %v95
  %v97 = vmul.f32 %v96, 0.0
  %v98 = vadd.f32 %v92, %v97
  %v99 = vlaneseq
  %v100 = vshrl.u32 %v99, 7
  %v101 = vsub.s32 0, %v100
  %v102 = vrot.slane %v26, %v101
  %v103 = vmul.f32 %v102, 0.0
  %v104 = vadd.f32 %v98, %v103
  %v105 = vlaneseq
  %v106 = vshrl.u32 %v105, 7
  %v107 = vsub.s32 1, %v106
  %v108 = vrot.slane %v23, %v107
  %v109 = vmul.f32 %v108, 0.0
  %v110 = vlaneseq
  %v111 = vshrl.u32 %v110, 7
  %v112 = vsub.s32 1, %v111
  %v113 = vrot.slane %v24, %v112
  %v114 = vmul.f32 %v113, 0.0
  %v115 = vadd.f32 %v109, %v114
  %v116 = vlaneseq
  %v117 = vshrl.u32 %v116, 7
  %v118 = vsub.s32 1, %v117
  %v119 = vrot.slane %v25, %v118
  %v120 = vmul.f32 %v119, 0.0
  %v121 = vadd.f32 %v115, %v120
  %v122 = vlaneseq
  %v123 = vshrl.u32 %v122, 7
  %v124 = vsub.s32 1, %v123
  %v125 = vrot.slane %v26, %v124
  %v126 = vmul.f32 %v125, 0.0
  %v127 = vadd.f32 %v121, %v126
  %v128 = vlaneseq
  %v129 = vshrl.u32 %v128, 7
  %v130 = vsub.s32 2, %v129
  %v131 = vrot.slane %v23, %v130
  %v132 = vmul.f32 %v131, 0.0
  %v133 = vlaneseq
  %v134 = vshrl.u32 %v133, 7
  %v135 = vsub.s32 2, %v134
  %v136 = vrot.slane %v24, %v135
  %v137 = vmul.f32 %v136, 0.0
  %v138 = vadd.f32 %v132, %v137
  %v139 = vlaneseq
  %v140 = vshrl.u32 %v139, 7
  %v141 = vsub.s32 2, %v140
  %v142 = vrot.slane %v25, %v141
  %v143 = vmul.f32 %v142, 0.0
  %v144 = vadd.f32 %v138, %v143
  %v145 = vlaneseq
  %v146 = vshrl.u32 %v145, 7
  %v147 = vsub.s32 2, %v146
  %v148 = vrot.slane %v26, %v147
  %v149 = vmul.f32 %v148, 0.0
  %v150 = vadd.f32 %v144, %v149
  %v151 = vlaneseq
  %v152 = vshrl.u32 %v151, 7
  %v153 = vsub.s32 3, %v152
  %v154 = vrot.slane %v23, %v153
  %v155 = vmul.f32 %v154, 0.0
  %v156 = vlaneseq
  %v157 = vshrl.u32 %v156, 7
  %v158 = vsub.s32 3, %v157
  %v159 = vrot.slane %v24, %v158
  %v160 = vmul.f32 %v159, 0.0
  %v161 = vadd.f32 %v155, %v160
  %v162 = vlaneseq
  %v163 = vshrl.u32 %v162, 7
  %v164 = vsub.s32 3, %v163
  %v165 = vrot.slane %v25, %v164
  %v166 = vmul.f32 %v165, 0.0
  %v167 = vadd.f32 %v161, %v166
  %v168 = vlaneseq
  %v169 = vshrl.u32 %v168, 7
  %v170 = vsub.s32 3, %v169
  %v171 = vrot.slane %v26, %v170
  %v172 = vmul.f32 %v171, 0.0
  %v173 = vadd.f32 %v167, %v172
  %v174 = vlaneseq
  %v175 = vshrl.u32 %v174, 7
  %v176 = vsub.s32 4, %v175
  %v177 = vrot.slane %v23, %v176
  %v178 = vmul.f32 %v177, 0.0
  %v179 = vlaneseq
  %v180 = vshrl.u32 %v179, 7
  %v181 = vsub.s32 4, %v180
  %v182 = vrot.slane %v24, %v181
  %v183 = vmul.f32 %v182, 0.0
  %v184 = vadd.f32 %v178, %v183
  %v185 = vlaneseq
  %v186 = vshrl.u32 %v185, 7
  %v187 = vsub.s32 4, %v186
  %v188 = vrot.slane %v25, %v187
  %v189 = vmul.f32 %v188, 0.0
  %v190 = vadd.f32 %v184, %v189
  %v191 = vlaneseq
  %v192 = vshrl.u32 %v191, 7
  %v193 = vsub.s32 4, %v192
  %v194 = vrot.slane %v26, %v193
  %v195 = vmul.f32 %v194, 0.0
  %v196 = vadd.f32 %v190, %v195
  %s197 = scalar_lea.vmem %s0, 280
  %v198 = vld [vmem:[%s197] sm:$0x1f]
  %v199 = vmul.f32 %v23, %v104
  %v200 = vmul.f32 %v24, %v104
  %v201 = vadd.f32 %v199, %v200
  %v202 = vmul.f32 %v25, %v104
  %v203 = vadd.f32 %v201, %v202
  %v204 = vmul.f32 %v26, %v104
  %v205 = vadd.f32 %v203, %v204
  %v206 = vadd.f32 %v198, %v205
  %s207 = scalar_lea.vmem %s0, 288
  %v208 = vld [vmem:[%s207] sm:$0x1f]
  %v209 = vmul.f32 %v23, %v127
  %v210 = vmul.f32 %v24, %v127
  %v211 = vadd.f32 %v209, %v210
  %v212 = vmul.f32 %v25, %v127
  %v213 = vadd.f32 %v211, %v212
  %v214 = vmul.f32 %v26, %v127
  %v215 = vadd.f32 %v213, %v214
  %v216 = vadd.f32 %v208, %v215
  %s217 = scalar_lea.vmem %s0, 296
  %v218 = vld [vmem:[%s217] sm:$0x1f]
  %v219 = vmul.f32 %v23, %v150
  %v220 = vmul.f32 %v24, %v150
  %v221 = vadd.f32 %v219, %v220
  %v222 = vmul.f32 %v25, %v150
  %v223 = vadd.f32 %v221, %v222
  %v224 = vmul.f32 %v26, %v150
  %v225 = vadd.f32 %v223, %v224
  %v226 = vadd.f32 %v218, %v225
  %s227 = scalar_lea.vmem %s0, 304
  %v228 = vld [vmem:[%s227] sm:$0x1f]
  %v229 = vmul.f32 %v23, %v173
  %v230 = vmul.f32 %v24, %v173
  %v231 = vadd.f32 %v229, %v230
  %v232 = vmul.f32 %v25, %v173
  %v233 = vadd.f32 %v231, %v232
  %v234 = vmul.f32 %v26, %v173
  %v235 = vadd.f32 %v233, %v234
  %v236 = vadd.f32 %v228, %v235
  %s237 = scalar_lea.vmem %s0, 312
  %v238 = vld [vmem:[%s237] sm:$0x1f]
  %v239 = vmul.f32 %v23, %v196
  %v240 = vmul.f32 %v24, %v196
  %v241 = vadd.f32 %v239, %v240
  %v242 = vmul.f32 %v25, %v196
  %v243 = vadd.f32 %v241, %v242
  %v244 = vmul.f32 %v26, %v196
  %v245 = vadd.f32 %v243, %v244
  %v246 = vadd.f32 %v238, %v245
  %v247 = vlaneseq
  %v248 = vshrl.u32 %v247, 7
  %v249 = vsub.s32 0, %v248
  %v250 = vrot.slane %v27, %v249
  %v251 = vmul.f32 %v250, 0.0
  %v252 = vlaneseq
  %v253 = vshrl.u32 %v252, 7
  %v254 = vsub.s32 1, %v253
  %v255 = vrot.slane %v27, %v254
  %v256 = vmul.f32 %v255, 0.0
  %v257 = vadd.f32 %v251, %v256
  %v258 = vlaneseq
  %v259 = vshrl.u32 %v258, 7
  %v260 = vsub.s32 2, %v259
  %v261 = vrot.slane %v27, %v260
  %v262 = vmul.f32 %v261, 0.0
  %v263 = vadd.f32 %v257, %v262
  %v264 = vlaneseq
  %v265 = vshrl.u32 %v264, 7
  %v266 = vsub.s32 3, %v265
  %v267 = vrot.slane %v27, %v266
  %v268 = vmul.f32 %v267, 0.0
  %v269 = vadd.f32 %v263, %v268
  %s270 = scalar_lea.vmem %s1, 56
  %v271 = vld [vmem:[%s270] sm:$0x1f]
  %v272 = vadd.f32 %v269, 0.0
  %v273 = vmul.f32 %v23, %v272
  %v274 = vmul.f32 %v24, %v272
  %v275 = vadd.f32 %v273, %v274
  %v276 = vmul.f32 %v25, %v272
  %v277 = vadd.f32 %v275, %v276
  %v278 = vmul.f32 %v26, %v272
  %v279 = vadd.f32 %v277, %v278
  %v280 = vadd.f32 %v271, %v279
  %v282 = vrot.slane %v206, 4
  %v285 = vrot.slane %v216, 3
  %v288 = vrot.slane %v226, 2
  %v291 = vrot.slane %v236, 1
  %v293 = vsel %vm37, %v282, %v285
  %v294 = vsel %vm39, %v293, %v288
  %v295 = vsel %vm41, %v294, %v291
  %v296 = vrcp.pop %v246
  %v297 = vlaneseq
  %v298 = vshrl.u32 %v297, 7
  %v299 = vsub.s32 4, %v298
  %v300 = vrot.slane %v296, %v299
  %v301 = vmul.f32 %v295, %v300
  %v302 = vsub.f32 0.0, %v301
  %v303 = vmul.f32 %v280, %v296
  %v304 = vsub.f32 0.0, %v303
  %v305 = vlaneseq
  %v306 = vshrl.u32 %v305, 7
  %v307 = vsub.s32 4, %v306
  %v308 = vrot.slane %v246, %v307
  %v309 = vmul.f32 %v302, %v308
  %v310 = vlaneseq
  %v311 = vshrl.u32 %v310, 7
  %v312 = vsub.s32 0, %v311
  %v313 = vrot.slane %v302, %v312
  %v314 = vmul.f32 %v246, %v313
  %v315 = vadd.f32 %v206, %v314
  %v316 = vlaneseq
  %v317 = vshrl.u32 %v316, 7
  %v318 = vsub.s32 0, %v317
  %v319 = vrot.slane %v295, %v318
  %v320 = vmul.f32 %v302, %v319
  %v321 = vadd.f32 %v315, %v320
  %v322 = vmul.f32 %v309, %v313
  %v323 = vadd.f32 %v321, %v322
  %v324 = vlaneseq
  %v325 = vshrl.u32 %v324, 7
  %v326 = vsub.s32 1, %v325
  %v327 = vrot.slane %v302, %v326
  %v328 = vmul.f32 %v246, %v327
  %v329 = vadd.f32 %v216, %v328
  %v330 = vlaneseq
  %v331 = vshrl.u32 %v330, 7
  %v332 = vsub.s32 1, %v331
  %v333 = vrot.slane %v295, %v332
  %v334 = vmul.f32 %v302, %v333
  %v335 = vadd.f32 %v329, %v334
  %v336 = vmul.f32 %v309, %v327
  %v337 = vadd.f32 %v335, %v336
  %v338 = vlaneseq
  %v339 = vshrl.u32 %v338, 7
  %v340 = vsub.s32 2, %v339
  %v341 = vrot.slane %v302, %v340
  %v342 = vmul.f32 %v246, %v341
  %v343 = vadd.f32 %v226, %v342
  %v344 = vlaneseq
  %v345 = vshrl.u32 %v344, 7
  %v346 = vsub.s32 2, %v345
  %v347 = vrot.slane %v295, %v346
  %v348 = vmul.f32 %v302, %v347
  %v349 = vadd.f32 %v343, %v348
  %v350 = vmul.f32 %v309, %v341
  %v351 = vadd.f32 %v349, %v350
  %v352 = vlaneseq
  %v353 = vshrl.u32 %v352, 7
  %v354 = vsub.s32 3, %v353
  %v355 = vrot.slane %v302, %v354
  %v356 = vmul.f32 %v246, %v355
  %v357 = vadd.f32 %v236, %v356
  %v358 = vlaneseq
  %v359 = vshrl.u32 %v358, 7
  %v360 = vsub.s32 3, %v359
  %v361 = vrot.slane %v295, %v360
  %v362 = vmul.f32 %v302, %v361
  %v363 = vadd.f32 %v357, %v362
  %v364 = vmul.f32 %v309, %v355
  %v365 = vadd.f32 %v363, %v364
  %v366 = vlaneseq
  %v367 = vshrl.u32 %v366, 7
  %v368 = vsub.s32 4, %v367
  %v369 = vrot.slane %v304, %v368
  %v370 = vmul.f32 %v246, %v369
  %v371 = vadd.f32 %v280, %v370
  %v372 = vlaneseq
  %v373 = vshrl.u32 %v372, 7
  %v374 = vsub.s32 4, %v373
  %v375 = vrot.slane %v280, %v374
  %v376 = vmul.f32 %v302, %v375
  %v377 = vadd.f32 %v371, %v376
  %v378 = vmul.f32 %v309, %v369
  %v379 = vadd.f32 %v377, %v378
  %vm380 = vcmask 1043456
  %v381 = vsel %vm380, %v302, %v304
  %s382 = scalar_lea.vmem [#allocation2], 56
  %383 = vst [vmem:[%s382] sm:$0x1f] %v381
  %v384 = vmul.f32 %v323, %v85
  %v385 = vmul.f32 %v337, %v90
  %v386 = vadd.f32 %v384, %v385
  %v387 = vmul.f32 %v351, %v96
  %v388 = vadd.f32 %v386, %v387
  %v389 = vmul.f32 %v365, %v102
  %v390 = vadd.f32 %v388, %v389
  %v391 = vmul.f32 %v323, %v108
  %v392 = vmul.f32 %v337, %v113
  %v393 = vadd.f32 %v391, %v392
  %v394 = vmul.f32 %v351, %v119
  %v395 = vadd.f32 %v393, %v394
  %v396 = vmul.f32 %v365, %v125
  %v397 = vadd.f32 %v395, %v396
  %v398 = vmul.f32 %v323, %v131
  %v399 = vmul.f32 %v337, %v136
  %v400 = vadd.f32 %v398, %v399
  %v401 = vmul.f32 %v351, %v142
  %v402 = vadd.f32 %v400, %v401
  %v403 = vmul.f32 %v365, %v148
  %v404 = vadd.f32 %v402, %v403
  %v405 = vmul.f32 %v323, %v154
  %v406 = vmul.f32 %v337, %v159
  %v407 = vadd.f32 %v405, %v406
  %v408 = vmul.f32 %v351, %v165
  %v409 = vadd.f32 %v407, %v408
  %v410 = vmul.f32 %v365, %v171
  %v411 = vadd.f32 %v409, %v410
  %v412 = vmul.f32 %v323, %v177
  %v413 = vmul.f32 %v337, %v182
  %v414 = vadd.f32 %v412, %v413
  %v415 = vmul.f32 %v351, %v188
  %v416 = vadd.f32 %v414, %v415
  %v417 = vmul.f32 %v365, %v194
  %v418 = vadd.f32 %v416, %v417
  %s419 = scalar_lea.vmem %s0, 240
  %v420 = vld [vmem:[%s419] sm:$0x1f]
  %v421 = vlaneseq
  %v422 = vshrl.u32 %v421, 7
  %v423 = vsub.s32 0, %v422
  %v424 = vrot.slane %v390, %v423
  %v425 = vmul.f32 %v23, %v424
  %v426 = vlaneseq
  %v427 = vshrl.u32 %v426, 7
  %v428 = vsub.s32 1, %v427
  %v429 = vrot.slane %v390, %v428
  %v430 = vmul.f32 %v24, %v429
  %v431 = vadd.f32 %v425, %v430
  %v432 = vlaneseq
  %v433 = vshrl.u32 %v432, 7
  %v434 = vsub.s32 2, %v433
  %v435 = vrot.slane %v390, %v434
  %v436 = vmul.f32 %v25, %v435
  %v437 = vadd.f32 %v431, %v436
  %v438 = vlaneseq
  %v439 = vshrl.u32 %v438, 7
  %v440 = vsub.s32 3, %v439
  %v441 = vrot.slane %v390, %v440
  %v442 = vmul.f32 %v26, %v441
  %v443 = vadd.f32 %v437, %v442
  %v444 = vadd.f32 %v420, %v443
  %s445 = scalar_lea.vmem %s0, 248
  %v446 = vld [vmem:[%s445] sm:$0x1f]
  %v447 = vlaneseq
  %v448 = vshrl.u32 %v447, 7
  %v449 = vsub.s32 0, %v448
  %v450 = vrot.slane %v397, %v449
  %v451 = vmul.f32 %v23, %v450
  %v452 = vlaneseq
  %v453 = vshrl.u32 %v452, 7
  %v454 = vsub.s32 1, %v453
  %v455 = vrot.slane %v397, %v454
  %v456 = vmul.f32 %v24, %v455
  %v457 = vadd.f32 %v451, %v456
  %v458 = vlaneseq
  %v459 = vshrl.u32 %v458, 7
  %v460 = vsub.s32 2, %v459
  %v461 = vrot.slane %v397, %v460
  %v462 = vmul.f32 %v25, %v461
  %v463 = vadd.f32 %v457, %v462
  %v464 = vlaneseq
  %v465 = vshrl.u32 %v464, 7
  %v466 = vsub.s32 3, %v465
  %v467 = vrot.slane %v397, %v466
  %v468 = vmul.f32 %v26, %v467
  %v469 = vadd.f32 %v463, %v468
  %v470 = vadd.f32 %v446, %v469
  %s471 = scalar_lea.vmem %s0, 256
  %v472 = vld [vmem:[%s471] sm:$0x1f]
  %v473 = vlaneseq
  %v474 = vshrl.u32 %v473, 7
  %v475 = vsub.s32 0, %v474
  %v476 = vrot.slane %v404, %v475
  %v477 = vmul.f32 %v23, %v476
  %v478 = vlaneseq
  %v479 = vshrl.u32 %v478, 7
  %v480 = vsub.s32 1, %v479
  %v481 = vrot.slane %v404, %v480
  %v482 = vmul.f32 %v24, %v481
  %v483 = vadd.f32 %v477, %v482
  %v484 = vlaneseq
  %v485 = vshrl.u32 %v484, 7
  %v486 = vsub.s32 2, %v485
  %v487 = vrot.slane %v404, %v486
  %v488 = vmul.f32 %v25, %v487
  %v489 = vadd.f32 %v483, %v488
  %v490 = vlaneseq
  %v491 = vshrl.u32 %v490, 7
  %v492 = vsub.s32 3, %v491
  %v493 = vrot.slane %v404, %v492
  %v494 = vmul.f32 %v26, %v493
  %v495 = vadd.f32 %v489, %v494
  %v496 = vadd.f32 %v472, %v495
  %s497 = scalar_lea.vmem %s0, 264
  %v498 = vld [vmem:[%s497] sm:$0x1f]
  %v499 = vlaneseq
  %v500 = vshrl.u32 %v499, 7
  %v501 = vsub.s32 0, %v500
  %v502 = vrot.slane %v411, %v501
  %v503 = vmul.f32 %v23, %v502
  %v504 = vlaneseq
  %v505 = vshrl.u32 %v504, 7
  %v506 = vsub.s32 1, %v505
  %v507 = vrot.slane %v411, %v506
  %v508 = vmul.f32 %v24, %v507
  %v509 = vadd.f32 %v503, %v508
  %v510 = vlaneseq
  %v511 = vshrl.u32 %v510, 7
  %v512 = vsub.s32 2, %v511
  %v513 = vrot.slane %v411, %v512
  %v514 = vmul.f32 %v25, %v513
  %v515 = vadd.f32 %v509, %v514
  %v516 = vlaneseq
  %v517 = vshrl.u32 %v516, 7
  %v518 = vsub.s32 3, %v517
  %v519 = vrot.slane %v411, %v518
  %v520 = vmul.f32 %v26, %v519
  %v521 = vadd.f32 %v515, %v520
  %v522 = vadd.f32 %v498, %v521
  %s523 = scalar_lea.vmem %s0, 272
  %v524 = vld [vmem:[%s523] sm:$0x1f]
  %v525 = vlaneseq
  %v526 = vshrl.u32 %v525, 7
  %v527 = vsub.s32 0, %v526
  %v528 = vrot.slane %v418, %v527
  %v529 = vmul.f32 %v23, %v528
  %v530 = vlaneseq
  %v531 = vshrl.u32 %v530, 7
  %v532 = vsub.s32 1, %v531
  %v533 = vrot.slane %v418, %v532
  %v534 = vmul.f32 %v24, %v533
  %v535 = vadd.f32 %v529, %v534
  %v536 = vlaneseq
  %v537 = vshrl.u32 %v536, 7
  %v538 = vsub.s32 2, %v537
  %v539 = vrot.slane %v418, %v538
  %v540 = vmul.f32 %v25, %v539
  %v541 = vadd.f32 %v535, %v540
  %v542 = vlaneseq
  %v543 = vshrl.u32 %v542, 7
  %v544 = vsub.s32 3, %v543
  %v545 = vrot.slane %v418, %v544
  %v546 = vmul.f32 %v26, %v545
  %v547 = vadd.f32 %v541, %v546
  %v548 = vadd.f32 %v524, %v547
  %v549 = vmul.f32 %v323, %v250
  %v550 = vmul.f32 %v337, %v255
  %v551 = vadd.f32 %v549, %v550
  %v552 = vmul.f32 %v351, %v261
  %v553 = vadd.f32 %v551, %v552
  %v554 = vmul.f32 %v365, %v267
  %v555 = vadd.f32 %v553, %v554
  %s556 = scalar_lea.vmem %s1, 48
  %v557 = vld [vmem:[%s556] sm:$0x1f]
  %v558 = vadd.f32 %v379, %v555
  %v559 = vlaneseq
  %v560 = vshrl.u32 %v559, 7
  %v561 = vsub.s32 0, %v560
  %v562 = vrot.slane %v558, %v561
  %v563 = vmul.f32 %v23, %v562
  %v564 = vlaneseq
  %v565 = vshrl.u32 %v564, 7
  %v566 = vsub.s32 1, %v565
  %v567 = vrot.slane %v558, %v566
  %v568 = vmul.f32 %v24, %v567
  %v569 = vadd.f32 %v563, %v568
  %v570 = vlaneseq
  %v571 = vshrl.u32 %v570, 7
  %v572 = vsub.s32 2, %v571
  %v573 = vrot.slane %v558, %v572
  %v574 = vmul.f32 %v25, %v573
  %v575 = vadd.f32 %v569, %v574
  %v576 = vlaneseq
  %v577 = vshrl.u32 %v576, 7
  %v578 = vsub.s32 3, %v577
  %v579 = vrot.slane %v558, %v578
  %v580 = vmul.f32 %v26, %v579
  %v581 = vadd.f32 %v575, %v580
  %v582 = vadd.f32 %v557, %v581
  %v584 = vrot.slane %v444, 4
  %v587 = vrot.slane %v470, 3
  %v590 = vrot.slane %v496, 2
  %v593 = vrot.slane %v522, 1
  %v595 = vsel %vm37, %v584, %v587
  %v596 = vsel %vm39, %v595, %v590
  %v597 = vsel %vm41, %v596, %v593
  %v598 = vrcp.pop %v548
  %v599 = vlaneseq
  %v600 = vshrl.u32 %v599, 7
  %v601 = vsub.s32 4, %v600
  %v602 = vrot.slane %v598, %v601
  %v603 = vmul.f32 %v597, %v602
  %v604 = vsub.f32 0.0, %v603
  %v605 = vmul.f32 %v582, %v598
  %v606 = vsub.f32 0.0, %v605
  %v607 = vlaneseq
  %v608 = vshrl.u32 %v607, 7
  %v609 = vsub.s32 4, %v608
  %v610 = vrot.slane %v548, %v609
  %v611 = vmul.f32 %v604, %v610
  %v612 = vlaneseq
  %v613 = vshrl.u32 %v612, 7
  %v614 = vsub.s32 0, %v613
  %v615 = vrot.slane %v604, %v614
  %v616 = vmul.f32 %v548, %v615
  %v617 = vadd.f32 %v444, %v616
  %v618 = vlaneseq
  %v619 = vshrl.u32 %v618, 7
  %v620 = vsub.s32 0, %v619
  %v621 = vrot.slane %v597, %v620
  %v622 = vmul.f32 %v604, %v621
  %v623 = vadd.f32 %v617, %v622
  %v624 = vmul.f32 %v611, %v615
  %v625 = vadd.f32 %v623, %v624
  %v626 = vlaneseq
  %v627 = vshrl.u32 %v626, 7
  %v628 = vsub.s32 1, %v627
  %v629 = vrot.slane %v604, %v628
  %v630 = vmul.f32 %v548, %v629
  %v631 = vadd.f32 %v470, %v630
  %v632 = vlaneseq
  %v633 = vshrl.u32 %v632, 7
  %v634 = vsub.s32 1, %v633
  %v635 = vrot.slane %v597, %v634
  %v636 = vmul.f32 %v604, %v635
  %v637 = vadd.f32 %v631, %v636
  %v638 = vmul.f32 %v611, %v629
  %v639 = vadd.f32 %v637, %v638
  %v640 = vlaneseq
  %v641 = vshrl.u32 %v640, 7
  %v642 = vsub.s32 2, %v641
  %v643 = vrot.slane %v604, %v642
  %v644 = vmul.f32 %v548, %v643
  %v645 = vadd.f32 %v496, %v644
  %v646 = vlaneseq
  %v647 = vshrl.u32 %v646, 7
  %v648 = vsub.s32 2, %v647
  %v649 = vrot.slane %v597, %v648
  %v650 = vmul.f32 %v604, %v649
  %v651 = vadd.f32 %v645, %v650
  %v652 = vmul.f32 %v611, %v643
  %v653 = vadd.f32 %v651, %v652
  %v654 = vlaneseq
  %v655 = vshrl.u32 %v654, 7
  %v656 = vsub.s32 3, %v655
  %v657 = vrot.slane %v604, %v656
  %v658 = vmul.f32 %v548, %v657
  %v659 = vadd.f32 %v522, %v658
  %v660 = vlaneseq
  %v661 = vshrl.u32 %v660, 7
  %v662 = vsub.s32 3, %v661
  %v663 = vrot.slane %v597, %v662
  %v664 = vmul.f32 %v604, %v663
  %v665 = vadd.f32 %v659, %v664
  %v666 = vmul.f32 %v611, %v657
  %v667 = vadd.f32 %v665, %v666
  %v668 = vlaneseq
  %v669 = vshrl.u32 %v668, 7
  %v670 = vsub.s32 4, %v669
  %v671 = vrot.slane %v606, %v670
  %v672 = vmul.f32 %v548, %v671
  %v673 = vadd.f32 %v582, %v672
  %v674 = vlaneseq
  %v675 = vshrl.u32 %v674, 7
  %v676 = vsub.s32 4, %v675
  %v677 = vrot.slane %v582, %v676
  %v678 = vmul.f32 %v604, %v677
  %v679 = vadd.f32 %v673, %v678
  %v680 = vmul.f32 %v611, %v671
  %v681 = vadd.f32 %v679, %v680
  %v682 = vsel %vm380, %v604, %v606
  %s683 = scalar_lea.vmem [#allocation2], 48
  %684 = vst [vmem:[%s683] sm:$0x1f] %v682
  %v685 = vmul.f32 %v625, %v85
  %v686 = vmul.f32 %v639, %v90
  %v687 = vadd.f32 %v685, %v686
  %v688 = vmul.f32 %v653, %v96
  %v689 = vadd.f32 %v687, %v688
  %v690 = vmul.f32 %v667, %v102
  %v691 = vadd.f32 %v689, %v690
  %v692 = vmul.f32 %v625, %v108
  %v693 = vmul.f32 %v639, %v113
  %v694 = vadd.f32 %v692, %v693
  %v695 = vmul.f32 %v653, %v119
  %v696 = vadd.f32 %v694, %v695
  %v697 = vmul.f32 %v667, %v125
  %v698 = vadd.f32 %v696, %v697
  %v699 = vmul.f32 %v625, %v131
  %v700 = vmul.f32 %v639, %v136
  %v701 = vadd.f32 %v699, %v700
  %v702 = vmul.f32 %v653, %v142
  %v703 = vadd.f32 %v701, %v702
  %v704 = vmul.f32 %v667, %v148
  %v705 = vadd.f32 %v703, %v704
  %v706 = vmul.f32 %v625, %v154
  %v707 = vmul.f32 %v639, %v159
  %v708 = vadd.f32 %v706, %v707
  %v709 = vmul.f32 %v653, %v165
  %v710 = vadd.f32 %v708, %v709
  %v711 = vmul.f32 %v667, %v171
  %v712 = vadd.f32 %v710, %v711
  %v713 = vmul.f32 %v625, %v177
  %v714 = vmul.f32 %v639, %v182
  %v715 = vadd.f32 %v713, %v714
  %v716 = vmul.f32 %v653, %v188
  %v717 = vadd.f32 %v715, %v716
  %v718 = vmul.f32 %v667, %v194
  %v719 = vadd.f32 %v717, %v718
  %s720 = scalar_lea.vmem %s0, 200
  %v721 = vld [vmem:[%s720] sm:$0x1f]
  %v722 = vlaneseq
  %v723 = vshrl.u32 %v722, 7
  %v724 = vsub.s32 0, %v723
  %v725 = vrot.slane %v691, %v724
  %v726 = vmul.f32 %v23, %v725
  %v727 = vlaneseq
  %v728 = vshrl.u32 %v727, 7
  %v729 = vsub.s32 1, %v728
  %v730 = vrot.slane %v691, %v729
  %v731 = vmul.f32 %v24, %v730
  %v732 = vadd.f32 %v726, %v731
  %v733 = vlaneseq
  %v734 = vshrl.u32 %v733, 7
  %v735 = vsub.s32 2, %v734
  %v736 = vrot.slane %v691, %v735
  %v737 = vmul.f32 %v25, %v736
  %v738 = vadd.f32 %v732, %v737
  %v739 = vlaneseq
  %v740 = vshrl.u32 %v739, 7
  %v741 = vsub.s32 3, %v740
  %v742 = vrot.slane %v691, %v741
  %v743 = vmul.f32 %v26, %v742
  %v744 = vadd.f32 %v738, %v743
  %v745 = vadd.f32 %v721, %v744
  %s746 = scalar_lea.vmem %s0, 208
  %v747 = vld [vmem:[%s746] sm:$0x1f]
  %v748 = vlaneseq
  %v749 = vshrl.u32 %v748, 7
  %v750 = vsub.s32 0, %v749
  %v751 = vrot.slane %v698, %v750
  %v752 = vmul.f32 %v23, %v751
  %v753 = vlaneseq
  %v754 = vshrl.u32 %v753, 7
  %v755 = vsub.s32 1, %v754
  %v756 = vrot.slane %v698, %v755
  %v757 = vmul.f32 %v24, %v756
  %v758 = vadd.f32 %v752, %v757
  %v759 = vlaneseq
  %v760 = vshrl.u32 %v759, 7
  %v761 = vsub.s32 2, %v760
  %v762 = vrot.slane %v698, %v761
  %v763 = vmul.f32 %v25, %v762
  %v764 = vadd.f32 %v758, %v763
  %v765 = vlaneseq
  %v766 = vshrl.u32 %v765, 7
  %v767 = vsub.s32 3, %v766
  %v768 = vrot.slane %v698, %v767
  %v769 = vmul.f32 %v26, %v768
  %v770 = vadd.f32 %v764, %v769
  %v771 = vadd.f32 %v747, %v770
  %s772 = scalar_lea.vmem %s0, 216
  %v773 = vld [vmem:[%s772] sm:$0x1f]
  %v774 = vlaneseq
  %v775 = vshrl.u32 %v774, 7
  %v776 = vsub.s32 0, %v775
  %v777 = vrot.slane %v705, %v776
  %v778 = vmul.f32 %v23, %v777
  %v779 = vlaneseq
  %v780 = vshrl.u32 %v779, 7
  %v781 = vsub.s32 1, %v780
  %v782 = vrot.slane %v705, %v781
  %v783 = vmul.f32 %v24, %v782
  %v784 = vadd.f32 %v778, %v783
  %v785 = vlaneseq
  %v786 = vshrl.u32 %v785, 7
  %v787 = vsub.s32 2, %v786
  %v788 = vrot.slane %v705, %v787
  %v789 = vmul.f32 %v25, %v788
  %v790 = vadd.f32 %v784, %v789
  %v791 = vlaneseq
  %v792 = vshrl.u32 %v791, 7
  %v793 = vsub.s32 3, %v792
  %v794 = vrot.slane %v705, %v793
  %v795 = vmul.f32 %v26, %v794
  %v796 = vadd.f32 %v790, %v795
  %v797 = vadd.f32 %v773, %v796
  %s798 = scalar_lea.vmem %s0, 224
  %v799 = vld [vmem:[%s798] sm:$0x1f]
  %v800 = vlaneseq
  %v801 = vshrl.u32 %v800, 7
  %v802 = vsub.s32 0, %v801
  %v803 = vrot.slane %v712, %v802
  %v804 = vmul.f32 %v23, %v803
  %v805 = vlaneseq
  %v806 = vshrl.u32 %v805, 7
  %v807 = vsub.s32 1, %v806
  %v808 = vrot.slane %v712, %v807
  %v809 = vmul.f32 %v24, %v808
  %v810 = vadd.f32 %v804, %v809
  %v811 = vlaneseq
  %v812 = vshrl.u32 %v811, 7
  %v813 = vsub.s32 2, %v812
  %v814 = vrot.slane %v712, %v813
  %v815 = vmul.f32 %v25, %v814
  %v816 = vadd.f32 %v810, %v815
  %v817 = vlaneseq
  %v818 = vshrl.u32 %v817, 7
  %v819 = vsub.s32 3, %v818
  %v820 = vrot.slane %v712, %v819
  %v821 = vmul.f32 %v26, %v820
  %v822 = vadd.f32 %v816, %v821
  %v823 = vadd.f32 %v799, %v822
  %s824 = scalar_lea.vmem %s0, 232
  %v825 = vld [vmem:[%s824] sm:$0x1f]
  %v826 = vlaneseq
  %v827 = vshrl.u32 %v826, 7
  %v828 = vsub.s32 0, %v827
  %v829 = vrot.slane %v719, %v828
  %v830 = vmul.f32 %v23, %v829
  %v831 = vlaneseq
  %v832 = vshrl.u32 %v831, 7
  %v833 = vsub.s32 1, %v832
  %v834 = vrot.slane %v719, %v833
  %v835 = vmul.f32 %v24, %v834
  %v836 = vadd.f32 %v830, %v835
  %v837 = vlaneseq
  %v838 = vshrl.u32 %v837, 7
  %v839 = vsub.s32 2, %v838
  %v840 = vrot.slane %v719, %v839
  %v841 = vmul.f32 %v25, %v840
  %v842 = vadd.f32 %v836, %v841
  %v843 = vlaneseq
  %v844 = vshrl.u32 %v843, 7
  %v845 = vsub.s32 3, %v844
  %v846 = vrot.slane %v719, %v845
  %v847 = vmul.f32 %v26, %v846
  %v848 = vadd.f32 %v842, %v847
  %v849 = vadd.f32 %v825, %v848
  %v850 = vmul.f32 %v625, %v250
  %v851 = vmul.f32 %v639, %v255
  %v852 = vadd.f32 %v850, %v851
  %v853 = vmul.f32 %v653, %v261
  %v854 = vadd.f32 %v852, %v853
  %v855 = vmul.f32 %v667, %v267
  %v856 = vadd.f32 %v854, %v855
  %s857 = scalar_lea.vmem %s1, 40
  %v858 = vld [vmem:[%s857] sm:$0x1f]
  %v859 = vadd.f32 %v681, %v856
  %v860 = vlaneseq
  %v861 = vshrl.u32 %v860, 7
  %v862 = vsub.s32 0, %v861
  %v863 = vrot.slane %v859, %v862
  %v864 = vmul.f32 %v23, %v863
  %v865 = vlaneseq
  %v866 = vshrl.u32 %v865, 7
  %v867 = vsub.s32 1, %v866
  %v868 = vrot.slane %v859, %v867
  %v869 = vmul.f32 %v24, %v868
  %v870 = vadd.f32 %v864, %v869
  %v871 = vlaneseq
  %v872 = vshrl.u32 %v871, 7
  %v873 = vsub.s32 2, %v872
  %v874 = vrot.slane %v859, %v873
  %v875 = vmul.f32 %v25, %v874
  %v876 = vadd.f32 %v870, %v875
  %v877 = vlaneseq
  %v878 = vshrl.u32 %v877, 7
  %v879 = vsub.s32 3, %v878
  %v880 = vrot.slane %v859, %v879
  %v881 = vmul.f32 %v26, %v880
  %v882 = vadd.f32 %v876, %v881
  %v883 = vadd.f32 %v858, %v882
  %v885 = vrot.slane %v745, 4
  %v888 = vrot.slane %v771, 3
  %v891 = vrot.slane %v797, 2
  %v894 = vrot.slane %v823, 1
  %v896 = vsel %vm37, %v885, %v888
  %v897 = vsel %vm39, %v896, %v891
  %v898 = vsel %vm41, %v897, %v894
  %v899 = vrcp.pop %v849
  %v900 = vlaneseq
  %v901 = vshrl.u32 %v900, 7
  %v902 = vsub.s32 4, %v901
  %v903 = vrot.slane %v899, %v902
  %v904 = vmul.f32 %v898, %v903
  %v905 = vsub.f32 0.0, %v904
  %v906 = vmul.f32 %v883, %v899
  %v907 = vsub.f32 0.0, %v906
  %v908 = vlaneseq
  %v909 = vshrl.u32 %v908, 7
  %v910 = vsub.s32 4, %v909
  %v911 = vrot.slane %v849, %v910
  %v912 = vmul.f32 %v905, %v911
  %v913 = vlaneseq
  %v914 = vshrl.u32 %v913, 7
  %v915 = vsub.s32 0, %v914
  %v916 = vrot.slane %v905, %v915
  %v917 = vmul.f32 %v849, %v916
  %v918 = vadd.f32 %v745, %v917
  %v919 = vlaneseq
  %v920 = vshrl.u32 %v919, 7
  %v921 = vsub.s32 0, %v920
  %v922 = vrot.slane %v898, %v921
  %v923 = vmul.f32 %v905, %v922
  %v924 = vadd.f32 %v918, %v923
  %v925 = vmul.f32 %v912, %v916
  %v926 = vadd.f32 %v924, %v925
  %v927 = vlaneseq
  %v928 = vshrl.u32 %v927, 7
  %v929 = vsub.s32 1, %v928
  %v930 = vrot.slane %v905, %v929
  %v931 = vmul.f32 %v849, %v930
  %v932 = vadd.f32 %v771, %v931
  %v933 = vlaneseq
  %v934 = vshrl.u32 %v933, 7
  %v935 = vsub.s32 1, %v934
  %v936 = vrot.slane %v898, %v935
  %v937 = vmul.f32 %v905, %v936
  %v938 = vadd.f32 %v932, %v937
  %v939 = vmul.f32 %v912, %v930
  %v940 = vadd.f32 %v938, %v939
  %v941 = vlaneseq
  %v942 = vshrl.u32 %v941, 7
  %v943 = vsub.s32 2, %v942
  %v944 = vrot.slane %v905, %v943
  %v945 = vmul.f32 %v849, %v944
  %v946 = vadd.f32 %v797, %v945
  %v947 = vlaneseq
  %v948 = vshrl.u32 %v947, 7
  %v949 = vsub.s32 2, %v948
  %v950 = vrot.slane %v898, %v949
  %v951 = vmul.f32 %v905, %v950
  %v952 = vadd.f32 %v946, %v951
  %v953 = vmul.f32 %v912, %v944
  %v954 = vadd.f32 %v952, %v953
  %v955 = vlaneseq
  %v956 = vshrl.u32 %v955, 7
  %v957 = vsub.s32 3, %v956
  %v958 = vrot.slane %v905, %v957
  %v959 = vmul.f32 %v849, %v958
  %v960 = vadd.f32 %v823, %v959
  %v961 = vlaneseq
  %v962 = vshrl.u32 %v961, 7
  %v963 = vsub.s32 3, %v962
  %v964 = vrot.slane %v898, %v963
  %v965 = vmul.f32 %v905, %v964
  %v966 = vadd.f32 %v960, %v965
  %v967 = vmul.f32 %v912, %v958
  %v968 = vadd.f32 %v966, %v967
  %v969 = vlaneseq
  %v970 = vshrl.u32 %v969, 7
  %v971 = vsub.s32 4, %v970
  %v972 = vrot.slane %v907, %v971
  %v973 = vmul.f32 %v849, %v972
  %v974 = vadd.f32 %v883, %v973
  %v975 = vlaneseq
  %v976 = vshrl.u32 %v975, 7
  %v977 = vsub.s32 4, %v976
  %v978 = vrot.slane %v883, %v977
  %v979 = vmul.f32 %v905, %v978
  %v980 = vadd.f32 %v974, %v979
  %v981 = vmul.f32 %v912, %v972
  %v982 = vadd.f32 %v980, %v981
  %v983 = vsel %vm380, %v905, %v907
  %s984 = scalar_lea.vmem [#allocation2], 40
  %985 = vst [vmem:[%s984] sm:$0x1f] %v983
  %v986 = vmul.f32 %v926, %v85
  %v987 = vmul.f32 %v940, %v90
  %v988 = vadd.f32 %v986, %v987
  %v989 = vmul.f32 %v954, %v96
  %v990 = vadd.f32 %v988, %v989
  %v991 = vmul.f32 %v968, %v102
  %v992 = vadd.f32 %v990, %v991
  %v993 = vmul.f32 %v926, %v108
  %v994 = vmul.f32 %v940, %v113
  %v995 = vadd.f32 %v993, %v994
  %v996 = vmul.f32 %v954, %v119
  %v997 = vadd.f32 %v995, %v996
  %v998 = vmul.f32 %v968, %v125
  %v999 = vadd.f32 %v997, %v998
  %v1000 = vmul.f32 %v926, %v131
  %v1001 = vmul.f32 %v940, %v136
  %v1002 = vadd.f32 %v1000, %v1001
  %v1003 = vmul.f32 %v954, %v142
  %v1004 = vadd.f32 %v1002, %v1003
  %v1005 = vmul.f32 %v968, %v148
  %v1006 = vadd.f32 %v1004, %v1005
  %v1007 = vmul.f32 %v926, %v154
  %v1008 = vmul.f32 %v940, %v159
  %v1009 = vadd.f32 %v1007, %v1008
  %v1010 = vmul.f32 %v954, %v165
  %v1011 = vadd.f32 %v1009, %v1010
  %v1012 = vmul.f32 %v968, %v171
  %v1013 = vadd.f32 %v1011, %v1012
  %v1014 = vmul.f32 %v926, %v177
  %v1015 = vmul.f32 %v940, %v182
  %v1016 = vadd.f32 %v1014, %v1015
  %v1017 = vmul.f32 %v954, %v188
  %v1018 = vadd.f32 %v1016, %v1017
  %v1019 = vmul.f32 %v968, %v194
  %v1020 = vadd.f32 %v1018, %v1019
  %s1021 = scalar_lea.vmem %s0, 160
  %v1022 = vld [vmem:[%s1021] sm:$0x1f]
  %v1023 = vlaneseq
  %v1024 = vshrl.u32 %v1023, 7
  %v1025 = vsub.s32 0, %v1024
  %v1026 = vrot.slane %v992, %v1025
  %v1027 = vmul.f32 %v23, %v1026
  %v1028 = vlaneseq
  %v1029 = vshrl.u32 %v1028, 7
  %v1030 = vsub.s32 1, %v1029
  %v1031 = vrot.slane %v992, %v1030
  %v1032 = vmul.f32 %v24, %v1031
  %v1033 = vadd.f32 %v1027, %v1032
  %v1034 = vlaneseq
  %v1035 = vshrl.u32 %v1034, 7
  %v1036 = vsub.s32 2, %v1035
  %v1037 = vrot.slane %v992, %v1036
  %v1038 = vmul.f32 %v25, %v1037
  %v1039 = vadd.f32 %v1033, %v1038
  %v1040 = vlaneseq
  %v1041 = vshrl.u32 %v1040, 7
  %v1042 = vsub.s32 3, %v1041
  %v1043 = vrot.slane %v992, %v1042
  %v1044 = vmul.f32 %v26, %v1043
  %v1045 = vadd.f32 %v1039, %v1044
  %v1046 = vadd.f32 %v1022, %v1045
  %s1047 = scalar_lea.vmem %s0, 168
  %v1048 = vld [vmem:[%s1047] sm:$0x1f]
  %v1049 = vlaneseq
  %v1050 = vshrl.u32 %v1049, 7
  %v1051 = vsub.s32 0, %v1050
  %v1052 = vrot.slane %v999, %v1051
  %v1053 = vmul.f32 %v23, %v1052
  %v1054 = vlaneseq
  %v1055 = vshrl.u32 %v1054, 7
  %v1056 = vsub.s32 1, %v1055
  %v1057 = vrot.slane %v999, %v1056
  %v1058 = vmul.f32 %v24, %v1057
  %v1059 = vadd.f32 %v1053, %v1058
  %v1060 = vlaneseq
  %v1061 = vshrl.u32 %v1060, 7
  %v1062 = vsub.s32 2, %v1061
  %v1063 = vrot.slane %v999, %v1062
  %v1064 = vmul.f32 %v25, %v1063
  %v1065 = vadd.f32 %v1059, %v1064
  %v1066 = vlaneseq
  %v1067 = vshrl.u32 %v1066, 7
  %v1068 = vsub.s32 3, %v1067
  %v1069 = vrot.slane %v999, %v1068
  %v1070 = vmul.f32 %v26, %v1069
  %v1071 = vadd.f32 %v1065, %v1070
  %v1072 = vadd.f32 %v1048, %v1071
  %s1073 = scalar_lea.vmem %s0, 176
  %v1074 = vld [vmem:[%s1073] sm:$0x1f]
  %v1075 = vlaneseq
  %v1076 = vshrl.u32 %v1075, 7
  %v1077 = vsub.s32 0, %v1076
  %v1078 = vrot.slane %v1006, %v1077
  %v1079 = vmul.f32 %v23, %v1078
  %v1080 = vlaneseq
  %v1081 = vshrl.u32 %v1080, 7
  %v1082 = vsub.s32 1, %v1081
  %v1083 = vrot.slane %v1006, %v1082
  %v1084 = vmul.f32 %v24, %v1083
  %v1085 = vadd.f32 %v1079, %v1084
  %v1086 = vlaneseq
  %v1087 = vshrl.u32 %v1086, 7
  %v1088 = vsub.s32 2, %v1087
  %v1089 = vrot.slane %v1006, %v1088
  %v1090 = vmul.f32 %v25, %v1089
  %v1091 = vadd.f32 %v1085, %v1090
  %v1092 = vlaneseq
  %v1093 = vshrl.u32 %v1092, 7
  %v1094 = vsub.s32 3, %v1093
  %v1095 = vrot.slane %v1006, %v1094
  %v1096 = vmul.f32 %v26, %v1095
  %v1097 = vadd.f32 %v1091, %v1096
  %v1098 = vadd.f32 %v1074, %v1097
  %s1099 = scalar_lea.vmem %s0, 184
  %v1100 = vld [vmem:[%s1099] sm:$0x1f]
  %v1101 = vlaneseq
  %v1102 = vshrl.u32 %v1101, 7
  %v1103 = vsub.s32 0, %v1102
  %v1104 = vrot.slane %v1013, %v1103
  %v1105 = vmul.f32 %v23, %v1104
  %v1106 = vlaneseq
  %v1107 = vshrl.u32 %v1106, 7
  %v1108 = vsub.s32 1, %v1107
  %v1109 = vrot.slane %v1013, %v1108
  %v1110 = vmul.f32 %v24, %v1109
  %v1111 = vadd.f32 %v1105, %v1110
  %v1112 = vlaneseq
  %v1113 = vshrl.u32 %v1112, 7
  %v1114 = vsub.s32 2, %v1113
  %v1115 = vrot.slane %v1013, %v1114
  %v1116 = vmul.f32 %v25, %v1115
  %v1117 = vadd.f32 %v1111, %v1116
  %v1118 = vlaneseq
  %v1119 = vshrl.u32 %v1118, 7
  %v1120 = vsub.s32 3, %v1119
  %v1121 = vrot.slane %v1013, %v1120
  %v1122 = vmul.f32 %v26, %v1121
  %v1123 = vadd.f32 %v1117, %v1122
  %v1124 = vadd.f32 %v1100, %v1123
  %s1125 = scalar_lea.vmem %s0, 192
  %v1126 = vld [vmem:[%s1125] sm:$0x1f]
  %v1127 = vlaneseq
  %v1128 = vshrl.u32 %v1127, 7
  %v1129 = vsub.s32 0, %v1128
  %v1130 = vrot.slane %v1020, %v1129
  %v1131 = vmul.f32 %v23, %v1130
  %v1132 = vlaneseq
  %v1133 = vshrl.u32 %v1132, 7
  %v1134 = vsub.s32 1, %v1133
  %v1135 = vrot.slane %v1020, %v1134
  %v1136 = vmul.f32 %v24, %v1135
  %v1137 = vadd.f32 %v1131, %v1136
  %v1138 = vlaneseq
  %v1139 = vshrl.u32 %v1138, 7
  %v1140 = vsub.s32 2, %v1139
  %v1141 = vrot.slane %v1020, %v1140
  %v1142 = vmul.f32 %v25, %v1141
  %v1143 = vadd.f32 %v1137, %v1142
  %v1144 = vlaneseq
  %v1145 = vshrl.u32 %v1144, 7
  %v1146 = vsub.s32 3, %v1145
  %v1147 = vrot.slane %v1020, %v1146
  %v1148 = vmul.f32 %v26, %v1147
  %v1149 = vadd.f32 %v1143, %v1148
  %v1150 = vadd.f32 %v1126, %v1149
  %v1151 = vmul.f32 %v926, %v250
  %v1152 = vmul.f32 %v940, %v255
  %v1153 = vadd.f32 %v1151, %v1152
  %v1154 = vmul.f32 %v954, %v261
  %v1155 = vadd.f32 %v1153, %v1154
  %v1156 = vmul.f32 %v968, %v267
  %v1157 = vadd.f32 %v1155, %v1156
  %s1158 = scalar_lea.vmem %s1, 32
  %v1159 = vld [vmem:[%s1158] sm:$0x1f]
  %v1160 = vadd.f32 %v982, %v1157
  %v1161 = vlaneseq
  %v1162 = vshrl.u32 %v1161, 7
  %v1163 = vsub.s32 0, %v1162
  %v1164 = vrot.slane %v1160, %v1163
  %v1165 = vmul.f32 %v23, %v1164
  %v1166 = vlaneseq
  %v1167 = vshrl.u32 %v1166, 7
  %v1168 = vsub.s32 1, %v1167
  %v1169 = vrot.slane %v1160, %v1168
  %v1170 = vmul.f32 %v24, %v1169
  %v1171 = vadd.f32 %v1165, %v1170
  %v1172 = vlaneseq
  %v1173 = vshrl.u32 %v1172, 7
  %v1174 = vsub.s32 2, %v1173
  %v1175 = vrot.slane %v1160, %v1174
  %v1176 = vmul.f32 %v25, %v1175
  %v1177 = vadd.f32 %v1171, %v1176
  %v1178 = vlaneseq
  %v1179 = vshrl.u32 %v1178, 7
  %v1180 = vsub.s32 3, %v1179
  %v1181 = vrot.slane %v1160, %v1180
  %v1182 = vmul.f32 %v26, %v1181
  %v1183 = vadd.f32 %v1177, %v1182
  %v1184 = vadd.f32 %v1159, %v1183
  %v1186 = vrot.slane %v1046, 4
  %v1189 = vrot.slane %v1072, 3
  %v1192 = vrot.slane %v1098, 2
  %v1195 = vrot.slane %v1124, 1
  %v1197 = vsel %vm37, %v1186, %v1189
  %v1198 = vsel %vm39, %v1197, %v1192
  %v1199 = vsel %vm41, %v1198, %v1195
  %v1200 = vrcp.pop %v1150
  %v1201 = vlaneseq
  %v1202 = vshrl.u32 %v1201, 7
  %v1203 = vsub.s32 4, %v1202
  %v1204 = vrot.slane %v1200, %v1203
  %v1205 = vmul.f32 %v1199, %v1204
  %v1206 = vsub.f32 0.0, %v1205
  %v1207 = vmul.f32 %v1184, %v1200
  %v1208 = vsub.f32 0.0, %v1207
  %v1209 = vlaneseq
  %v1210 = vshrl.u32 %v1209, 7
  %v1211 = vsub.s32 4, %v1210
  %v1212 = vrot.slane %v1150, %v1211
  %v1213 = vmul.f32 %v1206, %v1212
  %v1214 = vlaneseq
  %v1215 = vshrl.u32 %v1214, 7
  %v1216 = vsub.s32 0, %v1215
  %v1217 = vrot.slane %v1206, %v1216
  %v1218 = vmul.f32 %v1150, %v1217
  %v1219 = vadd.f32 %v1046, %v1218
  %v1220 = vlaneseq
  %v1221 = vshrl.u32 %v1220, 7
  %v1222 = vsub.s32 0, %v1221
  %v1223 = vrot.slane %v1199, %v1222
  %v1224 = vmul.f32 %v1206, %v1223
  %v1225 = vadd.f32 %v1219, %v1224
  %v1226 = vmul.f32 %v1213, %v1217
  %v1227 = vadd.f32 %v1225, %v1226
  %v1228 = vlaneseq
  %v1229 = vshrl.u32 %v1228, 7
  %v1230 = vsub.s32 1, %v1229
  %v1231 = vrot.slane %v1206, %v1230
  %v1232 = vmul.f32 %v1150, %v1231
  %v1233 = vadd.f32 %v1072, %v1232
  %v1234 = vlaneseq
  %v1235 = vshrl.u32 %v1234, 7
  %v1236 = vsub.s32 1, %v1235
  %v1237 = vrot.slane %v1199, %v1236
  %v1238 = vmul.f32 %v1206, %v1237
  %v1239 = vadd.f32 %v1233, %v1238
  %v1240 = vmul.f32 %v1213, %v1231
  %v1241 = vadd.f32 %v1239, %v1240
  %v1242 = vlaneseq
  %v1243 = vshrl.u32 %v1242, 7
  %v1244 = vsub.s32 2, %v1243
  %v1245 = vrot.slane %v1206, %v1244
  %v1246 = vmul.f32 %v1150, %v1245
  %v1247 = vadd.f32 %v1098, %v1246
  %v1248 = vlaneseq
  %v1249 = vshrl.u32 %v1248, 7
  %v1250 = vsub.s32 2, %v1249
  %v1251 = vrot.slane %v1199, %v1250
  %v1252 = vmul.f32 %v1206, %v1251
  %v1253 = vadd.f32 %v1247, %v1252
  %v1254 = vmul.f32 %v1213, %v1245
  %v1255 = vadd.f32 %v1253, %v1254
  %v1256 = vlaneseq
  %v1257 = vshrl.u32 %v1256, 7
  %v1258 = vsub.s32 3, %v1257
  %v1259 = vrot.slane %v1206, %v1258
  %v1260 = vmul.f32 %v1150, %v1259
  %v1261 = vadd.f32 %v1124, %v1260
  %v1262 = vlaneseq
  %v1263 = vshrl.u32 %v1262, 7
  %v1264 = vsub.s32 3, %v1263
  %v1265 = vrot.slane %v1199, %v1264
  %v1266 = vmul.f32 %v1206, %v1265
  %v1267 = vadd.f32 %v1261, %v1266
  %v1268 = vmul.f32 %v1213, %v1259
  %v1269 = vadd.f32 %v1267, %v1268
  %v1270 = vlaneseq
  %v1271 = vshrl.u32 %v1270, 7
  %v1272 = vsub.s32 4, %v1271
  %v1273 = vrot.slane %v1208, %v1272
  %v1274 = vmul.f32 %v1150, %v1273
  %v1275 = vadd.f32 %v1184, %v1274
  %v1276 = vlaneseq
  %v1277 = vshrl.u32 %v1276, 7
  %v1278 = vsub.s32 4, %v1277
  %v1279 = vrot.slane %v1184, %v1278
  %v1280 = vmul.f32 %v1206, %v1279
  %v1281 = vadd.f32 %v1275, %v1280
  %v1282 = vmul.f32 %v1213, %v1273
  %v1283 = vadd.f32 %v1281, %v1282
  %v1284 = vsel %vm380, %v1206, %v1208
  %s1285 = scalar_lea.vmem [#allocation2], 32
  %1286 = vst [vmem:[%s1285] sm:$0x1f] %v1284
  %v1287 = vmul.f32 %v1227, %v85
  %v1288 = vmul.f32 %v1241, %v90
  %v1289 = vadd.f32 %v1287, %v1288
  %v1290 = vmul.f32 %v1255, %v96
  %v1291 = vadd.f32 %v1289, %v1290
  %v1292 = vmul.f32 %v1269, %v102
  %v1293 = vadd.f32 %v1291, %v1292
  %v1294 = vmul.f32 %v1227, %v108
  %v1295 = vmul.f32 %v1241, %v113
  %v1296 = vadd.f32 %v1294, %v1295
  %v1297 = vmul.f32 %v1255, %v119
  %v1298 = vadd.f32 %v1296, %v1297
  %v1299 = vmul.f32 %v1269, %v125
  %v1300 = vadd.f32 %v1298, %v1299
  %v1301 = vmul.f32 %v1227, %v131
  %v1302 = vmul.f32 %v1241, %v136
  %v1303 = vadd.f32 %v1301, %v1302
  %v1304 = vmul.f32 %v1255, %v142
  %v1305 = vadd.f32 %v1303, %v1304
  %v1306 = vmul.f32 %v1269, %v148
  %v1307 = vadd.f32 %v1305, %v1306
  %v1308 = vmul.f32 %v1227, %v154
  %v1309 = vmul.f32 %v1241, %v159
  %v1310 = vadd.f32 %v1308, %v1309
  %v1311 = vmul.f32 %v1255, %v165
  %v1312 = vadd.f32 %v1310, %v1311
  %v1313 = vmul.f32 %v1269, %v171
  %v1314 = vadd.f32 %v1312, %v1313
  %v1315 = vmul.f32 %v1227, %v177
  %v1316 = vmul.f32 %v1241, %v182
  %v1317 = vadd.f32 %v1315, %v1316
  %v1318 = vmul.f32 %v1255, %v188
  %v1319 = vadd.f32 %v1317, %v1318
  %v1320 = vmul.f32 %v1269, %v194
  %v1321 = vadd.f32 %v1319, %v1320
  %s1322 = scalar_lea.vmem %s0, 120
  %v1323 = vld [vmem:[%s1322] sm:$0x1f]
  %v1324 = vlaneseq
  %v1325 = vshrl.u32 %v1324, 7
  %v1326 = vsub.s32 0, %v1325
  %v1327 = vrot.slane %v1293, %v1326
  %v1328 = vmul.f32 %v23, %v1327
  %v1329 = vlaneseq
  %v1330 = vshrl.u32 %v1329, 7
  %v1331 = vsub.s32 1, %v1330
  %v1332 = vrot.slane %v1293, %v1331
  %v1333 = vmul.f32 %v24, %v1332
  %v1334 = vadd.f32 %v1328, %v1333
  %v1335 = vlaneseq
  %v1336 = vshrl.u32 %v1335, 7
  %v1337 = vsub.s32 2, %v1336
  %v1338 = vrot.slane %v1293, %v1337
  %v1339 = vmul.f32 %v25, %v1338
  %v1340 = vadd.f32 %v1334, %v1339
  %v1341 = vlaneseq
  %v1342 = vshrl.u32 %v1341, 7
  %v1343 = vsub.s32 3, %v1342
  %v1344 = vrot.slane %v1293, %v1343
  %v1345 = vmul.f32 %v26, %v1344
  %v1346 = vadd.f32 %v1340, %v1345
  %v1347 = vadd.f32 %v1323, %v1346
  %s1348 = scalar_lea.vmem %s0, 128
  %v1349 = vld [vmem:[%s1348] sm:$0x1f]
  %v1350 = vlaneseq
  %v1351 = vshrl.u32 %v1350, 7
  %v1352 = vsub.s32 0, %v1351
  %v1353 = vrot.slane %v1300, %v1352
  %v1354 = vmul.f32 %v23, %v1353
  %v1355 = vlaneseq
  %v1356 = vshrl.u32 %v1355, 7
  %v1357 = vsub.s32 1, %v1356
  %v1358 = vrot.slane %v1300, %v1357
  %v1359 = vmul.f32 %v24, %v1358
  %v1360 = vadd.f32 %v1354, %v1359
  %v1361 = vlaneseq
  %v1362 = vshrl.u32 %v1361, 7
  %v1363 = vsub.s32 2, %v1362
  %v1364 = vrot.slane %v1300, %v1363
  %v1365 = vmul.f32 %v25, %v1364
  %v1366 = vadd.f32 %v1360, %v1365
  %v1367 = vlaneseq
  %v1368 = vshrl.u32 %v1367, 7
  %v1369 = vsub.s32 3, %v1368
  %v1370 = vrot.slane %v1300, %v1369
  %v1371 = vmul.f32 %v26, %v1370
  %v1372 = vadd.f32 %v1366, %v1371
  %v1373 = vadd.f32 %v1349, %v1372
  %s1374 = scalar_lea.vmem %s0, 136
  %v1375 = vld [vmem:[%s1374] sm:$0x1f]
  %v1376 = vlaneseq
  %v1377 = vshrl.u32 %v1376, 7
  %v1378 = vsub.s32 0, %v1377
  %v1379 = vrot.slane %v1307, %v1378
  %v1380 = vmul.f32 %v23, %v1379
  %v1381 = vlaneseq
  %v1382 = vshrl.u32 %v1381, 7
  %v1383 = vsub.s32 1, %v1382
  %v1384 = vrot.slane %v1307, %v1383
  %v1385 = vmul.f32 %v24, %v1384
  %v1386 = vadd.f32 %v1380, %v1385
  %v1387 = vlaneseq
  %v1388 = vshrl.u32 %v1387, 7
  %v1389 = vsub.s32 2, %v1388
  %v1390 = vrot.slane %v1307, %v1389
  %v1391 = vmul.f32 %v25, %v1390
  %v1392 = vadd.f32 %v1386, %v1391
  %v1393 = vlaneseq
  %v1394 = vshrl.u32 %v1393, 7
  %v1395 = vsub.s32 3, %v1394
  %v1396 = vrot.slane %v1307, %v1395
  %v1397 = vmul.f32 %v26, %v1396
  %v1398 = vadd.f32 %v1392, %v1397
  %v1399 = vadd.f32 %v1375, %v1398
  %s1400 = scalar_lea.vmem %s0, 144
  %v1401 = vld [vmem:[%s1400] sm:$0x1f]
  %v1402 = vlaneseq
  %v1403 = vshrl.u32 %v1402, 7
  %v1404 = vsub.s32 0, %v1403
  %v1405 = vrot.slane %v1314, %v1404
  %v1406 = vmul.f32 %v23, %v1405
  %v1407 = vlaneseq
  %v1408 = vshrl.u32 %v1407, 7
  %v1409 = vsub.s32 1, %v1408
  %v1410 = vrot.slane %v1314, %v1409
  %v1411 = vmul.f32 %v24, %v1410
  %v1412 = vadd.f32 %v1406, %v1411
  %v1413 = vlaneseq
  %v1414 = vshrl.u32 %v1413, 7
  %v1415 = vsub.s32 2, %v1414
  %v1416 = vrot.slane %v1314, %v1415
  %v1417 = vmul.f32 %v25, %v1416
  %v1418 = vadd.f32 %v1412, %v1417
  %v1419 = vlaneseq
  %v1420 = vshrl.u32 %v1419, 7
  %v1421 = vsub.s32 3, %v1420
  %v1422 = vrot.slane %v1314, %v1421
  %v1423 = vmul.f32 %v26, %v1422
  %v1424 = vadd.f32 %v1418, %v1423
  %v1425 = vadd.f32 %v1401, %v1424
  %s1426 = scalar_lea.vmem %s0, 152
  %v1427 = vld [vmem:[%s1426] sm:$0x1f]
  %v1428 = vlaneseq
  %v1429 = vshrl.u32 %v1428, 7
  %v1430 = vsub.s32 0, %v1429
  %v1431 = vrot.slane %v1321, %v1430
  %v1432 = vmul.f32 %v23, %v1431
  %v1433 = vlaneseq
  %v1434 = vshrl.u32 %v1433, 7
  %v1435 = vsub.s32 1, %v1434
  %v1436 = vrot.slane %v1321, %v1435
  %v1437 = vmul.f32 %v24, %v1436
  %v1438 = vadd.f32 %v1432, %v1437
  %v1439 = vlaneseq
  %v1440 = vshrl.u32 %v1439, 7
  %v1441 = vsub.s32 2, %v1440
  %v1442 = vrot.slane %v1321, %v1441
  %v1443 = vmul.f32 %v25, %v1442
  %v1444 = vadd.f32 %v1438, %v1443
  %v1445 = vlaneseq
  %v1446 = vshrl.u32 %v1445, 7
  %v1447 = vsub.s32 3, %v1446
  %v1448 = vrot.slane %v1321, %v1447
  %v1449 = vmul.f32 %v26, %v1448
  %v1450 = vadd.f32 %v1444, %v1449
  %v1451 = vadd.f32 %v1427, %v1450
  %v1452 = vmul.f32 %v1227, %v250
  %v1453 = vmul.f32 %v1241, %v255
  %v1454 = vadd.f32 %v1452, %v1453
  %v1455 = vmul.f32 %v1255, %v261
  %v1456 = vadd.f32 %v1454, %v1455
  %v1457 = vmul.f32 %v1269, %v267
  %v1458 = vadd.f32 %v1456, %v1457
  %s1459 = scalar_lea.vmem %s1, 24
  %v1460 = vld [vmem:[%s1459] sm:$0x1f]
  %v1461 = vadd.f32 %v1283, %v1458
  %v1462 = vlaneseq
  %v1463 = vshrl.u32 %v1462, 7
  %v1464 = vsub.s32 0, %v1463
  %v1465 = vrot.slane %v1461, %v1464
  %v1466 = vmul.f32 %v23, %v1465
  %v1467 = vlaneseq
  %v1468 = vshrl.u32 %v1467, 7
  %v1469 = vsub.s32 1, %v1468
  %v1470 = vrot.slane %v1461, %v1469
  %v1471 = vmul.f32 %v24, %v1470
  %v1472 = vadd.f32 %v1466, %v1471
  %v1473 = vlaneseq
  %v1474 = vshrl.u32 %v1473, 7
  %v1475 = vsub.s32 2, %v1474
  %v1476 = vrot.slane %v1461, %v1475
  %v1477 = vmul.f32 %v25, %v1476
  %v1478 = vadd.f32 %v1472, %v1477
  %v1479 = vlaneseq
  %v1480 = vshrl.u32 %v1479, 7
  %v1481 = vsub.s32 3, %v1480
  %v1482 = vrot.slane %v1461, %v1481
  %v1483 = vmul.f32 %v26, %v1482
  %v1484 = vadd.f32 %v1478, %v1483
  %v1485 = vadd.f32 %v1460, %v1484
  %v1487 = vrot.slane %v1347, 4
  %v1490 = vrot.slane %v1373, 3
  %v1493 = vrot.slane %v1399, 2
  %v1496 = vrot.slane %v1425, 1
  %v1498 = vsel %vm37, %v1487, %v1490
  %v1499 = vsel %vm39, %v1498, %v1493
  %v1500 = vsel %vm41, %v1499, %v1496
  %v1501 = vrcp.pop %v1451
  %v1502 = vlaneseq
  %v1503 = vshrl.u32 %v1502, 7
  %v1504 = vsub.s32 4, %v1503
  %v1505 = vrot.slane %v1501, %v1504
  %v1506 = vmul.f32 %v1500, %v1505
  %v1507 = vsub.f32 0.0, %v1506
  %v1508 = vmul.f32 %v1485, %v1501
  %v1509 = vsub.f32 0.0, %v1508
  %v1510 = vlaneseq
  %v1511 = vshrl.u32 %v1510, 7
  %v1512 = vsub.s32 4, %v1511
  %v1513 = vrot.slane %v1451, %v1512
  %v1514 = vmul.f32 %v1507, %v1513
  %v1515 = vlaneseq
  %v1516 = vshrl.u32 %v1515, 7
  %v1517 = vsub.s32 0, %v1516
  %v1518 = vrot.slane %v1507, %v1517
  %v1519 = vmul.f32 %v1451, %v1518
  %v1520 = vadd.f32 %v1347, %v1519
  %v1521 = vlaneseq
  %v1522 = vshrl.u32 %v1521, 7
  %v1523 = vsub.s32 0, %v1522
  %v1524 = vrot.slane %v1500, %v1523
  %v1525 = vmul.f32 %v1507, %v1524
  %v1526 = vadd.f32 %v1520, %v1525
  %v1527 = vmul.f32 %v1514, %v1518
  %v1528 = vadd.f32 %v1526, %v1527
  %v1529 = vlaneseq
  %v1530 = vshrl.u32 %v1529, 7
  %v1531 = vsub.s32 1, %v1530
  %v1532 = vrot.slane %v1507, %v1531
  %v1533 = vmul.f32 %v1451, %v1532
  %v1534 = vadd.f32 %v1373, %v1533
  %v1535 = vlaneseq
  %v1536 = vshrl.u32 %v1535, 7
  %v1537 = vsub.s32 1, %v1536
  %v1538 = vrot.slane %v1500, %v1537
  %v1539 = vmul.f32 %v1507, %v1538
  %v1540 = vadd.f32 %v1534, %v1539
  %v1541 = vmul.f32 %v1514, %v1532
  %v1542 = vadd.f32 %v1540, %v1541
  %v1543 = vlaneseq
  %v1544 = vshrl.u32 %v1543, 7
  %v1545 = vsub.s32 2, %v1544
  %v1546 = vrot.slane %v1507, %v1545
  %v1547 = vmul.f32 %v1451, %v1546
  %v1548 = vadd.f32 %v1399, %v1547
  %v1549 = vlaneseq
  %v1550 = vshrl.u32 %v1549, 7
  %v1551 = vsub.s32 2, %v1550
  %v1552 = vrot.slane %v1500, %v1551
  %v1553 = vmul.f32 %v1507, %v1552
  %v1554 = vadd.f32 %v1548, %v1553
  %v1555 = vmul.f32 %v1514, %v1546
  %v1556 = vadd.f32 %v1554, %v1555
  %v1557 = vlaneseq
  %v1558 = vshrl.u32 %v1557, 7
  %v1559 = vsub.s32 3, %v1558
  %v1560 = vrot.slane %v1507, %v1559
  %v1561 = vmul.f32 %v1451, %v1560
  %v1562 = vadd.f32 %v1425, %v1561
  %v1563 = vlaneseq
  %v1564 = vshrl.u32 %v1563, 7
  %v1565 = vsub.s32 3, %v1564
  %v1566 = vrot.slane %v1500, %v1565
  %v1567 = vmul.f32 %v1507, %v1566
  %v1568 = vadd.f32 %v1562, %v1567
  %v1569 = vmul.f32 %v1514, %v1560
  %v1570 = vadd.f32 %v1568, %v1569
  %v1571 = vlaneseq
  %v1572 = vshrl.u32 %v1571, 7
  %v1573 = vsub.s32 4, %v1572
  %v1574 = vrot.slane %v1509, %v1573
  %v1575 = vmul.f32 %v1451, %v1574
  %v1576 = vadd.f32 %v1485, %v1575
  %v1577 = vlaneseq
  %v1578 = vshrl.u32 %v1577, 7
  %v1579 = vsub.s32 4, %v1578
  %v1580 = vrot.slane %v1485, %v1579
  %v1581 = vmul.f32 %v1507, %v1580
  %v1582 = vadd.f32 %v1576, %v1581
  %v1583 = vmul.f32 %v1514, %v1574
  %v1584 = vadd.f32 %v1582, %v1583
  %v1585 = vsel %vm380, %v1507, %v1509
  %s1586 = scalar_lea.vmem [#allocation2], 24
  %1587 = vst [vmem:[%s1586] sm:$0x1f] %v1585
  %v1588 = vmul.f32 %v1528, %v85
  %v1589 = vmul.f32 %v1542, %v90
  %v1590 = vadd.f32 %v1588, %v1589
  %v1591 = vmul.f32 %v1556, %v96
  %v1592 = vadd.f32 %v1590, %v1591
  %v1593 = vmul.f32 %v1570, %v102
  %v1594 = vadd.f32 %v1592, %v1593
  %v1595 = vmul.f32 %v1528, %v108
  %v1596 = vmul.f32 %v1542, %v113
  %v1597 = vadd.f32 %v1595, %v1596
  %v1598 = vmul.f32 %v1556, %v119
  %v1599 = vadd.f32 %v1597, %v1598
  %v1600 = vmul.f32 %v1570, %v125
  %v1601 = vadd.f32 %v1599, %v1600
  %v1602 = vmul.f32 %v1528, %v131
  %v1603 = vmul.f32 %v1542, %v136
  %v1604 = vadd.f32 %v1602, %v1603
  %v1605 = vmul.f32 %v1556, %v142
  %v1606 = vadd.f32 %v1604, %v1605
  %v1607 = vmul.f32 %v1570, %v148
  %v1608 = vadd.f32 %v1606, %v1607
  %v1609 = vmul.f32 %v1528, %v154
  %v1610 = vmul.f32 %v1542, %v159
  %v1611 = vadd.f32 %v1609, %v1610
  %v1612 = vmul.f32 %v1556, %v165
  %v1613 = vadd.f32 %v1611, %v1612
  %v1614 = vmul.f32 %v1570, %v171
  %v1615 = vadd.f32 %v1613, %v1614
  %v1616 = vmul.f32 %v1528, %v177
  %v1617 = vmul.f32 %v1542, %v182
  %v1618 = vadd.f32 %v1616, %v1617
  %v1619 = vmul.f32 %v1556, %v188
  %v1620 = vadd.f32 %v1618, %v1619
  %v1621 = vmul.f32 %v1570, %v194
  %v1622 = vadd.f32 %v1620, %v1621
  %s1623 = scalar_lea.vmem %s0, 80
  %v1624 = vld [vmem:[%s1623] sm:$0x1f]
  %v1625 = vlaneseq
  %v1626 = vshrl.u32 %v1625, 7
  %v1627 = vsub.s32 0, %v1626
  %v1628 = vrot.slane %v1594, %v1627
  %v1629 = vmul.f32 %v23, %v1628
  %v1630 = vlaneseq
  %v1631 = vshrl.u32 %v1630, 7
  %v1632 = vsub.s32 1, %v1631
  %v1633 = vrot.slane %v1594, %v1632
  %v1634 = vmul.f32 %v24, %v1633
  %v1635 = vadd.f32 %v1629, %v1634
  %v1636 = vlaneseq
  %v1637 = vshrl.u32 %v1636, 7
  %v1638 = vsub.s32 2, %v1637
  %v1639 = vrot.slane %v1594, %v1638
  %v1640 = vmul.f32 %v25, %v1639
  %v1641 = vadd.f32 %v1635, %v1640
  %v1642 = vlaneseq
  %v1643 = vshrl.u32 %v1642, 7
  %v1644 = vsub.s32 3, %v1643
  %v1645 = vrot.slane %v1594, %v1644
  %v1646 = vmul.f32 %v26, %v1645
  %v1647 = vadd.f32 %v1641, %v1646
  %v1648 = vadd.f32 %v1624, %v1647
  %s1649 = scalar_lea.vmem %s0, 88
  %v1650 = vld [vmem:[%s1649] sm:$0x1f]
  %v1651 = vlaneseq
  %v1652 = vshrl.u32 %v1651, 7
  %v1653 = vsub.s32 0, %v1652
  %v1654 = vrot.slane %v1601, %v1653
  %v1655 = vmul.f32 %v23, %v1654
  %v1656 = vlaneseq
  %v1657 = vshrl.u32 %v1656, 7
  %v1658 = vsub.s32 1, %v1657
  %v1659 = vrot.slane %v1601, %v1658
  %v1660 = vmul.f32 %v24, %v1659
  %v1661 = vadd.f32 %v1655, %v1660
  %v1662 = vlaneseq
  %v1663 = vshrl.u32 %v1662, 7
  %v1664 = vsub.s32 2, %v1663
  %v1665 = vrot.slane %v1601, %v1664
  %v1666 = vmul.f32 %v25, %v1665
  %v1667 = vadd.f32 %v1661, %v1666
  %v1668 = vlaneseq
  %v1669 = vshrl.u32 %v1668, 7
  %v1670 = vsub.s32 3, %v1669
  %v1671 = vrot.slane %v1601, %v1670
  %v1672 = vmul.f32 %v26, %v1671
  %v1673 = vadd.f32 %v1667, %v1672
  %v1674 = vadd.f32 %v1650, %v1673
  %s1675 = scalar_lea.vmem %s0, 96
  %v1676 = vld [vmem:[%s1675] sm:$0x1f]
  %v1677 = vlaneseq
  %v1678 = vshrl.u32 %v1677, 7
  %v1679 = vsub.s32 0, %v1678
  %v1680 = vrot.slane %v1608, %v1679
  %v1681 = vmul.f32 %v23, %v1680
  %v1682 = vlaneseq
  %v1683 = vshrl.u32 %v1682, 7
  %v1684 = vsub.s32 1, %v1683
  %v1685 = vrot.slane %v1608, %v1684
  %v1686 = vmul.f32 %v24, %v1685
  %v1687 = vadd.f32 %v1681, %v1686
  %v1688 = vlaneseq
  %v1689 = vshrl.u32 %v1688, 7
  %v1690 = vsub.s32 2, %v1689
  %v1691 = vrot.slane %v1608, %v1690
  %v1692 = vmul.f32 %v25, %v1691
  %v1693 = vadd.f32 %v1687, %v1692
  %v1694 = vlaneseq
  %v1695 = vshrl.u32 %v1694, 7
  %v1696 = vsub.s32 3, %v1695
  %v1697 = vrot.slane %v1608, %v1696
  %v1698 = vmul.f32 %v26, %v1697
  %v1699 = vadd.f32 %v1693, %v1698
  %v1700 = vadd.f32 %v1676, %v1699
  %s1701 = scalar_lea.vmem %s0, 104
  %v1702 = vld [vmem:[%s1701] sm:$0x1f]
  %v1703 = vlaneseq
  %v1704 = vshrl.u32 %v1703, 7
  %v1705 = vsub.s32 0, %v1704
  %v1706 = vrot.slane %v1615, %v1705
  %v1707 = vmul.f32 %v23, %v1706
  %v1708 = vlaneseq
  %v1709 = vshrl.u32 %v1708, 7
  %v1710 = vsub.s32 1, %v1709
  %v1711 = vrot.slane %v1615, %v1710
  %v1712 = vmul.f32 %v24, %v1711
  %v1713 = vadd.f32 %v1707, %v1712
  %v1714 = vlaneseq
  %v1715 = vshrl.u32 %v1714, 7
  %v1716 = vsub.s32 2, %v1715
  %v1717 = vrot.slane %v1615, %v1716
  %v1718 = vmul.f32 %v25, %v1717
  %v1719 = vadd.f32 %v1713, %v1718
  %v1720 = vlaneseq
  %v1721 = vshrl.u32 %v1720, 7
  %v1722 = vsub.s32 3, %v1721
  %v1723 = vrot.slane %v1615, %v1722
  %v1724 = vmul.f32 %v26, %v1723
  %v1725 = vadd.f32 %v1719, %v1724
  %v1726 = vadd.f32 %v1702, %v1725
  %s1727 = scalar_lea.vmem %s0, 112
  %v1728 = vld [vmem:[%s1727] sm:$0x1f]
  %v1729 = vlaneseq
  %v1730 = vshrl.u32 %v1729, 7
  %v1731 = vsub.s32 0, %v1730
  %v1732 = vrot.slane %v1622, %v1731
  %v1733 = vmul.f32 %v23, %v1732
  %v1734 = vlaneseq
  %v1735 = vshrl.u32 %v1734, 7
  %v1736 = vsub.s32 1, %v1735
  %v1737 = vrot.slane %v1622, %v1736
  %v1738 = vmul.f32 %v24, %v1737
  %v1739 = vadd.f32 %v1733, %v1738
  %v1740 = vlaneseq
  %v1741 = vshrl.u32 %v1740, 7
  %v1742 = vsub.s32 2, %v1741
  %v1743 = vrot.slane %v1622, %v1742
  %v1744 = vmul.f32 %v25, %v1743
  %v1745 = vadd.f32 %v1739, %v1744
  %v1746 = vlaneseq
  %v1747 = vshrl.u32 %v1746, 7
  %v1748 = vsub.s32 3, %v1747
  %v1749 = vrot.slane %v1622, %v1748
  %v1750 = vmul.f32 %v26, %v1749
  %v1751 = vadd.f32 %v1745, %v1750
  %v1752 = vadd.f32 %v1728, %v1751
  %v1753 = vmul.f32 %v1528, %v250
  %v1754 = vmul.f32 %v1542, %v255
  %v1755 = vadd.f32 %v1753, %v1754
  %v1756 = vmul.f32 %v1556, %v261
  %v1757 = vadd.f32 %v1755, %v1756
  %v1758 = vmul.f32 %v1570, %v267
  %v1759 = vadd.f32 %v1757, %v1758
  %s1760 = scalar_lea.vmem %s1, 16
  %v1761 = vld [vmem:[%s1760] sm:$0x1f]
  %v1762 = vadd.f32 %v1584, %v1759
  %v1763 = vlaneseq
  %v1764 = vshrl.u32 %v1763, 7
  %v1765 = vsub.s32 0, %v1764
  %v1766 = vrot.slane %v1762, %v1765
  %v1767 = vmul.f32 %v23, %v1766
  %v1768 = vlaneseq
  %v1769 = vshrl.u32 %v1768, 7
  %v1770 = vsub.s32 1, %v1769
  %v1771 = vrot.slane %v1762, %v1770
  %v1772 = vmul.f32 %v24, %v1771
  %v1773 = vadd.f32 %v1767, %v1772
  %v1774 = vlaneseq
  %v1775 = vshrl.u32 %v1774, 7
  %v1776 = vsub.s32 2, %v1775
  %v1777 = vrot.slane %v1762, %v1776
  %v1778 = vmul.f32 %v25, %v1777
  %v1779 = vadd.f32 %v1773, %v1778
  %v1780 = vlaneseq
  %v1781 = vshrl.u32 %v1780, 7
  %v1782 = vsub.s32 3, %v1781
  %v1783 = vrot.slane %v1762, %v1782
  %v1784 = vmul.f32 %v26, %v1783
  %v1785 = vadd.f32 %v1779, %v1784
  %v1786 = vadd.f32 %v1761, %v1785
  %v1788 = vrot.slane %v1648, 4
  %v1791 = vrot.slane %v1674, 3
  %v1794 = vrot.slane %v1700, 2
  %v1797 = vrot.slane %v1726, 1
  %v1799 = vsel %vm37, %v1788, %v1791
  %v1800 = vsel %vm39, %v1799, %v1794
  %v1801 = vsel %vm41, %v1800, %v1797
  %v1802 = vrcp.pop %v1752
  %v1803 = vlaneseq
  %v1804 = vshrl.u32 %v1803, 7
  %v1805 = vsub.s32 4, %v1804
  %v1806 = vrot.slane %v1802, %v1805
  %v1807 = vmul.f32 %v1801, %v1806
  %v1808 = vsub.f32 0.0, %v1807
  %v1809 = vmul.f32 %v1786, %v1802
  %v1810 = vsub.f32 0.0, %v1809
  %v1811 = vlaneseq
  %v1812 = vshrl.u32 %v1811, 7
  %v1813 = vsub.s32 4, %v1812
  %v1814 = vrot.slane %v1752, %v1813
  %v1815 = vmul.f32 %v1808, %v1814
  %v1816 = vlaneseq
  %v1817 = vshrl.u32 %v1816, 7
  %v1818 = vsub.s32 0, %v1817
  %v1819 = vrot.slane %v1808, %v1818
  %v1820 = vmul.f32 %v1752, %v1819
  %v1821 = vadd.f32 %v1648, %v1820
  %v1822 = vlaneseq
  %v1823 = vshrl.u32 %v1822, 7
  %v1824 = vsub.s32 0, %v1823
  %v1825 = vrot.slane %v1801, %v1824
  %v1826 = vmul.f32 %v1808, %v1825
  %v1827 = vadd.f32 %v1821, %v1826
  %v1828 = vmul.f32 %v1815, %v1819
  %v1829 = vadd.f32 %v1827, %v1828
  %v1830 = vlaneseq
  %v1831 = vshrl.u32 %v1830, 7
  %v1832 = vsub.s32 1, %v1831
  %v1833 = vrot.slane %v1808, %v1832
  %v1834 = vmul.f32 %v1752, %v1833
  %v1835 = vadd.f32 %v1674, %v1834
  %v1836 = vlaneseq
  %v1837 = vshrl.u32 %v1836, 7
  %v1838 = vsub.s32 1, %v1837
  %v1839 = vrot.slane %v1801, %v1838
  %v1840 = vmul.f32 %v1808, %v1839
  %v1841 = vadd.f32 %v1835, %v1840
  %v1842 = vmul.f32 %v1815, %v1833
  %v1843 = vadd.f32 %v1841, %v1842
  %v1844 = vlaneseq
  %v1845 = vshrl.u32 %v1844, 7
  %v1846 = vsub.s32 2, %v1845
  %v1847 = vrot.slane %v1808, %v1846
  %v1848 = vmul.f32 %v1752, %v1847
  %v1849 = vadd.f32 %v1700, %v1848
  %v1850 = vlaneseq
  %v1851 = vshrl.u32 %v1850, 7
  %v1852 = vsub.s32 2, %v1851
  %v1853 = vrot.slane %v1801, %v1852
  %v1854 = vmul.f32 %v1808, %v1853
  %v1855 = vadd.f32 %v1849, %v1854
  %v1856 = vmul.f32 %v1815, %v1847
  %v1857 = vadd.f32 %v1855, %v1856
  %v1858 = vlaneseq
  %v1859 = vshrl.u32 %v1858, 7
  %v1860 = vsub.s32 3, %v1859
  %v1861 = vrot.slane %v1808, %v1860
  %v1862 = vmul.f32 %v1752, %v1861
  %v1863 = vadd.f32 %v1726, %v1862
  %v1864 = vlaneseq
  %v1865 = vshrl.u32 %v1864, 7
  %v1866 = vsub.s32 3, %v1865
  %v1867 = vrot.slane %v1801, %v1866
  %v1868 = vmul.f32 %v1808, %v1867
  %v1869 = vadd.f32 %v1863, %v1868
  %v1870 = vmul.f32 %v1815, %v1861
  %v1871 = vadd.f32 %v1869, %v1870
  %v1872 = vlaneseq
  %v1873 = vshrl.u32 %v1872, 7
  %v1874 = vsub.s32 4, %v1873
  %v1875 = vrot.slane %v1810, %v1874
  %v1876 = vmul.f32 %v1752, %v1875
  %v1877 = vadd.f32 %v1786, %v1876
  %v1878 = vlaneseq
  %v1879 = vshrl.u32 %v1878, 7
  %v1880 = vsub.s32 4, %v1879
  %v1881 = vrot.slane %v1786, %v1880
  %v1882 = vmul.f32 %v1808, %v1881
  %v1883 = vadd.f32 %v1877, %v1882
  %v1884 = vmul.f32 %v1815, %v1875
  %v1885 = vadd.f32 %v1883, %v1884
  %v1886 = vsel %vm380, %v1808, %v1810
  %s1887 = scalar_lea.vmem [#allocation2], 16
  %1888 = vst [vmem:[%s1887] sm:$0x1f] %v1886
  %v1889 = vmul.f32 %v1829, %v85
  %v1890 = vmul.f32 %v1843, %v90
  %v1891 = vadd.f32 %v1889, %v1890
  %v1892 = vmul.f32 %v1857, %v96
  %v1893 = vadd.f32 %v1891, %v1892
  %v1894 = vmul.f32 %v1871, %v102
  %v1895 = vadd.f32 %v1893, %v1894
  %v1896 = vmul.f32 %v1829, %v108
  %v1897 = vmul.f32 %v1843, %v113
  %v1898 = vadd.f32 %v1896, %v1897
  %v1899 = vmul.f32 %v1857, %v119
  %v1900 = vadd.f32 %v1898, %v1899
  %v1901 = vmul.f32 %v1871, %v125
  %v1902 = vadd.f32 %v1900, %v1901
  %v1903 = vmul.f32 %v1829, %v131
  %v1904 = vmul.f32 %v1843, %v136
  %v1905 = vadd.f32 %v1903, %v1904
  %v1906 = vmul.f32 %v1857, %v142
  %v1907 = vadd.f32 %v1905, %v1906
  %v1908 = vmul.f32 %v1871, %v148
  %v1909 = vadd.f32 %v1907, %v1908
  %v1910 = vmul.f32 %v1829, %v154
  %v1911 = vmul.f32 %v1843, %v159
  %v1912 = vadd.f32 %v1910, %v1911
  %v1913 = vmul.f32 %v1857, %v165
  %v1914 = vadd.f32 %v1912, %v1913
  %v1915 = vmul.f32 %v1871, %v171
  %v1916 = vadd.f32 %v1914, %v1915
  %v1917 = vmul.f32 %v1829, %v177
  %v1918 = vmul.f32 %v1843, %v182
  %v1919 = vadd.f32 %v1917, %v1918
  %v1920 = vmul.f32 %v1857, %v188
  %v1921 = vadd.f32 %v1919, %v1920
  %v1922 = vmul.f32 %v1871, %v194
  %v1923 = vadd.f32 %v1921, %v1922
  %s1924 = scalar_lea.vmem %s0, 40
  %v1925 = vld [vmem:[%s1924] sm:$0x1f]
  %v1926 = vlaneseq
  %v1927 = vshrl.u32 %v1926, 7
  %v1928 = vsub.s32 0, %v1927
  %v1929 = vrot.slane %v1895, %v1928
  %v1930 = vmul.f32 %v23, %v1929
  %v1931 = vlaneseq
  %v1932 = vshrl.u32 %v1931, 7
  %v1933 = vsub.s32 1, %v1932
  %v1934 = vrot.slane %v1895, %v1933
  %v1935 = vmul.f32 %v24, %v1934
  %v1936 = vadd.f32 %v1930, %v1935
  %v1937 = vlaneseq
  %v1938 = vshrl.u32 %v1937, 7
  %v1939 = vsub.s32 2, %v1938
  %v1940 = vrot.slane %v1895, %v1939
  %v1941 = vmul.f32 %v25, %v1940
  %v1942 = vadd.f32 %v1936, %v1941
  %v1943 = vlaneseq
  %v1944 = vshrl.u32 %v1943, 7
  %v1945 = vsub.s32 3, %v1944
  %v1946 = vrot.slane %v1895, %v1945
  %v1947 = vmul.f32 %v26, %v1946
  %v1948 = vadd.f32 %v1942, %v1947
  %v1949 = vadd.f32 %v1925, %v1948
  %s1950 = scalar_lea.vmem %s0, 48
  %v1951 = vld [vmem:[%s1950] sm:$0x1f]
  %v1952 = vlaneseq
  %v1953 = vshrl.u32 %v1952, 7
  %v1954 = vsub.s32 0, %v1953
  %v1955 = vrot.slane %v1902, %v1954
  %v1956 = vmul.f32 %v23, %v1955
  %v1957 = vlaneseq
  %v1958 = vshrl.u32 %v1957, 7
  %v1959 = vsub.s32 1, %v1958
  %v1960 = vrot.slane %v1902, %v1959
  %v1961 = vmul.f32 %v24, %v1960
  %v1962 = vadd.f32 %v1956, %v1961
  %v1963 = vlaneseq
  %v1964 = vshrl.u32 %v1963, 7
  %v1965 = vsub.s32 2, %v1964
  %v1966 = vrot.slane %v1902, %v1965
  %v1967 = vmul.f32 %v25, %v1966
  %v1968 = vadd.f32 %v1962, %v1967
  %v1969 = vlaneseq
  %v1970 = vshrl.u32 %v1969, 7
  %v1971 = vsub.s32 3, %v1970
  %v1972 = vrot.slane %v1902, %v1971
  %v1973 = vmul.f32 %v26, %v1972
  %v1974 = vadd.f32 %v1968, %v1973
  %v1975 = vadd.f32 %v1951, %v1974
  %s1976 = scalar_lea.vmem %s0, 56
  %v1977 = vld [vmem:[%s1976] sm:$0x1f]
  %v1978 = vlaneseq
  %v1979 = vshrl.u32 %v1978, 7
  %v1980 = vsub.s32 0, %v1979
  %v1981 = vrot.slane %v1909, %v1980
  %v1982 = vmul.f32 %v23, %v1981
  %v1983 = vlaneseq
  %v1984 = vshrl.u32 %v1983, 7
  %v1985 = vsub.s32 1, %v1984
  %v1986 = vrot.slane %v1909, %v1985
  %v1987 = vmul.f32 %v24, %v1986
  %v1988 = vadd.f32 %v1982, %v1987
  %v1989 = vlaneseq
  %v1990 = vshrl.u32 %v1989, 7
  %v1991 = vsub.s32 2, %v1990
  %v1992 = vrot.slane %v1909, %v1991
  %v1993 = vmul.f32 %v25, %v1992
  %v1994 = vadd.f32 %v1988, %v1993
  %v1995 = vlaneseq
  %v1996 = vshrl.u32 %v1995, 7
  %v1997 = vsub.s32 3, %v1996
  %v1998 = vrot.slane %v1909, %v1997
  %v1999 = vmul.f32 %v26, %v1998
  %v2000 = vadd.f32 %v1994, %v1999
  %v2001 = vadd.f32 %v1977, %v2000
  %s2002 = scalar_lea.vmem %s0, 64
  %v2003 = vld [vmem:[%s2002] sm:$0x1f]
  %v2004 = vlaneseq
  %v2005 = vshrl.u32 %v2004, 7
  %v2006 = vsub.s32 0, %v2005
  %v2007 = vrot.slane %v1916, %v2006
  %v2008 = vmul.f32 %v23, %v2007
  %v2009 = vlaneseq
  %v2010 = vshrl.u32 %v2009, 7
  %v2011 = vsub.s32 1, %v2010
  %v2012 = vrot.slane %v1916, %v2011
  %v2013 = vmul.f32 %v24, %v2012
  %v2014 = vadd.f32 %v2008, %v2013
  %v2015 = vlaneseq
  %v2016 = vshrl.u32 %v2015, 7
  %v2017 = vsub.s32 2, %v2016
  %v2018 = vrot.slane %v1916, %v2017
  %v2019 = vmul.f32 %v25, %v2018
  %v2020 = vadd.f32 %v2014, %v2019
  %v2021 = vlaneseq
  %v2022 = vshrl.u32 %v2021, 7
  %v2023 = vsub.s32 3, %v2022
  %v2024 = vrot.slane %v1916, %v2023
  %v2025 = vmul.f32 %v26, %v2024
  %v2026 = vadd.f32 %v2020, %v2025
  %v2027 = vadd.f32 %v2003, %v2026
  %s2028 = scalar_lea.vmem %s0, 72
  %v2029 = vld [vmem:[%s2028] sm:$0x1f]
  %v2030 = vlaneseq
  %v2031 = vshrl.u32 %v2030, 7
  %v2032 = vsub.s32 0, %v2031
  %v2033 = vrot.slane %v1923, %v2032
  %v2034 = vmul.f32 %v23, %v2033
  %v2035 = vlaneseq
  %v2036 = vshrl.u32 %v2035, 7
  %v2037 = vsub.s32 1, %v2036
  %v2038 = vrot.slane %v1923, %v2037
  %v2039 = vmul.f32 %v24, %v2038
  %v2040 = vadd.f32 %v2034, %v2039
  %v2041 = vlaneseq
  %v2042 = vshrl.u32 %v2041, 7
  %v2043 = vsub.s32 2, %v2042
  %v2044 = vrot.slane %v1923, %v2043
  %v2045 = vmul.f32 %v25, %v2044
  %v2046 = vadd.f32 %v2040, %v2045
  %v2047 = vlaneseq
  %v2048 = vshrl.u32 %v2047, 7
  %v2049 = vsub.s32 3, %v2048
  %v2050 = vrot.slane %v1923, %v2049
  %v2051 = vmul.f32 %v26, %v2050
  %v2052 = vadd.f32 %v2046, %v2051
  %v2053 = vadd.f32 %v2029, %v2052
  %v2054 = vmul.f32 %v1829, %v250
  %v2055 = vmul.f32 %v1843, %v255
  %v2056 = vadd.f32 %v2054, %v2055
  %v2057 = vmul.f32 %v1857, %v261
  %v2058 = vadd.f32 %v2056, %v2057
  %v2059 = vmul.f32 %v1871, %v267
  %v2060 = vadd.f32 %v2058, %v2059
  %s2061 = scalar_lea.vmem %s1, 8
  %v2062 = vld [vmem:[%s2061] sm:$0x1f]
  %v2063 = vadd.f32 %v1885, %v2060
  %v2064 = vlaneseq
  %v2065 = vshrl.u32 %v2064, 7
  %v2066 = vsub.s32 0, %v2065
  %v2067 = vrot.slane %v2063, %v2066
  %v2068 = vmul.f32 %v23, %v2067
  %v2069 = vlaneseq
  %v2070 = vshrl.u32 %v2069, 7
  %v2071 = vsub.s32 1, %v2070
  %v2072 = vrot.slane %v2063, %v2071
  %v2073 = vmul.f32 %v24, %v2072
  %v2074 = vadd.f32 %v2068, %v2073
  %v2075 = vlaneseq
  %v2076 = vshrl.u32 %v2075, 7
  %v2077 = vsub.s32 2, %v2076
  %v2078 = vrot.slane %v2063, %v2077
  %v2079 = vmul.f32 %v25, %v2078
  %v2080 = vadd.f32 %v2074, %v2079
  %v2081 = vlaneseq
  %v2082 = vshrl.u32 %v2081, 7
  %v2083 = vsub.s32 3, %v2082
  %v2084 = vrot.slane %v2063, %v2083
  %v2085 = vmul.f32 %v26, %v2084
  %v2086 = vadd.f32 %v2080, %v2085
  %v2087 = vadd.f32 %v2062, %v2086
  %v2089 = vrot.slane %v1949, 4
  %v2092 = vrot.slane %v1975, 3
  %v2095 = vrot.slane %v2001, 2
  %v2098 = vrot.slane %v2027, 1
  %v2100 = vsel %vm37, %v2089, %v2092
  %v2101 = vsel %vm39, %v2100, %v2095
  %v2102 = vsel %vm41, %v2101, %v2098
  %v2103 = vrcp.pop %v2053
  %v2104 = vlaneseq
  %v2105 = vshrl.u32 %v2104, 7
  %v2106 = vsub.s32 4, %v2105
  %v2107 = vrot.slane %v2103, %v2106
  %v2108 = vmul.f32 %v2102, %v2107
  %v2109 = vsub.f32 0.0, %v2108
  %v2110 = vmul.f32 %v2087, %v2103
  %v2111 = vsub.f32 0.0, %v2110
  %v2112 = vlaneseq
  %v2113 = vshrl.u32 %v2112, 7
  %v2114 = vsub.s32 4, %v2113
  %v2115 = vrot.slane %v2053, %v2114
  %v2116 = vmul.f32 %v2109, %v2115
  %v2117 = vlaneseq
  %v2118 = vshrl.u32 %v2117, 7
  %v2119 = vsub.s32 0, %v2118
  %v2120 = vrot.slane %v2109, %v2119
  %v2121 = vmul.f32 %v2053, %v2120
  %v2122 = vadd.f32 %v1949, %v2121
  %v2123 = vlaneseq
  %v2124 = vshrl.u32 %v2123, 7
  %v2125 = vsub.s32 0, %v2124
  %v2126 = vrot.slane %v2102, %v2125
  %v2127 = vmul.f32 %v2109, %v2126
  %v2128 = vadd.f32 %v2122, %v2127
  %v2129 = vmul.f32 %v2116, %v2120
  %v2130 = vadd.f32 %v2128, %v2129
  %v2131 = vlaneseq
  %v2132 = vshrl.u32 %v2131, 7
  %v2133 = vsub.s32 1, %v2132
  %v2134 = vrot.slane %v2109, %v2133
  %v2135 = vmul.f32 %v2053, %v2134
  %v2136 = vadd.f32 %v1975, %v2135
  %v2137 = vlaneseq
  %v2138 = vshrl.u32 %v2137, 7
  %v2139 = vsub.s32 1, %v2138
  %v2140 = vrot.slane %v2102, %v2139
  %v2141 = vmul.f32 %v2109, %v2140
  %v2142 = vadd.f32 %v2136, %v2141
  %v2143 = vmul.f32 %v2116, %v2134
  %v2144 = vadd.f32 %v2142, %v2143
  %v2145 = vlaneseq
  %v2146 = vshrl.u32 %v2145, 7
  %v2147 = vsub.s32 2, %v2146
  %v2148 = vrot.slane %v2109, %v2147
  %v2149 = vmul.f32 %v2053, %v2148
  %v2150 = vadd.f32 %v2001, %v2149
  %v2151 = vlaneseq
  %v2152 = vshrl.u32 %v2151, 7
  %v2153 = vsub.s32 2, %v2152
  %v2154 = vrot.slane %v2102, %v2153
  %v2155 = vmul.f32 %v2109, %v2154
  %v2156 = vadd.f32 %v2150, %v2155
  %v2157 = vmul.f32 %v2116, %v2148
  %v2158 = vadd.f32 %v2156, %v2157
  %v2159 = vlaneseq
  %v2160 = vshrl.u32 %v2159, 7
  %v2161 = vsub.s32 3, %v2160
  %v2162 = vrot.slane %v2109, %v2161
  %v2163 = vmul.f32 %v2053, %v2162
  %v2164 = vadd.f32 %v2027, %v2163
  %v2165 = vlaneseq
  %v2166 = vshrl.u32 %v2165, 7
  %v2167 = vsub.s32 3, %v2166
  %v2168 = vrot.slane %v2102, %v2167
  %v2169 = vmul.f32 %v2109, %v2168
  %v2170 = vadd.f32 %v2164, %v2169
  %v2171 = vmul.f32 %v2116, %v2162
  %v2172 = vadd.f32 %v2170, %v2171
  %v2173 = vlaneseq
  %v2174 = vshrl.u32 %v2173, 7
  %v2175 = vsub.s32 4, %v2174
  %v2176 = vrot.slane %v2111, %v2175
  %v2177 = vmul.f32 %v2053, %v2176
  %v2178 = vadd.f32 %v2087, %v2177
  %v2179 = vlaneseq
  %v2180 = vshrl.u32 %v2179, 7
  %v2181 = vsub.s32 4, %v2180
  %v2182 = vrot.slane %v2087, %v2181
  %v2183 = vmul.f32 %v2109, %v2182
  %v2184 = vadd.f32 %v2178, %v2183
  %v2185 = vmul.f32 %v2116, %v2176
  %v2186 = vadd.f32 %v2184, %v2185
  %v2187 = vsel %vm380, %v2109, %v2111
  %s2188 = scalar_lea.vmem [#allocation2], 8
  %2189 = vst [vmem:[%s2188] sm:$0x1f] %v2187
  %v2190 = vmul.f32 %v2130, %v85
  %v2191 = vmul.f32 %v2144, %v90
  %v2192 = vadd.f32 %v2190, %v2191
  %v2193 = vmul.f32 %v2158, %v96
  %v2194 = vadd.f32 %v2192, %v2193
  %v2195 = vmul.f32 %v2172, %v102
  %v2196 = vadd.f32 %v2194, %v2195
  %v2197 = vmul.f32 %v2130, %v108
  %v2198 = vmul.f32 %v2144, %v113
  %v2199 = vadd.f32 %v2197, %v2198
  %v2200 = vmul.f32 %v2158, %v119
  %v2201 = vadd.f32 %v2199, %v2200
  %v2202 = vmul.f32 %v2172, %v125
  %v2203 = vadd.f32 %v2201, %v2202
  %v2204 = vmul.f32 %v2130, %v131
  %v2205 = vmul.f32 %v2144, %v136
  %v2206 = vadd.f32 %v2204, %v2205
  %v2207 = vmul.f32 %v2158, %v142
  %v2208 = vadd.f32 %v2206, %v2207
  %v2209 = vmul.f32 %v2172, %v148
  %v2210 = vadd.f32 %v2208, %v2209
  %v2211 = vmul.f32 %v2130, %v154
  %v2212 = vmul.f32 %v2144, %v159
  %v2213 = vadd.f32 %v2211, %v2212
  %v2214 = vmul.f32 %v2158, %v165
  %v2215 = vadd.f32 %v2213, %v2214
  %v2216 = vmul.f32 %v2172, %v171
  %v2217 = vadd.f32 %v2215, %v2216
  %v2218 = vmul.f32 %v2130, %v177
  %v2219 = vmul.f32 %v2144, %v182
  %v2220 = vadd.f32 %v2218, %v2219
  %v2221 = vmul.f32 %v2158, %v188
  %v2222 = vadd.f32 %v2220, %v2221
  %v2223 = vmul.f32 %v2172, %v194
  %v2224 = vadd.f32 %v2222, %v2223
  %v2225 = vld [vmem:[%s0] sm:$0x1f]
  %v2226 = vlaneseq
  %v2227 = vshrl.u32 %v2226, 7
  %v2228 = vsub.s32 0, %v2227
  %v2229 = vrot.slane %v2196, %v2228
  %v2230 = vmul.f32 %v23, %v2229
  %v2231 = vlaneseq
  %v2232 = vshrl.u32 %v2231, 7
  %v2233 = vsub.s32 1, %v2232
  %v2234 = vrot.slane %v2196, %v2233
  %v2235 = vmul.f32 %v24, %v2234
  %v2236 = vadd.f32 %v2230, %v2235
  %v2237 = vlaneseq
  %v2238 = vshrl.u32 %v2237, 7
  %v2239 = vsub.s32 2, %v2238
  %v2240 = vrot.slane %v2196, %v2239
  %v2241 = vmul.f32 %v25, %v2240
  %v2242 = vadd.f32 %v2236, %v2241
  %v2243 = vlaneseq
  %v2244 = vshrl.u32 %v2243, 7
  %v2245 = vsub.s32 3, %v2244
  %v2246 = vrot.slane %v2196, %v2245
  %v2247 = vmul.f32 %v26, %v2246
  %v2248 = vadd.f32 %v2242, %v2247
  %v2249 = vadd.f32 %v2225, %v2248
  %s2250 = scalar_lea.vmem %s0, 8
  %v2251 = vld [vmem:[%s2250] sm:$0x1f]
  %v2252 = vlaneseq
  %v2253 = vshrl.u32 %v2252, 7
  %v2254 = vsub.s32 0, %v2253
  %v2255 = vrot.slane %v2203, %v2254
  %v2256 = vmul.f32 %v23, %v2255
  %v2257 = vlaneseq
  %v2258 = vshrl.u32 %v2257, 7
  %v2259 = vsub.s32 1, %v2258
  %v2260 = vrot.slane %v2203, %v2259
  %v2261 = vmul.f32 %v24, %v2260
  %v2262 = vadd.f32 %v2256, %v2261
  %v2263 = vlaneseq
  %v2264 = vshrl.u32 %v2263, 7
  %v2265 = vsub.s32 2, %v2264
  %v2266 = vrot.slane %v2203, %v2265
  %v2267 = vmul.f32 %v25, %v2266
  %v2268 = vadd.f32 %v2262, %v2267
  %v2269 = vlaneseq
  %v2270 = vshrl.u32 %v2269, 7
  %v2271 = vsub.s32 3, %v2270
  %v2272 = vrot.slane %v2203, %v2271
  %v2273 = vmul.f32 %v26, %v2272
  %v2274 = vadd.f32 %v2268, %v2273
  %v2275 = vadd.f32 %v2251, %v2274
  %s2276 = scalar_lea.vmem %s0, 16
  %v2277 = vld [vmem:[%s2276] sm:$0x1f]
  %v2278 = vlaneseq
  %v2279 = vshrl.u32 %v2278, 7
  %v2280 = vsub.s32 0, %v2279
  %v2281 = vrot.slane %v2210, %v2280
  %v2282 = vmul.f32 %v23, %v2281
  %v2283 = vlaneseq
  %v2284 = vshrl.u32 %v2283, 7
  %v2285 = vsub.s32 1, %v2284
  %v2286 = vrot.slane %v2210, %v2285
  %v2287 = vmul.f32 %v24, %v2286
  %v2288 = vadd.f32 %v2282, %v2287
  %v2289 = vlaneseq
  %v2290 = vshrl.u32 %v2289, 7
  %v2291 = vsub.s32 2, %v2290
  %v2292 = vrot.slane %v2210, %v2291
  %v2293 = vmul.f32 %v25, %v2292
  %v2294 = vadd.f32 %v2288, %v2293
  %v2295 = vlaneseq
  %v2296 = vshrl.u32 %v2295, 7
  %v2297 = vsub.s32 3, %v2296
  %v2298 = vrot.slane %v2210, %v2297
  %v2299 = vmul.f32 %v26, %v2298
  %v2300 = vadd.f32 %v2294, %v2299
  %v2301 = vadd.f32 %v2277, %v2300
  %s2302 = scalar_lea.vmem %s0, 24
  %v2303 = vld [vmem:[%s2302] sm:$0x1f]
  %v2304 = vlaneseq
  %v2305 = vshrl.u32 %v2304, 7
  %v2306 = vsub.s32 0, %v2305
  %v2307 = vrot.slane %v2217, %v2306
  %v2308 = vmul.f32 %v23, %v2307
  %v2309 = vlaneseq
  %v2310 = vshrl.u32 %v2309, 7
  %v2311 = vsub.s32 1, %v2310
  %v2312 = vrot.slane %v2217, %v2311
  %v2313 = vmul.f32 %v24, %v2312
  %v2314 = vadd.f32 %v2308, %v2313
  %v2315 = vlaneseq
  %v2316 = vshrl.u32 %v2315, 7
  %v2317 = vsub.s32 2, %v2316
  %v2318 = vrot.slane %v2217, %v2317
  %v2319 = vmul.f32 %v25, %v2318
  %v2320 = vadd.f32 %v2314, %v2319
  %v2321 = vlaneseq
  %v2322 = vshrl.u32 %v2321, 7
  %v2323 = vsub.s32 3, %v2322
  %v2324 = vrot.slane %v2217, %v2323
  %v2325 = vmul.f32 %v26, %v2324
  %v2326 = vadd.f32 %v2320, %v2325
  %v2327 = vadd.f32 %v2303, %v2326
  %s2328 = scalar_lea.vmem %s0, 32
  %v2329 = vld [vmem:[%s2328] sm:$0x1f]
  %v2330 = vlaneseq
  %v2331 = vshrl.u32 %v2330, 7
  %v2332 = vsub.s32 0, %v2331
  %v2333 = vrot.slane %v2224, %v2332
  %v2334 = vmul.f32 %v23, %v2333
  %v2335 = vlaneseq
  %v2336 = vshrl.u32 %v2335, 7
  %v2337 = vsub.s32 1, %v2336
  %v2338 = vrot.slane %v2224, %v2337
  %v2339 = vmul.f32 %v24, %v2338
  %v2340 = vadd.f32 %v2334, %v2339
  %v2341 = vlaneseq
  %v2342 = vshrl.u32 %v2341, 7
  %v2343 = vsub.s32 2, %v2342
  %v2344 = vrot.slane %v2224, %v2343
  %v2345 = vmul.f32 %v25, %v2344
  %v2346 = vadd.f32 %v2340, %v2345
  %v2347 = vlaneseq
  %v2348 = vshrl.u32 %v2347, 7
  %v2349 = vsub.s32 3, %v2348
  %v2350 = vrot.slane %v2224, %v2349
  %v2351 = vmul.f32 %v26, %v2350
  %v2352 = vadd.f32 %v2346, %v2351
  %v2353 = vadd.f32 %v2329, %v2352
  %v2354 = vmul.f32 %v2130, %v250
  %v2355 = vmul.f32 %v2144, %v255
  %v2356 = vadd.f32 %v2354, %v2355
  %v2357 = vmul.f32 %v2158, %v261
  %v2358 = vadd.f32 %v2356, %v2357
  %v2359 = vmul.f32 %v2172, %v267
  %v2360 = vadd.f32 %v2358, %v2359
  %v2361 = vld [vmem:[%s1] sm:$0x1f]
  %v2362 = vadd.f32 %v2186, %v2360
  %v2363 = vlaneseq
  %v2364 = vshrl.u32 %v2363, 7
  %v2365 = vsub.s32 0, %v2364
  %v2366 = vrot.slane %v2362, %v2365
  %v2367 = vmul.f32 %v23, %v2366
  %v2368 = vlaneseq
  %v2369 = vshrl.u32 %v2368, 7
  %v2370 = vsub.s32 1, %v2369
  %v2371 = vrot.slane %v2362, %v2370
  %v2372 = vmul.f32 %v24, %v2371
  %v2373 = vadd.f32 %v2367, %v2372
  %v2374 = vlaneseq
  %v2375 = vshrl.u32 %v2374, 7
  %v2376 = vsub.s32 2, %v2375
  %v2377 = vrot.slane %v2362, %v2376
  %v2378 = vmul.f32 %v25, %v2377
  %v2379 = vadd.f32 %v2373, %v2378
  %v2380 = vlaneseq
  %v2381 = vshrl.u32 %v2380, 7
  %v2382 = vsub.s32 3, %v2381
  %v2383 = vrot.slane %v2362, %v2382
  %v2384 = vmul.f32 %v26, %v2383
  %v2385 = vadd.f32 %v2379, %v2384
  %v2386 = vadd.f32 %v2361, %v2385
  %v2388 = vrot.slane %v2249, 4
  %v2391 = vrot.slane %v2275, 3
  %v2394 = vrot.slane %v2301, 2
  %v2397 = vrot.slane %v2327, 1
  %v2399 = vsel %vm37, %v2388, %v2391
  %v2400 = vsel %vm39, %v2399, %v2394
  %v2401 = vsel %vm41, %v2400, %v2397
  %v2402 = vrcp.pop %v2353
  %v2403 = vlaneseq
  %v2404 = vshrl.u32 %v2403, 7
  %v2405 = vsub.s32 4, %v2404
  %v2406 = vrot.slane %v2402, %v2405
  %v2407 = vmul.f32 %v2401, %v2406
  %v2408 = vsub.f32 0.0, %v2407
  %v2409 = vmul.f32 %v2386, %v2402
  %v2410 = vsub.f32 0.0, %v2409
  %v2411 = vsel %vm380, %v2408, %v2410
  %2412 = vst [vmem:[#allocation2] sm:$0x1f] %v2411
  %v2413 = vld [vmem:[%s4] sm:$0xf]
  %2414 = vst [vmem:[%s5] sm:$0xf] %v2413
  %v2415 = vld [vmem:[%s4] sm:$0xf]
  %v2416 = vld [vmem:[#allocation2] sm:$0x1f]
  %v2417 = vmul.f32 %v2416, %v2415
  %v2418 = vsel %vm380, %v2417, 0.0
  %v2419 = vrot.slane %v2418, 4
  %v2420 = vadd.f32 %v2418, %v2419
  %v2421 = vrot.slane %v2420, 2
  %v2422 = vadd.f32 %v2420, %v2421
  %v2423 = vrot.slane %v2422, 1
  %v2424 = vadd.f32 %v2422, %v2423
  %v2425 = vadd.f32 %v2424, %v2416
  %v2426 = vsel %vm380, %v2415, %v2425
  %v2427 = vld [vmem:[%s0] sm:$0x1f]
  %v2428 = vlaneseq
  %v2429 = vshrl.u32 %v2428, 7
  %v2430 = vsub.s32 0, %v2429
  %v2431 = vrot.slane %v2426, %v2430
  %v2432 = vmul.f32 %v2427, %v2431
  %v2433 = vld [vmem:[%s2250] sm:$0x1f]
  %v2434 = vlaneseq
  %v2435 = vshrl.u32 %v2434, 7
  %v2436 = vsub.s32 1, %v2435
  %v2437 = vrot.slane %v2426, %v2436
  %v2438 = vmul.f32 %v2433, %v2437
  %v2439 = vadd.f32 %v2432, %v2438
  %v2440 = vld [vmem:[%s2276] sm:$0x1f]
  %v2441 = vlaneseq
  %v2442 = vshrl.u32 %v2441, 7
  %v2443 = vsub.s32 2, %v2442
  %v2444 = vrot.slane %v2426, %v2443
  %v2445 = vmul.f32 %v2440, %v2444
  %v2446 = vadd.f32 %v2439, %v2445
  %v2447 = vld [vmem:[%s2302] sm:$0x1f]
  %v2448 = vlaneseq
  %v2449 = vshrl.u32 %v2448, 7
  %v2450 = vsub.s32 3, %v2449
  %v2451 = vrot.slane %v2426, %v2450
  %v2452 = vmul.f32 %v2447, %v2451
  %v2453 = vadd.f32 %v2446, %v2452
  %v2454 = vld [vmem:[%s2328] sm:$0x1f]
  %v2455 = vlaneseq
  %v2456 = vshrl.u32 %v2455, 7
  %v2457 = vsub.s32 4, %v2456
  %v2458 = vrot.slane %v2426, %v2457
  %v2459 = vmul.f32 %v2454, %v2458
  %v2460 = vadd.f32 %v2453, %v2459
  %v2461 = vmul.f32 %v2426, %v2460
  %vm2462 = vcmask 1044480
  %v2463 = vsel %vm2462, %v2461, 0.0
  %v2464 = vrot.slane %v2463, 4
  %v2465 = vadd.f32 %v2463, %v2464
  %v2466 = vrot.slane %v2465, 2
  %v2467 = vadd.f32 %v2465, %v2466
  %v2468 = vrot.slane %v2467, 1
  %v2469 = vadd.f32 %v2467, %v2468
  %v2470 = vld [vmem:[%s1] sm:$0x1f]
  %v2471 = vmul.f32 %v2470, %v2426
  %v2472 = vsel %vm2462, %v2471, 0.0
  %v2473 = vrot.slane %v2472, 4
  %v2474 = vadd.f32 %v2472, %v2473
  %v2475 = vrot.slane %v2474, 2
  %v2476 = vadd.f32 %v2474, %v2475
  %v2477 = vrot.slane %v2476, 1
  %v2478 = vadd.f32 %v2476, %v2477
  %v2479 = vmul.f32 %v2469, 0.5
  %v2480 = vadd.f32 %v2479, 0.0
  %v2481 = vadd.f32 %v2480, %v2478
  %v2482 = vmul.f32 %v42, %v2431
  %v2483 = vadd.f32 %v27, %v2482
  %v2484 = vmul.f32 %v52, %v2437
  %v2485 = vadd.f32 %v2483, %v2484
  %v2486 = vmul.f32 %v61, %v2444
  %v2487 = vadd.f32 %v2485, %v2486
  %v2488 = vmul.f32 %v70, %v2451
  %v2489 = vadd.f32 %v2487, %v2488
  %v2490 = vmul.f32 %v81, %v2458
  %v2491 = vadd.f32 %v2489, %v2490
  %2492 = vst [vmem:[%s6 - $0x4] sm:$0x10] %v2425
  %s2493 = scalar_lea.vmem %s5, 4
  %2494 = vst [vmem:[%s2493] sm:$0xf] %v2491
  %v2495 = vld [vmem:[%s2188] sm:$0x1f]
  %v2496 = vmul.f32 %v2495, %v2491
  %v2497 = vsel %vm380, %v2496, 0.0
  %v2498 = vrot.slane %v2497, 4
  %v2499 = vadd.f32 %v2497, %v2498
  %v2500 = vrot.slane %v2499, 2
  %v2501 = vadd.f32 %v2499, %v2500
  %v2502 = vrot.slane %v2501, 1
  %v2503 = vadd.f32 %v2501, %v2502
  %v2504 = vadd.f32 %v2503, %v2495
  %v2505 = vsel %vm380, %v2491, %v2504
  %v2506 = vld [vmem:[%s1924] sm:$0x1f]
  %v2507 = vlaneseq
  %v2508 = vshrl.u32 %v2507, 7
  %v2509 = vsub.s32 0, %v2508
  %v2510 = vrot.slane %v2505, %v2509
  %v2511 = vmul.f32 %v2506, %v2510
  %v2512 = vld [vmem:[%s1950] sm:$0x1f]
  %v2513 = vlaneseq
  %v2514 = vshrl.u32 %v2513, 7
  %v2515 = vsub.s32 1, %v2514
  %v2516 = vrot.slane %v2505, %v2515
  %v2517 = vmul.f32 %v2512, %v2516
  %v2518 = vadd.f32 %v2511, %v2517
  %v2519 = vld [vmem:[%s1976] sm:$0x1f]
  %v2520 = vlaneseq
  %v2521 = vshrl.u32 %v2520, 7
  %v2522 = vsub.s32 2, %v2521
  %v2523 = vrot.slane %v2505, %v2522
  %v2524 = vmul.f32 %v2519, %v2523
  %v2525 = vadd.f32 %v2518, %v2524
  %v2526 = vld [vmem:[%s2002] sm:$0x1f]
  %v2527 = vlaneseq
  %v2528 = vshrl.u32 %v2527, 7
  %v2529 = vsub.s32 3, %v2528
  %v2530 = vrot.slane %v2505, %v2529
  %v2531 = vmul.f32 %v2526, %v2530
  %v2532 = vadd.f32 %v2525, %v2531
  %v2533 = vld [vmem:[%s2028] sm:$0x1f]
  %v2534 = vlaneseq
  %v2535 = vshrl.u32 %v2534, 7
  %v2536 = vsub.s32 4, %v2535
  %v2537 = vrot.slane %v2505, %v2536
  %v2538 = vmul.f32 %v2533, %v2537
  %v2539 = vadd.f32 %v2532, %v2538
  %v2540 = vmul.f32 %v2505, %v2539
  %v2541 = vsel %vm2462, %v2540, 0.0
  %v2542 = vrot.slane %v2541, 4
  %v2543 = vadd.f32 %v2541, %v2542
  %v2544 = vrot.slane %v2543, 2
  %v2545 = vadd.f32 %v2543, %v2544
  %v2546 = vrot.slane %v2545, 1
  %v2547 = vadd.f32 %v2545, %v2546
  %v2548 = vld [vmem:[%s2061] sm:$0x1f]
  %v2549 = vmul.f32 %v2548, %v2505
  %v2550 = vsel %vm2462, %v2549, 0.0
  %v2551 = vrot.slane %v2550, 4
  %v2552 = vadd.f32 %v2550, %v2551
  %v2553 = vrot.slane %v2552, 2
  %v2554 = vadd.f32 %v2552, %v2553
  %v2555 = vrot.slane %v2554, 1
  %v2556 = vadd.f32 %v2554, %v2555
  %v2557 = vmul.f32 %v2547, 0.5
  %v2558 = vadd.f32 %v2481, %v2557
  %v2559 = vadd.f32 %v2558, %v2556
  %v2560 = vmul.f32 %v42, %v2510
  %v2561 = vadd.f32 %v27, %v2560
  %v2562 = vmul.f32 %v52, %v2516
  %v2563 = vadd.f32 %v2561, %v2562
  %v2564 = vmul.f32 %v61, %v2523
  %v2565 = vadd.f32 %v2563, %v2564
  %v2566 = vmul.f32 %v70, %v2530
  %v2567 = vadd.f32 %v2565, %v2566
  %v2568 = vmul.f32 %v81, %v2537
  %v2569 = vadd.f32 %v2567, %v2568
  %s2570 = scalar_lea.vmem %s6, 1
  %2571 = vst [vmem:[%s2570 - $0x4] sm:$0x10] %v2504
  %s2572 = scalar_lea.vmem %s5, 8
  %2573 = vst [vmem:[%s2572] sm:$0xf] %v2569
  %v2574 = vld [vmem:[%s1887] sm:$0x1f]
  %v2575 = vmul.f32 %v2574, %v2569
  %v2576 = vsel %vm380, %v2575, 0.0
  %v2577 = vrot.slane %v2576, 4
  %v2578 = vadd.f32 %v2576, %v2577
  %v2579 = vrot.slane %v2578, 2
  %v2580 = vadd.f32 %v2578, %v2579
  %v2581 = vrot.slane %v2580, 1
  %v2582 = vadd.f32 %v2580, %v2581
  %v2583 = vadd.f32 %v2582, %v2574
  %v2584 = vsel %vm380, %v2569, %v2583
  %v2585 = vld [vmem:[%s1623] sm:$0x1f]
  %v2586 = vlaneseq
  %v2587 = vshrl.u32 %v2586, 7
  %v2588 = vsub.s32 0, %v2587
  %v2589 = vrot.slane %v2584, %v2588
  %v2590 = vmul.f32 %v2585, %v2589
  %v2591 = vld [vmem:[%s1649] sm:$0x1f]
  %v2592 = vlaneseq
  %v2593 = vshrl.u32 %v2592, 7
  %v2594 = vsub.s32 1, %v2593
  %v2595 = vrot.slane %v2584, %v2594
  %v2596 = vmul.f32 %v2591, %v2595
  %v2597 = vadd.f32 %v2590, %v2596
  %v2598 = vld [vmem:[%s1675] sm:$0x1f]
  %v2599 = vlaneseq
  %v2600 = vshrl.u32 %v2599, 7
  %v2601 = vsub.s32 2, %v2600
  %v2602 = vrot.slane %v2584, %v2601
  %v2603 = vmul.f32 %v2598, %v2602
  %v2604 = vadd.f32 %v2597, %v2603
  %v2605 = vld [vmem:[%s1701] sm:$0x1f]
  %v2606 = vlaneseq
  %v2607 = vshrl.u32 %v2606, 7
  %v2608 = vsub.s32 3, %v2607
  %v2609 = vrot.slane %v2584, %v2608
  %v2610 = vmul.f32 %v2605, %v2609
  %v2611 = vadd.f32 %v2604, %v2610
  %v2612 = vld [vmem:[%s1727] sm:$0x1f]
  %v2613 = vlaneseq
  %v2614 = vshrl.u32 %v2613, 7
  %v2615 = vsub.s32 4, %v2614
  %v2616 = vrot.slane %v2584, %v2615
  %v2617 = vmul.f32 %v2612, %v2616
  %v2618 = vadd.f32 %v2611, %v2617
  %v2619 = vmul.f32 %v2584, %v2618
  %v2620 = vsel %vm2462, %v2619, 0.0
  %v2621 = vrot.slane %v2620, 4
  %v2622 = vadd.f32 %v2620, %v2621
  %v2623 = vrot.slane %v2622, 2
  %v2624 = vadd.f32 %v2622, %v2623
  %v2625 = vrot.slane %v2624, 1
  %v2626 = vadd.f32 %v2624, %v2625
  %v2627 = vld [vmem:[%s1760] sm:$0x1f]
  %v2628 = vmul.f32 %v2627, %v2584
  %v2629 = vsel %vm2462, %v2628, 0.0
  %v2630 = vrot.slane %v2629, 4
  %v2631 = vadd.f32 %v2629, %v2630
  %v2632 = vrot.slane %v2631, 2
  %v2633 = vadd.f32 %v2631, %v2632
  %v2634 = vrot.slane %v2633, 1
  %v2635 = vadd.f32 %v2633, %v2634
  %v2636 = vmul.f32 %v2626, 0.5
  %v2637 = vadd.f32 %v2559, %v2636
  %v2638 = vadd.f32 %v2637, %v2635
  %v2639 = vmul.f32 %v42, %v2589
  %v2640 = vadd.f32 %v27, %v2639
  %v2641 = vmul.f32 %v52, %v2595
  %v2642 = vadd.f32 %v2640, %v2641
  %v2643 = vmul.f32 %v61, %v2602
  %v2644 = vadd.f32 %v2642, %v2643
  %v2645 = vmul.f32 %v70, %v2609
  %v2646 = vadd.f32 %v2644, %v2645
  %v2647 = vmul.f32 %v81, %v2616
  %v2648 = vadd.f32 %v2646, %v2647
  %s2649 = scalar_lea.vmem %s6, 2
  %2650 = vst [vmem:[%s2649 - $0x4] sm:$0x10] %v2583
  %s2651 = scalar_lea.vmem %s5, 12
  %2652 = vst [vmem:[%s2651] sm:$0xf] %v2648
  %v2653 = vld [vmem:[%s1586] sm:$0x1f]
  %v2654 = vmul.f32 %v2653, %v2648
  %v2655 = vsel %vm380, %v2654, 0.0
  %v2656 = vrot.slane %v2655, 4
  %v2657 = vadd.f32 %v2655, %v2656
  %v2658 = vrot.slane %v2657, 2
  %v2659 = vadd.f32 %v2657, %v2658
  %v2660 = vrot.slane %v2659, 1
  %v2661 = vadd.f32 %v2659, %v2660
  %v2662 = vadd.f32 %v2661, %v2653
  %v2663 = vsel %vm380, %v2648, %v2662
  %v2664 = vld [vmem:[%s1322] sm:$0x1f]
  %v2665 = vlaneseq
  %v2666 = vshrl.u32 %v2665, 7
  %v2667 = vsub.s32 0, %v2666
  %v2668 = vrot.slane %v2663, %v2667
  %v2669 = vmul.f32 %v2664, %v2668
  %v2670 = vld [vmem:[%s1348] sm:$0x1f]
  %v2671 = vlaneseq
  %v2672 = vshrl.u32 %v2671, 7
  %v2673 = vsub.s32 1, %v2672
  %v2674 = vrot.slane %v2663, %v2673
  %v2675 = vmul.f32 %v2670, %v2674
  %v2676 = vadd.f32 %v2669, %v2675
  %v2677 = vld [vmem:[%s1374] sm:$0x1f]
  %v2678 = vlaneseq
  %v2679 = vshrl.u32 %v2678, 7
  %v2680 = vsub.s32 2, %v2679
  %v2681 = vrot.slane %v2663, %v2680
  %v2682 = vmul.f32 %v2677, %v2681
  %v2683 = vadd.f32 %v2676, %v2682
  %v2684 = vld [vmem:[%s1400] sm:$0x1f]
  %v2685 = vlaneseq
  %v2686 = vshrl.u32 %v2685, 7
  %v2687 = vsub.s32 3, %v2686
  %v2688 = vrot.slane %v2663, %v2687
  %v2689 = vmul.f32 %v2684, %v2688
  %v2690 = vadd.f32 %v2683, %v2689
  %v2691 = vld [vmem:[%s1426] sm:$0x1f]
  %v2692 = vlaneseq
  %v2693 = vshrl.u32 %v2692, 7
  %v2694 = vsub.s32 4, %v2693
  %v2695 = vrot.slane %v2663, %v2694
  %v2696 = vmul.f32 %v2691, %v2695
  %v2697 = vadd.f32 %v2690, %v2696
  %v2698 = vmul.f32 %v2663, %v2697
  %v2699 = vsel %vm2462, %v2698, 0.0
  %v2700 = vrot.slane %v2699, 4
  %v2701 = vadd.f32 %v2699, %v2700
  %v2702 = vrot.slane %v2701, 2
  %v2703 = vadd.f32 %v2701, %v2702
  %v2704 = vrot.slane %v2703, 1
  %v2705 = vadd.f32 %v2703, %v2704
  %v2706 = vld [vmem:[%s1459] sm:$0x1f]
  %v2707 = vmul.f32 %v2706, %v2663
  %v2708 = vsel %vm2462, %v2707, 0.0
  %v2709 = vrot.slane %v2708, 4
  %v2710 = vadd.f32 %v2708, %v2709
  %v2711 = vrot.slane %v2710, 2
  %v2712 = vadd.f32 %v2710, %v2711
  %v2713 = vrot.slane %v2712, 1
  %v2714 = vadd.f32 %v2712, %v2713
  %v2715 = vmul.f32 %v2705, 0.5
  %v2716 = vadd.f32 %v2638, %v2715
  %v2717 = vadd.f32 %v2716, %v2714
  %v2718 = vmul.f32 %v42, %v2668
  %v2719 = vadd.f32 %v27, %v2718
  %v2720 = vmul.f32 %v52, %v2674
  %v2721 = vadd.f32 %v2719, %v2720
  %v2722 = vmul.f32 %v61, %v2681
  %v2723 = vadd.f32 %v2721, %v2722
  %v2724 = vmul.f32 %v70, %v2688
  %v2725 = vadd.f32 %v2723, %v2724
  %v2726 = vmul.f32 %v81, %v2695
  %v2727 = vadd.f32 %v2725, %v2726
  %s2728 = scalar_lea.vmem %s6, 3
  %2729 = vst [vmem:[%s2728 - $0x4] sm:$0x10] %v2662
  %s2730 = scalar_lea.vmem %s5, 16
  %2731 = vst [vmem:[%s2730] sm:$0xf] %v2727
  %v2732 = vld [vmem:[%s1285] sm:$0x1f]
  %v2733 = vmul.f32 %v2732, %v2727
  %v2734 = vsel %vm380, %v2733, 0.0
  %v2735 = vrot.slane %v2734, 4
  %v2736 = vadd.f32 %v2734, %v2735
  %v2737 = vrot.slane %v2736, 2
  %v2738 = vadd.f32 %v2736, %v2737
  %v2739 = vrot.slane %v2738, 1
  %v2740 = vadd.f32 %v2738, %v2739
  %v2741 = vadd.f32 %v2740, %v2732
  %v2742 = vsel %vm380, %v2727, %v2741
  %v2743 = vld [vmem:[%s1021] sm:$0x1f]
  %v2744 = vlaneseq
  %v2745 = vshrl.u32 %v2744, 7
  %v2746 = vsub.s32 0, %v2745
  %v2747 = vrot.slane %v2742, %v2746
  %v2748 = vmul.f32 %v2743, %v2747
  %v2749 = vld [vmem:[%s1047] sm:$0x1f]
  %v2750 = vlaneseq
  %v2751 = vshrl.u32 %v2750, 7
  %v2752 = vsub.s32 1, %v2751
  %v2753 = vrot.slane %v2742, %v2752
  %v2754 = vmul.f32 %v2749, %v2753
  %v2755 = vadd.f32 %v2748, %v2754
  %v2756 = vld [vmem:[%s1073] sm:$0x1f]
  %v2757 = vlaneseq
  %v2758 = vshrl.u32 %v2757, 7
  %v2759 = vsub.s32 2, %v2758
  %v2760 = vrot.slane %v2742, %v2759
  %v2761 = vmul.f32 %v2756, %v2760
  %v2762 = vadd.f32 %v2755, %v2761
  %v2763 = vld [vmem:[%s1099] sm:$0x1f]
  %v2764 = vlaneseq
  %v2765 = vshrl.u32 %v2764, 7
  %v2766 = vsub.s32 3, %v2765
  %v2767 = vrot.slane %v2742, %v2766
  %v2768 = vmul.f32 %v2763, %v2767
  %v2769 = vadd.f32 %v2762, %v2768
  %v2770 = vld [vmem:[%s1125] sm:$0x1f]
  %v2771 = vlaneseq
  %v2772 = vshrl.u32 %v2771, 7
  %v2773 = vsub.s32 4, %v2772
  %v2774 = vrot.slane %v2742, %v2773
  %v2775 = vmul.f32 %v2770, %v2774
  %v2776 = vadd.f32 %v2769, %v2775
  %v2777 = vmul.f32 %v2742, %v2776
  %v2778 = vsel %vm2462, %v2777, 0.0
  %v2779 = vrot.slane %v2778, 4
  %v2780 = vadd.f32 %v2778, %v2779
  %v2781 = vrot.slane %v2780, 2
  %v2782 = vadd.f32 %v2780, %v2781
  %v2783 = vrot.slane %v2782, 1
  %v2784 = vadd.f32 %v2782, %v2783
  %v2785 = vld [vmem:[%s1158] sm:$0x1f]
  %v2786 = vmul.f32 %v2785, %v2742
  %v2787 = vsel %vm2462, %v2786, 0.0
  %v2788 = vrot.slane %v2787, 4
  %v2789 = vadd.f32 %v2787, %v2788
  %v2790 = vrot.slane %v2789, 2
  %v2791 = vadd.f32 %v2789, %v2790
  %v2792 = vrot.slane %v2791, 1
  %v2793 = vadd.f32 %v2791, %v2792
  %v2794 = vmul.f32 %v2784, 0.5
  %v2795 = vadd.f32 %v2717, %v2794
  %v2796 = vadd.f32 %v2795, %v2793
  %v2797 = vmul.f32 %v42, %v2747
  %v2798 = vadd.f32 %v27, %v2797
  %v2799 = vmul.f32 %v52, %v2753
  %v2800 = vadd.f32 %v2798, %v2799
  %v2801 = vmul.f32 %v61, %v2760
  %v2802 = vadd.f32 %v2800, %v2801
  %v2803 = vmul.f32 %v70, %v2767
  %v2804 = vadd.f32 %v2802, %v2803
  %v2805 = vmul.f32 %v81, %v2774
  %v2806 = vadd.f32 %v2804, %v2805
  %s2807 = scalar_lea.vmem %s6, 4
  %2808 = vst [vmem:[%s2807 - $0x4] sm:$0x10] %v2741
  %s2809 = scalar_lea.vmem %s5, 20
  %2810 = vst [vmem:[%s2809] sm:$0xf] %v2806
  %v2811 = vld [vmem:[%s984] sm:$0x1f]
  %v2812 = vmul.f32 %v2811, %v2806
  %v2813 = vsel %vm380, %v2812, 0.0
  %v2814 = vrot.slane %v2813, 4
  %v2815 = vadd.f32 %v2813, %v2814
  %v2816 = vrot.slane %v2815, 2
  %v2817 = vadd.f32 %v2815, %v2816
  %v2818 = vrot.slane %v2817, 1
  %v2819 = vadd.f32 %v2817, %v2818
  %v2820 = vadd.f32 %v2819, %v2811
  %v2821 = vsel %vm380, %v2806, %v2820
  %v2822 = vld [vmem:[%s720] sm:$0x1f]
  %v2823 = vlaneseq
  %v2824 = vshrl.u32 %v2823, 7
  %v2825 = vsub.s32 0, %v2824
  %v2826 = vrot.slane %v2821, %v2825
  %v2827 = vmul.f32 %v2822, %v2826
  %v2828 = vld [vmem:[%s746] sm:$0x1f]
  %v2829 = vlaneseq
  %v2830 = vshrl.u32 %v2829, 7
  %v2831 = vsub.s32 1, %v2830
  %v2832 = vrot.slane %v2821, %v2831
  %v2833 = vmul.f32 %v2828, %v2832
  %v2834 = vadd.f32 %v2827, %v2833
  %v2835 = vld [vmem:[%s772] sm:$0x1f]
  %v2836 = vlaneseq
  %v2837 = vshrl.u32 %v2836, 7
  %v2838 = vsub.s32 2, %v2837
  %v2839 = vrot.slane %v2821, %v2838
  %v2840 = vmul.f32 %v2835, %v2839
  %v2841 = vadd.f32 %v2834, %v2840
  %v2842 = vld [vmem:[%s798] sm:$0x1f]
  %v2843 = vlaneseq
  %v2844 = vshrl.u32 %v2843, 7
  %v2845 = vsub.s32 3, %v2844
  %v2846 = vrot.slane %v2821, %v2845
  %v2847 = vmul.f32 %v2842, %v2846
  %v2848 = vadd.f32 %v2841, %v2847
  %v2849 = vld [vmem:[%s824] sm:$0x1f]
  %v2850 = vlaneseq
  %v2851 = vshrl.u32 %v2850, 7
  %v2852 = vsub.s32 4, %v2851
  %v2853 = vrot.slane %v2821, %v2852
  %v2854 = vmul.f32 %v2849, %v2853
  %v2855 = vadd.f32 %v2848, %v2854
  %v2856 = vmul.f32 %v2821, %v2855
  %v2857 = vsel %vm2462, %v2856, 0.0
  %v2858 = vrot.slane %v2857, 4
  %v2859 = vadd.f32 %v2857, %v2858
  %v2860 = vrot.slane %v2859, 2
  %v2861 = vadd.f32 %v2859, %v2860
  %v2862 = vrot.slane %v2861, 1
  %v2863 = vadd.f32 %v2861, %v2862
  %v2864 = vld [vmem:[%s857] sm:$0x1f]
  %v2865 = vmul.f32 %v2864, %v2821
  %v2866 = vsel %vm2462, %v2865, 0.0
  %v2867 = vrot.slane %v2866, 4
  %v2868 = vadd.f32 %v2866, %v2867
  %v2869 = vrot.slane %v2868, 2
  %v2870 = vadd.f32 %v2868, %v2869
  %v2871 = vrot.slane %v2870, 1
  %v2872 = vadd.f32 %v2870, %v2871
  %v2873 = vmul.f32 %v2863, 0.5
  %v2874 = vadd.f32 %v2796, %v2873
  %v2875 = vadd.f32 %v2874, %v2872
  %v2876 = vmul.f32 %v42, %v2826
  %v2877 = vadd.f32 %v27, %v2876
  %v2878 = vmul.f32 %v52, %v2832
  %v2879 = vadd.f32 %v2877, %v2878
  %v2880 = vmul.f32 %v61, %v2839
  %v2881 = vadd.f32 %v2879, %v2880
  %v2882 = vmul.f32 %v70, %v2846
  %v2883 = vadd.f32 %v2881, %v2882
  %v2884 = vmul.f32 %v81, %v2853
  %v2885 = vadd.f32 %v2883, %v2884
  %s2886 = scalar_lea.vmem %s6, 5
  %2887 = vst [vmem:[%s2886 - $0x4] sm:$0x10] %v2820
  %s2888 = scalar_lea.vmem %s5, 24
  %2889 = vst [vmem:[%s2888] sm:$0xf] %v2885
  %v2890 = vld [vmem:[%s683] sm:$0x1f]
  %v2891 = vmul.f32 %v2890, %v2885
  %v2892 = vsel %vm380, %v2891, 0.0
  %v2893 = vrot.slane %v2892, 4
  %v2894 = vadd.f32 %v2892, %v2893
  %v2895 = vrot.slane %v2894, 2
  %v2896 = vadd.f32 %v2894, %v2895
  %v2897 = vrot.slane %v2896, 1
  %v2898 = vadd.f32 %v2896, %v2897
  %v2899 = vadd.f32 %v2898, %v2890
  %v2900 = vsel %vm380, %v2885, %v2899
  %v2901 = vld [vmem:[%s419] sm:$0x1f]
  %v2902 = vlaneseq
  %v2903 = vshrl.u32 %v2902, 7
  %v2904 = vsub.s32 0, %v2903
  %v2905 = vrot.slane %v2900, %v2904
  %v2906 = vmul.f32 %v2901, %v2905
  %v2907 = vld [vmem:[%s445] sm:$0x1f]
  %v2908 = vlaneseq
  %v2909 = vshrl.u32 %v2908, 7
  %v2910 = vsub.s32 1, %v2909
  %v2911 = vrot.slane %v2900, %v2910
  %v2912 = vmul.f32 %v2907, %v2911
  %v2913 = vadd.f32 %v2906, %v2912
  %v2914 = vld [vmem:[%s471] sm:$0x1f]
  %v2915 = vlaneseq
  %v2916 = vshrl.u32 %v2915, 7
  %v2917 = vsub.s32 2, %v2916
  %v2918 = vrot.slane %v2900, %v2917
  %v2919 = vmul.f32 %v2914, %v2918
  %v2920 = vadd.f32 %v2913, %v2919
  %v2921 = vld [vmem:[%s497] sm:$0x1f]
  %v2922 = vlaneseq
  %v2923 = vshrl.u32 %v2922, 7
  %v2924 = vsub.s32 3, %v2923
  %v2925 = vrot.slane %v2900, %v2924
  %v2926 = vmul.f32 %v2921, %v2925
  %v2927 = vadd.f32 %v2920, %v2926
  %v2928 = vld [vmem:[%s523] sm:$0x1f]
  %v2929 = vlaneseq
  %v2930 = vshrl.u32 %v2929, 7
  %v2931 = vsub.s32 4, %v2930
  %v2932 = vrot.slane %v2900, %v2931
  %v2933 = vmul.f32 %v2928, %v2932
  %v2934 = vadd.f32 %v2927, %v2933
  %v2935 = vmul.f32 %v2900, %v2934
  %v2936 = vsel %vm2462, %v2935, 0.0
  %v2937 = vrot.slane %v2936, 4
  %v2938 = vadd.f32 %v2936, %v2937
  %v2939 = vrot.slane %v2938, 2
  %v2940 = vadd.f32 %v2938, %v2939
  %v2941 = vrot.slane %v2940, 1
  %v2942 = vadd.f32 %v2940, %v2941
  %v2943 = vld [vmem:[%s556] sm:$0x1f]
  %v2944 = vmul.f32 %v2943, %v2900
  %v2945 = vsel %vm2462, %v2944, 0.0
  %v2946 = vrot.slane %v2945, 4
  %v2947 = vadd.f32 %v2945, %v2946
  %v2948 = vrot.slane %v2947, 2
  %v2949 = vadd.f32 %v2947, %v2948
  %v2950 = vrot.slane %v2949, 1
  %v2951 = vadd.f32 %v2949, %v2950
  %v2952 = vmul.f32 %v2942, 0.5
  %v2953 = vadd.f32 %v2875, %v2952
  %v2954 = vadd.f32 %v2953, %v2951
  %v2955 = vmul.f32 %v42, %v2905
  %v2956 = vadd.f32 %v27, %v2955
  %v2957 = vmul.f32 %v52, %v2911
  %v2958 = vadd.f32 %v2956, %v2957
  %v2959 = vmul.f32 %v61, %v2918
  %v2960 = vadd.f32 %v2958, %v2959
  %v2961 = vmul.f32 %v70, %v2925
  %v2962 = vadd.f32 %v2960, %v2961
  %v2963 = vmul.f32 %v81, %v2932
  %v2964 = vadd.f32 %v2962, %v2963
  %s2965 = scalar_lea.vmem %s6, 6
  %2966 = vst [vmem:[%s2965 - $0x4] sm:$0x10] %v2899
  %s2967 = scalar_lea.vmem %s5, 28
  %2968 = vst [vmem:[%s2967] sm:$0xf] %v2964
  %v2969 = vld [vmem:[%s382] sm:$0x1f]
  %v2970 = vmul.f32 %v2969, %v2964
  %v2971 = vsel %vm380, %v2970, 0.0
  %v2972 = vrot.slane %v2971, 4
  %v2973 = vadd.f32 %v2971, %v2972
  %v2974 = vrot.slane %v2973, 2
  %v2975 = vadd.f32 %v2973, %v2974
  %v2976 = vrot.slane %v2975, 1
  %v2977 = vadd.f32 %v2975, %v2976
  %v2978 = vadd.f32 %v2977, %v2969
  %v2979 = vsel %vm380, %v2964, %v2978
  %v2980 = vld [vmem:[%s197] sm:$0x1f]
  %v2981 = vlaneseq
  %v2982 = vshrl.u32 %v2981, 7
  %v2983 = vsub.s32 0, %v2982
  %v2984 = vrot.slane %v2979, %v2983
  %v2985 = vmul.f32 %v2980, %v2984
  %v2986 = vld [vmem:[%s207] sm:$0x1f]
  %v2987 = vlaneseq
  %v2988 = vshrl.u32 %v2987, 7
  %v2989 = vsub.s32 1, %v2988
  %v2990 = vrot.slane %v2979, %v2989
  %v2991 = vmul.f32 %v2986, %v2990
  %v2992 = vadd.f32 %v2985, %v2991
  %v2993 = vld [vmem:[%s217] sm:$0x1f]
  %v2994 = vlaneseq
  %v2995 = vshrl.u32 %v2994, 7
  %v2996 = vsub.s32 2, %v2995
  %v2997 = vrot.slane %v2979, %v2996
  %v2998 = vmul.f32 %v2993, %v2997
  %v2999 = vadd.f32 %v2992, %v2998
  %v3000 = vld [vmem:[%s227] sm:$0x1f]
  %v3001 = vlaneseq
  %v3002 = vshrl.u32 %v3001, 7
  %v3003 = vsub.s32 3, %v3002
  %v3004 = vrot.slane %v2979, %v3003
  %v3005 = vmul.f32 %v3000, %v3004
  %v3006 = vadd.f32 %v2999, %v3005
  %v3007 = vld [vmem:[%s237] sm:$0x1f]
  %v3008 = vlaneseq
  %v3009 = vshrl.u32 %v3008, 7
  %v3010 = vsub.s32 4, %v3009
  %v3011 = vrot.slane %v2979, %v3010
  %v3012 = vmul.f32 %v3007, %v3011
  %v3013 = vadd.f32 %v3006, %v3012
  %v3014 = vmul.f32 %v2979, %v3013
  %v3015 = vsel %vm2462, %v3014, 0.0
  %v3016 = vrot.slane %v3015, 4
  %v3017 = vadd.f32 %v3015, %v3016
  %v3018 = vrot.slane %v3017, 2
  %v3019 = vadd.f32 %v3017, %v3018
  %v3020 = vrot.slane %v3019, 1
  %v3021 = vadd.f32 %v3019, %v3020
  %v3022 = vld [vmem:[%s270] sm:$0x1f]
  %v3023 = vmul.f32 %v3022, %v2979
  %v3024 = vsel %vm2462, %v3023, 0.0
  %v3025 = vrot.slane %v3024, 4
  %v3026 = vadd.f32 %v3024, %v3025
  %v3027 = vrot.slane %v3026, 2
  %v3028 = vadd.f32 %v3026, %v3027
  %v3029 = vrot.slane %v3028, 1
  %v3030 = vadd.f32 %v3028, %v3029
  %v3031 = vmul.f32 %v3021, 0.5
  %v3032 = vadd.f32 %v2954, %v3031
  %v3033 = vadd.f32 %v3032, %v3030
  %v3034 = vmul.f32 %v42, %v2984
  %v3035 = vadd.f32 %v27, %v3034
  %v3036 = vmul.f32 %v52, %v2990
  %v3037 = vadd.f32 %v3035, %v3036
  %v3038 = vmul.f32 %v61, %v2997
  %v3039 = vadd.f32 %v3037, %v3038
  %v3040 = vmul.f32 %v70, %v3004
  %v3041 = vadd.f32 %v3039, %v3040
  %v3042 = vmul.f32 %v81, %v3011
  %v3043 = vadd.f32 %v3041, %v3042
  %s3044 = scalar_lea.vmem %s6, 7
  %3045 = vst [vmem:[%s3044 - $0x4] sm:$0x10] %v2978
  %s3046 = scalar_lea.vmem %s5, 32
  %3047 = vst [vmem:[%s3046] sm:$0xf] %v3043
  %3048 = vst [vmem:[%s7] sm:$0x1] %v3033
  // Predicated region
  $region22: #{_run_lqr.1} parent=0 // pred_check
    _
  $region23: #{_run_lqr.1} parent=0 // pred_check_branch
    %3050 = sbr.rel (0) target = $region25
  $region24: #{_run_lqr.1} parent=0 // pred_region
    _
  $region25: #{_run_lqr.1} parent=0 // pred_fallthru
    _
  // Predicated region
  $region26: #{_run_lqr.1} parent=0 // pred_check
    _
  $region27: #{_run_lqr.1} parent=0 // pred_check_branch
    %3052 = sbr.rel (0) target = $region29
  $region28: #{_run_lqr.1} parent=0 // pred_region
    _
  $region29: #{_run_lqr.1} parent=0 // pred_fallthru
    _
  // Predicated region
  $region30: #{_run_lqr.1} parent=0 // pred_check
    _
  $region31: #{_run_lqr.1} parent=0 // pred_check_branch
    %3054 = sbr.rel (0) target = $region33
  $region32: #{_run_lqr.1} parent=0 // pred_region
    _
  $region33: #{_run_lqr.1} parent=0 // pred_fallthru
    _
  // Predicated region
  $region34: #{_run_lqr.1} parent=0 // pred_check
    _
  $region35: #{_run_lqr.1} parent=0 // pred_check_branch
    %3056 = sbr.rel (0) target = $region37
  $region36: #{_run_lqr.1} parent=0 // pred_region
    _
  $region37: #{_run_lqr.1} parent=0 // pred_fallthru
    _
  // Predicated region
  $region38: #{_run_lqr.1} parent=0 // pred_check
    _
  $region39: #{_run_lqr.1} parent=0 // pred_check_branch
    %3058 = sbr.rel (0) target = $region41
  $region40: #{_run_lqr.1} parent=0 // pred_region
    _
  $region41: #{_run_lqr.1} parent=0 // pred_fallthru
    _
  // Predicated region
  $region42: #{_run_lqr.1} parent=0 // pred_check
    _
  $region43: #{_run_lqr.1} parent=0 // pred_check_branch
    %3060 = sbr.rel (0) target = $region45
  $region44: #{_run_lqr.1} parent=0 // pred_region
    _
  $region45: #{_run_lqr.1} parent=0 // pred_fallthru
    _

</llo_original>
